<compile_context>
chip_gen: v7x
topology: tpu7x:2x2x1
jax: 0.10.0
libtpu: 0.0.40
codegen_flags: <defaults>
</compile_context>

<pallas_src>
import math

import jax
import jax.numpy as jnp
from jax.experimental import pallas as pl
from jax.experimental.pallas import tpu as pltpu

LANE = 128
_EPS = 1e-5
_VMEM_LIMIT = 32 * 1024 * 1024  # explicit scoped-VMEM cap; safe on v5e/v6e/v7x


def _round_up(x, m):
    return (x + m - 1) // m * m


def _pick_row_tile(h, w, target_rows=1024):
    """Largest divisor `th` of h with th*w pixel-rows per tile <= target_rows."""
    best = 1
    for d in range(1, h + 1):
        if h % d == 0 and d * w <= target_rows:
            best = d
    return best


def _pick_m_tile(m, target=1024):
    """Row tile for flat [M, C] matmuls: divisor of m, multiple of 8, <= target."""
    if m <= target:
        return m
    for d in range(target, 7, -1):
        if m % d == 0 and d % 8 == 0:
            return d
    return m


# ---------------------------------------------------------------------------
# ConvTranspose2d(kernel=2, stride=2): one [Ci] x [Ci, 4*Co] matmul per input pixel.
# ---------------------------------------------------------------------------
def _deconv_matmul_kernel(x_ref, w_ref, b_ref, o_ref):
    o_ref[...] = (
        jnp.dot(x_ref[...], w_ref[...], preferred_element_type=jnp.float32)
        + b_ref[...]
    )


def conv_transpose2x2_forward(x_nhwc, w_iohw, bias):
    """x: [N,H,W,Ci] f32, w: [Ci,Co,2,2] (PyTorch layout), bias: [Co] -> [N,2H,2W,Co] f32."""
    n, h, w, ci = x_nhwc.shape
    co = w_iohw.shape[1]
    m = n * h * w
    ci_p = _round_up(ci, LANE)
    kd = co * 4
    kd_p = _round_up(kd, LANE)

    x_flat = jnp.pad(x_nhwc.reshape(m, ci), ((0, 0), (0, ci_p - ci)))
    x_flat = x_flat.astype(jnp.bfloat16)
    w_mat = jnp.pad(w_iohw.reshape(ci, kd), ((0, ci_p - ci), (0, kd_p - kd)))
    w_mat = w_mat.astype(jnp.bfloat16)
    b_row = jnp.pad(jnp.repeat(bias, 4), (0, kd_p - kd)).reshape(1, kd_p)
    b_row = b_row.astype(jnp.float32)

    tm = _pick_m_tile(m)
    out = pl.pallas_call(
        _deconv_matmul_kernel,
        out_shape=jax.ShapeDtypeStruct((m, kd_p), jnp.float32),
        grid=(m // tm,),
        in_specs=[
            pl.BlockSpec((tm, ci_p), lambda i: (i, 0)),
            pl.BlockSpec((ci_p, kd_p), lambda i: (0, 0)),   # resident weights
            pl.BlockSpec((1, kd_p), lambda i: (0, 0)),      # resident bias
        ],
        out_specs=pl.BlockSpec((tm, kd_p), lambda i: (i, 0)),
        compiler_params=pltpu.CompilerParams(
            dimension_semantics=("parallel",),
            vmem_limit_bytes=_VMEM_LIMIT,
        ),
        cost_estimate=pl.CostEstimate(
            flops=2 * m * ci_p * kd_p,
            transcendentals=0,
            bytes_accessed=(m * ci_p + ci_p * kd_p) * 2 + (m + 1) * kd_p * 4,
        ),
    )(x_flat, w_mat, b_row)

    out = out[:, :kd].reshape(n, h, w, co, 2, 2)
    out = out.transpose(0, 1, 4, 2, 5, 3).reshape(n, 2 * h, 2 * w, co)
    return out


# ---------------------------------------------------------------------------
# LUConv: Conv2d(3x3, pad=1) -> BatchNorm2d (training batch stats) -> ReLU.
# ---------------------------------------------------------------------------
def _conv3x3_stats_kernel(xr_ref, w_ref, y_ref, st_ref):
    # xr_ref: (TH, 3, W+2, Ci_p) bf16   TH output rows + their 3 halo'd input rows
    # w_ref : (9, Ci_p, Co_p)    bf16   resident across the whole grid
    # y_ref : (TH, W, Co_p)      f32    conv output (pre-BN)
    # st_ref: (2, Co_p)          f32    per-tile [sum; sum-of-squares] partials
    th, _, wp2, ci_p = xr_ref.shape
    w_out = wp2 - 2
    co_p = w_ref.shape[-1]
    m_rows = th * w_out

    acc = jnp.zeros((m_rows, co_p), jnp.float32)
    for kh in range(3):
        row = xr_ref[:, kh, :, :]                               # (TH, W+2, Ci_p)
        for kw in range(3):
            lhs = row[:, kw:kw + w_out, :].reshape(m_rows, ci_p)
            acc += jnp.dot(lhs, w_ref[kh * 3 + kw],
                           preferred_element_type=jnp.float32)

    y_ref[...] = acc.reshape(th, w_out, co_p)
    st_ref[...] = jnp.concatenate(
        [jnp.sum(acc, axis=0, keepdims=True),
         jnp.sum(acc * acc, axis=0, keepdims=True)], axis=0)


def _bn_relu_kernel(y_ref, scale_ref, shift_ref, o_ref):
    o_ref[...] = jnp.maximum(y_ref[...] * scale_ref[...] + shift_ref[...], 0.0)


def luconv_forward(x_nhwc, conv_w, gamma, beta, *, eps=_EPS, target_rows=1024):
    """x: [N,H,W,Ci] f32, conv_w: [Co,Ci,3,3], gamma/beta: [Co] -> [N,H,W,Co] f32.

    The Conv2d bias is intentionally dropped: training-mode BatchNorm subtracts the
    per-channel batch mean, which cancels a per-channel constant exactly.
    """
    n, h, w, ci = x_nhwc.shape
    co = conv_w.shape[0]
    ci_p = _round_up(ci, LANE)
    co_p = _round_up(co, LANE)
    m = n * h * w

    th = _pick_row_tile(h, w, target_rows)
    nt = h // th
    wp2 = w + 2

    # Spatial +1 halo and channel padding, then stack the 3 row-shifted views so a
    # th-row tile carries its own halo rows (BlockSpec windows stay disjoint).
    # This is a 3x activation copy vs. the 9x im2col of the previous version.
    xp = jnp.pad(x_nhwc, ((0, 0), (1, 1), (1, 1), (0, ci_p - ci)))
    xr = jnp.stack([xp[:, kh:kh + h] for kh in range(3)], axis=2)   # [N,H,3,W+2,Ci_p]
    xr = xr.astype(jnp.bfloat16)

    # [Co,Ci,3,3] -> [kh,kw,Ci,Co] -> pad -> [9,Ci_p,Co_p]; bf16 inputs for the MXU.
    w_k = jnp.pad(conv_w.transpose(2, 3, 1, 0),
                  ((0, 0), (0, 0), (0, ci_p - ci), (0, co_p - co)))
    w_k = w_k.reshape(9, ci_p, co_p).astype(jnp.bfloat16)

    conv_flops = 2 * m * (9 * ci_p) * co_p
    conv_bytes = xr.size * 2 + w_k.size * 2 + m * co_p * 4 + n * nt * 2 * co_p * 4

    # Pass 1: conv (9 shift-and-accumulate matmuls) + per-tile BN partial sums.
    y, stats = pl.pallas_call(
        _conv3x3_stats_kernel,
        out_shape=(
            jax.ShapeDtypeStruct((n, h, w, co_p), jnp.float32),
            jax.ShapeDtypeStruct((n, nt, 2, co_p), jnp.float32),
        ),
        grid=(n, nt),
        in_specs=[
            pl.BlockSpec((None, th, 3, wp2, ci_p), lambda i, t: (i, t, 0, 0, 0)),
            pl.BlockSpec((9, ci_p, co_p), lambda i, t: (0, 0, 0)),
        ],
        out_specs=(
            pl.BlockSpec((None, th, w, co_p), lambda i, t: (i, t, 0, 0)),
            pl.BlockSpec((None, None, 2, co_p), lambda i, t: (i, t, 0, 0)),
        ),
        compiler_params=pltpu.CompilerParams(
            dimension_semantics=("parallel", "parallel"),
            vmem_limit_bytes=_VMEM_LIMIT,
        ),
        cost_estimate=pl.CostEstimate(
            flops=conv_flops, transcendentals=0, bytes_accessed=conv_bytes),
    )(xr, w_k)

    # Fold BN into one per-channel scale/shift (tiny XLA glue on [2, Co_p] data).
    tot = jnp.sum(stats, axis=(0, 1))                    # (2, Co_p)
    mean = tot[0] / m
    var = jnp.maximum(tot[1] / m - mean * mean, 0.0)     # guard tiny negative
    g = jnp.pad(gamma, (0, co_p - co))
    b = jnp.pad(beta, (0, co_p - co))
    scale = g * jax.lax.rsqrt(var + eps)
    shift = b - mean * scale
    scale = scale.reshape(1, 1, co_p).astype(jnp.float32)
    shift = shift.reshape(1, 1, co_p).astype(jnp.float32)

    # Pass 2: out = max(y*scale + shift, 0)  (one FMA + max per element, lane-dense).
    out = pl.pallas_call(
        _bn_relu_kernel,
        out_shape=jax.ShapeDtypeStruct((n, h, w, co_p), jnp.float32),
        grid=(n, nt),
        in_specs=[
            pl.BlockSpec((None, th, w, co_p), lambda i, t: (i, t, 0, 0)),
            pl.BlockSpec((1, 1, co_p), lambda i, t: (0, 0, 0)),
            pl.BlockSpec((1, 1, co_p), lambda i, t: (0, 0, 0)),
        ],
        out_specs=pl.BlockSpec((None, th, w, co_p), lambda i, t: (i, t, 0, 0)),
        compiler_params=pltpu.CompilerParams(
            dimension_semantics=("parallel", "parallel"),
            vmem_limit_bytes=_VMEM_LIMIT,
        ),
        cost_estimate=pl.CostEstimate(
            flops=2 * m * co_p, transcendentals=0,
            bytes_accessed=2 * m * co_p * 4),
    )(y, scale, shift)

    return out[..., :co]


# ---------------------------------------------------------------------------
# UpTransition.forward
# ---------------------------------------------------------------------------
def up_transition_forward(x_nchw, skip_nchw, params):
    """up_conv -> concat(channel) -> LUConv -> LUConv.  NCHW in / NCHW out."""
    x = jnp.transpose(x_nchw, (0, 2, 3, 1))
    skip = jnp.transpose(skip_nchw, (0, 2, 3, 1))
    up = conv_transpose2x2_forward(x, params["up_w"], params["up_b"])
    cat = jnp.concatenate([up, skip], axis=-1)          # torch.cat((up, skip), 1)
    h1 = luconv_forward(cat, params["w1"], params["g1"], params["b1"])
    h2 = luconv_forward(h1, params["w2"], params["g2"], params["b2"])
    return jnp.transpose(h2, (0, 3, 1, 2))


# ---------------------------------------------------------------------------
# Pure-JAX reference (module semantics; conv biases included to verify cancellation).
# ---------------------------------------------------------------------------
def _bf16_round(a):
    # The Pallas kernels feed the MXU bf16 inputs with f32 accumulation; the reference
    # applies the same input rounding so the comparison isolates structural errors.
    return a.astype(jnp.bfloat16).astype(jnp.float32)


def _luconv_ref(x_nchw, w, bias, gamma, beta, eps=_EPS):
    y = jax.lax.conv_general_dilated(
        _bf16_round(x_nchw), _bf16_round(w), window_strides=(1, 1),
        padding=((1, 1), (1, 1)), dimension_numbers=("NCHW", "OIHW", "NCHW"),
        precision=jax.lax.Precision.HIGHEST)
    y = y + bias[None, :, None, None]          # cancelled exactly by BN below
    mean = jnp.mean(y, axis=(0, 2, 3), keepdims=True)
    var = jnp.mean((y - mean) ** 2, axis=(0, 2, 3), keepdims=True)
    y = (y - mean) * jax.lax.rsqrt(var + eps)
    y = y * gamma[None, :, None, None] + beta[None, :, None, None]
    return jnp.maximum(y, 0.0)


def _up_transition_ref(x_nchw, skip_nchw, params, conv_biases):
    n, _, h, w = x_nchw.shape
    co = params["up_w"].shape[1]
    up = jnp.einsum("nchw,coij->nohiwj", _bf16_round(x_nchw),
                    _bf16_round(params["up_w"]),
                    precision=jax.lax.Precision.HIGHEST)
    up = up.reshape(n, co, 2 * h, 2 * w) + params["up_b"][None, :, None, None]
    cat = jnp.concatenate([up, skip_nchw], axis=1)
    h1 = _luconv_ref(cat, params["w1"], conv_biases[0], params["g1"], params["b1"])
    h2 = _luconv_ref(h1, params["w2"], conv_biases[1], params["g2"], params["b2"])
    return h2


if __name__ == "__main__":
    key = jax.random.PRNGKey(0)
    ks = jax.random.split(key, 12)

    # UpTransition(inChans=8, outChans=8, depth=0):
    #   up_conv: ConvTranspose2d(8, 8, k=2, s=2);  x: [2, 8, 8, 8] -> [2, 8, 16, 16]
    #   skip_x: [2, 4, 16, 16]  (so concat width == inChans + outChans//2 == 12)
    #   ops: LUConv(12, 128) -> LUConv(128, 256)   (num=128 is hard-coded in the module)
    n, in_ch, out_ch, depth = 2, 8, 8, 0
    h = w = 8
    skip_ch = in_ch + out_ch // 2 - out_ch
    c_cat = out_ch + skip_ch
    c1 = 128 * 2 ** depth
    c2 = c1 * 2

    x = jax.random.normal(ks[0], (n, in_ch, h, w), dtype=jnp.float32)
    skip = jax.random.normal(ks[1], (n, skip_ch, 2 * h, 2 * w), dtype=jnp.float32)

    def init_w(k, shape, fan_in):
        return jax.random.normal(k, shape, dtype=jnp.float32) / math.sqrt(fan_in)

    params = {
        "up_w": init_w(ks[2], (in_ch, out_ch, 2, 2), in_ch * 4),
        "up_b": 0.1 * jax.random.normal(ks[3], (out_ch,), dtype=jnp.float32),
        "w1": init_w(ks[4], (c1, c_cat, 3, 3), c_cat * 9),
        "g1": 1.0 + 0.1 * jax.random.normal(ks[5], (c1,), dtype=jnp.float32),
        "b1": 0.1 * jax.random.normal(ks[6], (c1,), dtype=jnp.float32),
        "w2": init_w(ks[7], (c2, c1, 3, 3), c1 * 9),
        "g2": 1.0 + 0.1 * jax.random.normal(ks[8], (c2,), dtype=jnp.float32),
        "b2": 0.1 * jax.random.normal(ks[9], (c2,), dtype=jnp.float32),
    }
    # Conv2d biases exist in the PyTorch module but are cancelled exactly by the
    # following training-mode BatchNorm; the Pallas path drops them, the reference
    # keeps them so the comparison verifies the cancellation.
    conv_biases = (0.1 * jax.random.normal(ks[10], (c1,), dtype=jnp.float32),
                   0.1 * jax.random.normal(ks[11], (c2,), dtype=jnp.float32))

    out = jax.jit(up_transition_forward)(x, skip, params)
    out = jax.block_until_ready(out)

    ref = _up_transition_ref(x, skip, params, conv_biases)
    assert out.shape == (n, c2, 2 * h, 2 * w), out.shape
    assert jnp.allclose(out, ref, atol=1e-2, rtol=1e-2), (
        float(jnp.max(jnp.abs(out - ref))))
    print("KERNEL_OK")
</pallas_src>

<mosaic_0001>
module attributes {stable_mosaic.version = 11 : i64} {
  func.func @_deconv_matmul_kernel(%arg0: i32, %arg1: memref<128x128xbf16, #tpu.memory_space<vmem>>, %arg2: memref<128x128xbf16, #tpu.memory_space<vmem>>, %arg3: memref<1x128xf32, #tpu.memory_space<vmem>>, %arg4: memref<128x128xf32, #tpu.memory_space<vmem>>) attributes {dimension_semantics = [#tpu.dimension_semantics<parallel>], iteration_bounds = array<i64: 1>, scalar_prefetch = 0 : i64, scratch_operands = 0 : i64, tpu.core_type = #tpu.core_type<tc>, window_params = [{transform_indices = @transform_0, window_bounds = array<i64: 128, 128>}, {pipeline_mode = #tpu.pipeline_mode<synchronous>, transform_indices = @transform_1, window_bounds = array<i64: 128, 128>}, {pipeline_mode = #tpu.pipeline_mode<synchronous>, transform_indices = @transform_2, window_bounds = array<i64: 1, 128>}, {transform_indices = @transform_3, window_bounds = array<i64: 128, 128>}]} {
    %c0 = arith.constant 0 : index
    %c0_0 = arith.constant 0 : index
    %0 = vector.load %arg1[%c0, %c0_0] : memref<128x128xbf16, #tpu.memory_space<vmem>>, vector<128x128xbf16>
    %c0_1 = arith.constant 0 : index
    %c0_2 = arith.constant 0 : index
    %1 = vector.load %arg2[%c0_1, %c0_2] : memref<128x128xbf16, #tpu.memory_space<vmem>>, vector<128x128xbf16>
    %cst = arith.constant dense<0.000000e+00> : vector<128x128xf32>
    %2 = tpu.matmul %0, %1, %cst {dimension_numbers = #tpu.dot_dimension_numbers<[1], [0], [0], [1], [0, 0, 1, 1], [], []>} : vector<128x128xbf16>, vector<128x128xbf16>, vector<128x128xf32> -> vector<128x128xf32>
    %c0_3 = arith.constant 0 : index
    %c0_4 = arith.constant 0 : index
    %3 = vector.load %arg3[%c0_3, %c0_4] : memref<1x128xf32, #tpu.memory_space<vmem>>, vector<1x128xf32>
    %4 = vector.broadcast %3 : vector<1x128xf32> to vector<128x128xf32>
    %5 = arith.addf %2, %4 : vector<128x128xf32>
    %c0_5 = arith.constant 0 : index
    %c0_6 = arith.constant 0 : index
    %6 = vector.load %arg4[%c0_5, %c0_6] : memref<128x128xf32, #tpu.memory_space<vmem>>, vector<128x128xf32>
    tpu.vector_store %arg4[%c0_5, %c0_6], %5 {strides = array<i32>} : memref<128x128xf32, #tpu.memory_space<vmem>>, vector<128x128xf32>,
    return
  }
  func.func @transform_0(%arg0: i32) -> (i32, i32) {
    %c0_i32 = arith.constant 0 : i32
    %c0_i32_0 = arith.constant 0 : i32
    return %arg0, %c0_i32 : i32, i32
  }
  func.func @transform_1(%arg0: i32) -> (i32, i32) {
    %c0_i32 = arith.constant 0 : i32
    %c0_i32_0 = arith.constant 0 : i32
    %c0_i32_1 = arith.constant 0 : i32
    return %c0_i32, %c0_i32_0 : i32, i32
  }
  func.func @transform_2(%arg0: i32) -> (i32, i32) {
    %c0_i32 = arith.constant 0 : i32
    %c0_i32_0 = arith.constant 0 : i32
    %c0_i32_1 = arith.constant 0 : i32
    return %c0_i32, %c0_i32_0 : i32, i32
  }
  func.func @transform_3(%arg0: i32) -> (i32, i32) {
    %c0_i32 = arith.constant 0 : i32
    %c0_i32_0 = arith.constant 0 : i32
    return %arg0, %c0_i32 : i32, i32
  }
}

module attributes {stable_mosaic.version = 11 : i64} {
  func.func @_conv3x3_stats_kernel(%arg0: i32, %arg1: i32, %arg2: memref<1x16x3x18x128xbf16, #tpu.memory_space<vmem>>, %arg3: memref<9x128x128xbf16, #tpu.memory_space<vmem>>, %arg4: memref<1x16x16x128xf32, #tpu.memory_space<vmem>>, %arg5: memref<1x1x2x128xf32, #tpu.memory_space<vmem>>) attributes {dimension_semantics = [#tpu.dimension_semantics<parallel>, #tpu.dimension_semantics<parallel>], iteration_bounds = array<i64: 2, 1>, scalar_prefetch = 0 : i64, scratch_operands = 0 : i64, tpu.core_type = #tpu.core_type<tc>, window_params = [{transform_indices = @transform_0, window_bounds = array<i64: 1, 16, 3, 18, 128>}, {pipeline_mode = #tpu.pipeline_mode<synchronous>, transform_indices = @transform_1, window_bounds = array<i64: 9, 128, 128>}, {transform_indices = @transform_2, window_bounds = array<i64: 1, 16, 16, 128>}, {transform_indices = @transform_3, window_bounds = array<i64: 1, 1, 2, 128>}]} {
    %cst = arith.constant 0.000000e+00 : f32
    %0 = vector.broadcast %cst : f32 to vector<256x128xf32>
    %c0 = arith.constant 0 : index
    %c0_0 = arith.constant 0 : index
    %c0_1 = arith.constant 0 : index
    %c0_2 = arith.constant 0 : index
    %c0_3 = arith.constant 0 : index
    %1 = vector.load %arg2[%c0, %c0_0, %c0_1, %c0_2, %c0_3] : memref<1x16x3x18x128xbf16, #tpu.memory_space<vmem>>, vector<1x16x1x18x128xbf16>
    %2 = vector.shape_cast %1 : vector<1x16x1x18x128xbf16> to vector<16x18x128xbf16>
    %3 = vector.extract_strided_slice %2 {offsets = [0, 0, 0], sizes = [16, 16, 128], strides = [1, 1, 1]} : vector<16x18x128xbf16> to vector<16x16x128xbf16>
    %4 = vector.shape_cast %3 : vector<16x16x128xbf16> to vector<256x128xbf16>
    %c0_4 = arith.constant 0 : index
    %c0_5 = arith.constant 0 : index
    %c0_6 = arith.constant 0 : index
    %5 = vector.load %arg3[%c0_4, %c0_5, %c0_6] : memref<9x128x128xbf16, #tpu.memory_space<vmem>>, vector<1x128x128xbf16>
    %6 = vector.shape_cast %5 : vector<1x128x128xbf16> to vector<128x128xbf16>
    %cst_7 = arith.constant dense<0.000000e+00> : vector<256x128xf32>
    %7 = tpu.matmul %4, %6, %cst_7 {dimension_numbers = #tpu.dot_dimension_numbers<[1], [0], [0], [1], [0, 0, 1, 1], [], []>} : vector<256x128xbf16>, vector<128x128xbf16>, vector<256x128xf32> -> vector<256x128xf32>
    %8 = arith.addf %0, %7 : vector<256x128xf32>
    %9 = vector.extract_strided_slice %2 {offsets = [0, 1, 0], sizes = [16, 16, 128], strides = [1, 1, 1]} : vector<16x18x128xbf16> to vector<16x16x128xbf16>
    %10 = vector.shape_cast %9 : vector<16x16x128xbf16> to vector<256x128xbf16>
    %c1 = arith.constant 1 : index
    %c0_8 = arith.constant 0 : index
    %c0_9 = arith.constant 0 : index
    %11 = vector.load %arg3[%c1, %c0_8, %c0_9] : memref<9x128x128xbf16, #tpu.memory_space<vmem>>, vector<1x128x128xbf16>
    %12 = vector.shape_cast %11 : vector<1x128x128xbf16> to vector<128x128xbf16>
    %cst_10 = arith.constant dense<0.000000e+00> : vector<256x128xf32>
    %13 = tpu.matmul %10, %12, %cst_10 {dimension_numbers = #tpu.dot_dimension_numbers<[1], [0], [0], [1], [0, 0, 1, 1], [], []>} : vector<256x128xbf16>, vector<128x128xbf16>, vector<256x128xf32> -> vector<256x128xf32>
    %14 = arith.addf %8, %13 : vector<256x128xf32>
    %15 = vector.extract_strided_slice %2 {offsets = [0, 2, 0], sizes = [16, 16, 128], strides = [1, 1, 1]} : vector<16x18x128xbf16> to vector<16x16x128xbf16>
    %16 = vector.shape_cast %15 : vector<16x16x128xbf16> to vector<256x128xbf16>
    %c2 = arith.constant 2 : index
    %c0_11 = arith.constant 0 : index
    %c0_12 = arith.constant 0 : index
    %17 = vector.load %arg3[%c2, %c0_11, %c0_12] : memref<9x128x128xbf16, #tpu.memory_space<vmem>>, vector<1x128x128xbf16>
    %18 = vector.shape_cast %17 : vector<1x128x128xbf16> to vector<128x128xbf16>
    %cst_13 = arith.constant dense<0.000000e+00> : vector<256x128xf32>
    %19 = tpu.matmul %16, %18, %cst_13 {dimension_numbers = #tpu.dot_dimension_numbers<[1], [0], [0], [1], [0, 0, 1, 1], [], []>} : vector<256x128xbf16>, vector<128x128xbf16>, vector<256x128xf32> -> vector<256x128xf32>
    %20 = arith.addf %14, %19 : vector<256x128xf32>
    %c0_14 = arith.constant 0 : index
    %c0_15 = arith.constant 0 : index
    %c1_16 = arith.constant 1 : index
    %c0_17 = arith.constant 0 : index
    %c0_18 = arith.constant 0 : index
    %21 = vector.load %arg2[%c0_14, %c0_15, %c1_16, %c0_17, %c0_18] : memref<1x16x3x18x128xbf16, #tpu.memory_space<vmem>>, vector<1x16x1x18x128xbf16>
    %22 = vector.shape_cast %21 : vector<1x16x1x18x128xbf16> to vector<16x18x128xbf16>
    %23 = vector.extract_strided_slice %22 {offsets = [0, 0, 0], sizes = [16, 16, 128], strides = [1, 1, 1]} : vector<16x18x128xbf16> to vector<16x16x128xbf16>
    %24 = vector.shape_cast %23 : vector<16x16x128xbf16> to vector<256x128xbf16>
    %c3 = arith.constant 3 : index
    %c0_19 = arith.constant 0 : index
    %c0_20 = arith.constant 0 : index
    %25 = vector.load %arg3[%c3, %c0_19, %c0_20] : memref<9x128x128xbf16, #tpu.memory_space<vmem>>, vector<1x128x128xbf16>
    %26 = vector.shape_cast %25 : vector<1x128x128xbf16> to vector<128x128xbf16>
    %cst_21 = arith.constant dense<0.000000e+00> : vector<256x128xf32>
    %27 = tpu.matmul %24, %26, %cst_21 {dimension_numbers = #tpu.dot_dimension_numbers<[1], [0], [0], [1], [0, 0, 1, 1], [], []>} : vector<256x128xbf16>, vector<128x128xbf16>, vector<256x128xf32> -> vector<256x128xf32>
    %28 = arith.addf %20, %27 : vector<256x128xf32>
    %29 = vector.extract_strided_slice %22 {offsets = [0, 1, 0], sizes = [16, 16, 128], strides = [1, 1, 1]} : vector<16x18x128xbf16> to vector<16x16x128xbf16>
    %30 = vector.shape_cast %29 : vector<16x16x128xbf16> to vector<256x128xbf16>
    %c4 = arith.constant 4 : index
    %c0_22 = arith.constant 0 : index
    %c0_23 = arith.constant 0 : index
    %31 = vector.load %arg3[%c4, %c0_22, %c0_23] : memref<9x128x128xbf16, #tpu.memory_space<vmem>>, vector<1x128x128xbf16>
    %32 = vector.shape_cast %31 : vector<1x128x128xbf16> to vector<128x128xbf16>
    %cst_24 = arith.constant dense<0.000000e+00> : vector<256x128xf32>
    %33 = tpu.matmul %30, %32, %cst_24 {dimension_numbers = #tpu.dot_dimension_numbers<[1], [0], [0], [1], [0, 0, 1, 1], [], []>} : vector<256x128xbf16>, vector<128x128xbf16>, vector<256x128xf32> -> vector<256x128xf32>
    %34 = arith.addf %28, %33 : vector<256x128xf32>
    %35 = vector.extract_strided_slice %22 {offsets = [0, 2, 0], sizes = [16, 16, 128], strides = [1, 1, 1]} : vector<16x18x128xbf16> to vector<16x16x128xbf16>
    %36 = vector.shape_cast %35 : vector<16x16x128xbf16> to vector<256x128xbf16>
    %c5 = arith.constant 5 : index
    %c0_25 = arith.constant 0 : index
    %c0_26 = arith.constant 0 : index
    %37 = vector.load %arg3[%c5, %c0_25, %c0_26] : memref<9x128x128xbf16, #tpu.memory_space<vmem>>, vector<1x128x128xbf16>
    %38 = vector.shape_cast %37 : vector<1x128x128xbf16> to vector<128x128xbf16>
    %cst_27 = arith.constant dense<0.000000e+00> : vector<256x128xf32>
    %39 = tpu.matmul %36, %38, %cst_27 {dimension_numbers = #tpu.dot_dimension_numbers<[1], [0], [0], [1], [0, 0, 1, 1], [], []>} : vector<256x128xbf16>, vector<128x128xbf16>, vector<256x128xf32> -> vector<256x128xf32>
    %40 = arith.addf %34, %39 : vector<256x128xf32>
    %c0_28 = arith.constant 0 : index
    %c0_29 = arith.constant 0 : index
    %c2_30 = arith.constant 2 : index
    %c0_31 = arith.constant 0 : index
    %c0_32 = arith.constant 0 : index
    %41 = vector.load %arg2[%c0_28, %c0_29, %c2_30, %c0_31, %c0_32] : memref<1x16x3x18x128xbf16, #tpu.memory_space<vmem>>, vector<1x16x1x18x128xbf16>
    %42 = vector.shape_cast %41 : vector<1x16x1x18x128xbf16> to vector<16x18x128xbf16>
    %43 = vector.extract_strided_slice %42 {offsets = [0, 0, 0], sizes = [16, 16, 128], strides = [1, 1, 1]} : vector<16x18x128xbf16> to vector<16x16x128xbf16>
    %44 = vector.shape_cast %43 : vector<16x16x128xbf16> to vector<256x128xbf16>
    %c6 = arith.constant 6 : index
    %c0_33 = arith.constant 0 : index
    %c0_34 = arith.constant 0 : index
    %45 = vector.load %arg3[%c6, %c0_33, %c0_34] : memref<9x128x128xbf16, #tpu.memory_space<vmem>>, vector<1x128x128xbf16>
    %46 = vector.shape_cast %45 : vector<1x128x128xbf16> to vector<128x128xbf16>
    %cst_35 = arith.constant dense<0.000000e+00> : vector<256x128xf32>
    %47 = tpu.matmul %44, %46, %cst_35 {dimension_numbers = #tpu.dot_dimension_numbers<[1], [0], [0], [1], [0, 0, 1, 1], [], []>} : vector<256x128xbf16>, vector<128x128xbf16>, vector<256x128xf32> -> vector<256x128xf32>
    %48 = arith.addf %40, %47 : vector<256x128xf32>
    %49 = vector.extract_strided_slice %42 {offsets = [0, 1, 0], sizes = [16, 16, 128], strides = [1, 1, 1]} : vector<16x18x128xbf16> to vector<16x16x128xbf16>
    %50 = vector.shape_cast %49 : vector<16x16x128xbf16> to vector<256x128xbf16>
    %c7 = arith.constant 7 : index
    %c0_36 = arith.constant 0 : index
    %c0_37 = arith.constant 0 : index
    %51 = vector.load %arg3[%c7, %c0_36, %c0_37] : memref<9x128x128xbf16, #tpu.memory_space<vmem>>, vector<1x128x128xbf16>
    %52 = vector.shape_cast %51 : vector<1x128x128xbf16> to vector<128x128xbf16>
    %cst_38 = arith.constant dense<0.000000e+00> : vector<256x128xf32>
    %53 = tpu.matmul %50, %52, %cst_38 {dimension_numbers = #tpu.dot_dimension_numbers<[1], [0], [0], [1], [0, 0, 1, 1], [], []>} : vector<256x128xbf16>, vector<128x128xbf16>, vector<256x128xf32> -> vector<256x128xf32>
    %54 = arith.addf %48, %53 : vector<256x128xf32>
    %55 = vector.extract_strided_slice %42 {offsets = [0, 2, 0], sizes = [16, 16, 128], strides = [1, 1, 1]} : vector<16x18x128xbf16> to vector<16x16x128xbf16>
    %56 = vector.shape_cast %55 : vector<16x16x128xbf16> to vector<256x128xbf16>
    %c8 = arith.constant 8 : index
    %c0_39 = arith.constant 0 : index
    %c0_40 = arith.constant 0 : index
    %57 = vector.load %arg3[%c8, %c0_39, %c0_40] : memref<9x128x128xbf16, #tpu.memory_space<vmem>>, vector<1x128x128xbf16>
    %58 = vector.shape_cast %57 : vector<1x128x128xbf16> to vector<128x128xbf16>
    %cst_41 = arith.constant dense<0.000000e+00> : vector<256x128xf32>
    %59 = tpu.matmul %56, %58, %cst_41 {dimension_numbers = #tpu.dot_dimension_numbers<[1], [0], [0], [1], [0, 0, 1, 1], [], []>} : vector<256x128xbf16>, vector<128x128xbf16>, vector<256x128xf32> -> vector<256x128xf32>
    %60 = arith.addf %54, %59 : vector<256x128xf32>
    %61 = vector.shape_cast %60 : vector<256x128xf32> to vector<16x16x128xf32>
    %c0_42 = arith.constant 0 : index
    %c0_43 = arith.constant 0 : index
    %c0_44 = arith.constant 0 : index
    %c0_45 = arith.constant 0 : index
    %62 = vector.load %arg4[%c0_42, %c0_43, %c0_44, %c0_45] : memref<1x16x16x128xf32, #tpu.memory_space<vmem>>, vector<1x16x16x128xf32>
    %63 = vector.shape_cast %62 : vector<1x16x16x128xf32> to vector<16x16x128xf32>
    %64 = vector.shape_cast %61 : vector<16x16x128xf32> to vector<1x16x16x128xf32>
    tpu.vector_store %arg4[%c0_42, %c0_43, %c0_44, %c0_45], %64 {strides = array<i32>} : memref<1x16x16x128xf32, #tpu.memory_space<vmem>>, vector<1x16x16x128xf32>,
    %cst_46 = arith.constant dense<0.000000e+00> : vector<128xf32>
    %65 = vector.multi_reduction <add>, %60, %cst_46 [0] : vector<256x128xf32> to vector<128xf32>
    %66 = vector.shape_cast %65 : vector<128xf32> to vector<1x128xf32>
    %67 = arith.mulf %60, %60 : vector<256x128xf32>
    %cst_47 = arith.constant dense<0.000000e+00> : vector<128xf32>
    %68 = vector.multi_reduction <add>, %67, %cst_47 [0] : vector<256x128xf32> to vector<128xf32>
    %69 = vector.shape_cast %68 : vector<128xf32> to vector<1x128xf32>
    %70 = tpu.concatenate %66, %69 in 0 : vector<1x128xf32>, vector<1x128xf32> -> vector<2x128xf32>
    %c0_48 = arith.constant 0 : index
    %c0_49 = arith.constant 0 : index
    %c0_50 = arith.constant 0 : index
    %c0_51 = arith.constant 0 : index
    %71 = vector.load %arg5[%c0_48, %c0_49, %c0_50, %c0_51] : memref<1x1x2x128xf32, #tpu.memory_space<vmem>>, vector<1x1x2x128xf32>
    %72 = vector.shape_cast %71 : vector<1x1x2x128xf32> to vector<2x128xf32>
    %73 = vector.shape_cast %70 : vector<2x128xf32> to vector<1x1x2x128xf32>
    tpu.vector_store %arg5[%c0_48, %c0_49, %c0_50, %c0_51], %73 {strides = array<i32>} : memref<1x1x2x128xf32, #tpu.memory_space<vmem>>, vector<1x1x2x128xf32>,
    return
  }
  func.func @transform_0(%arg0: i32, %arg1: i32) -> (i32, i32, i32, i32, i32) {
    %c0_i32 = arith.constant 0 : i32
    %c0_i32_0 = arith.constant 0 : i32
    %c0_i32_1 = arith.constant 0 : i32
    %c0_i32_2 = arith.constant 0 : i32
    return %arg0, %arg1, %c0_i32, %c0_i32_0, %c0_i32_1 : i32, i32, i32, i32, i32
  }
  func.func @transform_1(%arg0: i32, %arg1: i32) -> (i32, i32, i32) {
    %c0_i32 = arith.constant 0 : i32
    %c0_i32_0 = arith.constant 0 : i32
    %c0_i32_1 = arith.constant 0 : i32
    %c0_i32_2 = arith.constant 0 : i32
    return %c0_i32, %c0_i32_0, %c0_i32_1 : i32, i32, i32
  }
  func.func @transform_2(%arg0: i32, %arg1: i32) -> (i32, i32, i32, i32) {
    %c0_i32 = arith.constant 0 : i32
    %c0_i32_0 = arith.constant 0 : i32
    %c0_i32_1 = arith.constant 0 : i32
    return %arg0, %arg1, %c0_i32, %c0_i32_0 : i32, i32, i32, i32
  }
  func.func @transform_3(%arg0: i32, %arg1: i32) -> (i32, i32, i32, i32) {
    %c0_i32 = arith.constant 0 : i32
    %c0_i32_0 = arith.constant 0 : i32
    %c0_i32_1 = arith.constant 0 : i32
    return %arg0, %arg1, %c0_i32, %c0_i32_0 : i32, i32, i32, i32
  }
}

module attributes {stable_mosaic.version = 11 : i64} {
  func.func @_bn_relu_kernel(%arg0: i32, %arg1: i32, %arg2: memref<1x16x16x128xf32, #tpu.memory_space<vmem>>, %arg3: memref<1x1x128xf32, #tpu.memory_space<vmem>>, %arg4: memref<1x1x128xf32, #tpu.memory_space<vmem>>, %arg5: memref<1x16x16x128xf32, #tpu.memory_space<vmem>>) attributes {dimension_semantics = [#tpu.dimension_semantics<parallel>, #tpu.dimension_semantics<parallel>], iteration_bounds = array<i64: 2, 1>, scalar_prefetch = 0 : i64, scratch_operands = 0 : i64, tpu.core_type = #tpu.core_type<tc>, window_params = [{transform_indices = @transform_0, window_bounds = array<i64: 1, 16, 16, 128>}, {pipeline_mode = #tpu.pipeline_mode<synchronous>, transform_indices = @transform_1, window_bounds = array<i64: 1, 1, 128>}, {pipeline_mode = #tpu.pipeline_mode<synchronous>, transform_indices = @transform_2, window_bounds = array<i64: 1, 1, 128>}, {transform_indices = @transform_3, window_bounds = array<i64: 1, 16, 16, 128>}]} {
    %c0 = arith.constant 0 : index
    %c0_0 = arith.constant 0 : index
    %c0_1 = arith.constant 0 : index
    %c0_2 = arith.constant 0 : index
    %0 = vector.load %arg2[%c0, %c0_0, %c0_1, %c0_2] : memref<1x16x16x128xf32, #tpu.memory_space<vmem>>, vector<1x16x16x128xf32>
    %1 = vector.shape_cast %0 : vector<1x16x16x128xf32> to vector<16x16x128xf32>
    %c0_3 = arith.constant 0 : index
    %c0_4 = arith.constant 0 : index
    %c0_5 = arith.constant 0 : index
    %2 = vector.load %arg3[%c0_3, %c0_4, %c0_5] : memref<1x1x128xf32, #tpu.memory_space<vmem>>, vector<1x1x128xf32>
    %3 = vector.broadcast %2 : vector<1x1x128xf32> to vector<16x16x128xf32>
    %4 = arith.mulf %1, %3 : vector<16x16x128xf32>
    %c0_6 = arith.constant 0 : index
    %c0_7 = arith.constant 0 : index
    %c0_8 = arith.constant 0 : index
    %5 = vector.load %arg4[%c0_6, %c0_7, %c0_8] : memref<1x1x128xf32, #tpu.memory_space<vmem>>, vector<1x1x128xf32>
    %6 = vector.broadcast %5 : vector<1x1x128xf32> to vector<16x16x128xf32>
    %7 = arith.addf %4, %6 : vector<16x16x128xf32>
    %cst = arith.constant 0.000000e+00 : f32
    %8 = vector.broadcast %cst : f32 to vector<16x16x128xf32>
    %9 = arith.maximumf %7, %8 : vector<16x16x128xf32>
    %c0_9 = arith.constant 0 : index
    %c0_10 = arith.constant 0 : index
    %c0_11 = arith.constant 0 : index
    %c0_12 = arith.constant 0 : index
    %10 = vector.load %arg5[%c0_9, %c0_10, %c0_11, %c0_12] : memref<1x16x16x128xf32, #tpu.memory_space<vmem>>, vector<1x16x16x128xf32>
    %11 = vector.shape_cast %10 : vector<1x16x16x128xf32> to vector<16x16x128xf32>
    %12 = vector.shape_cast %9 : vector<16x16x128xf32> to vector<1x16x16x128xf32>
    tpu.vector_store %arg5[%c0_9, %c0_10, %c0_11, %c0_12], %12 {strides = array<i32>} : memref<1x16x16x128xf32, #tpu.memory_space<vmem>>, vector<1x16x16x128xf32>,
    return
  }
  func.func @transform_0(%arg0: i32, %arg1: i32) -> (i32, i32, i32, i32) {
    %c0_i32 = arith.constant 0 : i32
    %c0_i32_0 = arith.constant 0 : i32
    %c0_i32_1 = arith.constant 0 : i32
    return %arg0, %arg1, %c0_i32, %c0_i32_0 : i32, i32, i32, i32
  }
  func.func @transform_1(%arg0: i32, %arg1: i32) -> (i32, i32, i32) {
    %c0_i32 = arith.constant 0 : i32
    %c0_i32_0 = arith.constant 0 : i32
    %c0_i32_1 = arith.constant 0 : i32
    %c0_i32_2 = arith.constant 0 : i32
    return %c0_i32, %c0_i32_0, %c0_i32_1 : i32, i32, i32
  }
  func.func @transform_2(%arg0: i32, %arg1: i32) -> (i32, i32, i32) {
    %c0_i32 = arith.constant 0 : i32
    %c0_i32_0 = arith.constant 0 : i32
    %c0_i32_1 = arith.constant 0 : i32
    %c0_i32_2 = arith.constant 0 : i32
    return %c0_i32, %c0_i32_0, %c0_i32_1 : i32, i32, i32
  }
  func.func @transform_3(%arg0: i32, %arg1: i32) -> (i32, i32, i32, i32) {
    %c0_i32 = arith.constant 0 : i32
    %c0_i32_0 = arith.constant 0 : i32
    %c0_i32_1 = arith.constant 0 : i32
    return %arg0, %arg1, %c0_i32, %c0_i32_0 : i32, i32, i32, i32
  }
}

module attributes {stable_mosaic.version = 11 : i64} {
  func.func @_conv3x3_stats_kernel(%arg0: i32, %arg1: i32, %arg2: memref<1x16x3x18x128xbf16, #tpu.memory_space<vmem>>, %arg3: memref<9x128x256xbf16, #tpu.memory_space<vmem>>, %arg4: memref<1x16x16x256xf32, #tpu.memory_space<vmem>>, %arg5: memref<1x1x2x256xf32, #tpu.memory_space<vmem>>) attributes {dimension_semantics = [#tpu.dimension_semantics<parallel>, #tpu.dimension_semantics<parallel>], iteration_bounds = array<i64: 2, 1>, scalar_prefetch = 0 : i64, scratch_operands = 0 : i64, tpu.core_type = #tpu.core_type<tc>, window_params = [{transform_indices = @transform_0, window_bounds = array<i64: 1, 16, 3, 18, 128>}, {pipeline_mode = #tpu.pipeline_mode<synchronous>, transform_indices = @transform_1, window_bounds = array<i64: 9, 128, 256>}, {transform_indices = @transform_2, window_bounds = array<i64: 1, 16, 16, 256>}, {transform_indices = @transform_3, window_bounds = array<i64: 1, 1, 2, 256>}]} {
    %cst = arith.constant 0.000000e+00 : f32
    %0 = vector.broadcast %cst : f32 to vector<256x256xf32>
    %c0 = arith.constant 0 : index
    %c0_0 = arith.constant 0 : index
    %c0_1 = arith.constant 0 : index
    %c0_2 = arith.constant 0 : index
    %c0_3 = arith.constant 0 : index
    %1 = vector.load %arg2[%c0, %c0_0, %c0_1, %c0_2, %c0_3] : memref<1x16x3x18x128xbf16, #tpu.memory_space<vmem>>, vector<1x16x1x18x128xbf16>
    %2 = vector.shape_cast %1 : vector<1x16x1x18x128xbf16> to vector<16x18x128xbf16>
    %3 = vector.extract_strided_slice %2 {offsets = [0, 0, 0], sizes = [16, 16, 128], strides = [1, 1, 1]} : vector<16x18x128xbf16> to vector<16x16x128xbf16>
    %4 = vector.shape_cast %3 : vector<16x16x128xbf16> to vector<256x128xbf16>
    %c0_4 = arith.constant 0 : index
    %c0_5 = arith.constant 0 : index
    %c0_6 = arith.constant 0 : index
    %5 = vector.load %arg3[%c0_4, %c0_5, %c0_6] : memref<9x128x256xbf16, #tpu.memory_space<vmem>>, vector<1x128x256xbf16>
    %6 = vector.shape_cast %5 : vector<1x128x256xbf16> to vector<128x256xbf16>
    %cst_7 = arith.constant dense<0.000000e+00> : vector<256x256xf32>
    %7 = tpu.matmul %4, %6, %cst_7 {dimension_numbers = #tpu.dot_dimension_numbers<[1], [0], [0], [1], [0, 0, 1, 1], [], []>} : vector<256x128xbf16>, vector<128x256xbf16>, vector<256x256xf32> -> vector<256x256xf32>
    %8 = arith.addf %0, %7 : vector<256x256xf32>
    %9 = vector.extract_strided_slice %2 {offsets = [0, 1, 0], sizes = [16, 16, 128], strides = [1, 1, 1]} : vector<16x18x128xbf16> to vector<16x16x128xbf16>
    %10 = vector.shape_cast %9 : vector<16x16x128xbf16> to vector<256x128xbf16>
    %c1 = arith.constant 1 : index
    %c0_8 = arith.constant 0 : index
    %c0_9 = arith.constant 0 : index
    %11 = vector.load %arg3[%c1, %c0_8, %c0_9] : memref<9x128x256xbf16, #tpu.memory_space<vmem>>, vector<1x128x256xbf16>
    %12 = vector.shape_cast %11 : vector<1x128x256xbf16> to vector<128x256xbf16>
    %cst_10 = arith.constant dense<0.000000e+00> : vector<256x256xf32>
    %13 = tpu.matmul %10, %12, %cst_10 {dimension_numbers = #tpu.dot_dimension_numbers<[1], [0], [0], [1], [0, 0, 1, 1], [], []>} : vector<256x128xbf16>, vector<128x256xbf16>, vector<256x256xf32> -> vector<256x256xf32>
    %14 = arith.addf %8, %13 : vector<256x256xf32>
    %15 = vector.extract_strided_slice %2 {offsets = [0, 2, 0], sizes = [16, 16, 128], strides = [1, 1, 1]} : vector<16x18x128xbf16> to vector<16x16x128xbf16>
    %16 = vector.shape_cast %15 : vector<16x16x128xbf16> to vector<256x128xbf16>
    %c2 = arith.constant 2 : index
    %c0_11 = arith.constant 0 : index
    %c0_12 = arith.constant 0 : index
    %17 = vector.load %arg3[%c2, %c0_11, %c0_12] : memref<9x128x256xbf16, #tpu.memory_space<vmem>>, vector<1x128x256xbf16>
    %18 = vector.shape_cast %17 : vector<1x128x256xbf16> to vector<128x256xbf16>
    %cst_13 = arith.constant dense<0.000000e+00> : vector<256x256xf32>
    %19 = tpu.matmul %16, %18, %cst_13 {dimension_numbers = #tpu.dot_dimension_numbers<[1], [0], [0], [1], [0, 0, 1, 1], [], []>} : vector<256x128xbf16>, vector<128x256xbf16>, vector<256x256xf32> -> vector<256x256xf32>
    %20 = arith.addf %14, %19 : vector<256x256xf32>
    %c0_14 = arith.constant 0 : index
    %c0_15 = arith.constant 0 : index
    %c1_16 = arith.constant 1 : index
    %c0_17 = arith.constant 0 : index
    %c0_18 = arith.constant 0 : index
    %21 = vector.load %arg2[%c0_14, %c0_15, %c1_16, %c0_17, %c0_18] : memref<1x16x3x18x128xbf16, #tpu.memory_space<vmem>>, vector<1x16x1x18x128xbf16>
    %22 = vector.shape_cast %21 : vector<1x16x1x18x128xbf16> to vector<16x18x128xbf16>
    %23 = vector.extract_strided_slice %22 {offsets = [0, 0, 0], sizes = [16, 16, 128], strides = [1, 1, 1]} : vector<16x18x128xbf16> to vector<16x16x128xbf16>
    %24 = vector.shape_cast %23 : vector<16x16x128xbf16> to vector<256x128xbf16>
    %c3 = arith.constant 3 : index
    %c0_19 = arith.constant 0 : index
    %c0_20 = arith.constant 0 : index
    %25 = vector.load %arg3[%c3, %c0_19, %c0_20] : memref<9x128x256xbf16, #tpu.memory_space<vmem>>, vector<1x128x256xbf16>
    %26 = vector.shape_cast %25 : vector<1x128x256xbf16> to vector<128x256xbf16>
    %cst_21 = arith.constant dense<0.000000e+00> : vector<256x256xf32>
    %27 = tpu.matmul %24, %26, %cst_21 {dimension_numbers = #tpu.dot_dimension_numbers<[1], [0], [0], [1], [0, 0, 1, 1], [], []>} : vector<256x128xbf16>, vector<128x256xbf16>, vector<256x256xf32> -> vector<256x256xf32>
    %28 = arith.addf %20, %27 : vector<256x256xf32>
    %29 = vector.extract_strided_slice %22 {offsets = [0, 1, 0], sizes = [16, 16, 128], strides = [1, 1, 1]} : vector<16x18x128xbf16> to vector<16x16x128xbf16>
    %30 = vector.shape_cast %29 : vector<16x16x128xbf16> to vector<256x128xbf16>
    %c4 = arith.constant 4 : index
    %c0_22 = arith.constant 0 : index
    %c0_23 = arith.constant 0 : index
    %31 = vector.load %arg3[%c4, %c0_22, %c0_23] : memref<9x128x256xbf16, #tpu.memory_space<vmem>>, vector<1x128x256xbf16>
    %32 = vector.shape_cast %31 : vector<1x128x256xbf16> to vector<128x256xbf16>
    %cst_24 = arith.constant dense<0.000000e+00> : vector<256x256xf32>
    %33 = tpu.matmul %30, %32, %cst_24 {dimension_numbers = #tpu.dot_dimension_numbers<[1], [0], [0], [1], [0, 0, 1, 1], [], []>} : vector<256x128xbf16>, vector<128x256xbf16>, vector<256x256xf32> -> vector<256x256xf32>
    %34 = arith.addf %28, %33 : vector<256x256xf32>
    %35 = vector.extract_strided_slice %22 {offsets = [0, 2, 0], sizes = [16, 16, 128], strides = [1, 1, 1]} : vector<16x18x128xbf16> to vector<16x16x128xbf16>
    %36 = vector.shape_cast %35 : vector<16x16x128xbf16> to vector<256x128xbf16>
    %c5 = arith.constant 5 : index
    %c0_25 = arith.constant 0 : index
    %c0_26 = arith.constant 0 : index
    %37 = vector.load %arg3[%c5, %c0_25, %c0_26] : memref<9x128x256xbf16, #tpu.memory_space<vmem>>, vector<1x128x256xbf16>
    %38 = vector.shape_cast %37 : vector<1x128x256xbf16> to vector<128x256xbf16>
    %cst_27 = arith.constant dense<0.000000e+00> : vector<256x256xf32>
    %39 = tpu.matmul %36, %38, %cst_27 {dimension_numbers = #tpu.dot_dimension_numbers<[1], [0], [0], [1], [0, 0, 1, 1], [], []>} : vector<256x128xbf16>, vector<128x256xbf16>, vector<256x256xf32> -> vector<256x256xf32>
    %40 = arith.addf %34, %39 : vector<256x256xf32>
    %c0_28 = arith.constant 0 : index
    %c0_29 = arith.constant 0 : index
    %c2_30 = arith.constant 2 : index
    %c0_31 = arith.constant 0 : index
    %c0_32 = arith.constant 0 : index
    %41 = vector.load %arg2[%c0_28, %c0_29, %c2_30, %c0_31, %c0_32] : memref<1x16x3x18x128xbf16, #tpu.memory_space<vmem>>, vector<1x16x1x18x128xbf16>
    %42 = vector.shape_cast %41 : vector<1x16x1x18x128xbf16> to vector<16x18x128xbf16>
    %43 = vector.extract_strided_slice %42 {offsets = [0, 0, 0], sizes = [16, 16, 128], strides = [1, 1, 1]} : vector<16x18x128xbf16> to vector<16x16x128xbf16>
    %44 = vector.shape_cast %43 : vector<16x16x128xbf16> to vector<256x128xbf16>
    %c6 = arith.constant 6 : index
    %c0_33 = arith.constant 0 : index
    %c0_34 = arith.constant 0 : index
    %45 = vector.load %arg3[%c6, %c0_33, %c0_34] : memref<9x128x256xbf16, #tpu.memory_space<vmem>>, vector<1x128x256xbf16>
    %46 = vector.shape_cast %45 : vector<1x128x256xbf16> to vector<128x256xbf16>
    %cst_35 = arith.constant dense<0.000000e+00> : vector<256x256xf32>
    %47 = tpu.matmul %44, %46, %cst_35 {dimension_numbers = #tpu.dot_dimension_numbers<[1], [0], [0], [1], [0, 0, 1, 1], [], []>} : vector<256x128xbf16>, vector<128x256xbf16>, vector<256x256xf32> -> vector<256x256xf32>
    %48 = arith.addf %40, %47 : vector<256x256xf32>
    %49 = vector.extract_strided_slice %42 {offsets = [0, 1, 0], sizes = [16, 16, 128], strides = [1, 1, 1]} : vector<16x18x128xbf16> to vector<16x16x128xbf16>
    %50 = vector.shape_cast %49 : vector<16x16x128xbf16> to vector<256x128xbf16>
    %c7 = arith.constant 7 : index
    %c0_36 = arith.constant 0 : index
    %c0_37 = arith.constant 0 : index
    %51 = vector.load %arg3[%c7, %c0_36, %c0_37] : memref<9x128x256xbf16, #tpu.memory_space<vmem>>, vector<1x128x256xbf16>
    %52 = vector.shape_cast %51 : vector<1x128x256xbf16> to vector<128x256xbf16>
    %cst_38 = arith.constant dense<0.000000e+00> : vector<256x256xf32>
    %53 = tpu.matmul %50, %52, %cst_38 {dimension_numbers = #tpu.dot_dimension_numbers<[1], [0], [0], [1], [0, 0, 1, 1], [], []>} : vector<256x128xbf16>, vector<128x256xbf16>, vector<256x256xf32> -> vector<256x256xf32>
    %54 = arith.addf %48, %53 : vector<256x256xf32>
    %55 = vector.extract_strided_slice %42 {offsets = [0, 2, 0], sizes = [16, 16, 128], strides = [1, 1, 1]} : vector<16x18x128xbf16> to vector<16x16x128xbf16>
    %56 = vector.shape_cast %55 : vector<16x16x128xbf16> to vector<256x128xbf16>
    %c8 = arith.constant 8 : index
    %c0_39 = arith.constant 0 : index
    %c0_40 = arith.constant 0 : index
    %57 = vector.load %arg3[%c8, %c0_39, %c0_40] : memref<9x128x256xbf16, #tpu.memory_space<vmem>>, vector<1x128x256xbf16>
    %58 = vector.shape_cast %57 : vector<1x128x256xbf16> to vector<128x256xbf16>
    %cst_41 = arith.constant dense<0.000000e+00> : vector<256x256xf32>
    %59 = tpu.matmul %56, %58, %cst_41 {dimension_numbers = #tpu.dot_dimension_numbers<[1], [0], [0], [1], [0, 0, 1, 1], [], []>} : vector<256x128xbf16>, vector<128x256xbf16>, vector<256x256xf32> -> vector<256x256xf32>
    %60 = arith.addf %54, %59 : vector<256x256xf32>
    %61 = vector.shape_cast %60 : vector<256x256xf32> to vector<16x16x256xf32>
    %c0_42 = arith.constant 0 : index
    %c0_43 = arith.constant 0 : index
    %c0_44 = arith.constant 0 : index
    %c0_45 = arith.constant 0 : index
    %62 = vector.load %arg4[%c0_42, %c0_43, %c0_44, %c0_45] : memref<1x16x16x256xf32, #tpu.memory_space<vmem>>, vector<1x16x16x256xf32>
    %63 = vector.shape_cast %62 : vector<1x16x16x256xf32> to vector<16x16x256xf32>
    %64 = vector.shape_cast %61 : vector<16x16x256xf32> to vector<1x16x16x256xf32>
    tpu.vector_store %arg4[%c0_42, %c0_43, %c0_44, %c0_45], %64 {strides = array<i32>} : memref<1x16x16x256xf32, #tpu.memory_space<vmem>>, vector<1x16x16x256xf32>,
    %cst_46 = arith.constant dense<0.000000e+00> : vector<256xf32>
    %65 = vector.multi_reduction <add>, %60, %cst_46 [0] : vector<256x256xf32> to vector<256xf32>
    %66 = vector.shape_cast %65 : vector<256xf32> to vector<1x256xf32>
    %67 = arith.mulf %60, %60 : vector<256x256xf32>
    %cst_47 = arith.constant dense<0.000000e+00> : vector<256xf32>
    %68 = vector.multi_reduction <add>, %67, %cst_47 [0] : vector<256x256xf32> to vector<256xf32>
    %69 = vector.shape_cast %68 : vector<256xf32> to vector<1x256xf32>
    %70 = tpu.concatenate %66, %69 in 0 : vector<1x256xf32>, vector<1x256xf32> -> vector<2x256xf32>
    %c0_48 = arith.constant 0 : index
    %c0_49 = arith.constant 0 : index
    %c0_50 = arith.constant 0 : index
    %c0_51 = arith.constant 0 : index
    %71 = vector.load %arg5[%c0_48, %c0_49, %c0_50, %c0_51] : memref<1x1x2x256xf32, #tpu.memory_space<vmem>>, vector<1x1x2x256xf32>
    %72 = vector.shape_cast %71 : vector<1x1x2x256xf32> to vector<2x256xf32>
    %73 = vector.shape_cast %70 : vector<2x256xf32> to vector<1x1x2x256xf32>
    tpu.vector_store %arg5[%c0_48, %c0_49, %c0_50, %c0_51], %73 {strides = array<i32>} : memref<1x1x2x256xf32, #tpu.memory_space<vmem>>, vector<1x1x2x256xf32>,
    return
  }
  func.func @transform_0(%arg0: i32, %arg1: i32) -> (i32, i32, i32, i32, i32) {
    %c0_i32 = arith.constant 0 : i32
    %c0_i32_0 = arith.constant 0 : i32
    %c0_i32_1 = arith.constant 0 : i32
    %c0_i32_2 = arith.constant 0 : i32
    return %arg0, %arg1, %c0_i32, %c0_i32_0, %c0_i32_1 : i32, i32, i32, i32, i32
  }
  func.func @transform_1(%arg0: i32, %arg1: i32) -> (i32, i32, i32) {
    %c0_i32 = arith.constant 0 : i32
    %c0_i32_0 = arith.constant 0 : i32
    %c0_i32_1 = arith.constant 0 : i32
    %c0_i32_2 = arith.constant 0 : i32
    return %c0_i32, %c0_i32_0, %c0_i32_1 : i32, i32, i32
  }
  func.func @transform_2(%arg0: i32, %arg1: i32) -> (i32, i32, i32, i32) {
    %c0_i32 = arith.constant 0 : i32
    %c0_i32_0 = arith.constant 0 : i32
    %c0_i32_1 = arith.constant 0 : i32
    return %arg0, %arg1, %c0_i32, %c0_i32_0 : i32, i32, i32, i32
  }
  func.func @transform_3(%arg0: i32, %arg1: i32) -> (i32, i32, i32, i32) {
    %c0_i32 = arith.constant 0 : i32
    %c0_i32_0 = arith.constant 0 : i32
    %c0_i32_1 = arith.constant 0 : i32
    return %arg0, %arg1, %c0_i32, %c0_i32_0 : i32, i32, i32, i32
  }
}

module attributes {stable_mosaic.version = 11 : i64} {
  func.func @_bn_relu_kernel(%arg0: i32, %arg1: i32, %arg2: memref<1x16x16x256xf32, #tpu.memory_space<vmem>>, %arg3: memref<1x1x256xf32, #tpu.memory_space<vmem>>, %arg4: memref<1x1x256xf32, #tpu.memory_space<vmem>>, %arg5: memref<1x16x16x256xf32, #tpu.memory_space<vmem>>) attributes {dimension_semantics = [#tpu.dimension_semantics<parallel>, #tpu.dimension_semantics<parallel>], iteration_bounds = array<i64: 2, 1>, scalar_prefetch = 0 : i64, scratch_operands = 0 : i64, tpu.core_type = #tpu.core_type<tc>, window_params = [{transform_indices = @transform_0, window_bounds = array<i64: 1, 16, 16, 256>}, {pipeline_mode = #tpu.pipeline_mode<synchronous>, transform_indices = @transform_1, window_bounds = array<i64: 1, 1, 256>}, {pipeline_mode = #tpu.pipeline_mode<synchronous>, transform_indices = @transform_2, window_bounds = array<i64: 1, 1, 256>}, {transform_indices = @transform_3, window_bounds = array<i64: 1, 16, 16, 256>}]} {
    %c0 = arith.constant 0 : index
    %c0_0 = arith.constant 0 : index
    %c0_1 = arith.constant 0 : index
    %c0_2 = arith.constant 0 : index
    %0 = vector.load %arg2[%c0, %c0_0, %c0_1, %c0_2] : memref<1x16x16x256xf32, #tpu.memory_space<vmem>>, vector<1x16x16x256xf32>
    %1 = vector.shape_cast %0 : vector<1x16x16x256xf32> to vector<16x16x256xf32>
    %c0_3 = arith.constant 0 : index
    %c0_4 = arith.constant 0 : index
    %c0_5 = arith.constant 0 : index
    %2 = vector.load %arg3[%c0_3, %c0_4, %c0_5] : memref<1x1x256xf32, #tpu.memory_space<vmem>>, vector<1x1x256xf32>
    %3 = vector.broadcast %2 : vector<1x1x256xf32> to vector<16x16x256xf32>
    %4 = arith.mulf %1, %3 : vector<16x16x256xf32>
    %c0_6 = arith.constant 0 : index
    %c0_7 = arith.constant 0 : index
    %c0_8 = arith.constant 0 : index
    %5 = vector.load %arg4[%c0_6, %c0_7, %c0_8] : memref<1x1x256xf32, #tpu.memory_space<vmem>>, vector<1x1x256xf32>
    %6 = vector.broadcast %5 : vector<1x1x256xf32> to vector<16x16x256xf32>
    %7 = arith.addf %4, %6 : vector<16x16x256xf32>
    %cst = arith.constant 0.000000e+00 : f32
    %8 = vector.broadcast %cst : f32 to vector<16x16x256xf32>
    %9 = arith.maximumf %7, %8 : vector<16x16x256xf32>
    %c0_9 = arith.constant 0 : index
    %c0_10 = arith.constant 0 : index
    %c0_11 = arith.constant 0 : index
    %c0_12 = arith.constant 0 : index
    %10 = vector.load %arg5[%c0_9, %c0_10, %c0_11, %c0_12] : memref<1x16x16x256xf32, #tpu.memory_space<vmem>>, vector<1x16x16x256xf32>
    %11 = vector.shape_cast %10 : vector<1x16x16x256xf32> to vector<16x16x256xf32>
    %12 = vector.shape_cast %9 : vector<16x16x256xf32> to vector<1x16x16x256xf32>
    tpu.vector_store %arg5[%c0_9, %c0_10, %c0_11, %c0_12], %12 {strides = array<i32>} : memref<1x16x16x256xf32, #tpu.memory_space<vmem>>, vector<1x16x16x256xf32>,
    return
  }
  func.func @transform_0(%arg0: i32, %arg1: i32) -> (i32, i32, i32, i32) {
    %c0_i32 = arith.constant 0 : i32
    %c0_i32_0 = arith.constant 0 : i32
    %c0_i32_1 = arith.constant 0 : i32
    return %arg0, %arg1, %c0_i32, %c0_i32_0 : i32, i32, i32, i32
  }
  func.func @transform_1(%arg0: i32, %arg1: i32) -> (i32, i32, i32) {
    %c0_i32 = arith.constant 0 : i32
    %c0_i32_0 = arith.constant 0 : i32
    %c0_i32_1 = arith.constant 0 : i32
    %c0_i32_2 = arith.constant 0 : i32
    return %c0_i32, %c0_i32_0, %c0_i32_1 : i32, i32, i32
  }
  func.func @transform_2(%arg0: i32, %arg1: i32) -> (i32, i32, i32) {
    %c0_i32 = arith.constant 0 : i32
    %c0_i32_0 = arith.constant 0 : i32
    %c0_i32_1 = arith.constant 0 : i32
    %c0_i32_2 = arith.constant 0 : i32
    return %c0_i32, %c0_i32_0, %c0_i32_1 : i32, i32, i32
  }
  func.func @transform_3(%arg0: i32, %arg1: i32) -> (i32, i32, i32, i32) {
    %c0_i32 = arith.constant 0 : i32
    %c0_i32_0 = arith.constant 0 : i32
    %c0_i32_1 = arith.constant 0 : i32
    return %arg0, %arg1, %c0_i32, %c0_i32_0 : i32, i32, i32, i32
  }
}

</mosaic_0001>

<llo_original>
// kernel: up_transition_forward.5
$region0: #{up_transition_forward.5}
  #allocation0 [shape = 'u32[]', space=smem, size = 0x4, offset = 0x4, fixed_abs, tag = 'smem constant byte address 0x4 - core index']
  #allocation1 [shape = 'u32[144,128]{1,0:T(1,128)}', space=vmem, size = 0x12000, scoped, tag = 'internal scratch']
  %s0 = inlined_call_operand.vmem [shape: bf16[128,128], index: 0, kind: input, shape index: {}]
  %s1 = inlined_call_operand.vmem [shape: bf16[128,128], index: 1, kind: input, shape index: {}]
  %s2 = inlined_call_operand.vmem [shape: f32[1,128], index: 2, kind: input, shape index: {}]
  %s3 = inlined_call_operand.vmem [shape: f32[128,128], index: 3, kind: output, shape index: {}]
  %s4 = sld [smem:[#allocation0]]
  $region22: #{up_transition_forward.5} parent=0
    _
  %s6 = ssub.s32 1, %s4
  %s7 = scalar_select 0, %s6, %s4
  // Predicated region
  $region2: #{up_transition_forward.5} parent=0 // pred_check
    _
  $region3: #{up_transition_forward.5} parent=0 // pred_check_branch
    %9 = sbr.rel (0) target = $region5
  $region4: #{up_transition_forward.5} parent=0 // pred_region
    _
  $region5: #{up_transition_forward.5} parent=0 // pred_fallthru
    _
  // Predicated region
  $region6: #{up_transition_forward.5} parent=0 // pred_check
    _
  $region7: #{up_transition_forward.5} parent=0 // pred_check_branch
    %11 = sbr.rel (0) target = $region9
  $region8: #{up_transition_forward.5} parent=0 // pred_region
    _
  $region9: #{up_transition_forward.5} parent=0 // pred_fallthru
    _
  // Predicated region
  $region10: #{up_transition_forward.5} parent=0 // pred_check
    _
  $region11: #{up_transition_forward.5} parent=0 // pred_check_branch
    %13 = sbr.rel (0) target = $region13
  $region12: #{up_transition_forward.5} parent=0 // pred_region
    _
  $region13: #{up_transition_forward.5} parent=0 // pred_fallthru
    _
  %v15 = vld [vmem:[%s0] sm:$0xf]
  %v16 = vld [vmem:[%s0 + $0x4] sm:$0xf]
  %v17 = vld [vmem:[%s0 + $0x8] sm:$0xf]
  %v18 = vld [vmem:[%s0 + $0xc] sm:$0xf]
  %v19 = vld [vmem:[%s0 + $0x10] sm:$0xf]
  %v20 = vld [vmem:[%s0 + $0x14] sm:$0xf]
  %v21 = vld [vmem:[%s0 + $0x18] sm:$0xf]
  %v22 = vld [vmem:[%s0 + $0x1c] sm:$0xf]
  %v23 = vld [vmem:[%s0 + $0x20] sm:$0xf]
  %v24 = vld [vmem:[%s0 + $0x24] sm:$0xf]
  %v25 = vld [vmem:[%s0 + $0x28] sm:$0xf]
  %v26 = vld [vmem:[%s0 + $0x2c] sm:$0xf]
  %v27 = vld [vmem:[%s0 + $0x30] sm:$0xf]
  %v28 = vld [vmem:[%s0 + $0x34] sm:$0xf]
  %v29 = vld [vmem:[%s0 + $0x38] sm:$0xf]
  %v30 = vld [vmem:[%s0 + $0x3c] sm:$0xf]
  %v31 = vld [vmem:[%s1] sm:$0xf]
  %v32 = vld [vmem:[%s1 + $0x4] sm:$0xf]
  %v33 = vld [vmem:[%s1 + $0x8] sm:$0xf]
  %v34 = vld [vmem:[%s1 + $0xc] sm:$0xf]
  %v35 = vld [vmem:[%s1 + $0x10] sm:$0xf]
  %v36 = vld [vmem:[%s1 + $0x14] sm:$0xf]
  %v37 = vld [vmem:[%s1 + $0x18] sm:$0xf]
  %v38 = vld [vmem:[%s1 + $0x1c] sm:$0xf]
  %v39 = vld [vmem:[%s1 + $0x20] sm:$0xf]
  %v40 = vld [vmem:[%s1 + $0x24] sm:$0xf]
  %v41 = vld [vmem:[%s1 + $0x28] sm:$0xf]
  %v42 = vld [vmem:[%s1 + $0x2c] sm:$0xf]
  %v43 = vld [vmem:[%s1 + $0x30] sm:$0xf]
  %v44 = vld [vmem:[%s1 + $0x34] sm:$0xf]
  %v45 = vld [vmem:[%s1 + $0x38] sm:$0xf]
  %v46 = vld [vmem:[%s1 + $0x3c] sm:$0xf]
  %v47 = vld [vmem:[%s2] sm:$0x1]
  %v49 = vlaneseq
  %v50 = vshrl.u32 %v49, 7
  %v51 = vsub.s32 0, %v50
  %v52 = vrot.slane %v47, %v51
  %v70 = vunpack.c.l.b16 %v15
  %v71 = vunpack.c.l.b16 %v16
  %v72 = vunpack.c.l.b16 %v17
  %v73 = vunpack.c.l.b16 %v18
  %v74 = vunpack.c.l.b16 %v19
  %v75 = vunpack.c.l.b16 %v20
  %v76 = vunpack.c.l.b16 %v21
  %v77 = vunpack.c.l.b16 %v22
  %v78 = vunpack.c.l.b16 %v23
  %v79 = vunpack.c.l.b16 %v24
  %v80 = vunpack.c.l.b16 %v25
  %v81 = vunpack.c.l.b16 %v26
  %v82 = vunpack.c.l.b16 %v27
  %v83 = vunpack.c.l.b16 %v28
  %v84 = vunpack.c.l.b16 %v29
  %v85 = vunpack.c.l.b16 %v30
  %v86 = vpack.c.b16 %v71, %v70
  %v87 = vpack.c.b16 %v73, %v72
  %v88 = vpack.c.b16 %v75, %v74
  %v89 = vpack.c.b16 %v77, %v76
  %v90 = vpack.c.b16 %v79, %v78
  %v91 = vpack.c.b16 %v81, %v80
  %v92 = vpack.c.b16 %v83, %v82
  %v93 = vpack.c.b16 %v85, %v84
  %v118 = vunpack.c.l.b16 %v31
  %v119 = vunpack.c.l.b16 %v32
  %v120 = vunpack.c.l.b16 %v33
  %v121 = vunpack.c.l.b16 %v34
  %v122 = vunpack.c.l.b16 %v35
  %v123 = vunpack.c.l.b16 %v36
  %v124 = vunpack.c.l.b16 %v37
  %v125 = vunpack.c.l.b16 %v38
  %v126 = vunpack.c.l.b16 %v39
  %v127 = vunpack.c.l.b16 %v40
  %v128 = vunpack.c.l.b16 %v41
  %v129 = vunpack.c.l.b16 %v42
  %v130 = vunpack.c.l.b16 %v43
  %v131 = vunpack.c.l.b16 %v44
  %v132 = vunpack.c.l.b16 %v45
  %v133 = vunpack.c.l.b16 %v46
  %v134 = vpack.c.b16 %v119, %v118
  %v135 = vpack.c.b16 %v121, %v120
  %v136 = vpack.c.b16 %v123, %v122
  %v137 = vpack.c.b16 %v125, %v124
  %v138 = vpack.c.b16 %v127, %v126
  %v139 = vpack.c.b16 %v129, %v128
  %v140 = vpack.c.b16 %v131, %v130
  %v141 = vpack.c.b16 %v133, %v132
  %150 = vmatprep.subr.bf16.mxu0 0
  %151 = vmatpush1.bf16.msra.mxu0 %v134
  %152 = vmatprep.subr.bf16.mxu0 0
  %153 = vmatpush1.bf16.msra.mxu0 %v135
  %154 = vmatprep.subr.bf16.mxu0 0
  %155 = vmatpush1.bf16.msra.mxu0 %v136
  %156 = vmatprep.subr.bf16.mxu0 0
  %157 = vmatpush1.bf16.msra.mxu0 %v137
  %158 = vmatprep.subr.bf16.mxu0 0
  %159 = vmatpush1.bf16.msra.mxu0 %v138
  %160 = vmatprep.subr.bf16.mxu0 0
  %161 = vmatpush1.bf16.msra.mxu0 %v139
  %162 = vmatprep.subr.bf16.mxu0 0
  %163 = vmatpush1.bf16.msra.mxu0 %v140
  %164 = vmatprep.subr.bf16.mxu0 0
  %165 = vmatpush1.bf16.msra.mxu0 %v141
  %166 = vmatprep.subr.bf16.mxu0 0
  %167 = vmatpush1.bf16.msra.mxu0 0
  %168 = vmatprep.subr.bf16.mxu0 0
  %169 = vmatpush1.bf16.msra.mxu0 0
  %170 = vmatprep.subr.bf16.mxu0 0
  %171 = vmatpush1.bf16.msra.mxu0 0
  %172 = vmatprep.subr.bf16.mxu0 0
  %173 = vmatpush1.bf16.msra.mxu0 0
  %174 = vmatprep.subr.bf16.mxu0 0
  %175 = vmatpush1.bf16.msra.mxu0 0
  %176 = vmatprep.subr.bf16.mxu0 0
  %177 = vmatpush1.bf16.msra.mxu0 0
  %178 = vmatprep.subr.bf16.mxu0 0
  %179 = vmatpush1.bf16.msra.mxu0 0
  %180 = vmatprep.subr.bf16.mxu0 0
  %181 = vmatpush1.bf16.msra.mxu0 0
  %182 = vmatprep.mubr.bf16.mxu0 0
  %183 = vmatmul.mubr.bf16.gmra.mrb[0].mxu0 %v86
  %v184 = vpop.f32.mrb[0].mxu0
  %v185 = vadd.f32 %v52, %v184
  %v186 = vpop.f32.mrb[0].mxu0
  %v187 = vpop.f32.mrb[0].mxu0
  %v188 = vadd.f32 %v52, %v187
  %v189 = vpop.f32.mrb[0].mxu0
  %190 = vmatprep.mubr.bf16.mxu0 0
  %191 = vmatmul.mubr.bf16.gmra.mrb[0].mxu0 %v87
  %v192 = vpop.f32.mrb[0].mxu0
  %v193 = vadd.f32 %v52, %v192
  %v194 = vpop.f32.mrb[0].mxu0
  %v195 = vpop.f32.mrb[0].mxu0
  %v196 = vadd.f32 %v52, %v195
  %v197 = vpop.f32.mrb[0].mxu0
  %198 = vmatprep.mubr.bf16.mxu0 0
  %199 = vmatmul.mubr.bf16.gmra.mrb[0].mxu0 %v88
  %v200 = vpop.f32.mrb[0].mxu0
  %v201 = vadd.f32 %v52, %v200
  %v202 = vpop.f32.mrb[0].mxu0
  %v203 = vpop.f32.mrb[0].mxu0
  %v204 = vadd.f32 %v52, %v203
  %v205 = vpop.f32.mrb[0].mxu0
  %206 = vmatprep.mubr.bf16.mxu0 0
  %207 = vmatmul.mubr.bf16.gmra.mrb[0].mxu0 %v89
  %v208 = vpop.f32.mrb[0].mxu0
  %v209 = vadd.f32 %v52, %v208
  %v210 = vpop.f32.mrb[0].mxu0
  %v211 = vpop.f32.mrb[0].mxu0
  %v212 = vadd.f32 %v52, %v211
  %v213 = vpop.f32.mrb[0].mxu0
  %214 = vmatprep.mubr.bf16.mxu0 0
  %215 = vmatmul.mubr.bf16.gmra.mrb[0].mxu0 %v90
  %v216 = vpop.f32.mrb[0].mxu0
  %v217 = vadd.f32 %v52, %v216
  %v218 = vpop.f32.mrb[0].mxu0
  %v219 = vpop.f32.mrb[0].mxu0
  %v220 = vadd.f32 %v52, %v219
  %v221 = vpop.f32.mrb[0].mxu0
  %222 = vmatprep.mubr.bf16.mxu0 0
  %223 = vmatmul.mubr.bf16.gmra.mrb[0].mxu0 %v91
  %v224 = vpop.f32.mrb[0].mxu0
  %v225 = vadd.f32 %v52, %v224
  %v226 = vpop.f32.mrb[0].mxu0
  %v227 = vpop.f32.mrb[0].mxu0
  %v228 = vadd.f32 %v52, %v227
  %v229 = vpop.f32.mrb[0].mxu0
  %230 = vmatprep.mubr.bf16.mxu0 0
  %231 = vmatmul.mubr.bf16.gmra.mrb[0].mxu0 %v92
  %v232 = vpop.f32.mrb[0].mxu0
  %v233 = vadd.f32 %v52, %v232
  %v234 = vpop.f32.mrb[0].mxu0
  %v235 = vpop.f32.mrb[0].mxu0
  %v236 = vadd.f32 %v52, %v235
  %v237 = vpop.f32.mrb[0].mxu0
  %238 = vmatprep.mubr.bf16.mxu0 0
  %239 = vmatmul.mubr.bf16.gmra.mrb[0].mxu0 %v93
  %v240 = vpop.f32.mrb[0].mxu0
  %v241 = vadd.f32 %v52, %v240
  %v242 = vpop.f32.mrb[0].mxu0
  %v243 = vpop.f32.mrb[0].mxu0
  %v244 = vadd.f32 %v52, %v243
  %v245 = vpop.f32.mrb[0].mxu0
  %246 = vdwg.mxu0
  %247 = vst [vmem:[%s3] sm:$0xff] %v185
  %248 = vst [vmem:[%s3 + $0x8] sm:$0xff] %v188
  %249 = vst [vmem:[%s3 + $0x10] sm:$0xff] %v193
  %250 = vst [vmem:[%s3 + $0x18] sm:$0xff] %v196
  %251 = vst [vmem:[%s3 + $0x20] sm:$0xff] %v201
  %252 = vst [vmem:[%s3 + $0x28] sm:$0xff] %v204
  %253 = vst [vmem:[%s3 + $0x30] sm:$0xff] %v209
  %254 = vst [vmem:[%s3 + $0x38] sm:$0xff] %v212
  %255 = vst [vmem:[%s3 + $0x40] sm:$0xff] %v217
  %256 = vst [vmem:[%s3 + $0x48] sm:$0xff] %v220
  %257 = vst [vmem:[%s3 + $0x50] sm:$0xff] %v225
  %258 = vst [vmem:[%s3 + $0x58] sm:$0xff] %v228
  %259 = vst [vmem:[%s3 + $0x60] sm:$0xff] %v233
  %260 = vst [vmem:[%s3 + $0x68] sm:$0xff] %v236
  %261 = vst [vmem:[%s3 + $0x70] sm:$0xff] %v241
  %262 = vst [vmem:[%s3 + $0x78] sm:$0xff] %v244
  // Predicated region
  $region14: #{up_transition_forward.5} parent=0 // pred_check
    _
  $region15: #{up_transition_forward.5} parent=0 // pred_check_branch
    %264 = sbr.rel (0) target = $region17
  $region16: #{up_transition_forward.5} parent=0 // pred_region
    _
  $region17: #{up_transition_forward.5} parent=0 // pred_fallthru
    _
  // Predicated region
  $region18: #{up_transition_forward.5} parent=0 // pred_check
    _
  $region19: #{up_transition_forward.5} parent=0 // pred_check_branch
    %266 = sbr.rel (0) target = $region21
  $region20: #{up_transition_forward.5} parent=0 // pred_region
    _
  $region21: #{up_transition_forward.5} parent=0 // pred_fallthru
    _

// kernel: up_transition_forward.7
$region0: #{up_transition_forward.7}
  #allocation0 [shape = 'u32[]', space=smem, size = 0x4, offset = 0x4, fixed_abs, tag = 'smem constant byte address 0x4 - core index']
  #allocation1 [shape = 'u32[144,128]{1,0:T(1,128)}', space=vmem, size = 0x12000, scoped, tag = 'internal scratch']
  %s0 = inlined_call_operand.vmem [shape: f32[2,16,16,128], index: 0, kind: input, shape index: {}]
  %s1 = inlined_call_operand.vmem [shape: f32[1,1,128], index: 1, kind: input, shape index: {}]
  %s2 = inlined_call_operand.vmem [shape: f32[1,1,128], index: 2, kind: input, shape index: {}]
  %s3 = inlined_call_operand.vmem [shape: f32[2,16,16,128], index: 3, kind: output, shape index: {}]
  %s4 = sld [smem:[#allocation0]]
  $region45: #{up_transition_forward.7} parent=0
    _
  %s6 = ssub.s32 1, %s4
  %s7 = scalar_select 0, %s6, %s4
  loop: start=0, step=1, limit=4
  $region2: #{up_transition_forward.7} parent=0 // loop_pre_header
    _
  $region3: #{up_transition_forward.7} parent=0 // loop_header
    %s9 = sphi 0, %s13
    %p10 = scmp.ge.s32.totalorder %s9, 4
    %s16 = sphi 0, %s28
    %s17 = sphi 0, %s24
    %s18 = sphi 0, %s16
    %s19 = sphi 0, %s17
    %s20 = sphi 0, %s18
    %s21 = sphi 0, %s19
    %s33 = sphi 0, %s35
    %s36 = sphi 0, %s33
    %s37 = sphi 0, %s36
    %s53 = sphi 0, %s37
    %s57 = sphi 0, %s57
    %s59 = sphi 0, %s57
    %s60 = sphi 0, %s59
    %s74 = sphi 0, %s60
    %s78 = sphi 0, %s78
    %s80 = sphi 0, %s78
    %s81 = sphi 0, %s80
    %s95 = sphi 0, %s81
    %s103 = sphi 0, %s105
    %s106 = sphi 0, %s103
    %s107 = sphi 0, %s106
    %s123 = sphi 0, %s107
  $region4: #{up_transition_forward.7} parent=0 // loop_header_branch
    %12 = sbr.rel (%p10) target = $region8
  $region5: #{up_transition_forward.7} parent=0 // loop_body
    %s14 = ssub.s32 %s9, 1
    %s15 = ssub.s32 %s9, 2
    %s22 = sadd.s32 1, %s17
    %p23 = scmp.ge.s32.totalorder %s22, 1
    %s24 = scalar_select %p23, 0, %s22
    %s25 = sadd.s32 1, %s16
    %s26 = scalar_select %p23, %s25, %s16
    %p27 = scmp.ge.s32.totalorder %s26, 2
    %s28 = scalar_select %p27, 0, %s26
    %s29 = ssub.s32 %s16, %s28
    %s30 = ssub.s32 %s17, %s24
    %s31 = sor.u32 %s29, %s30
    %p32 = scmp.eq.s32.totalorder %s31, 0
    %s34 = sadd.s32 %s33, 1
    %s35 = scalar_select %p32, %s33, %s34
    %p38 = pneg %p32
    %p39 = scmp.eq.s32.totalorder %s9, 1
    %p40 = por %p38, %p39
    %p41 = scmp.ne.s32.totalorder %s33, %s36
    %p42 = scmp.eq.s32.totalorder %s9, 0
    %p43 = por %p41, %p42
    %p44 = scmp.ne.s32.totalorder %s33, %s36
    %p45 = scmp.eq.s32.totalorder %s14, 1
    %p46 = por %p44, %p45
    %p47 = scmp.ne.s32.totalorder %s36, %s37
    %p48 = scmp.eq.s32.totalorder %s14, 0
    %p49 = por %p47, %p48
    %p50 = scmp.ne.s32.totalorder %s36, %s37
    %p51 = scmp.eq.s32.totalorder %s15, 1
    %p52 = por %p50, %p51
    %p54 = scmp.ne.s32.totalorder %s37, %s53
    %p55 = scmp.eq.s32.totalorder %s15, 0
    %p56 = por %p54, %p55
    %s58 = sadd.s32 %s57, 1
    %p61 = scmp.eq.s32.totalorder %s9, 1
    %p62 = scmp.ne.s32.totalorder %s57, %s59
    %p63 = scmp.eq.s32.totalorder %s9, 0
    %p64 = por %p62, %p63
    %p65 = scmp.ne.s32.totalorder %s57, %s59
    %p66 = scmp.eq.s32.totalorder %s14, 1
    %p67 = por %p65, %p66
    %p68 = scmp.ne.s32.totalorder %s59, %s60
    %p69 = scmp.eq.s32.totalorder %s14, 0
    %p70 = por %p68, %p69
    %p71 = scmp.ne.s32.totalorder %s59, %s60
    %p72 = scmp.eq.s32.totalorder %s15, 1
    %p73 = por %p71, %p72
    %p75 = scmp.ne.s32.totalorder %s60, %s74
    %p76 = scmp.eq.s32.totalorder %s15, 0
    %p77 = por %p75, %p76
    %s79 = sadd.s32 %s78, 1
    %p82 = scmp.eq.s32.totalorder %s9, 1
    %p83 = scmp.ne.s32.totalorder %s78, %s80
    %p84 = scmp.eq.s32.totalorder %s9, 0
    %p85 = por %p83, %p84
    %p86 = scmp.ne.s32.totalorder %s78, %s80
    %p87 = scmp.eq.s32.totalorder %s14, 1
    %p88 = por %p86, %p87
    %p89 = scmp.ne.s32.totalorder %s80, %s81
    %p90 = scmp.eq.s32.totalorder %s14, 0
    %p91 = por %p89, %p90
    %p92 = scmp.ne.s32.totalorder %s80, %s81
    %p93 = scmp.eq.s32.totalorder %s15, 1
    %p94 = por %p92, %p93
    %p96 = scmp.ne.s32.totalorder %s81, %s95
    %p97 = scmp.eq.s32.totalorder %s15, 0
    %p98 = por %p96, %p97
    %s99 = ssub.s32 %s16, %s28
    %s100 = ssub.s32 %s17, %s24
    %s101 = sor.u32 %s99, %s100
    %p102 = scmp.eq.s32.totalorder %s101, 0
    %s104 = sadd.s32 %s103, 1
    %s105 = scalar_select %p102, %s103, %s104
    %p108 = pneg %p102
    %p109 = scmp.eq.s32.totalorder %s9, 1
    %p110 = por %p108, %p109
    %p111 = scmp.ne.s32.totalorder %s103, %s106
    %p112 = scmp.eq.s32.totalorder %s9, 0
    %p113 = por %p111, %p112
    %p114 = scmp.ne.s32.totalorder %s103, %s106
    %p115 = scmp.eq.s32.totalorder %s14, 1
    %p116 = por %p114, %p115
    %p117 = scmp.ne.s32.totalorder %s106, %s107
    %p118 = scmp.eq.s32.totalorder %s14, 0
    %p119 = por %p117, %p118
    %p120 = scmp.ne.s32.totalorder %s106, %s107
    %p121 = scmp.eq.s32.totalorder %s15, 1
    %p122 = por %p120, %p121
    %p124 = scmp.ne.s32.totalorder %s107, %s123
    %p125 = scmp.eq.s32.totalorder %s15, 0
    %p126 = por %p124, %p125
    %p127 = scmp.le.s32.totalorder 1, %s9
    %p128 = scmp.lt.s32.totalorder %s9, 3
    %p129 = pnand %p127, %p128
    %p130 = pneg %p129
    // Predicated region
    $region9: #{up_transition_forward.7} parent=5 // pred_check
      _
    $region10: #{up_transition_forward.7} parent=5 // pred_check_branch
      %132 = sbr.rel (%p129) target = $region12
    $region11: #{up_transition_forward.7} parent=5 // pred_region
      %s133 = ssub.s32 %s9, 1
      // Predicated region
      $region13: #{up_transition_forward.7} parent=11 // pred_check
        %p134 = pneg %p70
      $region14: #{up_transition_forward.7} parent=11 // pred_check_branch
        %136 = sbr.rel (%p134) target = $region16
      $region15: #{up_transition_forward.7} parent=11 // pred_region
        _
      $region16: #{up_transition_forward.7} parent=11 // pred_fallthru
        _
      // Predicated region
      $region17: #{up_transition_forward.7} parent=11 // pred_check
        %p137 = pneg %p91
      $region18: #{up_transition_forward.7} parent=11 // pred_check_branch
        %139 = sbr.rel (%p137) target = $region20
      $region19: #{up_transition_forward.7} parent=11 // pred_region
        _
      $region20: #{up_transition_forward.7} parent=11 // pred_fallthru
        _
    $region12: #{up_transition_forward.7} parent=5 // pred_fallthru
      _
    %p140 = scmp.lt.s32.totalorder %s9, 2
    // Predicated region
    $region21: #{up_transition_forward.7} parent=5 // pred_check
      %p141 = pneg %p140
    $region22: #{up_transition_forward.7} parent=5 // pred_check_branch
      %143 = sbr.rel (%p141) target = $region24
    $region23: #{up_transition_forward.7} parent=5 // pred_region
      // Predicated region
      $region25: #{up_transition_forward.7} parent=23 // pred_check
        %p144 = pneg %p43
      $region26: #{up_transition_forward.7} parent=23 // pred_check_branch
        %146 = sbr.rel (%p144) target = $region28
      $region27: #{up_transition_forward.7} parent=23 // pred_region
        %s147 = smul.u32 16, %s17
        %p148 = scmp.lt.s32.totalorder %s16, 1
        %s149 = scalar_select %p148, %s16, 1
        %p150 = scmp.lt.s32.totalorder %s147, 15
        %s151 = scalar_select %p150, %s147, 15
        %s152 = smul.addr %s151, 2
        %s153 = smul.addr %s149, 32
        %s154 = sadd.s32 %s152, %s153
        %s155 = smul.addr %s154, 8
        %s156 = scalar_lea.vmem %s0, %s155
        %s157 = smul.u32 16, %s17
      $region28: #{up_transition_forward.7} parent=23 // pred_fallthru
        _
    $region24: #{up_transition_forward.7} parent=5 // pred_fallthru
      _
    %p158 = scmp.le.s32.totalorder 1, %s9
    %p159 = scmp.lt.s32.totalorder %s9, 3
    %p160 = pnand %p158, %p159
    %p161 = pneg %p160
    // Predicated region
    $region29: #{up_transition_forward.7} parent=5 // pred_check
      _
    $region30: #{up_transition_forward.7} parent=5 // pred_check_branch
      %163 = sbr.rel (%p160) target = $region32
    $region31: #{up_transition_forward.7} parent=5 // pred_region
      %s164 = ssub.s32 %s9, 1
      %s165 = smul.u32 16, %s19
      %p166 = scmp.lt.s32.totalorder %s18, 1
      %s167 = scalar_select %p166, %s18, 1
      %p168 = scmp.lt.s32.totalorder %s165, 15
      %s169 = scalar_select %p168, %s165, 15
      %s170 = smul.addr %s169, 2
      %s171 = smul.addr %s167, 32
      %s172 = sadd.s32 %s170, %s171
      %s173 = smul.addr %s172, 8
      %s174 = scalar_lea.vmem %s0, %s173
      %p175 = pneg %p49
      %p176 = pneg %p46
      %p177 = pneg %p70
      %p178 = pneg %p67
      %p179 = pneg %p91
      %p180 = pneg %p88
      %p181 = pneg %p119
      %p182 = pneg %p116
      %s183 = smul.u32 16, %s19
      %p184 = scmp.lt.s32.totalorder %s18, 1
      %s185 = scalar_select %p184, %s18, 1
      %p186 = scmp.lt.s32.totalorder %s183, 15
      %s187 = scalar_select %p186, %s183, 15
      %s188 = smul.addr %s187, 2
      %s189 = smul.addr %s185, 32
      %s190 = sadd.s32 %s188, %s189
      %s191 = smul.addr %s190, 8
      %s192 = scalar_lea.vmem %s3, %s191
      %s193 = smul.u32 16, %s19
      %p194 = scmp.lt.s32.totalorder %s18, 1
      %s195 = scalar_select %p194, %s18, 1
      %p196 = scmp.lt.s32.totalorder %s193, 15
      %s197 = scalar_select %p196, %s193, 15
      %s198 = smul.addr %s197, 2
      %s199 = smul.addr %s195, 32
      %s200 = sadd.s32 %s198, %s199
      %s201 = smul.addr %s200, 8
      %s202 = scalar_lea.vmem %s0, %s201
      %s203 = smul.u32 16, %s19
      %s204 = smul.u32 16, %s19
      %p205 = scmp.lt.s32.totalorder %s18, 1
      %s206 = scalar_select %p205, %s18, 1
      %p207 = scmp.lt.s32.totalorder %s204, 15
      %s208 = scalar_select %p207, %s204, 15
      %s209 = smul.addr %s208, 2
      %s210 = smul.addr %s206, 32
      %s211 = sadd.s32 %s209, %s210
      %s212 = smul.addr %s211, 8
      %s213 = scalar_lea.vmem %s3, %s212
      %s214 = smul.u32 16, %s19
      %v215 = vld [vmem:[%s202] sm:$0xff]
      %v216 = vld [vmem:[%s202 + $0x8] sm:$0xff]
      %v217 = vld [vmem:[%s202 + $0x10] sm:$0xff]
      %v218 = vld [vmem:[%s202 + $0x18] sm:$0xff]
      %v219 = vld [vmem:[%s202 + $0x20] sm:$0xff]
      %v220 = vld [vmem:[%s202 + $0x28] sm:$0xff]
      %v221 = vld [vmem:[%s202 + $0x30] sm:$0xff]
      %v222 = vld [vmem:[%s202 + $0x38] sm:$0xff]
      %v223 = vld [vmem:[%s202 + $0x40] sm:$0xff]
      %v224 = vld [vmem:[%s202 + $0x48] sm:$0xff]
      %v225 = vld [vmem:[%s202 + $0x50] sm:$0xff]
      %v226 = vld [vmem:[%s202 + $0x58] sm:$0xff]
      %v227 = vld [vmem:[%s202 + $0x60] sm:$0xff]
      %v228 = vld [vmem:[%s202 + $0x68] sm:$0xff]
      %v229 = vld [vmem:[%s202 + $0x70] sm:$0xff]
      %v230 = vld [vmem:[%s202 + $0x78] sm:$0xff]
      %v231 = vld [vmem:[%s202 + $0x80] sm:$0xff]
      %v232 = vld [vmem:[%s202 + $0x88] sm:$0xff]
      %v233 = vld [vmem:[%s202 + $0x90] sm:$0xff]
      %v234 = vld [vmem:[%s202 + $0x98] sm:$0xff]
      %v235 = vld [vmem:[%s202 + $0xa0] sm:$0xff]
      %v236 = vld [vmem:[%s202 + $0xa8] sm:$0xff]
      %v237 = vld [vmem:[%s202 + $0xb0] sm:$0xff]
      %v238 = vld [vmem:[%s202 + $0xb8] sm:$0xff]
      %v239 = vld [vmem:[%s202 + $0xc0] sm:$0xff]
      %v240 = vld [vmem:[%s202 + $0xc8] sm:$0xff]
      %v241 = vld [vmem:[%s202 + $0xd0] sm:$0xff]
      %v242 = vld [vmem:[%s202 + $0xd8] sm:$0xff]
      %v243 = vld [vmem:[%s202 + $0xe0] sm:$0xff]
      %v244 = vld [vmem:[%s202 + $0xe8] sm:$0xff]
      %v245 = vld [vmem:[%s202 + $0xf0] sm:$0xff]
      %v246 = vld [vmem:[%s202 + $0xf8] sm:$0xff]
      %v247 = vld [vmem:[%s1] sm:$0x1]
      %v249 = vlaneseq
      %v250 = vshrl.u32 %v249, 7
      %v251 = vsub.s32 0, %v250
      %v252 = vrot.slane %v247, %v251
      %v254 = vmul.f32 %v215, %v252
      %v255 = vmul.f32 %v216, %v252
      %v256 = vmul.f32 %v217, %v252
      %v257 = vmul.f32 %v218, %v252
      %v258 = vmul.f32 %v219, %v252
      %v259 = vmul.f32 %v220, %v252
      %v260 = vmul.f32 %v221, %v252
      %v261 = vmul.f32 %v222, %v252
      %v262 = vmul.f32 %v223, %v252
      %v263 = vmul.f32 %v224, %v252
      %v264 = vmul.f32 %v225, %v252
      %v265 = vmul.f32 %v226, %v252
      %v266 = vmul.f32 %v227, %v252
      %v267 = vmul.f32 %v228, %v252
      %v268 = vmul.f32 %v229, %v252
      %v269 = vmul.f32 %v230, %v252
      %v270 = vmul.f32 %v231, %v252
      %v271 = vmul.f32 %v232, %v252
      %v272 = vmul.f32 %v233, %v252
      %v273 = vmul.f32 %v234, %v252
      %v274 = vmul.f32 %v235, %v252
      %v275 = vmul.f32 %v236, %v252
      %v276 = vmul.f32 %v237, %v252
      %v277 = vmul.f32 %v238, %v252
      %v278 = vmul.f32 %v239, %v252
      %v279 = vmul.f32 %v240, %v252
      %v280 = vmul.f32 %v241, %v252
      %v281 = vmul.f32 %v242, %v252
      %v282 = vmul.f32 %v243, %v252
      %v283 = vmul.f32 %v244, %v252
      %v284 = vmul.f32 %v245, %v252
      %v285 = vmul.f32 %v246, %v252
      %v286 = vld [vmem:[%s2] sm:$0x1]
      %v288 = vlaneseq
      %v289 = vshrl.u32 %v288, 7
      %v290 = vsub.s32 0, %v289
      %v291 = vrot.slane %v286, %v290
      %v293 = vadd.f32 %v254, %v291
      %v294 = vadd.f32 %v255, %v291
      %v295 = vadd.f32 %v256, %v291
      %v296 = vadd.f32 %v257, %v291
      %v297 = vadd.f32 %v258, %v291
      %v298 = vadd.f32 %v259, %v291
      %v299 = vadd.f32 %v260, %v291
      %v300 = vadd.f32 %v261, %v291
      %v301 = vadd.f32 %v262, %v291
      %v302 = vadd.f32 %v263, %v291
      %v303 = vadd.f32 %v264, %v291
      %v304 = vadd.f32 %v265, %v291
      %v305 = vadd.f32 %v266, %v291
      %v306 = vadd.f32 %v267, %v291
      %v307 = vadd.f32 %v268, %v291
      %v308 = vadd.f32 %v269, %v291
      %v309 = vadd.f32 %v270, %v291
      %v310 = vadd.f32 %v271, %v291
      %v311 = vadd.f32 %v272, %v291
      %v312 = vadd.f32 %v273, %v291
      %v313 = vadd.f32 %v274, %v291
      %v314 = vadd.f32 %v275, %v291
      %v315 = vadd.f32 %v276, %v291
      %v316 = vadd.f32 %v277, %v291
      %v317 = vadd.f32 %v278, %v291
      %v318 = vadd.f32 %v279, %v291
      %v319 = vadd.f32 %v280, %v291
      %v320 = vadd.f32 %v281, %v291
      %v321 = vadd.f32 %v282, %v291
      %v322 = vadd.f32 %v283, %v291
      %v323 = vadd.f32 %v284, %v291
      %v324 = vadd.f32 %v285, %v291
      %v325 = vmax.f32 %v293, 0.0
      %v326 = vmax.f32 %v294, 0.0
      %v327 = vmax.f32 %v295, 0.0
      %v328 = vmax.f32 %v296, 0.0
      %v329 = vmax.f32 %v297, 0.0
      %v330 = vmax.f32 %v298, 0.0
      %v331 = vmax.f32 %v299, 0.0
      %v332 = vmax.f32 %v300, 0.0
      %v333 = vmax.f32 %v301, 0.0
      %v334 = vmax.f32 %v302, 0.0
      %v335 = vmax.f32 %v303, 0.0
      %v336 = vmax.f32 %v304, 0.0
      %v337 = vmax.f32 %v305, 0.0
      %v338 = vmax.f32 %v306, 0.0
      %v339 = vmax.f32 %v307, 0.0
      %v340 = vmax.f32 %v308, 0.0
      %v341 = vmax.f32 %v309, 0.0
      %v342 = vmax.f32 %v310, 0.0
      %v343 = vmax.f32 %v311, 0.0
      %v344 = vmax.f32 %v312, 0.0
      %v345 = vmax.f32 %v313, 0.0
      %v346 = vmax.f32 %v314, 0.0
      %v347 = vmax.f32 %v315, 0.0
      %v348 = vmax.f32 %v316, 0.0
      %v349 = vmax.f32 %v317, 0.0
      %v350 = vmax.f32 %v318, 0.0
      %v351 = vmax.f32 %v319, 0.0
      %v352 = vmax.f32 %v320, 0.0
      %v353 = vmax.f32 %v321, 0.0
      %v354 = vmax.f32 %v322, 0.0
      %v355 = vmax.f32 %v323, 0.0
      %v356 = vmax.f32 %v324, 0.0
      %357 = vst [vmem:[%s213] sm:$0xff] %v325
      %358 = vst [vmem:[%s213 + $0x8] sm:$0xff] %v326
      %359 = vst [vmem:[%s213 + $0x10] sm:$0xff] %v327
      %360 = vst [vmem:[%s213 + $0x18] sm:$0xff] %v328
      %361 = vst [vmem:[%s213 + $0x20] sm:$0xff] %v329
      %362 = vst [vmem:[%s213 + $0x28] sm:$0xff] %v330
      %363 = vst [vmem:[%s213 + $0x30] sm:$0xff] %v331
      %364 = vst [vmem:[%s213 + $0x38] sm:$0xff] %v332
      %365 = vst [vmem:[%s213 + $0x40] sm:$0xff] %v333
      %366 = vst [vmem:[%s213 + $0x48] sm:$0xff] %v334
      %367 = vst [vmem:[%s213 + $0x50] sm:$0xff] %v335
      %368 = vst [vmem:[%s213 + $0x58] sm:$0xff] %v336
      %369 = vst [vmem:[%s213 + $0x60] sm:$0xff] %v337
      %370 = vst [vmem:[%s213 + $0x68] sm:$0xff] %v338
      %371 = vst [vmem:[%s213 + $0x70] sm:$0xff] %v339
      %372 = vst [vmem:[%s213 + $0x78] sm:$0xff] %v340
      %373 = vst [vmem:[%s213 + $0x80] sm:$0xff] %v341
      %374 = vst [vmem:[%s213 + $0x88] sm:$0xff] %v342
      %375 = vst [vmem:[%s213 + $0x90] sm:$0xff] %v343
      %376 = vst [vmem:[%s213 + $0x98] sm:$0xff] %v344
      %377 = vst [vmem:[%s213 + $0xa0] sm:$0xff] %v345
      %378 = vst [vmem:[%s213 + $0xa8] sm:$0xff] %v346
      %379 = vst [vmem:[%s213 + $0xb0] sm:$0xff] %v347
      %380 = vst [vmem:[%s213 + $0xb8] sm:$0xff] %v348
      %381 = vst [vmem:[%s213 + $0xc0] sm:$0xff] %v349
      %382 = vst [vmem:[%s213 + $0xc8] sm:$0xff] %v350
      %383 = vst [vmem:[%s213 + $0xd0] sm:$0xff] %v351
      %384 = vst [vmem:[%s213 + $0xd8] sm:$0xff] %v352
      %385 = vst [vmem:[%s213 + $0xe0] sm:$0xff] %v353
      %386 = vst [vmem:[%s213 + $0xe8] sm:$0xff] %v354
      %387 = vst [vmem:[%s213 + $0xf0] sm:$0xff] %v355
      %388 = vst [vmem:[%s213 + $0xf8] sm:$0xff] %v356
      %s389 = smul.u32 16, %s19
      %p390 = scmp.lt.s32.totalorder %s18, 1
      %s391 = scalar_select %p390, %s18, 1
      %p392 = scmp.lt.s32.totalorder %s389, 15
      %s393 = scalar_select %p392, %s389, 15
      %s394 = smul.addr %s393, 2
      %s395 = smul.addr %s391, 32
      %s396 = sadd.s32 %s394, %s395
      %s397 = smul.addr %s396, 8
      %s398 = scalar_lea.vmem %s3, %s397
      // Predicated region
      $region33: #{up_transition_forward.7} parent=31 // pred_check
        %p399 = pneg %p116
      $region34: #{up_transition_forward.7} parent=31 // pred_check_branch
        %401 = sbr.rel (%p399) target = $region36
      $region35: #{up_transition_forward.7} parent=31 // pred_region
        %s402 = smul.u32 16, %s19
      $region36: #{up_transition_forward.7} parent=31 // pred_fallthru
        _
    $region32: #{up_transition_forward.7} parent=5 // pred_fallthru
      _
    %p403 = scmp.le.s32.totalorder 2, %s9
    // Predicated region
    $region37: #{up_transition_forward.7} parent=5 // pred_check
      %p404 = pneg %p403
    $region38: #{up_transition_forward.7} parent=5 // pred_check_branch
      %406 = sbr.rel (%p404) target = $region40
    $region39: #{up_transition_forward.7} parent=5 // pred_region
      %s407 = ssub.s32 %s9, 2
      // Predicated region
      $region41: #{up_transition_forward.7} parent=39 // pred_check
        %p408 = pneg %p122
      $region42: #{up_transition_forward.7} parent=39 // pred_check_branch
        %410 = sbr.rel (%p408) target = $region44
      $region43: #{up_transition_forward.7} parent=39 // pred_region
        %s411 = smul.u32 16, %s21
        %p412 = scmp.lt.s32.totalorder %s20, 1
        %s413 = scalar_select %p412, %s20, 1
        %p414 = scmp.lt.s32.totalorder %s411, 15
        %s415 = scalar_select %p414, %s411, 15
        %s416 = smul.addr %s415, 2
        %s417 = smul.addr %s413, 32
        %s418 = sadd.s32 %s416, %s417
        %s419 = smul.addr %s418, 8
        %s420 = scalar_lea.vmem %s3, %s419
      $region44: #{up_transition_forward.7} parent=39 // pred_fallthru
        _
    $region40: #{up_transition_forward.7} parent=5 // pred_fallthru
      _
  $region6: #{up_transition_forward.7} parent=0 // loop_footer
    %s13 = sadd.s32 1, %s9
  $region7: #{up_transition_forward.7} parent=0 // loop_footer_branch
    %8 = sbr.rel target = $region3
  $region8: #{up_transition_forward.7} parent=0 // loop_exit
    _

// kernel: up_transition_forward.9
$region0: #{up_transition_forward.9}
  #allocation0 [shape = 'u32[]', space=smem, size = 0x4, offset = 0x4, fixed_abs, tag = 'smem constant byte address 0x4 - core index']
  #allocation1 [shape = 'u32[144,128]{1,0:T(1,128)}', space=vmem, size = 0x12000, scoped, tag = 'internal scratch']
  %s0 = inlined_call_operand.vmem [shape: f32[2,16,16,256], index: 0, kind: input, shape index: {}]
  %s1 = inlined_call_operand.vmem [shape: f32[1,1,256], index: 1, kind: input, shape index: {}]
  %s2 = inlined_call_operand.vmem [shape: f32[1,1,256], index: 2, kind: input, shape index: {}]
  %s3 = inlined_call_operand.hbm [shape: f32[2,16,16,256], index: 3, kind: output, shape index: {}]
  %s4 = sld [smem:[#allocation0]]
  $region45: #{up_transition_forward.9} parent=0
    _
  %s6 = ssub.s32 1, %s4
  %s7 = scalar_select 0, %s6, %s4
  $region1: #{up_transition_forward.9} parent=0
    #allocation2 [shape = 'u8[524288]{0}', space=vmem, size = 0x80000, scoped, tag = 'output window, operand 0']
    #allocation3 [shape = 's32[2]{0}', space=sflag, size = 0x8, scoped, tag = 'scoped memory for up_transition_forward.9']
    %8 = vsyncpa [#allocation3], 0
    %s9 = scalar_lea.sflag [#allocation3], 1
    %10 = vsyncpa %s9, 0
    loop: start=0, step=1, limit=4
    $region2: #{up_transition_forward.9} parent=1 // loop_pre_header
      _
    $region3: #{up_transition_forward.9} parent=1 // loop_header
      %s12 = sphi 0, %s16
      %p13 = scmp.ge.s32.totalorder %s12, 4
      %s19 = sphi 0, %s31
      %s20 = sphi 0, %s27
      %s21 = sphi 0, %s19
      %s22 = sphi 0, %s20
      %s23 = sphi 0, %s21
      %s24 = sphi 0, %s22
      %s36 = sphi 0, %s38
      %s39 = sphi 0, %s36
      %s40 = sphi 0, %s39
      %s56 = sphi 0, %s40
      %s60 = sphi 0, %s60
      %s62 = sphi 0, %s60
      %s63 = sphi 0, %s62
      %s77 = sphi 0, %s63
      %s81 = sphi 0, %s81
      %s83 = sphi 0, %s81
      %s84 = sphi 0, %s83
      %s98 = sphi 0, %s84
      %s106 = sphi 0, %s108
      %s109 = sphi 0, %s106
      %s110 = sphi 0, %s109
      %s126 = sphi 0, %s110
    $region4: #{up_transition_forward.9} parent=1 // loop_header_branch
      %15 = sbr.rel (%p13) target = $region8
    $region5: #{up_transition_forward.9} parent=1 // loop_body
      %s17 = ssub.s32 %s12, 1
      %s18 = ssub.s32 %s12, 2
      %s25 = sadd.s32 1, %s20
      %p26 = scmp.ge.s32.totalorder %s25, 1
      %s27 = scalar_select %p26, 0, %s25
      %s28 = sadd.s32 1, %s19
      %s29 = scalar_select %p26, %s28, %s19
      %p30 = scmp.ge.s32.totalorder %s29, 2
      %s31 = scalar_select %p30, 0, %s29
      %s32 = ssub.s32 %s19, %s31
      %s33 = ssub.s32 %s20, %s27
      %s34 = sor.u32 %s32, %s33
      %p35 = scmp.eq.s32.totalorder %s34, 0
      %s37 = sadd.s32 %s36, 1
      %s38 = scalar_select %p35, %s36, %s37
      %p41 = pneg %p35
      %p42 = scmp.eq.s32.totalorder %s12, 1
      %p43 = por %p41, %p42
      %p44 = scmp.ne.s32.totalorder %s36, %s39
      %p45 = scmp.eq.s32.totalorder %s12, 0
      %p46 = por %p44, %p45
      %p47 = scmp.ne.s32.totalorder %s36, %s39
      %p48 = scmp.eq.s32.totalorder %s17, 1
      %p49 = por %p47, %p48
      %p50 = scmp.ne.s32.totalorder %s39, %s40
      %p51 = scmp.eq.s32.totalorder %s17, 0
      %p52 = por %p50, %p51
      %p53 = scmp.ne.s32.totalorder %s39, %s40
      %p54 = scmp.eq.s32.totalorder %s18, 1
      %p55 = por %p53, %p54
      %p57 = scmp.ne.s32.totalorder %s40, %s56
      %p58 = scmp.eq.s32.totalorder %s18, 0
      %p59 = por %p57, %p58
      %s61 = sadd.s32 %s60, 1
      %p64 = scmp.eq.s32.totalorder %s12, 1
      %p65 = scmp.ne.s32.totalorder %s60, %s62
      %p66 = scmp.eq.s32.totalorder %s12, 0
      %p67 = por %p65, %p66
      %p68 = scmp.ne.s32.totalorder %s60, %s62
      %p69 = scmp.eq.s32.totalorder %s17, 1
      %p70 = por %p68, %p69
      %p71 = scmp.ne.s32.totalorder %s62, %s63
      %p72 = scmp.eq.s32.totalorder %s17, 0
      %p73 = por %p71, %p72
      %p74 = scmp.ne.s32.totalorder %s62, %s63
      %p75 = scmp.eq.s32.totalorder %s18, 1
      %p76 = por %p74, %p75
      %p78 = scmp.ne.s32.totalorder %s63, %s77
      %p79 = scmp.eq.s32.totalorder %s18, 0
      %p80 = por %p78, %p79
      %s82 = sadd.s32 %s81, 1
      %p85 = scmp.eq.s32.totalorder %s12, 1
      %p86 = scmp.ne.s32.totalorder %s81, %s83
      %p87 = scmp.eq.s32.totalorder %s12, 0
      %p88 = por %p86, %p87
      %p89 = scmp.ne.s32.totalorder %s81, %s83
      %p90 = scmp.eq.s32.totalorder %s17, 1
      %p91 = por %p89, %p90
      %p92 = scmp.ne.s32.totalorder %s83, %s84
      %p93 = scmp.eq.s32.totalorder %s17, 0
      %p94 = por %p92, %p93
      %p95 = scmp.ne.s32.totalorder %s83, %s84
      %p96 = scmp.eq.s32.totalorder %s18, 1
      %p97 = por %p95, %p96
      %p99 = scmp.ne.s32.totalorder %s84, %s98
      %p100 = scmp.eq.s32.totalorder %s18, 0
      %p101 = por %p99, %p100
      %s102 = ssub.s32 %s19, %s31
      %s103 = ssub.s32 %s20, %s27
      %s104 = sor.u32 %s102, %s103
      %p105 = scmp.eq.s32.totalorder %s104, 0
      %s107 = sadd.s32 %s106, 1
      %s108 = scalar_select %p105, %s106, %s107
      %p111 = pneg %p105
      %p112 = scmp.eq.s32.totalorder %s12, 1
      %p113 = por %p111, %p112
      %p114 = scmp.ne.s32.totalorder %s106, %s109
      %p115 = scmp.eq.s32.totalorder %s12, 0
      %p116 = por %p114, %p115
      %p117 = scmp.ne.s32.totalorder %s106, %s109
      %p118 = scmp.eq.s32.totalorder %s17, 1
      %p119 = por %p117, %p118
      %p120 = scmp.ne.s32.totalorder %s109, %s110
      %p121 = scmp.eq.s32.totalorder %s17, 0
      %p122 = por %p120, %p121
      %p123 = scmp.ne.s32.totalorder %s109, %s110
      %p124 = scmp.eq.s32.totalorder %s18, 1
      %p125 = por %p123, %p124
      %p127 = scmp.ne.s32.totalorder %s110, %s126
      %p128 = scmp.eq.s32.totalorder %s18, 0
      %p129 = por %p127, %p128
      %p130 = scmp.le.s32.totalorder 1, %s12
      %p131 = scmp.lt.s32.totalorder %s12, 3
      %p132 = pnand %p130, %p131
      %p133 = pneg %p132
      // Predicated region
      $region9: #{up_transition_forward.9} parent=5 // pred_check
        _
      $region10: #{up_transition_forward.9} parent=5 // pred_check_branch
        %135 = sbr.rel (%p132) target = $region12
      $region11: #{up_transition_forward.9} parent=5 // pred_region
        %s136 = ssub.s32 %s12, 1
        // Predicated region
        $region13: #{up_transition_forward.9} parent=11 // pred_check
          %p137 = pneg %p73
        $region14: #{up_transition_forward.9} parent=11 // pred_check_branch
          %139 = sbr.rel (%p137) target = $region16
        $region15: #{up_transition_forward.9} parent=11 // pred_region
          _
        $region16: #{up_transition_forward.9} parent=11 // pred_fallthru
          _
        // Predicated region
        $region17: #{up_transition_forward.9} parent=11 // pred_check
          %p140 = pneg %p94
        $region18: #{up_transition_forward.9} parent=11 // pred_check_branch
          %142 = sbr.rel (%p140) target = $region20
        $region19: #{up_transition_forward.9} parent=11 // pred_region
          _
        $region20: #{up_transition_forward.9} parent=11 // pred_fallthru
          _
      $region12: #{up_transition_forward.9} parent=5 // pred_fallthru
        _
      %p143 = scmp.lt.s32.totalorder %s12, 2
      // Predicated region
      $region21: #{up_transition_forward.9} parent=5 // pred_check
        %p144 = pneg %p143
      $region22: #{up_transition_forward.9} parent=5 // pred_check_branch
        %146 = sbr.rel (%p144) target = $region24
      $region23: #{up_transition_forward.9} parent=5 // pred_region
        // Predicated region
        $region25: #{up_transition_forward.9} parent=23 // pred_check
          %p147 = pneg %p46
        $region26: #{up_transition_forward.9} parent=23 // pred_check_branch
          %149 = sbr.rel (%p147) target = $region28
        $region27: #{up_transition_forward.9} parent=23 // pred_region
          %s150 = smul.u32 16, %s20
          %p151 = scmp.lt.s32.totalorder %s19, 1
          %s152 = scalar_select %p151, %s19, 1
          %p153 = scmp.lt.s32.totalorder %s150, 15
          %s154 = scalar_select %p153, %s150, 15
          %s155 = smul.addr %s154, 4
          %s156 = smul.addr %s152, 64
          %s157 = sadd.s32 %s155, %s156
          %s158 = smul.addr %s157, 8
          %s159 = scalar_lea.vmem %s0, %s158
          %s160 = smul.u32 16, %s20
        $region28: #{up_transition_forward.9} parent=23 // pred_fallthru
          _
      $region24: #{up_transition_forward.9} parent=5 // pred_fallthru
        _
      %p161 = scmp.le.s32.totalorder 1, %s12
      %p162 = scmp.lt.s32.totalorder %s12, 3
      %p163 = pnand %p161, %p162
      %p164 = pneg %p163
      // Predicated region
      $region29: #{up_transition_forward.9} parent=5 // pred_check
        _
      $region30: #{up_transition_forward.9} parent=5 // pred_check_branch
        %166 = sbr.rel (%p163) target = $region32
      $region31: #{up_transition_forward.9} parent=5 // pred_region
        %s167 = ssub.s32 %s12, 1
        %s168 = smul.u32 16, %s22
        %p169 = scmp.lt.s32.totalorder %s21, 1
        %s170 = scalar_select %p169, %s21, 1
        %p171 = scmp.lt.s32.totalorder %s168, 15
        %s172 = scalar_select %p171, %s168, 15
        %s173 = smul.addr %s172, 4
        %s174 = smul.addr %s170, 64
        %s175 = sadd.s32 %s173, %s174
        %s176 = smul.addr %s175, 8
        %s177 = scalar_lea.vmem %s0, %s176
        %p178 = pneg %p52
        %p179 = pneg %p49
        %p180 = pneg %p73
        %p181 = pneg %p70
        %p182 = pneg %p94
        %p183 = pneg %p91
        %p184 = pneg %p122
        %p185 = pneg %p119
        %s186 = sand.u32 %s109, 1
        %s187 = scalar_lea.sflag [#allocation3], %s186
        %s188 = sand.u32 %s109, 1
        %s189 = smul.addr %s188, 512
        %s190 = scalar_lea.vmem [#allocation2], %s189
        %s191 = smul.u32 16, %s22
        %p192 = scmp.lt.s32.totalorder %s21, 1
        %s193 = scalar_select %p192, %s21, 1
        %p194 = scmp.lt.s32.totalorder %s191, 15
        %s195 = scalar_select %p194, %s191, 15
        %s196 = smul.addr %s195, 4
        %s197 = smul.addr %s193, 64
        %s198 = sadd.s32 %s196, %s197
        %s199 = smul.addr %s198, 8
        %s200 = scalar_lea.vmem %s0, %s199
        %s201 = smul.u32 16, %s22
        %s202 = smul.u32 16, %s22
        %v203 = vld [vmem:[%s200] sm:$0xff]
        %v204 = vld [vmem:[%s200 + $0x8] sm:$0xff]
        %v205 = vld [vmem:[%s200 + $0x10] sm:$0xff]
        %v206 = vld [vmem:[%s200 + $0x18] sm:$0xff]
        %v207 = vld [vmem:[%s200 + $0x20] sm:$0xff]
        %v208 = vld [vmem:[%s200 + $0x28] sm:$0xff]
        %v209 = vld [vmem:[%s200 + $0x30] sm:$0xff]
        %v210 = vld [vmem:[%s200 + $0x38] sm:$0xff]
        %v211 = vld [vmem:[%s200 + $0x40] sm:$0xff]
        %v212 = vld [vmem:[%s200 + $0x48] sm:$0xff]
        %v213 = vld [vmem:[%s200 + $0x50] sm:$0xff]
        %v214 = vld [vmem:[%s200 + $0x58] sm:$0xff]
        %v215 = vld [vmem:[%s200 + $0x60] sm:$0xff]
        %v216 = vld [vmem:[%s200 + $0x68] sm:$0xff]
        %v217 = vld [vmem:[%s200 + $0x70] sm:$0xff]
        %v218 = vld [vmem:[%s200 + $0x78] sm:$0xff]
        %v219 = vld [vmem:[%s200 + $0x80] sm:$0xff]
        %v220 = vld [vmem:[%s200 + $0x88] sm:$0xff]
        %v221 = vld [vmem:[%s200 + $0x90] sm:$0xff]
        %v222 = vld [vmem:[%s200 + $0x98] sm:$0xff]
        %v223 = vld [vmem:[%s200 + $0xa0] sm:$0xff]
        %v224 = vld [vmem:[%s200 + $0xa8] sm:$0xff]
        %v225 = vld [vmem:[%s200 + $0xb0] sm:$0xff]
        %v226 = vld [vmem:[%s200 + $0xb8] sm:$0xff]
        %v227 = vld [vmem:[%s200 + $0xc0] sm:$0xff]
        %v228 = vld [vmem:[%s200 + $0xc8] sm:$0xff]
        %v229 = vld [vmem:[%s200 + $0xd0] sm:$0xff]
        %v230 = vld [vmem:[%s200 + $0xd8] sm:$0xff]
        %v231 = vld [vmem:[%s200 + $0xe0] sm:$0xff]
        %v232 = vld [vmem:[%s200 + $0xe8] sm:$0xff]
        %v233 = vld [vmem:[%s200 + $0xf0] sm:$0xff]
        %v234 = vld [vmem:[%s200 + $0xf8] sm:$0xff]
        %v235 = vld [vmem:[%s200 + $0x100] sm:$0xff]
        %v236 = vld [vmem:[%s200 + $0x108] sm:$0xff]
        %v237 = vld [vmem:[%s200 + $0x110] sm:$0xff]
        %v238 = vld [vmem:[%s200 + $0x118] sm:$0xff]
        %v239 = vld [vmem:[%s200 + $0x120] sm:$0xff]
        %v240 = vld [vmem:[%s200 + $0x128] sm:$0xff]
        %v241 = vld [vmem:[%s200 + $0x130] sm:$0xff]
        %v242 = vld [vmem:[%s200 + $0x138] sm:$0xff]
        %v243 = vld [vmem:[%s200 + $0x140] sm:$0xff]
        %v244 = vld [vmem:[%s200 + $0x148] sm:$0xff]
        %v245 = vld [vmem:[%s200 + $0x150] sm:$0xff]
        %v246 = vld [vmem:[%s200 + $0x158] sm:$0xff]
        %v247 = vld [vmem:[%s200 + $0x160] sm:$0xff]
        %v248 = vld [vmem:[%s200 + $0x168] sm:$0xff]
        %v249 = vld [vmem:[%s200 + $0x170] sm:$0xff]
        %v250 = vld [vmem:[%s200 + $0x178] sm:$0xff]
        %v251 = vld [vmem:[%s200 + $0x180] sm:$0xff]
        %v252 = vld [vmem:[%s200 + $0x188] sm:$0xff]
        %v253 = vld [vmem:[%s200 + $0x190] sm:$0xff]
        %v254 = vld [vmem:[%s200 + $0x198] sm:$0xff]
        %v255 = vld [vmem:[%s200 + $0x1a0] sm:$0xff]
        %v256 = vld [vmem:[%s200 + $0x1a8] sm:$0xff]
        %v257 = vld [vmem:[%s200 + $0x1b0] sm:$0xff]
        %v258 = vld [vmem:[%s200 + $0x1b8] sm:$0xff]
        %v259 = vld [vmem:[%s200 + $0x1c0] sm:$0xff]
        %v260 = vld [vmem:[%s200 + $0x1c8] sm:$0xff]
        %v261 = vld [vmem:[%s200 + $0x1d0] sm:$0xff]
        %v262 = vld [vmem:[%s200 + $0x1d8] sm:$0xff]
        %v263 = vld [vmem:[%s200 + $0x1e0] sm:$0xff]
        %v264 = vld [vmem:[%s200 + $0x1e8] sm:$0xff]
        %v265 = vld [vmem:[%s200 + $0x1f0] sm:$0xff]
        %v266 = vld [vmem:[%s200 + $0x1f8] sm:$0xff]
        %v267 = vld [vmem:[%s1] sm:$0x3]
        %v269 = vlaneseq
        %v270 = vshrl.u32 %v269, 7
        %v271 = vsub.s32 0, %v270
        %v272 = vrot.slane %v267, %v271
        %v273 = vlaneseq
        %v274 = vshrl.u32 %v273, 7
        %v275 = vsub.s32 1, %v274
        %v276 = vrot.slane %v267, %v275
        %v279 = vmul.f32 %v203, %v272
        %v280 = vmul.f32 %v204, %v276
        %v281 = vmul.f32 %v205, %v272
        %v282 = vmul.f32 %v206, %v276
        %v283 = vmul.f32 %v207, %v272
        %v284 = vmul.f32 %v208, %v276
        %v285 = vmul.f32 %v209, %v272
        %v286 = vmul.f32 %v210, %v276
        %v287 = vmul.f32 %v211, %v272
        %v288 = vmul.f32 %v212, %v276
        %v289 = vmul.f32 %v213, %v272
        %v290 = vmul.f32 %v214, %v276
        %v291 = vmul.f32 %v215, %v272
        %v292 = vmul.f32 %v216, %v276
        %v293 = vmul.f32 %v217, %v272
        %v294 = vmul.f32 %v218, %v276
        %v295 = vmul.f32 %v219, %v272
        %v296 = vmul.f32 %v220, %v276
        %v297 = vmul.f32 %v221, %v272
        %v298 = vmul.f32 %v222, %v276
        %v299 = vmul.f32 %v223, %v272
        %v300 = vmul.f32 %v224, %v276
        %v301 = vmul.f32 %v225, %v272
        %v302 = vmul.f32 %v226, %v276
        %v303 = vmul.f32 %v227, %v272
        %v304 = vmul.f32 %v228, %v276
        %v305 = vmul.f32 %v229, %v272
        %v306 = vmul.f32 %v230, %v276
        %v307 = vmul.f32 %v231, %v272
        %v308 = vmul.f32 %v232, %v276
        %v309 = vmul.f32 %v233, %v272
        %v310 = vmul.f32 %v234, %v276
        %v311 = vmul.f32 %v235, %v272
        %v312 = vmul.f32 %v236, %v276
        %v313 = vmul.f32 %v237, %v272
        %v314 = vmul.f32 %v238, %v276
        %v315 = vmul.f32 %v239, %v272
        %v316 = vmul.f32 %v240, %v276
        %v317 = vmul.f32 %v241, %v272
        %v318 = vmul.f32 %v242, %v276
        %v319 = vmul.f32 %v243, %v272
        %v320 = vmul.f32 %v244, %v276
        %v321 = vmul.f32 %v245, %v272
        %v322 = vmul.f32 %v246, %v276
        %v323 = vmul.f32 %v247, %v272
        %v324 = vmul.f32 %v248, %v276
        %v325 = vmul.f32 %v249, %v272
        %v326 = vmul.f32 %v250, %v276
        %v327 = vmul.f32 %v251, %v272
        %v328 = vmul.f32 %v252, %v276
        %v329 = vmul.f32 %v253, %v272
        %v330 = vmul.f32 %v254, %v276
        %v331 = vmul.f32 %v255, %v272
        %v332 = vmul.f32 %v256, %v276
        %v333 = vmul.f32 %v257, %v272
        %v334 = vmul.f32 %v258, %v276
        %v335 = vmul.f32 %v259, %v272
        %v336 = vmul.f32 %v260, %v276
        %v337 = vmul.f32 %v261, %v272
        %v338 = vmul.f32 %v262, %v276
        %v339 = vmul.f32 %v263, %v272
        %v340 = vmul.f32 %v264, %v276
        %v341 = vmul.f32 %v265, %v272
        %v342 = vmul.f32 %v266, %v276
        %v343 = vld [vmem:[%s2] sm:$0x3]
        %v345 = vlaneseq
        %v346 = vshrl.u32 %v345, 7
        %v347 = vsub.s32 0, %v346
        %v348 = vrot.slane %v343, %v347
        %v349 = vlaneseq
        %v350 = vshrl.u32 %v349, 7
        %v351 = vsub.s32 1, %v350
        %v352 = vrot.slane %v343, %v351
        %v355 = vadd.f32 %v279, %v348
        %v356 = vadd.f32 %v280, %v352
        %v357 = vadd.f32 %v281, %v348
        %v358 = vadd.f32 %v282, %v352
        %v359 = vadd.f32 %v283, %v348
        %v360 = vadd.f32 %v284, %v352
        %v361 = vadd.f32 %v285, %v348
        %v362 = vadd.f32 %v286, %v352
        %v363 = vadd.f32 %v287, %v348
        %v364 = vadd.f32 %v288, %v352
        %v365 = vadd.f32 %v289, %v348
        %v366 = vadd.f32 %v290, %v352
        %v367 = vadd.f32 %v291, %v348
        %v368 = vadd.f32 %v292, %v352
        %v369 = vadd.f32 %v293, %v348
        %v370 = vadd.f32 %v294, %v352
        %v371 = vadd.f32 %v295, %v348
        %v372 = vadd.f32 %v296, %v352
        %v373 = vadd.f32 %v297, %v348
        %v374 = vadd.f32 %v298, %v352
        %v375 = vadd.f32 %v299, %v348
        %v376 = vadd.f32 %v300, %v352
        %v377 = vadd.f32 %v301, %v348
        %v378 = vadd.f32 %v302, %v352
        %v379 = vadd.f32 %v303, %v348
        %v380 = vadd.f32 %v304, %v352
        %v381 = vadd.f32 %v305, %v348
        %v382 = vadd.f32 %v306, %v352
        %v383 = vadd.f32 %v307, %v348
        %v384 = vadd.f32 %v308, %v352
        %v385 = vadd.f32 %v309, %v348
        %v386 = vadd.f32 %v310, %v352
        %v387 = vadd.f32 %v311, %v348
        %v388 = vadd.f32 %v312, %v352
        %v389 = vadd.f32 %v313, %v348
        %v390 = vadd.f32 %v314, %v352
        %v391 = vadd.f32 %v315, %v348
        %v392 = vadd.f32 %v316, %v352
        %v393 = vadd.f32 %v317, %v348
        %v394 = vadd.f32 %v318, %v352
        %v395 = vadd.f32 %v319, %v348
        %v396 = vadd.f32 %v320, %v352
        %v397 = vadd.f32 %v321, %v348
        %v398 = vadd.f32 %v322, %v352
        %v399 = vadd.f32 %v323, %v348
        %v400 = vadd.f32 %v324, %v352
        %v401 = vadd.f32 %v325, %v348
        %v402 = vadd.f32 %v326, %v352
        %v403 = vadd.f32 %v327, %v348
        %v404 = vadd.f32 %v328, %v352
        %v405 = vadd.f32 %v329, %v348
        %v406 = vadd.f32 %v330, %v352
        %v407 = vadd.f32 %v331, %v348
        %v408 = vadd.f32 %v332, %v352
        %v409 = vadd.f32 %v333, %v348
        %v410 = vadd.f32 %v334, %v352
        %v411 = vadd.f32 %v335, %v348
        %v412 = vadd.f32 %v336, %v352
        %v413 = vadd.f32 %v337, %v348
        %v414 = vadd.f32 %v338, %v352
        %v415 = vadd.f32 %v339, %v348
        %v416 = vadd.f32 %v340, %v352
        %v417 = vadd.f32 %v341, %v348
        %v418 = vadd.f32 %v342, %v352
        %v419 = vmax.f32 %v355, 0.0
        %v420 = vmax.f32 %v356, 0.0
        %v421 = vmax.f32 %v357, 0.0
        %v422 = vmax.f32 %v358, 0.0
        %v423 = vmax.f32 %v359, 0.0
        %v424 = vmax.f32 %v360, 0.0
        %v425 = vmax.f32 %v361, 0.0
        %v426 = vmax.f32 %v362, 0.0
        %v427 = vmax.f32 %v363, 0.0
        %v428 = vmax.f32 %v364, 0.0
        %v429 = vmax.f32 %v365, 0.0
        %v430 = vmax.f32 %v366, 0.0
        %v431 = vmax.f32 %v367, 0.0
        %v432 = vmax.f32 %v368, 0.0
        %v433 = vmax.f32 %v369, 0.0
        %v434 = vmax.f32 %v370, 0.0
        %v435 = vmax.f32 %v371, 0.0
        %v436 = vmax.f32 %v372, 0.0
        %v437 = vmax.f32 %v373, 0.0
        %v438 = vmax.f32 %v374, 0.0
        %v439 = vmax.f32 %v375, 0.0
        %v440 = vmax.f32 %v376, 0.0
        %v441 = vmax.f32 %v377, 0.0
        %v442 = vmax.f32 %v378, 0.0
        %v443 = vmax.f32 %v379, 0.0
        %v444 = vmax.f32 %v380, 0.0
        %v445 = vmax.f32 %v381, 0.0
        %v446 = vmax.f32 %v382, 0.0
        %v447 = vmax.f32 %v383, 0.0
        %v448 = vmax.f32 %v384, 0.0
        %v449 = vmax.f32 %v385, 0.0
        %v450 = vmax.f32 %v386, 0.0
        %v451 = vmax.f32 %v387, 0.0
        %v452 = vmax.f32 %v388, 0.0
        %v453 = vmax.f32 %v389, 0.0
        %v454 = vmax.f32 %v390, 0.0
        %v455 = vmax.f32 %v391, 0.0
        %v456 = vmax.f32 %v392, 0.0
        %v457 = vmax.f32 %v393, 0.0
        %v458 = vmax.f32 %v394, 0.0
        %v459 = vmax.f32 %v395, 0.0
        %v460 = vmax.f32 %v396, 0.0
        %v461 = vmax.f32 %v397, 0.0
        %v462 = vmax.f32 %v398, 0.0
        %v463 = vmax.f32 %v399, 0.0
        %v464 = vmax.f32 %v400, 0.0
        %v465 = vmax.f32 %v401, 0.0
        %v466 = vmax.f32 %v402, 0.0
        %v467 = vmax.f32 %v403, 0.0
        %v468 = vmax.f32 %v404, 0.0
        %v469 = vmax.f32 %v405, 0.0
        %v470 = vmax.f32 %v406, 0.0
        %v471 = vmax.f32 %v407, 0.0
        %v472 = vmax.f32 %v408, 0.0
        %v473 = vmax.f32 %v409, 0.0
        %v474 = vmax.f32 %v410, 0.0
        %v475 = vmax.f32 %v411, 0.0
        %v476 = vmax.f32 %v412, 0.0
        %v477 = vmax.f32 %v413, 0.0
        %v478 = vmax.f32 %v414, 0.0
        %v479 = vmax.f32 %v415, 0.0
        %v480 = vmax.f32 %v416, 0.0
        %v481 = vmax.f32 %v417, 0.0
        %v482 = vmax.f32 %v418, 0.0
        %483 = vst [vmem:[%s190] sm:$0xff] %v419
        %484 = vst [vmem:[%s190 + $0x8] sm:$0xff] %v420
        %485 = vst [vmem:[%s190 + $0x10] sm:$0xff] %v421
        %486 = vst [vmem:[%s190 + $0x18] sm:$0xff] %v422
        %487 = vst [vmem:[%s190 + $0x20] sm:$0xff] %v423
        %488 = vst [vmem:[%s190 + $0x28] sm:$0xff] %v424
        %489 = vst [vmem:[%s190 + $0x30] sm:$0xff] %v425
        %490 = vst [vmem:[%s190 + $0x38] sm:$0xff] %v426
        %491 = vst [vmem:[%s190 + $0x40] sm:$0xff] %v427
        %492 = vst [vmem:[%s190 + $0x48] sm:$0xff] %v428
        %493 = vst [vmem:[%s190 + $0x50] sm:$0xff] %v429
        %494 = vst [vmem:[%s190 + $0x58] sm:$0xff] %v430
        %495 = vst [vmem:[%s190 + $0x60] sm:$0xff] %v431
        %496 = vst [vmem:[%s190 + $0x68] sm:$0xff] %v432
        %497 = vst [vmem:[%s190 + $0x70] sm:$0xff] %v433
        %498 = vst [vmem:[%s190 + $0x78] sm:$0xff] %v434
        %499 = vst [vmem:[%s190 + $0x80] sm:$0xff] %v435
        %500 = vst [vmem:[%s190 + $0x88] sm:$0xff] %v436
        %501 = vst [vmem:[%s190 + $0x90] sm:$0xff] %v437
        %502 = vst [vmem:[%s190 + $0x98] sm:$0xff] %v438
        %503 = vst [vmem:[%s190 + $0xa0] sm:$0xff] %v439
        %504 = vst [vmem:[%s190 + $0xa8] sm:$0xff] %v440
        %505 = vst [vmem:[%s190 + $0xb0] sm:$0xff] %v441
        %506 = vst [vmem:[%s190 + $0xb8] sm:$0xff] %v442
        %507 = vst [vmem:[%s190 + $0xc0] sm:$0xff] %v443
        %508 = vst [vmem:[%s190 + $0xc8] sm:$0xff] %v444
        %509 = vst [vmem:[%s190 + $0xd0] sm:$0xff] %v445
        %510 = vst [vmem:[%s190 + $0xd8] sm:$0xff] %v446
        %511 = vst [vmem:[%s190 + $0xe0] sm:$0xff] %v447
        %512 = vst [vmem:[%s190 + $0xe8] sm:$0xff] %v448
        %513 = vst [vmem:[%s190 + $0xf0] sm:$0xff] %v449
        %514 = vst [vmem:[%s190 + $0xf8] sm:$0xff] %v450
        %515 = vst [vmem:[%s190 + $0x100] sm:$0xff] %v451
        %516 = vst [vmem:[%s190 + $0x108] sm:$0xff] %v452
        %517 = vst [vmem:[%s190 + $0x110] sm:$0xff] %v453
        %518 = vst [vmem:[%s190 + $0x118] sm:$0xff] %v454
        %519 = vst [vmem:[%s190 + $0x120] sm:$0xff] %v455
        %520 = vst [vmem:[%s190 + $0x128] sm:$0xff] %v456
        %521 = vst [vmem:[%s190 + $0x130] sm:$0xff] %v457
        %522 = vst [vmem:[%s190 + $0x138] sm:$0xff] %v458
        %523 = vst [vmem:[%s190 + $0x140] sm:$0xff] %v459
        %524 = vst [vmem:[%s190 + $0x148] sm:$0xff] %v460
        %525 = vst [vmem:[%s190 + $0x150] sm:$0xff] %v461
        %526 = vst [vmem:[%s190 + $0x158] sm:$0xff] %v462
        %527 = vst [vmem:[%s190 + $0x160] sm:$0xff] %v463
        %528 = vst [vmem:[%s190 + $0x168] sm:$0xff] %v464
        %529 = vst [vmem:[%s190 + $0x170] sm:$0xff] %v465
        %530 = vst [vmem:[%s190 + $0x178] sm:$0xff] %v466
        %531 = vst [vmem:[%s190 + $0x180] sm:$0xff] %v467
        %532 = vst [vmem:[%s190 + $0x188] sm:$0xff] %v468
        %533 = vst [vmem:[%s190 + $0x190] sm:$0xff] %v469
        %534 = vst [vmem:[%s190 + $0x198] sm:$0xff] %v470
        %535 = vst [vmem:[%s190 + $0x1a0] sm:$0xff] %v471
        %536 = vst [vmem:[%s190 + $0x1a8] sm:$0xff] %v472
        %537 = vst [vmem:[%s190 + $0x1b0] sm:$0xff] %v473
        %538 = vst [vmem:[%s190 + $0x1b8] sm:$0xff] %v474
        %539 = vst [vmem:[%s190 + $0x1c0] sm:$0xff] %v475
        %540 = vst [vmem:[%s190 + $0x1c8] sm:$0xff] %v476
        %541 = vst [vmem:[%s190 + $0x1d0] sm:$0xff] %v477
        %542 = vst [vmem:[%s190 + $0x1d8] sm:$0xff] %v478
        %543 = vst [vmem:[%s190 + $0x1e0] sm:$0xff] %v479
        %544 = vst [vmem:[%s190 + $0x1e8] sm:$0xff] %v480
        %545 = vst [vmem:[%s190 + $0x1f0] sm:$0xff] %v481
        %546 = vst [vmem:[%s190 + $0x1f8] sm:$0xff] %v482
        %s547 = sand.u32 %s109, 1
        %s548 = scalar_lea.sflag [#allocation3], %s547
        %s549 = sand.u32 %s109, 1
        %s550 = smul.addr %s549, 512
        %s551 = scalar_lea.vmem [#allocation2], %s550
        // Predicated region
        $region33: #{up_transition_forward.9} parent=31 // pred_check
          %p552 = pneg %p119
        $region34: #{up_transition_forward.9} parent=31 // pred_check_branch
          %554 = sbr.rel (%p552) target = $region36
        $region35: #{up_transition_forward.9} parent=31 // pred_region
          %s555 = smul.u32 16, %s22
          %s557 = ssub.s32 8192, 8192
          %558 = vsyncadd %s548, %s557
          %s559 = smul.addr %s555, 4
          %s560 = smul.addr %s21, 64
          %s561 = sadd.s32 %s559, %s560
          %s562 = smul.addr %s561, 128
          %s563 = scalar_lea.hbm %s3, %s562
          %s564 = sshll.u32 %s551, 4
          %s565 = int_to_ptr.vmem [resolvable:$true] %s564
          %570 = dma.vmem_to_hbm [thread:$0]  %s565, 8192, %s563, %s548, 256, 256, 16
        $region36: #{up_transition_forward.9} parent=31 // pred_fallthru
          _
      $region32: #{up_transition_forward.9} parent=5 // pred_fallthru
        _
      %p571 = scmp.le.s32.totalorder 2, %s12
      // Predicated region
      $region37: #{up_transition_forward.9} parent=5 // pred_check
        %p572 = pneg %p571
      $region38: #{up_transition_forward.9} parent=5 // pred_check_branch
        %574 = sbr.rel (%p572) target = $region40
      $region39: #{up_transition_forward.9} parent=5 // pred_region
        %s575 = ssub.s32 %s12, 2
        // Predicated region
        $region41: #{up_transition_forward.9} parent=39 // pred_check
          %p576 = pneg %p125
        $region42: #{up_transition_forward.9} parent=39 // pred_check_branch
          %578 = sbr.rel (%p576) target = $region44
        $region43: #{up_transition_forward.9} parent=39 // pred_region
          %s579 = sand.u32 %s110, 1
          %s580 = scalar_lea.sflag [#allocation3], %s579
          %s581 = sand.u32 %s110, 1
          %s582 = smul.addr %s581, 512
          %s583 = scalar_lea.vmem [#allocation2], %s582
          %584 = dma.done %s580, 8192
        $region44: #{up_transition_forward.9} parent=39 // pred_fallthru
          _
      $region40: #{up_transition_forward.9} parent=5 // pred_fallthru
        _
    $region6: #{up_transition_forward.9} parent=1 // loop_footer
      %s16 = sadd.s32 1, %s12
    $region7: #{up_transition_forward.9} parent=1 // loop_footer_branch
      %11 = sbr.rel target = $region3
    $region8: #{up_transition_forward.9} parent=1 // loop_exit
      _
    %585 = vsyncpa [#allocation3], 1
    %s586 = scalar_lea.sflag [#allocation3], 1
    %587 = vsyncpa %s586, 1

// kernel: up_transition_forward.6
$region0: #{up_transition_forward.6}
  #allocation0 [shape = 'u32[]', space=smem, size = 0x4, offset = 0x4, fixed_abs, tag = 'smem constant byte address 0x4 - core index']
  #allocation1 [shape = 'u32[144,128]{1,0:T(1,128)}', space=vmem, size = 0x12000, scoped, tag = 'internal scratch']
  %s0 = inlined_call_operand.vmem [shape: bf16[2,16,3,18,128], index: 0, kind: input, shape index: {}]
  %s1 = inlined_call_operand.vmem [shape: bf16[9,128,128], index: 1, kind: input, shape index: {}]
  %s2 = inlined_call_operand.vmem [shape: f32[2,16,16,128], index: 2, kind: output, shape index: {0}]
  %s3 = inlined_call_operand.vmem [shape: f32[2,1,2,128], index: 3, kind: output, shape index: {1}]
  %4 = xla_tuple %s2, %s3
  %s5 = sld [smem:[#allocation0]]
  $region49: #{up_transition_forward.6} parent=0
    _
  %s7 = ssub.s32 1, %s5
  %s8 = scalar_select 0, %s7, %s5
  loop: start=0, step=1, limit=4
  $region2: #{up_transition_forward.6} parent=0 // loop_pre_header
    _
  $region3: #{up_transition_forward.6} parent=0 // loop_header
    %s10 = sphi 0, %s14
    %p11 = scmp.ge.s32.totalorder %s10, 4
    %s17 = sphi 0, %s29
    %s18 = sphi 0, %s25
    %s19 = sphi 0, %s17
    %s20 = sphi 0, %s18
    %s21 = sphi 0, %s19
    %s22 = sphi 0, %s20
    %s34 = sphi 0, %s36
    %s37 = sphi 0, %s34
    %s38 = sphi 0, %s37
    %s54 = sphi 0, %s38
    %s58 = sphi 0, %s58
    %s60 = sphi 0, %s58
    %s61 = sphi 0, %s60
    %s75 = sphi 0, %s61
    %s83 = sphi 0, %s85
    %s86 = sphi 0, %s83
    %s87 = sphi 0, %s86
    %s103 = sphi 0, %s87
    %s111 = sphi 0, %s113
    %s114 = sphi 0, %s111
    %s115 = sphi 0, %s114
    %s131 = sphi 0, %s115
  $region4: #{up_transition_forward.6} parent=0 // loop_header_branch
    %13 = sbr.rel (%p11) target = $region8
  $region5: #{up_transition_forward.6} parent=0 // loop_body
    %s15 = ssub.s32 %s10, 1
    %s16 = ssub.s32 %s10, 2
    %s23 = sadd.s32 1, %s18
    %p24 = scmp.ge.s32.totalorder %s23, 1
    %s25 = scalar_select %p24, 0, %s23
    %s26 = sadd.s32 1, %s17
    %s27 = scalar_select %p24, %s26, %s17
    %p28 = scmp.ge.s32.totalorder %s27, 2
    %s29 = scalar_select %p28, 0, %s27
    %s30 = ssub.s32 %s17, %s29
    %s31 = ssub.s32 %s18, %s25
    %s32 = sor.u32 %s30, %s31
    %p33 = scmp.eq.s32.totalorder %s32, 0
    %s35 = sadd.s32 %s34, 1
    %s36 = scalar_select %p33, %s34, %s35
    %p39 = pneg %p33
    %p40 = scmp.eq.s32.totalorder %s10, 1
    %p41 = por %p39, %p40
    %p42 = scmp.ne.s32.totalorder %s34, %s37
    %p43 = scmp.eq.s32.totalorder %s10, 0
    %p44 = por %p42, %p43
    %p45 = scmp.ne.s32.totalorder %s34, %s37
    %p46 = scmp.eq.s32.totalorder %s15, 1
    %p47 = por %p45, %p46
    %p48 = scmp.ne.s32.totalorder %s37, %s38
    %p49 = scmp.eq.s32.totalorder %s15, 0
    %p50 = por %p48, %p49
    %p51 = scmp.ne.s32.totalorder %s37, %s38
    %p52 = scmp.eq.s32.totalorder %s16, 1
    %p53 = por %p51, %p52
    %p55 = scmp.ne.s32.totalorder %s38, %s54
    %p56 = scmp.eq.s32.totalorder %s16, 0
    %p57 = por %p55, %p56
    %s59 = sadd.s32 %s58, 1
    %p62 = scmp.eq.s32.totalorder %s10, 1
    %p63 = scmp.ne.s32.totalorder %s58, %s60
    %p64 = scmp.eq.s32.totalorder %s10, 0
    %p65 = por %p63, %p64
    %p66 = scmp.ne.s32.totalorder %s58, %s60
    %p67 = scmp.eq.s32.totalorder %s15, 1
    %p68 = por %p66, %p67
    %p69 = scmp.ne.s32.totalorder %s60, %s61
    %p70 = scmp.eq.s32.totalorder %s15, 0
    %p71 = por %p69, %p70
    %p72 = scmp.ne.s32.totalorder %s60, %s61
    %p73 = scmp.eq.s32.totalorder %s16, 1
    %p74 = por %p72, %p73
    %p76 = scmp.ne.s32.totalorder %s61, %s75
    %p77 = scmp.eq.s32.totalorder %s16, 0
    %p78 = por %p76, %p77
    %s79 = ssub.s32 %s17, %s29
    %s80 = ssub.s32 %s18, %s25
    %s81 = sor.u32 %s79, %s80
    %p82 = scmp.eq.s32.totalorder %s81, 0
    %s84 = sadd.s32 %s83, 1
    %s85 = scalar_select %p82, %s83, %s84
    %p88 = pneg %p82
    %p89 = scmp.eq.s32.totalorder %s10, 1
    %p90 = por %p88, %p89
    %p91 = scmp.ne.s32.totalorder %s83, %s86
    %p92 = scmp.eq.s32.totalorder %s10, 0
    %p93 = por %p91, %p92
    %p94 = scmp.ne.s32.totalorder %s83, %s86
    %p95 = scmp.eq.s32.totalorder %s15, 1
    %p96 = por %p94, %p95
    %p97 = scmp.ne.s32.totalorder %s86, %s87
    %p98 = scmp.eq.s32.totalorder %s15, 0
    %p99 = por %p97, %p98
    %p100 = scmp.ne.s32.totalorder %s86, %s87
    %p101 = scmp.eq.s32.totalorder %s16, 1
    %p102 = por %p100, %p101
    %p104 = scmp.ne.s32.totalorder %s87, %s103
    %p105 = scmp.eq.s32.totalorder %s16, 0
    %p106 = por %p104, %p105
    %s107 = ssub.s32 %s17, %s29
    %s108 = ssub.s32 %s18, %s25
    %s109 = sor.u32 %s107, %s108
    %p110 = scmp.eq.s32.totalorder %s109, 0
    %s112 = sadd.s32 %s111, 1
    %s113 = scalar_select %p110, %s111, %s112
    %p116 = pneg %p110
    %p117 = scmp.eq.s32.totalorder %s10, 1
    %p118 = por %p116, %p117
    %p119 = scmp.ne.s32.totalorder %s111, %s114
    %p120 = scmp.eq.s32.totalorder %s10, 0
    %p121 = por %p119, %p120
    %p122 = scmp.ne.s32.totalorder %s111, %s114
    %p123 = scmp.eq.s32.totalorder %s15, 1
    %p124 = por %p122, %p123
    %p125 = scmp.ne.s32.totalorder %s114, %s115
    %p126 = scmp.eq.s32.totalorder %s15, 0
    %p127 = por %p125, %p126
    %p128 = scmp.ne.s32.totalorder %s114, %s115
    %p129 = scmp.eq.s32.totalorder %s16, 1
    %p130 = por %p128, %p129
    %p132 = scmp.ne.s32.totalorder %s115, %s131
    %p133 = scmp.eq.s32.totalorder %s16, 0
    %p134 = por %p132, %p133
    %p135 = scmp.le.s32.totalorder 1, %s10
    %p136 = scmp.lt.s32.totalorder %s10, 3
    %p137 = pnand %p135, %p136
    %p138 = pneg %p137
    // Predicated region
    $region9: #{up_transition_forward.6} parent=5 // pred_check
      _
    $region10: #{up_transition_forward.6} parent=5 // pred_check_branch
      %140 = sbr.rel (%p137) target = $region12
    $region11: #{up_transition_forward.6} parent=5 // pred_region
      %s141 = ssub.s32 %s10, 1
      // Predicated region
      $region13: #{up_transition_forward.6} parent=11 // pred_check
        %p142 = pneg %p71
      $region14: #{up_transition_forward.6} parent=11 // pred_check_branch
        %144 = sbr.rel (%p142) target = $region16
      $region15: #{up_transition_forward.6} parent=11 // pred_region
        _
      $region16: #{up_transition_forward.6} parent=11 // pred_fallthru
        _
    $region12: #{up_transition_forward.6} parent=5 // pred_fallthru
      _
    %p145 = scmp.lt.s32.totalorder %s10, 2
    // Predicated region
    $region17: #{up_transition_forward.6} parent=5 // pred_check
      %p146 = pneg %p145
    $region18: #{up_transition_forward.6} parent=5 // pred_check_branch
      %148 = sbr.rel (%p146) target = $region20
    $region19: #{up_transition_forward.6} parent=5 // pred_region
      // Predicated region
      $region21: #{up_transition_forward.6} parent=19 // pred_check
        %p149 = pneg %p44
      $region22: #{up_transition_forward.6} parent=19 // pred_check_branch
        %151 = sbr.rel (%p149) target = $region24
      $region23: #{up_transition_forward.6} parent=19 // pred_region
        %s152 = smul.u32 16, %s18
        %p153 = scmp.lt.s32.totalorder %s17, 1
        %s154 = scalar_select %p153, %s17, 1
        %p155 = scmp.lt.s32.totalorder %s152, 15
        %s156 = scalar_select %p155, %s152, 15
        %s157 = smul.addr %s156, 9
        %s158 = smul.addr %s154, 144
        %s159 = sadd.s32 %s157, %s158
        %s160 = smul.addr %s159, 4
        %s161 = scalar_lea.vmem %s0, %s160
        %s162 = smul.u32 16, %s18
      $region24: #{up_transition_forward.6} parent=19 // pred_fallthru
        _
    $region20: #{up_transition_forward.6} parent=5 // pred_fallthru
      _
    %p163 = scmp.le.s32.totalorder 1, %s10
    %p164 = scmp.lt.s32.totalorder %s10, 3
    %p165 = pnand %p163, %p164
    %p166 = pneg %p165
    // Predicated region
    $region25: #{up_transition_forward.6} parent=5 // pred_check
      _
    $region26: #{up_transition_forward.6} parent=5 // pred_check_branch
      %168 = sbr.rel (%p165) target = $region28
    $region27: #{up_transition_forward.6} parent=5 // pred_region
      %s169 = ssub.s32 %s10, 1
      %s170 = smul.u32 16, %s20
      %p171 = scmp.lt.s32.totalorder %s19, 1
      %s172 = scalar_select %p171, %s19, 1
      %p173 = scmp.lt.s32.totalorder %s170, 15
      %s174 = scalar_select %p173, %s170, 15
      %s175 = smul.addr %s174, 9
      %s176 = smul.addr %s172, 144
      %s177 = sadd.s32 %s175, %s176
      %s178 = smul.addr %s177, 4
      %s179 = scalar_lea.vmem %s0, %s178
      %p180 = pneg %p50
      %p181 = pneg %p47
      %p182 = pneg %p71
      %p183 = pneg %p68
      %p184 = pneg %p99
      %p185 = pneg %p96
      %s186 = smul.u32 16, %s20
      %p187 = scmp.lt.s32.totalorder %s19, 1
      %s188 = scalar_select %p187, %s19, 1
      %p189 = scmp.lt.s32.totalorder %s186, 15
      %s190 = scalar_select %p189, %s186, 15
      %s191 = smul.addr %s190, 2
      %s192 = smul.addr %s188, 32
      %s193 = sadd.s32 %s191, %s192
      %s194 = smul.addr %s193, 8
      %s195 = scalar_lea.vmem %s2, %s194
      %p196 = pneg %p127
      %p197 = pneg %p124
      %p198 = scmp.lt.s32.totalorder %s19, 1
      %s199 = scalar_select %p198, %s19, 1
      %p200 = scmp.lt.s32.totalorder %s20, 0
      %s201 = scalar_select %p200, %s20, 0
      %s202 = sadd.s32 %s201, %s199
      %s203 = smul.addr %s202, 2
      %s204 = scalar_lea.vmem %s3, %s203
      %s205 = smul.u32 16, %s20
      %p206 = scmp.lt.s32.totalorder %s19, 1
      %s207 = scalar_select %p206, %s19, 1
      %p208 = scmp.lt.s32.totalorder %s205, 15
      %s209 = scalar_select %p208, %s205, 15
      %s210 = smul.addr %s209, 9
      %s211 = smul.addr %s207, 144
      %s212 = sadd.s32 %s210, %s211
      %s213 = smul.addr %s212, 4
      %s214 = scalar_lea.vmem %s0, %s213
      %s215 = smul.u32 16, %s20
      %s216 = smul.u32 16, %s20
      %p217 = scmp.lt.s32.totalorder %s19, 1
      %s218 = scalar_select %p217, %s19, 1
      %p219 = scmp.lt.s32.totalorder %s216, 15
      %s220 = scalar_select %p219, %s216, 15
      %s221 = smul.addr %s220, 2
      %s222 = smul.addr %s218, 32
      %s223 = sadd.s32 %s221, %s222
      %s224 = smul.addr %s223, 8
      %s225 = scalar_lea.vmem %s2, %s224
      %s226 = smul.u32 16, %s20
      %p227 = scmp.lt.s32.totalorder %s19, 1
      %s228 = scalar_select %p227, %s19, 1
      %p229 = scmp.lt.s32.totalorder %s20, 0
      %s230 = scalar_select %p229, %s20, 0
      %s231 = sadd.s32 %s230, %s228
      %s232 = smul.addr %s231, 2
      %s233 = scalar_lea.vmem %s3, %s232
      %v235 = vld [vmem:[%s214] sm:$0xf]
      %v236 = vld [vmem:[%s214 + $0x4] sm:$0xf]
      %v237 = vld [vmem:[%s214 + $0x8] sm:$0x1]
      %v238 = vld [vmem:[%s214 + $0x24] sm:$0xf]
      %v239 = vld [vmem:[%s214 + $0x28] sm:$0xf]
      %v240 = vld [vmem:[%s214 + $0x2c] sm:$0x1]
      %v241 = vld [vmem:[%s214 + $0x48] sm:$0xf]
      %v242 = vld [vmem:[%s214 + $0x4c] sm:$0xf]
      %v243 = vld [vmem:[%s214 + $0x50] sm:$0x1]
      %v244 = vld [vmem:[%s214 + $0x6c] sm:$0xf]
      %v245 = vld [vmem:[%s214 + $0x70] sm:$0xf]
      %v246 = vld [vmem:[%s214 + $0x74] sm:$0x1]
      %v247 = vld [vmem:[%s214 + $0x90] sm:$0xf]
      %v248 = vld [vmem:[%s214 + $0x94] sm:$0xf]
      %v249 = vld [vmem:[%s214 + $0x98] sm:$0x1]
      %v250 = vld [vmem:[%s214 + $0xb4] sm:$0xf]
      %v251 = vld [vmem:[%s214 + $0xb8] sm:$0xf]
      %v252 = vld [vmem:[%s214 + $0xbc] sm:$0x1]
      %v253 = vld [vmem:[%s214 + $0xd8] sm:$0xf]
      %v254 = vld [vmem:[%s214 + $0xdc] sm:$0xf]
      %v255 = vld [vmem:[%s214 + $0xe0] sm:$0x1]
      %v256 = vld [vmem:[%s214 + $0xfc] sm:$0xf]
      %v257 = vld [vmem:[%s214 + $0x100] sm:$0xf]
      %v258 = vld [vmem:[%s214 + $0x104] sm:$0x1]
      %v259 = vld [vmem:[%s214 + $0x120] sm:$0xf]
      %v260 = vld [vmem:[%s214 + $0x124] sm:$0xf]
      %v261 = vld [vmem:[%s214 + $0x128] sm:$0x1]
      %v262 = vld [vmem:[%s214 + $0x144] sm:$0xf]
      %v263 = vld [vmem:[%s214 + $0x148] sm:$0xf]
      %v264 = vld [vmem:[%s214 + $0x14c] sm:$0x1]
      %v265 = vld [vmem:[%s214 + $0x168] sm:$0xf]
      %v266 = vld [vmem:[%s214 + $0x16c] sm:$0xf]
      %v267 = vld [vmem:[%s214 + $0x170] sm:$0x1]
      %v268 = vld [vmem:[%s214 + $0x18c] sm:$0xf]
      %v269 = vld [vmem:[%s214 + $0x190] sm:$0xf]
      %v270 = vld [vmem:[%s214 + $0x194] sm:$0x1]
      %v271 = vld [vmem:[%s214 + $0x1b0] sm:$0xf]
      %v272 = vld [vmem:[%s214 + $0x1b4] sm:$0xf]
      %v273 = vld [vmem:[%s214 + $0x1b8] sm:$0x1]
      %v274 = vld [vmem:[%s214 + $0x1d4] sm:$0xf]
      %v275 = vld [vmem:[%s214 + $0x1d8] sm:$0xf]
      %v276 = vld [vmem:[%s214 + $0x1dc] sm:$0x1]
      %v277 = vld [vmem:[%s214 + $0x1f8] sm:$0xf]
      %v278 = vld [vmem:[%s214 + $0x1fc] sm:$0xf]
      %v279 = vld [vmem:[%s214 + $0x200] sm:$0x1]
      %v280 = vld [vmem:[%s214 + $0x21c] sm:$0xf]
      %v281 = vld [vmem:[%s214 + $0x220] sm:$0xf]
      %v282 = vld [vmem:[%s214 + $0x224] sm:$0x1]
      %v283 = vld [vmem:[%s1] sm:$0xf]
      %v284 = vld [vmem:[%s1 + $0x4] sm:$0xf]
      %v285 = vld [vmem:[%s1 + $0x8] sm:$0xf]
      %v286 = vld [vmem:[%s1 + $0xc] sm:$0xf]
      %v287 = vld [vmem:[%s1 + $0x10] sm:$0xf]
      %v288 = vld [vmem:[%s1 + $0x14] sm:$0xf]
      %v289 = vld [vmem:[%s1 + $0x18] sm:$0xf]
      %v290 = vld [vmem:[%s1 + $0x1c] sm:$0xf]
      %v291 = vld [vmem:[%s1 + $0x20] sm:$0xf]
      %v292 = vld [vmem:[%s1 + $0x24] sm:$0xf]
      %v293 = vld [vmem:[%s1 + $0x28] sm:$0xf]
      %v294 = vld [vmem:[%s1 + $0x2c] sm:$0xf]
      %v295 = vld [vmem:[%s1 + $0x30] sm:$0xf]
      %v296 = vld [vmem:[%s1 + $0x34] sm:$0xf]
      %v297 = vld [vmem:[%s1 + $0x38] sm:$0xf]
      %v298 = vld [vmem:[%s1 + $0x3c] sm:$0xf]
      %vm299 = vsmask.f32 3328
      %vm300 = vsmask.f32 7440
      %vm301 = vmor %vm299, %vm300
      %v303 = vshrl.u32 %v235, 16
      %v305 = vrot.slane %v303, 4
      %v306 = vshll.u32 %v235, 16
      %v308 = vrot.slane %v306, 5
      %v309 = vor.u32 %v305, %v308
      %v310 = vrot.slane %v309, 4
      %v312 = vshll.u32 %v236, 16
      %v314 = vrot.slane %v312, 5
      %v315 = vsel %vm301, %v310, %v314
      %v316 = vshrl.u32 %v236, 16
      %v318 = vrot.slane %v316, 4
      %v319 = vor.u32 %v318, %v314
      %v320 = vrot.slane %v319, 4
      %v322 = vshll.u32 %v237, 16
      %v324 = vrot.slane %v322, 5
      %v325 = vsel %vm301, %v320, %v324
      %v327 = vshrl.u32 %v238, 16
      %v329 = vrot.slane %v327, 4
      %v330 = vshll.u32 %v238, 16
      %v332 = vrot.slane %v330, 5
      %v333 = vor.u32 %v329, %v332
      %v334 = vrot.slane %v333, 4
      %v336 = vshll.u32 %v239, 16
      %v338 = vrot.slane %v336, 5
      %v339 = vsel %vm301, %v334, %v338
      %v340 = vshrl.u32 %v239, 16
      %v342 = vrot.slane %v340, 4
      %v343 = vor.u32 %v342, %v338
      %v344 = vrot.slane %v343, 4
      %v346 = vshll.u32 %v240, 16
      %v348 = vrot.slane %v346, 5
      %v349 = vsel %vm301, %v344, %v348
      %v351 = vshrl.u32 %v241, 16
      %v353 = vrot.slane %v351, 4
      %v354 = vshll.u32 %v241, 16
      %v356 = vrot.slane %v354, 5
      %v357 = vor.u32 %v353, %v356
      %v358 = vrot.slane %v357, 4
      %v360 = vshll.u32 %v242, 16
      %v362 = vrot.slane %v360, 5
      %v363 = vsel %vm301, %v358, %v362
      %v364 = vshrl.u32 %v242, 16
      %v366 = vrot.slane %v364, 4
      %v367 = vor.u32 %v366, %v362
      %v368 = vrot.slane %v367, 4
      %v370 = vshll.u32 %v243, 16
      %v372 = vrot.slane %v370, 5
      %v373 = vsel %vm301, %v368, %v372
      %v375 = vshrl.u32 %v244, 16
      %v377 = vrot.slane %v375, 4
      %v378 = vshll.u32 %v244, 16
      %v380 = vrot.slane %v378, 5
      %v381 = vor.u32 %v377, %v380
      %v382 = vrot.slane %v381, 4
      %v384 = vshll.u32 %v245, 16
      %v386 = vrot.slane %v384, 5
      %v387 = vsel %vm301, %v382, %v386
      %v388 = vshrl.u32 %v245, 16
      %v390 = vrot.slane %v388, 4
      %v391 = vor.u32 %v390, %v386
      %v392 = vrot.slane %v391, 4
      %v394 = vshll.u32 %v246, 16
      %v396 = vrot.slane %v394, 5
      %v397 = vsel %vm301, %v392, %v396
      %v399 = vshrl.u32 %v247, 16
      %v401 = vrot.slane %v399, 4
      %v402 = vshll.u32 %v247, 16
      %v404 = vrot.slane %v402, 5
      %v405 = vor.u32 %v401, %v404
      %v406 = vrot.slane %v405, 4
      %v408 = vshll.u32 %v248, 16
      %v410 = vrot.slane %v408, 5
      %v411 = vsel %vm301, %v406, %v410
      %v412 = vshrl.u32 %v248, 16
      %v414 = vrot.slane %v412, 4
      %v415 = vor.u32 %v414, %v410
      %v416 = vrot.slane %v415, 4
      %v418 = vshll.u32 %v249, 16
      %v420 = vrot.slane %v418, 5
      %v421 = vsel %vm301, %v416, %v420
      %v423 = vshrl.u32 %v250, 16
      %v425 = vrot.slane %v423, 4
      %v426 = vshll.u32 %v250, 16
      %v428 = vrot.slane %v426, 5
      %v429 = vor.u32 %v425, %v428
      %v430 = vrot.slane %v429, 4
      %v432 = vshll.u32 %v251, 16
      %v434 = vrot.slane %v432, 5
      %v435 = vsel %vm301, %v430, %v434
      %v436 = vshrl.u32 %v251, 16
      %v438 = vrot.slane %v436, 4
      %v439 = vor.u32 %v438, %v434
      %v440 = vrot.slane %v439, 4
      %v442 = vshll.u32 %v252, 16
      %v444 = vrot.slane %v442, 5
      %v445 = vsel %vm301, %v440, %v444
      %v447 = vshrl.u32 %v253, 16
      %v449 = vrot.slane %v447, 4
      %v450 = vshll.u32 %v253, 16
      %v452 = vrot.slane %v450, 5
      %v453 = vor.u32 %v449, %v452
      %v454 = vrot.slane %v453, 4
      %v456 = vshll.u32 %v254, 16
      %v458 = vrot.slane %v456, 5
      %v459 = vsel %vm301, %v454, %v458
      %v460 = vshrl.u32 %v254, 16
      %v462 = vrot.slane %v460, 4
      %v463 = vor.u32 %v462, %v458
      %v464 = vrot.slane %v463, 4
      %v466 = vshll.u32 %v255, 16
      %v468 = vrot.slane %v466, 5
      %v469 = vsel %vm301, %v464, %v468
      %v471 = vshrl.u32 %v256, 16
      %v473 = vrot.slane %v471, 4
      %v474 = vshll.u32 %v256, 16
      %v476 = vrot.slane %v474, 5
      %v477 = vor.u32 %v473, %v476
      %v478 = vrot.slane %v477, 4
      %v480 = vshll.u32 %v257, 16
      %v482 = vrot.slane %v480, 5
      %v483 = vsel %vm301, %v478, %v482
      %v484 = vshrl.u32 %v257, 16
      %v486 = vrot.slane %v484, 4
      %v487 = vor.u32 %v486, %v482
      %v488 = vrot.slane %v487, 4
      %v490 = vshll.u32 %v258, 16
      %v492 = vrot.slane %v490, 5
      %v493 = vsel %vm301, %v488, %v492
      %v495 = vshrl.u32 %v259, 16
      %v497 = vrot.slane %v495, 4
      %v498 = vshll.u32 %v259, 16
      %v500 = vrot.slane %v498, 5
      %v501 = vor.u32 %v497, %v500
      %v502 = vrot.slane %v501, 4
      %v504 = vshll.u32 %v260, 16
      %v506 = vrot.slane %v504, 5
      %v507 = vsel %vm301, %v502, %v506
      %v508 = vshrl.u32 %v260, 16
      %v510 = vrot.slane %v508, 4
      %v511 = vor.u32 %v510, %v506
      %v512 = vrot.slane %v511, 4
      %v514 = vshll.u32 %v261, 16
      %v516 = vrot.slane %v514, 5
      %v517 = vsel %vm301, %v512, %v516
      %v519 = vshrl.u32 %v262, 16
      %v521 = vrot.slane %v519, 4
      %v522 = vshll.u32 %v262, 16
      %v524 = vrot.slane %v522, 5
      %v525 = vor.u32 %v521, %v524
      %v526 = vrot.slane %v525, 4
      %v528 = vshll.u32 %v263, 16
      %v530 = vrot.slane %v528, 5
      %v531 = vsel %vm301, %v526, %v530
      %v532 = vshrl.u32 %v263, 16
      %v534 = vrot.slane %v532, 4
      %v535 = vor.u32 %v534, %v530
      %v536 = vrot.slane %v535, 4
      %v538 = vshll.u32 %v264, 16
      %v540 = vrot.slane %v538, 5
      %v541 = vsel %vm301, %v536, %v540
      %v543 = vshrl.u32 %v265, 16
      %v545 = vrot.slane %v543, 4
      %v546 = vshll.u32 %v265, 16
      %v548 = vrot.slane %v546, 5
      %v549 = vor.u32 %v545, %v548
      %v550 = vrot.slane %v549, 4
      %v552 = vshll.u32 %v266, 16
      %v554 = vrot.slane %v552, 5
      %v555 = vsel %vm301, %v550, %v554
      %v556 = vshrl.u32 %v266, 16
      %v558 = vrot.slane %v556, 4
      %v559 = vor.u32 %v558, %v554
      %v560 = vrot.slane %v559, 4
      %v562 = vshll.u32 %v267, 16
      %v564 = vrot.slane %v562, 5
      %v565 = vsel %vm301, %v560, %v564
      %v567 = vshrl.u32 %v268, 16
      %v569 = vrot.slane %v567, 4
      %v570 = vshll.u32 %v268, 16
      %v572 = vrot.slane %v570, 5
      %v573 = vor.u32 %v569, %v572
      %v574 = vrot.slane %v573, 4
      %v576 = vshll.u32 %v269, 16
      %v578 = vrot.slane %v576, 5
      %v579 = vsel %vm301, %v574, %v578
      %v580 = vshrl.u32 %v269, 16
      %v582 = vrot.slane %v580, 4
      %v583 = vor.u32 %v582, %v578
      %v584 = vrot.slane %v583, 4
      %v586 = vshll.u32 %v270, 16
      %v588 = vrot.slane %v586, 5
      %v589 = vsel %vm301, %v584, %v588
      %v591 = vshrl.u32 %v271, 16
      %v593 = vrot.slane %v591, 4
      %v594 = vshll.u32 %v271, 16
      %v596 = vrot.slane %v594, 5
      %v597 = vor.u32 %v593, %v596
      %v598 = vrot.slane %v597, 4
      %v600 = vshll.u32 %v272, 16
      %v602 = vrot.slane %v600, 5
      %v603 = vsel %vm301, %v598, %v602
      %v604 = vshrl.u32 %v272, 16
      %v606 = vrot.slane %v604, 4
      %v607 = vor.u32 %v606, %v602
      %v608 = vrot.slane %v607, 4
      %v610 = vshll.u32 %v273, 16
      %v612 = vrot.slane %v610, 5
      %v613 = vsel %vm301, %v608, %v612
      %v615 = vshrl.u32 %v274, 16
      %v617 = vrot.slane %v615, 4
      %v618 = vshll.u32 %v274, 16
      %v620 = vrot.slane %v618, 5
      %v621 = vor.u32 %v617, %v620
      %v622 = vrot.slane %v621, 4
      %v624 = vshll.u32 %v275, 16
      %v626 = vrot.slane %v624, 5
      %v627 = vsel %vm301, %v622, %v626
      %v628 = vshrl.u32 %v275, 16
      %v630 = vrot.slane %v628, 4
      %v631 = vor.u32 %v630, %v626
      %v632 = vrot.slane %v631, 4
      %v634 = vshll.u32 %v276, 16
      %v636 = vrot.slane %v634, 5
      %v637 = vsel %vm301, %v632, %v636
      %v639 = vshrl.u32 %v277, 16
      %v641 = vrot.slane %v639, 4
      %v642 = vshll.u32 %v277, 16
      %v644 = vrot.slane %v642, 5
      %v645 = vor.u32 %v641, %v644
      %v646 = vrot.slane %v645, 4
      %v648 = vshll.u32 %v278, 16
      %v650 = vrot.slane %v648, 5
      %v651 = vsel %vm301, %v646, %v650
      %v652 = vshrl.u32 %v278, 16
      %v654 = vrot.slane %v652, 4
      %v655 = vor.u32 %v654, %v650
      %v656 = vrot.slane %v655, 4
      %v658 = vshll.u32 %v279, 16
      %v660 = vrot.slane %v658, 5
      %v661 = vsel %vm301, %v656, %v660
      %v663 = vshrl.u32 %v280, 16
      %v665 = vrot.slane %v663, 4
      %v666 = vshll.u32 %v280, 16
      %v668 = vrot.slane %v666, 5
      %v669 = vor.u32 %v665, %v668
      %v670 = vrot.slane %v669, 4
      %v672 = vshll.u32 %v281, 16
      %v674 = vrot.slane %v672, 5
      %v675 = vsel %vm301, %v670, %v674
      %v676 = vshrl.u32 %v281, 16
      %v678 = vrot.slane %v676, 4
      %v679 = vor.u32 %v678, %v674
      %v680 = vrot.slane %v679, 4
      %v682 = vshll.u32 %v282, 16
      %v684 = vrot.slane %v682, 5
      %v685 = vsel %vm301, %v680, %v684
      %s686 = scalar_lea.vmem %s1, 64
      %v687 = vld [vmem:[%s686] sm:$0xf]
      %v688 = vld [vmem:[%s686 + $0x4] sm:$0xf]
      %v689 = vld [vmem:[%s686 + $0x8] sm:$0xf]
      %v690 = vld [vmem:[%s686 + $0xc] sm:$0xf]
      %v691 = vld [vmem:[%s686 + $0x10] sm:$0xf]
      %v692 = vld [vmem:[%s686 + $0x14] sm:$0xf]
      %v693 = vld [vmem:[%s686 + $0x18] sm:$0xf]
      %v694 = vld [vmem:[%s686 + $0x1c] sm:$0xf]
      %v695 = vld [vmem:[%s686 + $0x20] sm:$0xf]
      %v696 = vld [vmem:[%s686 + $0x24] sm:$0xf]
      %v697 = vld [vmem:[%s686 + $0x28] sm:$0xf]
      %v698 = vld [vmem:[%s686 + $0x2c] sm:$0xf]
      %v699 = vld [vmem:[%s686 + $0x30] sm:$0xf]
      %v700 = vld [vmem:[%s686 + $0x34] sm:$0xf]
      %v701 = vld [vmem:[%s686 + $0x38] sm:$0xf]
      %v702 = vld [vmem:[%s686 + $0x3c] sm:$0xf]
      %v703 = vunpack.c.l.b16 %v315
      %v704 = vunpack.c.l.b16 %v325
      %v705 = vunpack.c.l.b16 %v339
      %v706 = vunpack.c.l.b16 %v349
      %v707 = vunpack.c.l.b16 %v363
      %v708 = vunpack.c.l.b16 %v373
      %v709 = vunpack.c.l.b16 %v387
      %v710 = vunpack.c.l.b16 %v397
      %v711 = vunpack.c.l.b16 %v411
      %v712 = vunpack.c.l.b16 %v421
      %v713 = vunpack.c.l.b16 %v435
      %v714 = vunpack.c.l.b16 %v445
      %v715 = vunpack.c.l.b16 %v459
      %v716 = vunpack.c.l.b16 %v469
      %v717 = vunpack.c.l.b16 %v483
      %v718 = vunpack.c.l.b16 %v493
      %v719 = vunpack.c.l.b16 %v507
      %v720 = vunpack.c.l.b16 %v517
      %v721 = vunpack.c.l.b16 %v531
      %v722 = vunpack.c.l.b16 %v541
      %v723 = vunpack.c.l.b16 %v555
      %v724 = vunpack.c.l.b16 %v565
      %v725 = vunpack.c.l.b16 %v579
      %v726 = vunpack.c.l.b16 %v589
      %v727 = vunpack.c.l.b16 %v603
      %v728 = vunpack.c.l.b16 %v613
      %v729 = vunpack.c.l.b16 %v627
      %v730 = vunpack.c.l.b16 %v637
      %v731 = vunpack.c.l.b16 %v651
      %v732 = vunpack.c.l.b16 %v661
      %v733 = vunpack.c.l.b16 %v675
      %v734 = vunpack.c.l.b16 %v685
      %v735 = vpack.c.b16 %v704, %v703
      %v736 = vpack.c.b16 %v706, %v705
      %v737 = vpack.c.b16 %v708, %v707
      %v738 = vpack.c.b16 %v710, %v709
      %v739 = vpack.c.b16 %v712, %v711
      %v740 = vpack.c.b16 %v714, %v713
      %v741 = vpack.c.b16 %v716, %v715
      %v742 = vpack.c.b16 %v718, %v717
      %v743 = vpack.c.b16 %v720, %v719
      %v744 = vpack.c.b16 %v722, %v721
      %v745 = vpack.c.b16 %v724, %v723
      %v746 = vpack.c.b16 %v726, %v725
      %v747 = vpack.c.b16 %v728, %v727
      %v748 = vpack.c.b16 %v730, %v729
      %v749 = vpack.c.b16 %v732, %v731
      %v750 = vpack.c.b16 %v734, %v733
      %v783 = vunpack.c.l.b16 %v687
      %v784 = vunpack.c.l.b16 %v688
      %v785 = vunpack.c.l.b16 %v689
      %v786 = vunpack.c.l.b16 %v690
      %v787 = vunpack.c.l.b16 %v691
      %v788 = vunpack.c.l.b16 %v692
      %v789 = vunpack.c.l.b16 %v693
      %v790 = vunpack.c.l.b16 %v694
      %v791 = vunpack.c.l.b16 %v695
      %v792 = vunpack.c.l.b16 %v696
      %v793 = vunpack.c.l.b16 %v697
      %v794 = vunpack.c.l.b16 %v698
      %v795 = vunpack.c.l.b16 %v699
      %v796 = vunpack.c.l.b16 %v700
      %v797 = vunpack.c.l.b16 %v701
      %v798 = vunpack.c.l.b16 %v702
      %v799 = vpack.c.b16 %v784, %v783
      %v800 = vpack.c.b16 %v786, %v785
      %v801 = vpack.c.b16 %v788, %v787
      %v802 = vpack.c.b16 %v790, %v789
      %v803 = vpack.c.b16 %v792, %v791
      %v804 = vpack.c.b16 %v794, %v793
      %v805 = vpack.c.b16 %v796, %v795
      %v806 = vpack.c.b16 %v798, %v797
      %815 = vmatprep.subr.bf16.mxu0 0
      %816 = vmatpush1.bf16.msra.mxu0 %v799
      %817 = vmatprep.subr.bf16.mxu0 0
      %818 = vmatpush1.bf16.msra.mxu0 %v800
      %819 = vmatprep.subr.bf16.mxu0 0
      %820 = vmatpush1.bf16.msra.mxu0 %v801
      %821 = vmatprep.subr.bf16.mxu0 0
      %822 = vmatpush1.bf16.msra.mxu0 %v802
      %823 = vmatprep.subr.bf16.mxu0 0
      %824 = vmatpush1.bf16.msra.mxu0 %v803
      %825 = vmatprep.subr.bf16.mxu0 0
      %826 = vmatpush1.bf16.msra.mxu0 %v804
      %827 = vmatprep.subr.bf16.mxu0 0
      %828 = vmatpush1.bf16.msra.mxu0 %v805
      %829 = vmatprep.subr.bf16.mxu0 0
      %830 = vmatpush1.bf16.msra.mxu0 %v806
      %831 = vmatprep.subr.bf16.mxu0 0
      %832 = vmatpush1.bf16.msra.mxu0 0
      %833 = vmatprep.subr.bf16.mxu0 0
      %834 = vmatpush1.bf16.msra.mxu0 0
      %835 = vmatprep.subr.bf16.mxu0 0
      %836 = vmatpush1.bf16.msra.mxu0 0
      %837 = vmatprep.subr.bf16.mxu0 0
      %838 = vmatpush1.bf16.msra.mxu0 0
      %839 = vmatprep.subr.bf16.mxu0 0
      %840 = vmatpush1.bf16.msra.mxu0 0
      %841 = vmatprep.subr.bf16.mxu0 0
      %842 = vmatpush1.bf16.msra.mxu0 0
      %843 = vmatprep.subr.bf16.mxu0 0
      %844 = vmatpush1.bf16.msra.mxu0 0
      %845 = vmatprep.subr.bf16.mxu0 0
      %846 = vmatpush1.bf16.msra.mxu0 0
      %847 = vmatprep.mubr.bf16.mxu0 0
      %848 = vmatmul.mubr.bf16.gmra.mrb[0].mxu0 %v735
      %v849 = vpop.f32.mrb[0].mxu0
      %v850 = vadd.f32 0.0, %v849
      %v851 = vpop.f32.mrb[0].mxu0
      %v852 = vpop.f32.mrb[0].mxu0
      %v853 = vadd.f32 0.0, %v852
      %v854 = vpop.f32.mrb[0].mxu0
      %855 = vmatprep.mubr.bf16.mxu0 0
      %856 = vmatmul.mubr.bf16.gmra.mrb[0].mxu0 %v736
      %v857 = vpop.f32.mrb[0].mxu0
      %v858 = vadd.f32 0.0, %v857
      %v859 = vpop.f32.mrb[0].mxu0
      %v860 = vpop.f32.mrb[0].mxu0
      %v861 = vadd.f32 0.0, %v860
      %v862 = vpop.f32.mrb[0].mxu0
      %863 = vmatprep.mubr.bf16.mxu0 0
      %864 = vmatmul.mubr.bf16.gmra.mrb[0].mxu0 %v737
      %v865 = vpop.f32.mrb[0].mxu0
      %v866 = vadd.f32 0.0, %v865
      %v867 = vpop.f32.mrb[0].mxu0
      %v868 = vpop.f32.mrb[0].mxu0
      %v869 = vadd.f32 0.0, %v868
      %v870 = vpop.f32.mrb[0].mxu0
      %871 = vmatprep.mubr.bf16.mxu0 0
      %872 = vmatmul.mubr.bf16.gmra.mrb[0].mxu0 %v738
      %v873 = vpop.f32.mrb[0].mxu0
      %v874 = vadd.f32 0.0, %v873
      %v875 = vpop.f32.mrb[0].mxu0
      %v876 = vpop.f32.mrb[0].mxu0
      %v877 = vadd.f32 0.0, %v876
      %v878 = vpop.f32.mrb[0].mxu0
      %879 = vmatprep.mubr.bf16.mxu0 0
      %880 = vmatmul.mubr.bf16.gmra.mrb[0].mxu0 %v739
      %v881 = vpop.f32.mrb[0].mxu0
      %v882 = vadd.f32 0.0, %v881
      %v883 = vpop.f32.mrb[0].mxu0
      %v884 = vpop.f32.mrb[0].mxu0
      %v885 = vadd.f32 0.0, %v884
      %v886 = vpop.f32.mrb[0].mxu0
      %887 = vmatprep.mubr.bf16.mxu0 0
      %888 = vmatmul.mubr.bf16.gmra.mrb[0].mxu0 %v740
      %v889 = vpop.f32.mrb[0].mxu0
      %v890 = vadd.f32 0.0, %v889
      %v891 = vpop.f32.mrb[0].mxu0
      %v892 = vpop.f32.mrb[0].mxu0
      %v893 = vadd.f32 0.0, %v892
      %v894 = vpop.f32.mrb[0].mxu0
      %895 = vmatprep.mubr.bf16.mxu0 0
      %896 = vmatmul.mubr.bf16.gmra.mrb[0].mxu0 %v741
      %v897 = vpop.f32.mrb[0].mxu0
      %v898 = vadd.f32 0.0, %v897
      %v899 = vpop.f32.mrb[0].mxu0
      %v900 = vpop.f32.mrb[0].mxu0
      %v901 = vadd.f32 0.0, %v900
      %v902 = vpop.f32.mrb[0].mxu0
      %903 = vmatprep.mubr.bf16.mxu0 0
      %904 = vmatmul.mubr.bf16.gmra.mrb[0].mxu0 %v742
      %v905 = vpop.f32.mrb[0].mxu0
      %v906 = vadd.f32 0.0, %v905
      %v907 = vpop.f32.mrb[0].mxu0
      %v908 = vpop.f32.mrb[0].mxu0
      %v909 = vadd.f32 0.0, %v908
      %v910 = vpop.f32.mrb[0].mxu0
      %911 = vmatprep.mubr.bf16.mxu0 0
      %912 = vmatmul.mubr.bf16.gmra.mrb[0].mxu0 %v743
      %v913 = vpop.f32.mrb[0].mxu0
      %v914 = vadd.f32 0.0, %v913
      %v915 = vpop.f32.mrb[0].mxu0
      %v916 = vpop.f32.mrb[0].mxu0
      %v917 = vadd.f32 0.0, %v916
      %v918 = vpop.f32.mrb[0].mxu0
      %919 = vmatprep.mubr.bf16.mxu0 0
      %920 = vmatmul.mubr.bf16.gmra.mrb[0].mxu0 %v744
      %v921 = vpop.f32.mrb[0].mxu0
      %v922 = vadd.f32 0.0, %v921
      %v923 = vpop.f32.mrb[0].mxu0
      %v924 = vpop.f32.mrb[0].mxu0
      %v925 = vadd.f32 0.0, %v924
      %v926 = vpop.f32.mrb[0].mxu0
      %927 = vmatprep.mubr.bf16.mxu0 0
      %928 = vmatmul.mubr.bf16.gmra.mrb[0].mxu0 %v745
      %v929 = vpop.f32.mrb[0].mxu0
      %v930 = vadd.f32 0.0, %v929
      %v931 = vpop.f32.mrb[0].mxu0
      %v932 = vpop.f32.mrb[0].mxu0
      %v933 = vadd.f32 0.0, %v932
      %v934 = vpop.f32.mrb[0].mxu0
      %935 = vmatprep.mubr.bf16.mxu0 0
      %936 = vmatmul.mubr.bf16.gmra.mrb[0].mxu0 %v746
      %v937 = vpop.f32.mrb[0].mxu0
      %v938 = vadd.f32 0.0, %v937
      %v939 = vpop.f32.mrb[0].mxu0
      %v940 = vpop.f32.mrb[0].mxu0
      %v941 = vadd.f32 0.0, %v940
      %v942 = vpop.f32.mrb[0].mxu0
      %943 = vmatprep.mubr.bf16.mxu0 0
      %944 = vmatmul.mubr.bf16.gmra.mrb[0].mxu0 %v747
      %v945 = vpop.f32.mrb[0].mxu0
      %v946 = vadd.f32 0.0, %v945
      %v947 = vpop.f32.mrb[0].mxu0
      %v948 = vpop.f32.mrb[0].mxu0
      %v949 = vadd.f32 0.0, %v948
      %v950 = vpop.f32.mrb[0].mxu0
      %951 = vmatprep.mubr.bf16.mxu0 0
      %952 = vmatmul.mubr.bf16.gmra.mrb[0].mxu0 %v748
      %v953 = vpop.f32.mrb[0].mxu0
      %v954 = vadd.f32 0.0, %v953
      %v955 = vpop.f32.mrb[0].mxu0
      %v956 = vpop.f32.mrb[0].mxu0
      %v957 = vadd.f32 0.0, %v956
      %v958 = vpop.f32.mrb[0].mxu0
      %959 = vmatprep.mubr.bf16.mxu0 0
      %960 = vmatmul.mubr.bf16.gmra.mrb[0].mxu0 %v749
      %v961 = vpop.f32.mrb[0].mxu0
      %v962 = vadd.f32 0.0, %v961
      %v963 = vpop.f32.mrb[0].mxu0
      %v964 = vpop.f32.mrb[0].mxu0
      %v965 = vadd.f32 0.0, %v964
      %v966 = vpop.f32.mrb[0].mxu0
      %967 = vmatprep.mubr.bf16.mxu0 0
      %968 = vmatmul.mubr.bf16.gmra.mrb[0].mxu0 %v750
      %v969 = vpop.f32.mrb[0].mxu0
      %v970 = vadd.f32 0.0, %v969
      %v971 = vpop.f32.mrb[0].mxu0
      %v972 = vpop.f32.mrb[0].mxu0
      %v973 = vadd.f32 0.0, %v972
      %v974 = vpop.f32.mrb[0].mxu0
      %975 = vdwg.mxu0
      %v1008 = vunpack.c.l.b16 %v235
      %v1009 = vunpack.c.l.b16 %v236
      %v1010 = vunpack.c.l.b16 %v238
      %v1011 = vunpack.c.l.b16 %v239
      %v1012 = vunpack.c.l.b16 %v241
      %v1013 = vunpack.c.l.b16 %v242
      %v1014 = vunpack.c.l.b16 %v244
      %v1015 = vunpack.c.l.b16 %v245
      %v1016 = vunpack.c.l.b16 %v247
      %v1017 = vunpack.c.l.b16 %v248
      %v1018 = vunpack.c.l.b16 %v250
      %v1019 = vunpack.c.l.b16 %v251
      %v1020 = vunpack.c.l.b16 %v253
      %v1021 = vunpack.c.l.b16 %v254
      %v1022 = vunpack.c.l.b16 %v256
      %v1023 = vunpack.c.l.b16 %v257
      %v1024 = vunpack.c.l.b16 %v259
      %v1025 = vunpack.c.l.b16 %v260
      %v1026 = vunpack.c.l.b16 %v262
      %v1027 = vunpack.c.l.b16 %v263
      %v1028 = vunpack.c.l.b16 %v265
      %v1029 = vunpack.c.l.b16 %v266
      %v1030 = vunpack.c.l.b16 %v268
      %v1031 = vunpack.c.l.b16 %v269
      %v1032 = vunpack.c.l.b16 %v271
      %v1033 = vunpack.c.l.b16 %v272
      %v1034 = vunpack.c.l.b16 %v274
      %v1035 = vunpack.c.l.b16 %v275
      %v1036 = vunpack.c.l.b16 %v277
      %v1037 = vunpack.c.l.b16 %v278
      %v1038 = vunpack.c.l.b16 %v280
      %v1039 = vunpack.c.l.b16 %v281
      %v1040 = vpack.c.b16 %v1009, %v1008
      %v1041 = vpack.c.b16 %v1011, %v1010
      %v1042 = vpack.c.b16 %v1013, %v1012
      %v1043 = vpack.c.b16 %v1015, %v1014
      %v1044 = vpack.c.b16 %v1017, %v1016
      %v1045 = vpack.c.b16 %v1019, %v1018
      %v1046 = vpack.c.b16 %v1021, %v1020
      %v1047 = vpack.c.b16 %v1023, %v1022
      %v1048 = vpack.c.b16 %v1025, %v1024
      %v1049 = vpack.c.b16 %v1027, %v1026
      %v1050 = vpack.c.b16 %v1029, %v1028
      %v1051 = vpack.c.b16 %v1031, %v1030
      %v1052 = vpack.c.b16 %v1033, %v1032
      %v1053 = vpack.c.b16 %v1035, %v1034
      %v1054 = vpack.c.b16 %v1037, %v1036
      %v1055 = vpack.c.b16 %v1039, %v1038
      %v1088 = vunpack.c.l.b16 %v283
      %v1089 = vunpack.c.l.b16 %v284
      %v1090 = vunpack.c.l.b16 %v285
      %v1091 = vunpack.c.l.b16 %v286
      %v1092 = vunpack.c.l.b16 %v287
      %v1093 = vunpack.c.l.b16 %v288
      %v1094 = vunpack.c.l.b16 %v289
      %v1095 = vunpack.c.l.b16 %v290
      %v1096 = vunpack.c.l.b16 %v291
      %v1097 = vunpack.c.l.b16 %v292
      %v1098 = vunpack.c.l.b16 %v293
      %v1099 = vunpack.c.l.b16 %v294
      %v1100 = vunpack.c.l.b16 %v295
      %v1101 = vunpack.c.l.b16 %v296
      %v1102 = vunpack.c.l.b16 %v297
      %v1103 = vunpack.c.l.b16 %v298
      %v1104 = vpack.c.b16 %v1089, %v1088
      %v1105 = vpack.c.b16 %v1091, %v1090
      %v1106 = vpack.c.b16 %v1093, %v1092
      %v1107 = vpack.c.b16 %v1095, %v1094
      %v1108 = vpack.c.b16 %v1097, %v1096
      %v1109 = vpack.c.b16 %v1099, %v1098
      %v1110 = vpack.c.b16 %v1101, %v1100
      %v1111 = vpack.c.b16 %v1103, %v1102
      %1120 = vmatprep.subr.bf16.mxu0 0
      %1121 = vmatpush1.bf16.msra.mxu0 %v1104
      %1122 = vmatprep.subr.bf16.mxu0 0
      %1123 = vmatpush1.bf16.msra.mxu0 %v1105
      %1124 = vmatprep.subr.bf16.mxu0 0
      %1125 = vmatpush1.bf16.msra.mxu0 %v1106
      %1126 = vmatprep.subr.bf16.mxu0 0
      %1127 = vmatpush1.bf16.msra.mxu0 %v1107
      %1128 = vmatprep.subr.bf16.mxu0 0
      %1129 = vmatpush1.bf16.msra.mxu0 %v1108
      %1130 = vmatprep.subr.bf16.mxu0 0
      %1131 = vmatpush1.bf16.msra.mxu0 %v1109
      %1132 = vmatprep.subr.bf16.mxu0 0
      %1133 = vmatpush1.bf16.msra.mxu0 %v1110
      %1134 = vmatprep.subr.bf16.mxu0 0
      %1135 = vmatpush1.bf16.msra.mxu0 %v1111
      %1136 = vmatprep.subr.bf16.mxu0 0
      %1137 = vmatpush1.bf16.msra.mxu0 0
      %1138 = vmatprep.subr.bf16.mxu0 0
      %1139 = vmatpush1.bf16.msra.mxu0 0
      %1140 = vmatprep.subr.bf16.mxu0 0
      %1141 = vmatpush1.bf16.msra.mxu0 0
      %1142 = vmatprep.subr.bf16.mxu0 0
      %1143 = vmatpush1.bf16.msra.mxu0 0
      %1144 = vmatprep.subr.bf16.mxu0 0
      %1145 = vmatpush1.bf16.msra.mxu0 0
      %1146 = vmatprep.subr.bf16.mxu0 0
      %1147 = vmatpush1.bf16.msra.mxu0 0
      %1148 = vmatprep.subr.bf16.mxu0 0
      %1149 = vmatpush1.bf16.msra.mxu0 0
      %1150 = vmatprep.subr.bf16.mxu0 0
      %1151 = vmatpush1.bf16.msra.mxu0 0
      %1152 = vmatprep.mubr.bf16.mxu0 0
      %1153 = vmatmul.mubr.bf16.gmra.mrb[0].mxu0 %v1040
      %v1154 = vpop.f32.mrb[0].mxu0
      %v1155 = vadd.f32 %v850, %v1154
      %v1156 = vpop.f32.mrb[0].mxu0
      %v1157 = vpop.f32.mrb[0].mxu0
      %v1158 = vadd.f32 %v853, %v1157
      %v1159 = vpop.f32.mrb[0].mxu0
      %1160 = vmatprep.mubr.bf16.mxu0 0
      %1161 = vmatmul.mubr.bf16.gmra.mrb[0].mxu0 %v1041
      %v1162 = vpop.f32.mrb[0].mxu0
      %v1163 = vadd.f32 %v858, %v1162
      %v1164 = vpop.f32.mrb[0].mxu0
      %v1165 = vpop.f32.mrb[0].mxu0
      %v1166 = vadd.f32 %v861, %v1165
      %v1167 = vpop.f32.mrb[0].mxu0
      %1168 = vmatprep.mubr.bf16.mxu0 0
      %1169 = vmatmul.mubr.bf16.gmra.mrb[0].mxu0 %v1042
      %v1170 = vpop.f32.mrb[0].mxu0
      %v1171 = vadd.f32 %v866, %v1170
      %v1172 = vpop.f32.mrb[0].mxu0
      %v1173 = vpop.f32.mrb[0].mxu0
      %v1174 = vadd.f32 %v869, %v1173
      %v1175 = vpop.f32.mrb[0].mxu0
      %1176 = vmatprep.mubr.bf16.mxu0 0
      %1177 = vmatmul.mubr.bf16.gmra.mrb[0].mxu0 %v1043
      %v1178 = vpop.f32.mrb[0].mxu0
      %v1179 = vadd.f32 %v874, %v1178
      %v1180 = vpop.f32.mrb[0].mxu0
      %v1181 = vpop.f32.mrb[0].mxu0
      %v1182 = vadd.f32 %v877, %v1181
      %v1183 = vpop.f32.mrb[0].mxu0
      %1184 = vmatprep.mubr.bf16.mxu0 0
      %1185 = vmatmul.mubr.bf16.gmra.mrb[0].mxu0 %v1044
      %v1186 = vpop.f32.mrb[0].mxu0
      %v1187 = vadd.f32 %v882, %v1186
      %v1188 = vpop.f32.mrb[0].mxu0
      %v1189 = vpop.f32.mrb[0].mxu0
      %v1190 = vadd.f32 %v885, %v1189
      %v1191 = vpop.f32.mrb[0].mxu0
      %1192 = vmatprep.mubr.bf16.mxu0 0
      %1193 = vmatmul.mubr.bf16.gmra.mrb[0].mxu0 %v1045
      %v1194 = vpop.f32.mrb[0].mxu0
      %v1195 = vadd.f32 %v890, %v1194
      %v1196 = vpop.f32.mrb[0].mxu0
      %v1197 = vpop.f32.mrb[0].mxu0
      %v1198 = vadd.f32 %v893, %v1197
      %v1199 = vpop.f32.mrb[0].mxu0
      %1200 = vmatprep.mubr.bf16.mxu0 0
      %1201 = vmatmul.mubr.bf16.gmra.mrb[0].mxu0 %v1046
      %v1202 = vpop.f32.mrb[0].mxu0
      %v1203 = vadd.f32 %v898, %v1202
      %v1204 = vpop.f32.mrb[0].mxu0
      %v1205 = vpop.f32.mrb[0].mxu0
      %v1206 = vadd.f32 %v901, %v1205
      %v1207 = vpop.f32.mrb[0].mxu0
      %1208 = vmatprep.mubr.bf16.mxu0 0
      %1209 = vmatmul.mubr.bf16.gmra.mrb[0].mxu0 %v1047
      %v1210 = vpop.f32.mrb[0].mxu0
      %v1211 = vadd.f32 %v906, %v1210
      %v1212 = vpop.f32.mrb[0].mxu0
      %v1213 = vpop.f32.mrb[0].mxu0
      %v1214 = vadd.f32 %v909, %v1213
      %v1215 = vpop.f32.mrb[0].mxu0
      %1216 = vmatprep.mubr.bf16.mxu0 0
      %1217 = vmatmul.mubr.bf16.gmra.mrb[0].mxu0 %v1048
      %v1218 = vpop.f32.mrb[0].mxu0
      %v1219 = vadd.f32 %v914, %v1218
      %v1220 = vpop.f32.mrb[0].mxu0
      %v1221 = vpop.f32.mrb[0].mxu0
      %v1222 = vadd.f32 %v917, %v1221
      %v1223 = vpop.f32.mrb[0].mxu0
      %1224 = vmatprep.mubr.bf16.mxu0 0
      %1225 = vmatmul.mubr.bf16.gmra.mrb[0].mxu0 %v1049
      %v1226 = vpop.f32.mrb[0].mxu0
      %v1227 = vadd.f32 %v922, %v1226
      %v1228 = vpop.f32.mrb[0].mxu0
      %v1229 = vpop.f32.mrb[0].mxu0
      %v1230 = vadd.f32 %v925, %v1229
      %v1231 = vpop.f32.mrb[0].mxu0
      %1232 = vmatprep.mubr.bf16.mxu0 0
      %1233 = vmatmul.mubr.bf16.gmra.mrb[0].mxu0 %v1050
      %v1234 = vpop.f32.mrb[0].mxu0
      %v1235 = vadd.f32 %v930, %v1234
      %v1236 = vpop.f32.mrb[0].mxu0
      %v1237 = vpop.f32.mrb[0].mxu0
      %v1238 = vadd.f32 %v933, %v1237
      %v1239 = vpop.f32.mrb[0].mxu0
      %1240 = vmatprep.mubr.bf16.mxu0 0
      %1241 = vmatmul.mubr.bf16.gmra.mrb[0].mxu0 %v1051
      %v1242 = vpop.f32.mrb[0].mxu0
      %v1243 = vadd.f32 %v938, %v1242
      %v1244 = vpop.f32.mrb[0].mxu0
      %v1245 = vpop.f32.mrb[0].mxu0
      %v1246 = vadd.f32 %v941, %v1245
      %v1247 = vpop.f32.mrb[0].mxu0
      %1248 = vmatprep.mubr.bf16.mxu0 0
      %1249 = vmatmul.mubr.bf16.gmra.mrb[0].mxu0 %v1052
      %v1250 = vpop.f32.mrb[0].mxu0
      %v1251 = vadd.f32 %v946, %v1250
      %v1252 = vpop.f32.mrb[0].mxu0
      %v1253 = vpop.f32.mrb[0].mxu0
      %v1254 = vadd.f32 %v949, %v1253
      %v1255 = vpop.f32.mrb[0].mxu0
      %1256 = vmatprep.mubr.bf16.mxu0 0
      %1257 = vmatmul.mubr.bf16.gmra.mrb[0].mxu0 %v1053
      %v1258 = vpop.f32.mrb[0].mxu0
      %v1259 = vadd.f32 %v954, %v1258
      %v1260 = vpop.f32.mrb[0].mxu0
      %v1261 = vpop.f32.mrb[0].mxu0
      %v1262 = vadd.f32 %v957, %v1261
      %v1263 = vpop.f32.mrb[0].mxu0
      %1264 = vmatprep.mubr.bf16.mxu0 0
      %1265 = vmatmul.mubr.bf16.gmra.mrb[0].mxu0 %v1054
      %v1266 = vpop.f32.mrb[0].mxu0
      %v1267 = vadd.f32 %v962, %v1266
      %v1268 = vpop.f32.mrb[0].mxu0
      %v1269 = vpop.f32.mrb[0].mxu0
      %v1270 = vadd.f32 %v965, %v1269
      %v1271 = vpop.f32.mrb[0].mxu0
      %1272 = vmatprep.mubr.bf16.mxu0 0
      %1273 = vmatmul.mubr.bf16.gmra.mrb[0].mxu0 %v1055
      %v1274 = vpop.f32.mrb[0].mxu0
      %v1275 = vadd.f32 %v970, %v1274
      %v1276 = vpop.f32.mrb[0].mxu0
      %v1277 = vpop.f32.mrb[0].mxu0
      %v1278 = vadd.f32 %v973, %v1277
      %v1279 = vpop.f32.mrb[0].mxu0
      %1280 = vdwg.mxu0
      %vm1297 = vcmask 1042432
      %vm1298 = vcmask 1046532
      %vm1299 = vmor %vm1297, %vm1298
      %v1300 = vrot.slane %v235, 5
      %v1301 = vrot.slane %v1300, 4
      %v1302 = vrot.slane %v236, 5
      %v1303 = vsel %vm1299, %v1301, %v1302
      %v1304 = vrot.slane %v1302, 4
      %v1305 = vrot.slane %v237, 5
      %v1306 = vsel %vm1299, %v1304, %v1305
      %v1307 = vrot.slane %v238, 5
      %v1308 = vrot.slane %v1307, 4
      %v1309 = vrot.slane %v239, 5
      %v1310 = vsel %vm1299, %v1308, %v1309
      %v1311 = vrot.slane %v1309, 4
      %v1312 = vrot.slane %v240, 5
      %v1313 = vsel %vm1299, %v1311, %v1312
      %v1314 = vrot.slane %v241, 5
      %v1315 = vrot.slane %v1314, 4
      %v1316 = vrot.slane %v242, 5
      %v1317 = vsel %vm1299, %v1315, %v1316
      %v1318 = vrot.slane %v1316, 4
      %v1319 = vrot.slane %v243, 5
      %v1320 = vsel %vm1299, %v1318, %v1319
      %v1321 = vrot.slane %v244, 5
      %v1322 = vrot.slane %v1321, 4
      %v1323 = vrot.slane %v245, 5
      %v1324 = vsel %vm1299, %v1322, %v1323
      %v1325 = vrot.slane %v1323, 4
      %v1326 = vrot.slane %v246, 5
      %v1327 = vsel %vm1299, %v1325, %v1326
      %v1328 = vrot.slane %v247, 5
      %v1329 = vrot.slane %v1328, 4
      %v1330 = vrot.slane %v248, 5
      %v1331 = vsel %vm1299, %v1329, %v1330
      %v1332 = vrot.slane %v1330, 4
      %v1333 = vrot.slane %v249, 5
      %v1334 = vsel %vm1299, %v1332, %v1333
      %v1335 = vrot.slane %v250, 5
      %v1336 = vrot.slane %v1335, 4
      %v1337 = vrot.slane %v251, 5
      %v1338 = vsel %vm1299, %v1336, %v1337
      %v1339 = vrot.slane %v1337, 4
      %v1340 = vrot.slane %v252, 5
      %v1341 = vsel %vm1299, %v1339, %v1340
      %v1342 = vrot.slane %v253, 5
      %v1343 = vrot.slane %v1342, 4
      %v1344 = vrot.slane %v254, 5
      %v1345 = vsel %vm1299, %v1343, %v1344
      %v1346 = vrot.slane %v1344, 4
      %v1347 = vrot.slane %v255, 5
      %v1348 = vsel %vm1299, %v1346, %v1347
      %v1349 = vrot.slane %v256, 5
      %v1350 = vrot.slane %v1349, 4
      %v1351 = vrot.slane %v257, 5
      %v1352 = vsel %vm1299, %v1350, %v1351
      %v1353 = vrot.slane %v1351, 4
      %v1354 = vrot.slane %v258, 5
      %v1355 = vsel %vm1299, %v1353, %v1354
      %v1356 = vrot.slane %v259, 5
      %v1357 = vrot.slane %v1356, 4
      %v1358 = vrot.slane %v260, 5
      %v1359 = vsel %vm1299, %v1357, %v1358
      %v1360 = vrot.slane %v1358, 4
      %v1361 = vrot.slane %v261, 5
      %v1362 = vsel %vm1299, %v1360, %v1361
      %v1363 = vrot.slane %v262, 5
      %v1364 = vrot.slane %v1363, 4
      %v1365 = vrot.slane %v263, 5
      %v1366 = vsel %vm1299, %v1364, %v1365
      %v1367 = vrot.slane %v1365, 4
      %v1368 = vrot.slane %v264, 5
      %v1369 = vsel %vm1299, %v1367, %v1368
      %v1370 = vrot.slane %v265, 5
      %v1371 = vrot.slane %v1370, 4
      %v1372 = vrot.slane %v266, 5
      %v1373 = vsel %vm1299, %v1371, %v1372
      %v1374 = vrot.slane %v1372, 4
      %v1375 = vrot.slane %v267, 5
      %v1376 = vsel %vm1299, %v1374, %v1375
      %v1377 = vrot.slane %v268, 5
      %v1378 = vrot.slane %v1377, 4
      %v1379 = vrot.slane %v269, 5
      %v1380 = vsel %vm1299, %v1378, %v1379
      %v1381 = vrot.slane %v1379, 4
      %v1382 = vrot.slane %v270, 5
      %v1383 = vsel %vm1299, %v1381, %v1382
      %v1384 = vrot.slane %v271, 5
      %v1385 = vrot.slane %v1384, 4
      %v1386 = vrot.slane %v272, 5
      %v1387 = vsel %vm1299, %v1385, %v1386
      %v1388 = vrot.slane %v1386, 4
      %v1389 = vrot.slane %v273, 5
      %v1390 = vsel %vm1299, %v1388, %v1389
      %v1391 = vrot.slane %v274, 5
      %v1392 = vrot.slane %v1391, 4
      %v1393 = vrot.slane %v275, 5
      %v1394 = vsel %vm1299, %v1392, %v1393
      %v1395 = vrot.slane %v1393, 4
      %v1396 = vrot.slane %v276, 5
      %v1397 = vsel %vm1299, %v1395, %v1396
      %v1398 = vrot.slane %v277, 5
      %v1399 = vrot.slane %v1398, 4
      %v1400 = vrot.slane %v278, 5
      %v1401 = vsel %vm1299, %v1399, %v1400
      %v1402 = vrot.slane %v1400, 4
      %v1403 = vrot.slane %v279, 5
      %v1404 = vsel %vm1299, %v1402, %v1403
      %v1405 = vrot.slane %v280, 5
      %v1406 = vrot.slane %v1405, 4
      %v1407 = vrot.slane %v281, 5
      %v1408 = vsel %vm1299, %v1406, %v1407
      %v1409 = vrot.slane %v1407, 4
      %v1410 = vrot.slane %v282, 5
      %v1411 = vsel %vm1299, %v1409, %v1410
      %s1412 = scalar_lea.vmem %s1, 128
      %v1413 = vld [vmem:[%s1412] sm:$0xf]
      %v1414 = vld [vmem:[%s1412 + $0x4] sm:$0xf]
      %v1415 = vld [vmem:[%s1412 + $0x8] sm:$0xf]
      %v1416 = vld [vmem:[%s1412 + $0xc] sm:$0xf]
      %v1417 = vld [vmem:[%s1412 + $0x10] sm:$0xf]
      %v1418 = vld [vmem:[%s1412 + $0x14] sm:$0xf]
      %v1419 = vld [vmem:[%s1412 + $0x18] sm:$0xf]
      %v1420 = vld [vmem:[%s1412 + $0x1c] sm:$0xf]
      %v1421 = vld [vmem:[%s1412 + $0x20] sm:$0xf]
      %v1422 = vld [vmem:[%s1412 + $0x24] sm:$0xf]
      %v1423 = vld [vmem:[%s1412 + $0x28] sm:$0xf]
      %v1424 = vld [vmem:[%s1412 + $0x2c] sm:$0xf]
      %v1425 = vld [vmem:[%s1412 + $0x30] sm:$0xf]
      %v1426 = vld [vmem:[%s1412 + $0x34] sm:$0xf]
      %v1427 = vld [vmem:[%s1412 + $0x38] sm:$0xf]
      %v1428 = vld [vmem:[%s1412 + $0x3c] sm:$0xf]
      %v1429 = vunpack.c.l.b16 %v1303
      %v1430 = vunpack.c.l.b16 %v1306
      %v1431 = vunpack.c.l.b16 %v1310
      %v1432 = vunpack.c.l.b16 %v1313
      %v1433 = vunpack.c.l.b16 %v1317
      %v1434 = vunpack.c.l.b16 %v1320
      %v1435 = vunpack.c.l.b16 %v1324
      %v1436 = vunpack.c.l.b16 %v1327
      %v1437 = vunpack.c.l.b16 %v1331
      %v1438 = vunpack.c.l.b16 %v1334
      %v1439 = vunpack.c.l.b16 %v1338
      %v1440 = vunpack.c.l.b16 %v1341
      %v1441 = vunpack.c.l.b16 %v1345
      %v1442 = vunpack.c.l.b16 %v1348
      %v1443 = vunpack.c.l.b16 %v1352
      %v1444 = vunpack.c.l.b16 %v1355
      %v1445 = vunpack.c.l.b16 %v1359
      %v1446 = vunpack.c.l.b16 %v1362
      %v1447 = vunpack.c.l.b16 %v1366
      %v1448 = vunpack.c.l.b16 %v1369
      %v1449 = vunpack.c.l.b16 %v1373
      %v1450 = vunpack.c.l.b16 %v1376
      %v1451 = vunpack.c.l.b16 %v1380
      %v1452 = vunpack.c.l.b16 %v1383
      %v1453 = vunpack.c.l.b16 %v1387
      %v1454 = vunpack.c.l.b16 %v1390
      %v1455 = vunpack.c.l.b16 %v1394
      %v1456 = vunpack.c.l.b16 %v1397
      %v1457 = vunpack.c.l.b16 %v1401
      %v1458 = vunpack.c.l.b16 %v1404
      %v1459 = vunpack.c.l.b16 %v1408
      %v1460 = vunpack.c.l.b16 %v1411
      %v1461 = vpack.c.b16 %v1430, %v1429
      %v1462 = vpack.c.b16 %v1432, %v1431
      %v1463 = vpack.c.b16 %v1434, %v1433
      %v1464 = vpack.c.b16 %v1436, %v1435
      %v1465 = vpack.c.b16 %v1438, %v1437
      %v1466 = vpack.c.b16 %v1440, %v1439
      %v1467 = vpack.c.b16 %v1442, %v1441
      %v1468 = vpack.c.b16 %v1444, %v1443
      %v1469 = vpack.c.b16 %v1446, %v1445
      %v1470 = vpack.c.b16 %v1448, %v1447
      %v1471 = vpack.c.b16 %v1450, %v1449
      %v1472 = vpack.c.b16 %v1452, %v1451
      %v1473 = vpack.c.b16 %v1454, %v1453
      %v1474 = vpack.c.b16 %v1456, %v1455
      %v1475 = vpack.c.b16 %v1458, %v1457
      %v1476 = vpack.c.b16 %v1460, %v1459
      %v1509 = vunpack.c.l.b16 %v1413
      %v1510 = vunpack.c.l.b16 %v1414
      %v1511 = vunpack.c.l.b16 %v1415
      %v1512 = vunpack.c.l.b16 %v1416
      %v1513 = vunpack.c.l.b16 %v1417
      %v1514 = vunpack.c.l.b16 %v1418
      %v1515 = vunpack.c.l.b16 %v1419
      %v1516 = vunpack.c.l.b16 %v1420
      %v1517 = vunpack.c.l.b16 %v1421
      %v1518 = vunpack.c.l.b16 %v1422
      %v1519 = vunpack.c.l.b16 %v1423
      %v1520 = vunpack.c.l.b16 %v1424
      %v1521 = vunpack.c.l.b16 %v1425
      %v1522 = vunpack.c.l.b16 %v1426
      %v1523 = vunpack.c.l.b16 %v1427
      %v1524 = vunpack.c.l.b16 %v1428
      %v1525 = vpack.c.b16 %v1510, %v1509
      %v1526 = vpack.c.b16 %v1512, %v1511
      %v1527 = vpack.c.b16 %v1514, %v1513
      %v1528 = vpack.c.b16 %v1516, %v1515
      %v1529 = vpack.c.b16 %v1518, %v1517
      %v1530 = vpack.c.b16 %v1520, %v1519
      %v1531 = vpack.c.b16 %v1522, %v1521
      %v1532 = vpack.c.b16 %v1524, %v1523
      %1541 = vmatprep.subr.bf16.mxu0 0
      %1542 = vmatpush1.bf16.msra.mxu0 %v1525
      %1543 = vmatprep.subr.bf16.mxu0 0
      %1544 = vmatpush1.bf16.msra.mxu0 %v1526
      %1545 = vmatprep.subr.bf16.mxu0 0
      %1546 = vmatpush1.bf16.msra.mxu0 %v1527
      %1547 = vmatprep.subr.bf16.mxu0 0
      %1548 = vmatpush1.bf16.msra.mxu0 %v1528
      %1549 = vmatprep.subr.bf16.mxu0 0
      %1550 = vmatpush1.bf16.msra.mxu0 %v1529
      %1551 = vmatprep.subr.bf16.mxu0 0
      %1552 = vmatpush1.bf16.msra.mxu0 %v1530
      %1553 = vmatprep.subr.bf16.mxu0 0
      %1554 = vmatpush1.bf16.msra.mxu0 %v1531
      %1555 = vmatprep.subr.bf16.mxu0 0
      %1556 = vmatpush1.bf16.msra.mxu0 %v1532
      %1557 = vmatprep.subr.bf16.mxu0 0
      %1558 = vmatpush1.bf16.msra.mxu0 0
      %1559 = vmatprep.subr.bf16.mxu0 0
      %1560 = vmatpush1.bf16.msra.mxu0 0
      %1561 = vmatprep.subr.bf16.mxu0 0
      %1562 = vmatpush1.bf16.msra.mxu0 0
      %1563 = vmatprep.subr.bf16.mxu0 0
      %1564 = vmatpush1.bf16.msra.mxu0 0
      %1565 = vmatprep.subr.bf16.mxu0 0
      %1566 = vmatpush1.bf16.msra.mxu0 0
      %1567 = vmatprep.subr.bf16.mxu0 0
      %1568 = vmatpush1.bf16.msra.mxu0 0
      %1569 = vmatprep.subr.bf16.mxu0 0
      %1570 = vmatpush1.bf16.msra.mxu0 0
      %1571 = vmatprep.subr.bf16.mxu0 0
      %1572 = vmatpush1.bf16.msra.mxu0 0
      %1573 = vmatprep.mubr.bf16.mxu0 0
      %1574 = vmatmul.mubr.bf16.gmra.mrb[0].mxu0 %v1461
      %v1575 = vpop.f32.mrb[0].mxu0
      %v1576 = vadd.f32 0.0, %v1575
      %v1577 = vpop.f32.mrb[0].mxu0
      %v1578 = vpop.f32.mrb[0].mxu0
      %v1579 = vadd.f32 0.0, %v1578
      %v1580 = vpop.f32.mrb[0].mxu0
      %1581 = vmatprep.mubr.bf16.mxu0 0
      %1582 = vmatmul.mubr.bf16.gmra.mrb[0].mxu0 %v1462
      %v1583 = vpop.f32.mrb[0].mxu0
      %v1584 = vadd.f32 0.0, %v1583
      %v1585 = vpop.f32.mrb[0].mxu0
      %v1586 = vpop.f32.mrb[0].mxu0
      %v1587 = vadd.f32 0.0, %v1586
      %v1588 = vpop.f32.mrb[0].mxu0
      %1589 = vmatprep.mubr.bf16.mxu0 0
      %1590 = vmatmul.mubr.bf16.gmra.mrb[0].mxu0 %v1463
      %v1591 = vpop.f32.mrb[0].mxu0
      %v1592 = vadd.f32 0.0, %v1591
      %v1593 = vpop.f32.mrb[0].mxu0
      %v1594 = vpop.f32.mrb[0].mxu0
      %v1595 = vadd.f32 0.0, %v1594
      %v1596 = vpop.f32.mrb[0].mxu0
      %1597 = vmatprep.mubr.bf16.mxu0 0
      %1598 = vmatmul.mubr.bf16.gmra.mrb[0].mxu0 %v1464
      %v1599 = vpop.f32.mrb[0].mxu0
      %v1600 = vadd.f32 0.0, %v1599
      %v1601 = vpop.f32.mrb[0].mxu0
      %v1602 = vpop.f32.mrb[0].mxu0
      %v1603 = vadd.f32 0.0, %v1602
      %v1604 = vpop.f32.mrb[0].mxu0
      %1605 = vmatprep.mubr.bf16.mxu0 0
      %1606 = vmatmul.mubr.bf16.gmra.mrb[0].mxu0 %v1465
      %v1607 = vpop.f32.mrb[0].mxu0
      %v1608 = vadd.f32 0.0, %v1607
      %v1609 = vpop.f32.mrb[0].mxu0
      %v1610 = vpop.f32.mrb[0].mxu0
      %v1611 = vadd.f32 0.0, %v1610
      %v1612 = vpop.f32.mrb[0].mxu0
      %1613 = vmatprep.mubr.bf16.mxu0 0
      %1614 = vmatmul.mubr.bf16.gmra.mrb[0].mxu0 %v1466
      %v1615 = vpop.f32.mrb[0].mxu0
      %v1616 = vadd.f32 0.0, %v1615
      %v1617 = vpop.f32.mrb[0].mxu0
      %v1618 = vpop.f32.mrb[0].mxu0
      %v1619 = vadd.f32 0.0, %v1618
      %v1620 = vpop.f32.mrb[0].mxu0
      %1621 = vmatprep.mubr.bf16.mxu0 0
      %1622 = vmatmul.mubr.bf16.gmra.mrb[0].mxu0 %v1467
      %v1623 = vpop.f32.mrb[0].mxu0
      %v1624 = vadd.f32 0.0, %v1623
      %v1625 = vpop.f32.mrb[0].mxu0
      %v1626 = vpop.f32.mrb[0].mxu0
      %v1627 = vadd.f32 0.0, %v1626
      %v1628 = vpop.f32.mrb[0].mxu0
      %1629 = vmatprep.mubr.bf16.mxu0 0
      %1630 = vmatmul.mubr.bf16.gmra.mrb[0].mxu0 %v1468
      %v1631 = vpop.f32.mrb[0].mxu0
      %v1632 = vadd.f32 0.0, %v1631
      %v1633 = vpop.f32.mrb[0].mxu0
      %v1634 = vpop.f32.mrb[0].mxu0
      %v1635 = vadd.f32 0.0, %v1634
      %v1636 = vpop.f32.mrb[0].mxu0
      %1637 = vmatprep.mubr.bf16.mxu0 0
      %1638 = vmatmul.mubr.bf16.gmra.mrb[0].mxu0 %v1469
      %v1639 = vpop.f32.mrb[0].mxu0
      %v1640 = vadd.f32 0.0, %v1639
      %v1641 = vpop.f32.mrb[0].mxu0
      %v1642 = vpop.f32.mrb[0].mxu0
      %v1643 = vadd.f32 0.0, %v1642
      %v1644 = vpop.f32.mrb[0].mxu0
      %1645 = vmatprep.mubr.bf16.mxu0 0
      %1646 = vmatmul.mubr.bf16.gmra.mrb[0].mxu0 %v1470
      %v1647 = vpop.f32.mrb[0].mxu0
      %v1648 = vadd.f32 0.0, %v1647
      %v1649 = vpop.f32.mrb[0].mxu0
      %v1650 = vpop.f32.mrb[0].mxu0
      %v1651 = vadd.f32 0.0, %v1650
      %v1652 = vpop.f32.mrb[0].mxu0
      %1653 = vmatprep.mubr.bf16.mxu0 0
      %1654 = vmatmul.mubr.bf16.gmra.mrb[0].mxu0 %v1471
      %v1655 = vpop.f32.mrb[0].mxu0
      %v1656 = vadd.f32 0.0, %v1655
      %v1657 = vpop.f32.mrb[0].mxu0
      %v1658 = vpop.f32.mrb[0].mxu0
      %v1659 = vadd.f32 0.0, %v1658
      %v1660 = vpop.f32.mrb[0].mxu0
      %1661 = vmatprep.mubr.bf16.mxu0 0
      %1662 = vmatmul.mubr.bf16.gmra.mrb[0].mxu0 %v1472
      %v1663 = vpop.f32.mrb[0].mxu0
      %v1664 = vadd.f32 0.0, %v1663
      %v1665 = vpop.f32.mrb[0].mxu0
      %v1666 = vpop.f32.mrb[0].mxu0
      %v1667 = vadd.f32 0.0, %v1666
      %v1668 = vpop.f32.mrb[0].mxu0
      %1669 = vmatprep.mubr.bf16.mxu0 0
      %1670 = vmatmul.mubr.bf16.gmra.mrb[0].mxu0 %v1473
      %v1671 = vpop.f32.mrb[0].mxu0
      %v1672 = vadd.f32 0.0, %v1671
      %v1673 = vpop.f32.mrb[0].mxu0
      %v1674 = vpop.f32.mrb[0].mxu0
      %v1675 = vadd.f32 0.0, %v1674
      %v1676 = vpop.f32.mrb[0].mxu0
      %1677 = vmatprep.mubr.bf16.mxu0 0
      %1678 = vmatmul.mubr.bf16.gmra.mrb[0].mxu0 %v1474
      %v1679 = vpop.f32.mrb[0].mxu0
      %v1680 = vadd.f32 0.0, %v1679
      %v1681 = vpop.f32.mrb[0].mxu0
      %v1682 = vpop.f32.mrb[0].mxu0
      %v1683 = vadd.f32 0.0, %v1682
      %v1684 = vpop.f32.mrb[0].mxu0
      %1685 = vmatprep.mubr.bf16.mxu0 0
      %1686 = vmatmul.mubr.bf16.gmra.mrb[0].mxu0 %v1475
      %v1687 = vpop.f32.mrb[0].mxu0
      %v1688 = vadd.f32 0.0, %v1687
      %v1689 = vpop.f32.mrb[0].mxu0
      %v1690 = vpop.f32.mrb[0].mxu0
      %v1691 = vadd.f32 0.0, %v1690
      %v1692 = vpop.f32.mrb[0].mxu0
      %1693 = vmatprep.mubr.bf16.mxu0 0
      %1694 = vmatmul.mubr.bf16.gmra.mrb[0].mxu0 %v1476
      %v1695 = vpop.f32.mrb[0].mxu0
      %v1696 = vadd.f32 0.0, %v1695
      %v1697 = vpop.f32.mrb[0].mxu0
      %v1698 = vpop.f32.mrb[0].mxu0
      %v1699 = vadd.f32 0.0, %v1698
      %v1700 = vpop.f32.mrb[0].mxu0
      %1701 = vdwg.mxu0
      %v1702 = vadd.f32 %v1155, %v1576
      %v1703 = vadd.f32 %v1158, %v1579
      %v1704 = vadd.f32 %v1163, %v1584
      %v1705 = vadd.f32 %v1166, %v1587
      %v1706 = vadd.f32 %v1171, %v1592
      %v1707 = vadd.f32 %v1174, %v1595
      %v1708 = vadd.f32 %v1179, %v1600
      %v1709 = vadd.f32 %v1182, %v1603
      %v1710 = vadd.f32 %v1187, %v1608
      %v1711 = vadd.f32 %v1190, %v1611
      %v1712 = vadd.f32 %v1195, %v1616
      %v1713 = vadd.f32 %v1198, %v1619
      %v1714 = vadd.f32 %v1203, %v1624
      %v1715 = vadd.f32 %v1206, %v1627
      %v1716 = vadd.f32 %v1211, %v1632
      %v1717 = vadd.f32 %v1214, %v1635
      %v1718 = vadd.f32 %v1219, %v1640
      %v1719 = vadd.f32 %v1222, %v1643
      %v1720 = vadd.f32 %v1227, %v1648
      %v1721 = vadd.f32 %v1230, %v1651
      %v1722 = vadd.f32 %v1235, %v1656
      %v1723 = vadd.f32 %v1238, %v1659
      %v1724 = vadd.f32 %v1243, %v1664
      %v1725 = vadd.f32 %v1246, %v1667
      %v1726 = vadd.f32 %v1251, %v1672
      %v1727 = vadd.f32 %v1254, %v1675
      %v1728 = vadd.f32 %v1259, %v1680
      %v1729 = vadd.f32 %v1262, %v1683
      %v1730 = vadd.f32 %v1267, %v1688
      %v1731 = vadd.f32 %v1270, %v1691
      %v1732 = vadd.f32 %v1275, %v1696
      %v1733 = vadd.f32 %v1278, %v1699
      %s1734 = scalar_lea.vmem %s214, 12
      %v1735 = vld [vmem:[%s1734] sm:$0xf]
      %v1736 = vld [vmem:[%s1734 + $0x4] sm:$0xf]
      %v1737 = vld [vmem:[%s1734 + $0x8] sm:$0x1]
      %v1738 = vld [vmem:[%s1734 + $0x24] sm:$0xf]
      %v1739 = vld [vmem:[%s1734 + $0x28] sm:$0xf]
      %v1740 = vld [vmem:[%s1734 + $0x2c] sm:$0x1]
      %v1741 = vld [vmem:[%s1734 + $0x48] sm:$0xf]
      %v1742 = vld [vmem:[%s1734 + $0x4c] sm:$0xf]
      %v1743 = vld [vmem:[%s1734 + $0x50] sm:$0x1]
      %v1744 = vld [vmem:[%s1734 + $0x6c] sm:$0xf]
      %v1745 = vld [vmem:[%s1734 + $0x70] sm:$0xf]
      %v1746 = vld [vmem:[%s1734 + $0x74] sm:$0x1]
      %v1747 = vld [vmem:[%s1734 + $0x90] sm:$0xf]
      %v1748 = vld [vmem:[%s1734 + $0x94] sm:$0xf]
      %v1749 = vld [vmem:[%s1734 + $0x98] sm:$0x1]
      %v1750 = vld [vmem:[%s1734 + $0xb4] sm:$0xf]
      %v1751 = vld [vmem:[%s1734 + $0xb8] sm:$0xf]
      %v1752 = vld [vmem:[%s1734 + $0xbc] sm:$0x1]
      %v1753 = vld [vmem:[%s1734 + $0xd8] sm:$0xf]
      %v1754 = vld [vmem:[%s1734 + $0xdc] sm:$0xf]
      %v1755 = vld [vmem:[%s1734 + $0xe0] sm:$0x1]
      %v1756 = vld [vmem:[%s1734 + $0xfc] sm:$0xf]
      %v1757 = vld [vmem:[%s1734 + $0x100] sm:$0xf]
      %v1758 = vld [vmem:[%s1734 + $0x104] sm:$0x1]
      %v1759 = vld [vmem:[%s1734 + $0x120] sm:$0xf]
      %v1760 = vld [vmem:[%s1734 + $0x124] sm:$0xf]
      %v1761 = vld [vmem:[%s1734 + $0x128] sm:$0x1]
      %v1762 = vld [vmem:[%s1734 + $0x144] sm:$0xf]
      %v1763 = vld [vmem:[%s1734 + $0x148] sm:$0xf]
      %v1764 = vld [vmem:[%s1734 + $0x14c] sm:$0x1]
      %v1765 = vld [vmem:[%s1734 + $0x168] sm:$0xf]
      %v1766 = vld [vmem:[%s1734 + $0x16c] sm:$0xf]
      %v1767 = vld [vmem:[%s1734 + $0x170] sm:$0x1]
      %v1768 = vld [vmem:[%s1734 + $0x18c] sm:$0xf]
      %v1769 = vld [vmem:[%s1734 + $0x190] sm:$0xf]
      %v1770 = vld [vmem:[%s1734 + $0x194] sm:$0x1]
      %v1771 = vld [vmem:[%s1734 + $0x1b0] sm:$0xf]
      %v1772 = vld [vmem:[%s1734 + $0x1b4] sm:$0xf]
      %v1773 = vld [vmem:[%s1734 + $0x1b8] sm:$0x1]
      %v1774 = vld [vmem:[%s1734 + $0x1d4] sm:$0xf]
      %v1775 = vld [vmem:[%s1734 + $0x1d8] sm:$0xf]
      %v1776 = vld [vmem:[%s1734 + $0x1dc] sm:$0x1]
      %v1777 = vld [vmem:[%s1734 + $0x1f8] sm:$0xf]
      %v1778 = vld [vmem:[%s1734 + $0x1fc] sm:$0xf]
      %v1779 = vld [vmem:[%s1734 + $0x200] sm:$0x1]
      %v1780 = vld [vmem:[%s1734 + $0x21c] sm:$0xf]
      %v1781 = vld [vmem:[%s1734 + $0x220] sm:$0xf]
      %v1782 = vld [vmem:[%s1734 + $0x224] sm:$0x1]
      %s1783 = scalar_lea.vmem %s1, 192
      %v1784 = vld [vmem:[%s1783] sm:$0xf]
      %v1785 = vld [vmem:[%s1783 + $0x4] sm:$0xf]
      %v1786 = vld [vmem:[%s1783 + $0x8] sm:$0xf]
      %v1787 = vld [vmem:[%s1783 + $0xc] sm:$0xf]
      %v1788 = vld [vmem:[%s1783 + $0x10] sm:$0xf]
      %v1789 = vld [vmem:[%s1783 + $0x14] sm:$0xf]
      %v1790 = vld [vmem:[%s1783 + $0x18] sm:$0xf]
      %v1791 = vld [vmem:[%s1783 + $0x1c] sm:$0xf]
      %v1792 = vld [vmem:[%s1783 + $0x20] sm:$0xf]
      %v1793 = vld [vmem:[%s1783 + $0x24] sm:$0xf]
      %v1794 = vld [vmem:[%s1783 + $0x28] sm:$0xf]
      %v1795 = vld [vmem:[%s1783 + $0x2c] sm:$0xf]
      %v1796 = vld [vmem:[%s1783 + $0x30] sm:$0xf]
      %v1797 = vld [vmem:[%s1783 + $0x34] sm:$0xf]
      %v1798 = vld [vmem:[%s1783 + $0x38] sm:$0xf]
      %v1799 = vld [vmem:[%s1783 + $0x3c] sm:$0xf]
      %v1832 = vunpack.c.l.b16 %v1735
      %v1833 = vunpack.c.l.b16 %v1736
      %v1834 = vunpack.c.l.b16 %v1738
      %v1835 = vunpack.c.l.b16 %v1739
      %v1836 = vunpack.c.l.b16 %v1741
      %v1837 = vunpack.c.l.b16 %v1742
      %v1838 = vunpack.c.l.b16 %v1744
      %v1839 = vunpack.c.l.b16 %v1745
      %v1840 = vunpack.c.l.b16 %v1747
      %v1841 = vunpack.c.l.b16 %v1748
      %v1842 = vunpack.c.l.b16 %v1750
      %v1843 = vunpack.c.l.b16 %v1751
      %v1844 = vunpack.c.l.b16 %v1753
      %v1845 = vunpack.c.l.b16 %v1754
      %v1846 = vunpack.c.l.b16 %v1756
      %v1847 = vunpack.c.l.b16 %v1757
      %v1848 = vunpack.c.l.b16 %v1759
      %v1849 = vunpack.c.l.b16 %v1760
      %v1850 = vunpack.c.l.b16 %v1762
      %v1851 = vunpack.c.l.b16 %v1763
      %v1852 = vunpack.c.l.b16 %v1765
      %v1853 = vunpack.c.l.b16 %v1766
      %v1854 = vunpack.c.l.b16 %v1768
      %v1855 = vunpack.c.l.b16 %v1769
      %v1856 = vunpack.c.l.b16 %v1771
      %v1857 = vunpack.c.l.b16 %v1772
      %v1858 = vunpack.c.l.b16 %v1774
      %v1859 = vunpack.c.l.b16 %v1775
      %v1860 = vunpack.c.l.b16 %v1777
      %v1861 = vunpack.c.l.b16 %v1778
      %v1862 = vunpack.c.l.b16 %v1780
      %v1863 = vunpack.c.l.b16 %v1781
      %v1864 = vpack.c.b16 %v1833, %v1832
      %v1865 = vpack.c.b16 %v1835, %v1834
      %v1866 = vpack.c.b16 %v1837, %v1836
      %v1867 = vpack.c.b16 %v1839, %v1838
      %v1868 = vpack.c.b16 %v1841, %v1840
      %v1869 = vpack.c.b16 %v1843, %v1842
      %v1870 = vpack.c.b16 %v1845, %v1844
      %v1871 = vpack.c.b16 %v1847, %v1846
      %v1872 = vpack.c.b16 %v1849, %v1848
      %v1873 = vpack.c.b16 %v1851, %v1850
      %v1874 = vpack.c.b16 %v1853, %v1852
      %v1875 = vpack.c.b16 %v1855, %v1854
      %v1876 = vpack.c.b16 %v1857, %v1856
      %v1877 = vpack.c.b16 %v1859, %v1858
      %v1878 = vpack.c.b16 %v1861, %v1860
      %v1879 = vpack.c.b16 %v1863, %v1862
      %v1912 = vunpack.c.l.b16 %v1784
      %v1913 = vunpack.c.l.b16 %v1785
      %v1914 = vunpack.c.l.b16 %v1786
      %v1915 = vunpack.c.l.b16 %v1787
      %v1916 = vunpack.c.l.b16 %v1788
      %v1917 = vunpack.c.l.b16 %v1789
      %v1918 = vunpack.c.l.b16 %v1790
      %v1919 = vunpack.c.l.b16 %v1791
      %v1920 = vunpack.c.l.b16 %v1792
      %v1921 = vunpack.c.l.b16 %v1793
      %v1922 = vunpack.c.l.b16 %v1794
      %v1923 = vunpack.c.l.b16 %v1795
      %v1924 = vunpack.c.l.b16 %v1796
      %v1925 = vunpack.c.l.b16 %v1797
      %v1926 = vunpack.c.l.b16 %v1798
      %v1927 = vunpack.c.l.b16 %v1799
      %v1928 = vpack.c.b16 %v1913, %v1912
      %v1929 = vpack.c.b16 %v1915, %v1914
      %v1930 = vpack.c.b16 %v1917, %v1916
      %v1931 = vpack.c.b16 %v1919, %v1918
      %v1932 = vpack.c.b16 %v1921, %v1920
      %v1933 = vpack.c.b16 %v1923, %v1922
      %v1934 = vpack.c.b16 %v1925, %v1924
      %v1935 = vpack.c.b16 %v1927, %v1926
      %1944 = vmatprep.subr.bf16.mxu0 0
      %1945 = vmatpush1.bf16.msra.mxu0 %v1928
      %1946 = vmatprep.subr.bf16.mxu0 0
      %1947 = vmatpush1.bf16.msra.mxu0 %v1929
      %1948 = vmatprep.subr.bf16.mxu0 0
      %1949 = vmatpush1.bf16.msra.mxu0 %v1930
      %1950 = vmatprep.subr.bf16.mxu0 0
      %1951 = vmatpush1.bf16.msra.mxu0 %v1931
      %1952 = vmatprep.subr.bf16.mxu0 0
      %1953 = vmatpush1.bf16.msra.mxu0 %v1932
      %1954 = vmatprep.subr.bf16.mxu0 0
      %1955 = vmatpush1.bf16.msra.mxu0 %v1933
      %1956 = vmatprep.subr.bf16.mxu0 0
      %1957 = vmatpush1.bf16.msra.mxu0 %v1934
      %1958 = vmatprep.subr.bf16.mxu0 0
      %1959 = vmatpush1.bf16.msra.mxu0 %v1935
      %1960 = vmatprep.subr.bf16.mxu0 0
      %1961 = vmatpush1.bf16.msra.mxu0 0
      %1962 = vmatprep.subr.bf16.mxu0 0
      %1963 = vmatpush1.bf16.msra.mxu0 0
      %1964 = vmatprep.subr.bf16.mxu0 0
      %1965 = vmatpush1.bf16.msra.mxu0 0
      %1966 = vmatprep.subr.bf16.mxu0 0
      %1967 = vmatpush1.bf16.msra.mxu0 0
      %1968 = vmatprep.subr.bf16.mxu0 0
      %1969 = vmatpush1.bf16.msra.mxu0 0
      %1970 = vmatprep.subr.bf16.mxu0 0
      %1971 = vmatpush1.bf16.msra.mxu0 0
      %1972 = vmatprep.subr.bf16.mxu0 0
      %1973 = vmatpush1.bf16.msra.mxu0 0
      %1974 = vmatprep.subr.bf16.mxu0 0
      %1975 = vmatpush1.bf16.msra.mxu0 0
      %1976 = vmatprep.mubr.bf16.mxu0 0
      %1977 = vmatmul.mubr.bf16.gmra.mrb[0].mxu0 %v1864
      %v1978 = vpop.f32.mrb[0].mxu0
      %v1979 = vadd.f32 0.0, %v1978
      %v1980 = vpop.f32.mrb[0].mxu0
      %v1981 = vpop.f32.mrb[0].mxu0
      %v1982 = vadd.f32 0.0, %v1981
      %v1983 = vpop.f32.mrb[0].mxu0
      %1984 = vmatprep.mubr.bf16.mxu0 0
      %1985 = vmatmul.mubr.bf16.gmra.mrb[0].mxu0 %v1865
      %v1986 = vpop.f32.mrb[0].mxu0
      %v1987 = vadd.f32 0.0, %v1986
      %v1988 = vpop.f32.mrb[0].mxu0
      %v1989 = vpop.f32.mrb[0].mxu0
      %v1990 = vadd.f32 0.0, %v1989
      %v1991 = vpop.f32.mrb[0].mxu0
      %1992 = vmatprep.mubr.bf16.mxu0 0
      %1993 = vmatmul.mubr.bf16.gmra.mrb[0].mxu0 %v1866
      %v1994 = vpop.f32.mrb[0].mxu0
      %v1995 = vadd.f32 0.0, %v1994
      %v1996 = vpop.f32.mrb[0].mxu0
      %v1997 = vpop.f32.mrb[0].mxu0
      %v1998 = vadd.f32 0.0, %v1997
      %v1999 = vpop.f32.mrb[0].mxu0
      %2000 = vmatprep.mubr.bf16.mxu0 0
      %2001 = vmatmul.mubr.bf16.gmra.mrb[0].mxu0 %v1867
      %v2002 = vpop.f32.mrb[0].mxu0
      %v2003 = vadd.f32 0.0, %v2002
      %v2004 = vpop.f32.mrb[0].mxu0
      %v2005 = vpop.f32.mrb[0].mxu0
      %v2006 = vadd.f32 0.0, %v2005
      %v2007 = vpop.f32.mrb[0].mxu0
      %2008 = vmatprep.mubr.bf16.mxu0 0
      %2009 = vmatmul.mubr.bf16.gmra.mrb[0].mxu0 %v1868
      %v2010 = vpop.f32.mrb[0].mxu0
      %v2011 = vadd.f32 0.0, %v2010
      %v2012 = vpop.f32.mrb[0].mxu0
      %v2013 = vpop.f32.mrb[0].mxu0
      %v2014 = vadd.f32 0.0, %v2013
      %v2015 = vpop.f32.mrb[0].mxu0
      %2016 = vmatprep.mubr.bf16.mxu0 0
      %2017 = vmatmul.mubr.bf16.gmra.mrb[0].mxu0 %v1869
      %v2018 = vpop.f32.mrb[0].mxu0
      %v2019 = vadd.f32 0.0, %v2018
      %v2020 = vpop.f32.mrb[0].mxu0
      %v2021 = vpop.f32.mrb[0].mxu0
      %v2022 = vadd.f32 0.0, %v2021
      %v2023 = vpop.f32.mrb[0].mxu0
      %2024 = vmatprep.mubr.bf16.mxu0 0
      %2025 = vmatmul.mubr.bf16.gmra.mrb[0].mxu0 %v1870
      %v2026 = vpop.f32.mrb[0].mxu0
      %v2027 = vadd.f32 0.0, %v2026
      %v2028 = vpop.f32.mrb[0].mxu0
      %v2029 = vpop.f32.mrb[0].mxu0
      %v2030 = vadd.f32 0.0, %v2029
      %v2031 = vpop.f32.mrb[0].mxu0
      %2032 = vmatprep.mubr.bf16.mxu0 0
      %2033 = vmatmul.mubr.bf16.gmra.mrb[0].mxu0 %v1871
      %v2034 = vpop.f32.mrb[0].mxu0
      %v2035 = vadd.f32 0.0, %v2034
      %v2036 = vpop.f32.mrb[0].mxu0
      %v2037 = vpop.f32.mrb[0].mxu0
      %v2038 = vadd.f32 0.0, %v2037
      %v2039 = vpop.f32.mrb[0].mxu0
      %2040 = vmatprep.mubr.bf16.mxu0 0
      %2041 = vmatmul.mubr.bf16.gmra.mrb[0].mxu0 %v1872
      %v2042 = vpop.f32.mrb[0].mxu0
      %v2043 = vadd.f32 0.0, %v2042
      %v2044 = vpop.f32.mrb[0].mxu0
      %v2045 = vpop.f32.mrb[0].mxu0
      %v2046 = vadd.f32 0.0, %v2045
      %v2047 = vpop.f32.mrb[0].mxu0
      %2048 = vmatprep.mubr.bf16.mxu0 0
      %2049 = vmatmul.mubr.bf16.gmra.mrb[0].mxu0 %v1873
      %v2050 = vpop.f32.mrb[0].mxu0
      %v2051 = vadd.f32 0.0, %v2050
      %v2052 = vpop.f32.mrb[0].mxu0
      %v2053 = vpop.f32.mrb[0].mxu0
      %v2054 = vadd.f32 0.0, %v2053
      %v2055 = vpop.f32.mrb[0].mxu0
      %2056 = vmatprep.mubr.bf16.mxu0 0
      %2057 = vmatmul.mubr.bf16.gmra.mrb[0].mxu0 %v1874
      %v2058 = vpop.f32.mrb[0].mxu0
      %v2059 = vadd.f32 0.0, %v2058
      %v2060 = vpop.f32.mrb[0].mxu0
      %v2061 = vpop.f32.mrb[0].mxu0
      %v2062 = vadd.f32 0.0, %v2061
      %v2063 = vpop.f32.mrb[0].mxu0
      %2064 = vmatprep.mubr.bf16.mxu0 0
      %2065 = vmatmul.mubr.bf16.gmra.mrb[0].mxu0 %v1875
      %v2066 = vpop.f32.mrb[0].mxu0
      %v2067 = vadd.f32 0.0, %v2066
      %v2068 = vpop.f32.mrb[0].mxu0
      %v2069 = vpop.f32.mrb[0].mxu0
      %v2070 = vadd.f32 0.0, %v2069
      %v2071 = vpop.f32.mrb[0].mxu0
      %2072 = vmatprep.mubr.bf16.mxu0 0
      %2073 = vmatmul.mubr.bf16.gmra.mrb[0].mxu0 %v1876
      %v2074 = vpop.f32.mrb[0].mxu0
      %v2075 = vadd.f32 0.0, %v2074
      %v2076 = vpop.f32.mrb[0].mxu0
      %v2077 = vpop.f32.mrb[0].mxu0
      %v2078 = vadd.f32 0.0, %v2077
      %v2079 = vpop.f32.mrb[0].mxu0
      %2080 = vmatprep.mubr.bf16.mxu0 0
      %2081 = vmatmul.mubr.bf16.gmra.mrb[0].mxu0 %v1877
      %v2082 = vpop.f32.mrb[0].mxu0
      %v2083 = vadd.f32 0.0, %v2082
      %v2084 = vpop.f32.mrb[0].mxu0
      %v2085 = vpop.f32.mrb[0].mxu0
      %v2086 = vadd.f32 0.0, %v2085
      %v2087 = vpop.f32.mrb[0].mxu0
      %2088 = vmatprep.mubr.bf16.mxu0 0
      %2089 = vmatmul.mubr.bf16.gmra.mrb[0].mxu0 %v1878
      %v2090 = vpop.f32.mrb[0].mxu0
      %v2091 = vadd.f32 0.0, %v2090
      %v2092 = vpop.f32.mrb[0].mxu0
      %v2093 = vpop.f32.mrb[0].mxu0
      %v2094 = vadd.f32 0.0, %v2093
      %v2095 = vpop.f32.mrb[0].mxu0
      %2096 = vmatprep.mubr.bf16.mxu0 0
      %2097 = vmatmul.mubr.bf16.gmra.mrb[0].mxu0 %v1879
      %v2098 = vpop.f32.mrb[0].mxu0
      %v2099 = vadd.f32 0.0, %v2098
      %v2100 = vpop.f32.mrb[0].mxu0
      %v2101 = vpop.f32.mrb[0].mxu0
      %v2102 = vadd.f32 0.0, %v2101
      %v2103 = vpop.f32.mrb[0].mxu0
      %2104 = vdwg.mxu0
      %v2105 = vadd.f32 %v1702, %v1979
      %v2106 = vadd.f32 %v1703, %v1982
      %v2107 = vadd.f32 %v1704, %v1987
      %v2108 = vadd.f32 %v1705, %v1990
      %v2109 = vadd.f32 %v1706, %v1995
      %v2110 = vadd.f32 %v1707, %v1998
      %v2111 = vadd.f32 %v1708, %v2003
      %v2112 = vadd.f32 %v1709, %v2006
      %v2113 = vadd.f32 %v1710, %v2011
      %v2114 = vadd.f32 %v1711, %v2014
      %v2115 = vadd.f32 %v1712, %v2019
      %v2116 = vadd.f32 %v1713, %v2022
      %v2117 = vadd.f32 %v1714, %v2027
      %v2118 = vadd.f32 %v1715, %v2030
      %v2119 = vadd.f32 %v1716, %v2035
      %v2120 = vadd.f32 %v1717, %v2038
      %v2121 = vadd.f32 %v1718, %v2043
      %v2122 = vadd.f32 %v1719, %v2046
      %v2123 = vadd.f32 %v1720, %v2051
      %v2124 = vadd.f32 %v1721, %v2054
      %v2125 = vadd.f32 %v1722, %v2059
      %v2126 = vadd.f32 %v1723, %v2062
      %v2127 = vadd.f32 %v1724, %v2067
      %v2128 = vadd.f32 %v1725, %v2070
      %v2129 = vadd.f32 %v1726, %v2075
      %v2130 = vadd.f32 %v1727, %v2078
      %v2131 = vadd.f32 %v1728, %v2083
      %v2132 = vadd.f32 %v1729, %v2086
      %v2133 = vadd.f32 %v1730, %v2091
      %v2134 = vadd.f32 %v1731, %v2094
      %v2135 = vadd.f32 %v1732, %v2099
      %v2136 = vadd.f32 %v1733, %v2102
      %v2138 = vshrl.u32 %v1735, 16
      %v2140 = vrot.slane %v2138, 4
      %v2141 = vshll.u32 %v1735, 16
      %v2143 = vrot.slane %v2141, 5
      %v2144 = vor.u32 %v2140, %v2143
      %v2145 = vrot.slane %v2144, 4
      %v2147 = vshll.u32 %v1736, 16
      %v2149 = vrot.slane %v2147, 5
      %v2150 = vsel %vm301, %v2145, %v2149
      %v2151 = vshrl.u32 %v1736, 16
      %v2153 = vrot.slane %v2151, 4
      %v2154 = vor.u32 %v2153, %v2149
      %v2155 = vrot.slane %v2154, 4
      %v2157 = vshll.u32 %v1737, 16
      %v2159 = vrot.slane %v2157, 5
      %v2160 = vsel %vm301, %v2155, %v2159
      %v2162 = vshrl.u32 %v1738, 16
      %v2164 = vrot.slane %v2162, 4
      %v2165 = vshll.u32 %v1738, 16
      %v2167 = vrot.slane %v2165, 5
      %v2168 = vor.u32 %v2164, %v2167
      %v2169 = vrot.slane %v2168, 4
      %v2171 = vshll.u32 %v1739, 16
      %v2173 = vrot.slane %v2171, 5
      %v2174 = vsel %vm301, %v2169, %v2173
      %v2175 = vshrl.u32 %v1739, 16
      %v2177 = vrot.slane %v2175, 4
      %v2178 = vor.u32 %v2177, %v2173
      %v2179 = vrot.slane %v2178, 4
      %v2181 = vshll.u32 %v1740, 16
      %v2183 = vrot.slane %v2181, 5
      %v2184 = vsel %vm301, %v2179, %v2183
      %v2186 = vshrl.u32 %v1741, 16
      %v2188 = vrot.slane %v2186, 4
      %v2189 = vshll.u32 %v1741, 16
      %v2191 = vrot.slane %v2189, 5
      %v2192 = vor.u32 %v2188, %v2191
      %v2193 = vrot.slane %v2192, 4
      %v2195 = vshll.u32 %v1742, 16
      %v2197 = vrot.slane %v2195, 5
      %v2198 = vsel %vm301, %v2193, %v2197
      %v2199 = vshrl.u32 %v1742, 16
      %v2201 = vrot.slane %v2199, 4
      %v2202 = vor.u32 %v2201, %v2197
      %v2203 = vrot.slane %v2202, 4
      %v2205 = vshll.u32 %v1743, 16
      %v2207 = vrot.slane %v2205, 5
      %v2208 = vsel %vm301, %v2203, %v2207
      %v2210 = vshrl.u32 %v1744, 16
      %v2212 = vrot.slane %v2210, 4
      %v2213 = vshll.u32 %v1744, 16
      %v2215 = vrot.slane %v2213, 5
      %v2216 = vor.u32 %v2212, %v2215
      %v2217 = vrot.slane %v2216, 4
      %v2219 = vshll.u32 %v1745, 16
      %v2221 = vrot.slane %v2219, 5
      %v2222 = vsel %vm301, %v2217, %v2221
      %v2223 = vshrl.u32 %v1745, 16
      %v2225 = vrot.slane %v2223, 4
      %v2226 = vor.u32 %v2225, %v2221
      %v2227 = vrot.slane %v2226, 4
      %v2229 = vshll.u32 %v1746, 16
      %v2231 = vrot.slane %v2229, 5
      %v2232 = vsel %vm301, %v2227, %v2231
      %v2234 = vshrl.u32 %v1747, 16
      %v2236 = vrot.slane %v2234, 4
      %v2237 = vshll.u32 %v1747, 16
      %v2239 = vrot.slane %v2237, 5
      %v2240 = vor.u32 %v2236, %v2239
      %v2241 = vrot.slane %v2240, 4
      %v2243 = vshll.u32 %v1748, 16
      %v2245 = vrot.slane %v2243, 5
      %v2246 = vsel %vm301, %v2241, %v2245
      %v2247 = vshrl.u32 %v1748, 16
      %v2249 = vrot.slane %v2247, 4
      %v2250 = vor.u32 %v2249, %v2245
      %v2251 = vrot.slane %v2250, 4
      %v2253 = vshll.u32 %v1749, 16
      %v2255 = vrot.slane %v2253, 5
      %v2256 = vsel %vm301, %v2251, %v2255
      %v2258 = vshrl.u32 %v1750, 16
      %v2260 = vrot.slane %v2258, 4
      %v2261 = vshll.u32 %v1750, 16
      %v2263 = vrot.slane %v2261, 5
      %v2264 = vor.u32 %v2260, %v2263
      %v2265 = vrot.slane %v2264, 4
      %v2267 = vshll.u32 %v1751, 16
      %v2269 = vrot.slane %v2267, 5
      %v2270 = vsel %vm301, %v2265, %v2269
      %v2271 = vshrl.u32 %v1751, 16
      %v2273 = vrot.slane %v2271, 4
      %v2274 = vor.u32 %v2273, %v2269
      %v2275 = vrot.slane %v2274, 4
      %v2277 = vshll.u32 %v1752, 16
      %v2279 = vrot.slane %v2277, 5
      %v2280 = vsel %vm301, %v2275, %v2279
      %v2282 = vshrl.u32 %v1753, 16
      %v2284 = vrot.slane %v2282, 4
      %v2285 = vshll.u32 %v1753, 16
      %v2287 = vrot.slane %v2285, 5
      %v2288 = vor.u32 %v2284, %v2287
      %v2289 = vrot.slane %v2288, 4
      %v2291 = vshll.u32 %v1754, 16
      %v2293 = vrot.slane %v2291, 5
      %v2294 = vsel %vm301, %v2289, %v2293
      %v2295 = vshrl.u32 %v1754, 16
      %v2297 = vrot.slane %v2295, 4
      %v2298 = vor.u32 %v2297, %v2293
      %v2299 = vrot.slane %v2298, 4
      %v2301 = vshll.u32 %v1755, 16
      %v2303 = vrot.slane %v2301, 5
      %v2304 = vsel %vm301, %v2299, %v2303
      %v2306 = vshrl.u32 %v1756, 16
      %v2308 = vrot.slane %v2306, 4
      %v2309 = vshll.u32 %v1756, 16
      %v2311 = vrot.slane %v2309, 5
      %v2312 = vor.u32 %v2308, %v2311
      %v2313 = vrot.slane %v2312, 4
      %v2315 = vshll.u32 %v1757, 16
      %v2317 = vrot.slane %v2315, 5
      %v2318 = vsel %vm301, %v2313, %v2317
      %v2319 = vshrl.u32 %v1757, 16
      %v2321 = vrot.slane %v2319, 4
      %v2322 = vor.u32 %v2321, %v2317
      %v2323 = vrot.slane %v2322, 4
      %v2325 = vshll.u32 %v1758, 16
      %v2327 = vrot.slane %v2325, 5
      %v2328 = vsel %vm301, %v2323, %v2327
      %v2330 = vshrl.u32 %v1759, 16
      %v2332 = vrot.slane %v2330, 4
      %v2333 = vshll.u32 %v1759, 16
      %v2335 = vrot.slane %v2333, 5
      %v2336 = vor.u32 %v2332, %v2335
      %v2337 = vrot.slane %v2336, 4
      %v2339 = vshll.u32 %v1760, 16
      %v2341 = vrot.slane %v2339, 5
      %v2342 = vsel %vm301, %v2337, %v2341
      %v2343 = vshrl.u32 %v1760, 16
      %v2345 = vrot.slane %v2343, 4
      %v2346 = vor.u32 %v2345, %v2341
      %v2347 = vrot.slane %v2346, 4
      %v2349 = vshll.u32 %v1761, 16
      %v2351 = vrot.slane %v2349, 5
      %v2352 = vsel %vm301, %v2347, %v2351
      %v2354 = vshrl.u32 %v1762, 16
      %v2356 = vrot.slane %v2354, 4
      %v2357 = vshll.u32 %v1762, 16
      %v2359 = vrot.slane %v2357, 5
      %v2360 = vor.u32 %v2356, %v2359
      %v2361 = vrot.slane %v2360, 4
      %v2363 = vshll.u32 %v1763, 16
      %v2365 = vrot.slane %v2363, 5
      %v2366 = vsel %vm301, %v2361, %v2365
      %v2367 = vshrl.u32 %v1763, 16
      %v2369 = vrot.slane %v2367, 4
      %v2370 = vor.u32 %v2369, %v2365
      %v2371 = vrot.slane %v2370, 4
      %v2373 = vshll.u32 %v1764, 16
      %v2375 = vrot.slane %v2373, 5
      %v2376 = vsel %vm301, %v2371, %v2375
      %v2378 = vshrl.u32 %v1765, 16
      %v2380 = vrot.slane %v2378, 4
      %v2381 = vshll.u32 %v1765, 16
      %v2383 = vrot.slane %v2381, 5
      %v2384 = vor.u32 %v2380, %v2383
      %v2385 = vrot.slane %v2384, 4
      %v2387 = vshll.u32 %v1766, 16
      %v2389 = vrot.slane %v2387, 5
      %v2390 = vsel %vm301, %v2385, %v2389
      %v2391 = vshrl.u32 %v1766, 16
      %v2393 = vrot.slane %v2391, 4
      %v2394 = vor.u32 %v2393, %v2389
      %v2395 = vrot.slane %v2394, 4
      %v2397 = vshll.u32 %v1767, 16
      %v2399 = vrot.slane %v2397, 5
      %v2400 = vsel %vm301, %v2395, %v2399
      %v2402 = vshrl.u32 %v1768, 16
      %v2404 = vrot.slane %v2402, 4
      %v2405 = vshll.u32 %v1768, 16
      %v2407 = vrot.slane %v2405, 5
      %v2408 = vor.u32 %v2404, %v2407
      %v2409 = vrot.slane %v2408, 4
      %v2411 = vshll.u32 %v1769, 16
      %v2413 = vrot.slane %v2411, 5
      %v2414 = vsel %vm301, %v2409, %v2413
      %v2415 = vshrl.u32 %v1769, 16
      %v2417 = vrot.slane %v2415, 4
      %v2418 = vor.u32 %v2417, %v2413
      %v2419 = vrot.slane %v2418, 4
      %v2421 = vshll.u32 %v1770, 16
      %v2423 = vrot.slane %v2421, 5
      %v2424 = vsel %vm301, %v2419, %v2423
      %v2426 = vshrl.u32 %v1771, 16
      %v2428 = vrot.slane %v2426, 4
      %v2429 = vshll.u32 %v1771, 16
      %v2431 = vrot.slane %v2429, 5
      %v2432 = vor.u32 %v2428, %v2431
      %v2433 = vrot.slane %v2432, 4
      %v2435 = vshll.u32 %v1772, 16
      %v2437 = vrot.slane %v2435, 5
      %v2438 = vsel %vm301, %v2433, %v2437
      %v2439 = vshrl.u32 %v1772, 16
      %v2441 = vrot.slane %v2439, 4
      %v2442 = vor.u32 %v2441, %v2437
      %v2443 = vrot.slane %v2442, 4
      %v2445 = vshll.u32 %v1773, 16
      %v2447 = vrot.slane %v2445, 5
      %v2448 = vsel %vm301, %v2443, %v2447
      %v2450 = vshrl.u32 %v1774, 16
      %v2452 = vrot.slane %v2450, 4
      %v2453 = vshll.u32 %v1774, 16
      %v2455 = vrot.slane %v2453, 5
      %v2456 = vor.u32 %v2452, %v2455
      %v2457 = vrot.slane %v2456, 4
      %v2459 = vshll.u32 %v1775, 16
      %v2461 = vrot.slane %v2459, 5
      %v2462 = vsel %vm301, %v2457, %v2461
      %v2463 = vshrl.u32 %v1775, 16
      %v2465 = vrot.slane %v2463, 4
      %v2466 = vor.u32 %v2465, %v2461
      %v2467 = vrot.slane %v2466, 4
      %v2469 = vshll.u32 %v1776, 16
      %v2471 = vrot.slane %v2469, 5
      %v2472 = vsel %vm301, %v2467, %v2471
      %v2474 = vshrl.u32 %v1777, 16
      %v2476 = vrot.slane %v2474, 4
      %v2477 = vshll.u32 %v1777, 16
      %v2479 = vrot.slane %v2477, 5
      %v2480 = vor.u32 %v2476, %v2479
      %v2481 = vrot.slane %v2480, 4
      %v2483 = vshll.u32 %v1778, 16
      %v2485 = vrot.slane %v2483, 5
      %v2486 = vsel %vm301, %v2481, %v2485
      %v2487 = vshrl.u32 %v1778, 16
      %v2489 = vrot.slane %v2487, 4
      %v2490 = vor.u32 %v2489, %v2485
      %v2491 = vrot.slane %v2490, 4
      %v2493 = vshll.u32 %v1779, 16
      %v2495 = vrot.slane %v2493, 5
      %v2496 = vsel %vm301, %v2491, %v2495
      %v2498 = vshrl.u32 %v1780, 16
      %v2500 = vrot.slane %v2498, 4
      %v2501 = vshll.u32 %v1780, 16
      %v2503 = vrot.slane %v2501, 5
      %v2504 = vor.u32 %v2500, %v2503
      %v2505 = vrot.slane %v2504, 4
      %v2507 = vshll.u32 %v1781, 16
      %v2509 = vrot.slane %v2507, 5
      %v2510 = vsel %vm301, %v2505, %v2509
      %v2511 = vshrl.u32 %v1781, 16
      %v2513 = vrot.slane %v2511, 4
      %v2514 = vor.u32 %v2513, %v2509
      %v2515 = vrot.slane %v2514, 4
      %v2517 = vshll.u32 %v1782, 16
      %v2519 = vrot.slane %v2517, 5
      %v2520 = vsel %vm301, %v2515, %v2519
      %s2521 = scalar_lea.vmem %s1, 256
      %v2522 = vld [vmem:[%s2521] sm:$0xf]
      %v2523 = vld [vmem:[%s2521 + $0x4] sm:$0xf]
      %v2524 = vld [vmem:[%s2521 + $0x8] sm:$0xf]
      %v2525 = vld [vmem:[%s2521 + $0xc] sm:$0xf]
      %v2526 = vld [vmem:[%s2521 + $0x10] sm:$0xf]
      %v2527 = vld [vmem:[%s2521 + $0x14] sm:$0xf]
      %v2528 = vld [vmem:[%s2521 + $0x18] sm:$0xf]
      %v2529 = vld [vmem:[%s2521 + $0x1c] sm:$0xf]
      %v2530 = vld [vmem:[%s2521 + $0x20] sm:$0xf]
      %v2531 = vld [vmem:[%s2521 + $0x24] sm:$0xf]
      %v2532 = vld [vmem:[%s2521 + $0x28] sm:$0xf]
      %v2533 = vld [vmem:[%s2521 + $0x2c] sm:$0xf]
      %v2534 = vld [vmem:[%s2521 + $0x30] sm:$0xf]
      %v2535 = vld [vmem:[%s2521 + $0x34] sm:$0xf]
      %v2536 = vld [vmem:[%s2521 + $0x38] sm:$0xf]
      %v2537 = vld [vmem:[%s2521 + $0x3c] sm:$0xf]
      %v2538 = vunpack.c.l.b16 %v2150
      %v2539 = vunpack.c.l.b16 %v2160
      %v2540 = vunpack.c.l.b16 %v2174
      %v2541 = vunpack.c.l.b16 %v2184
      %v2542 = vunpack.c.l.b16 %v2198
      %v2543 = vunpack.c.l.b16 %v2208
      %v2544 = vunpack.c.l.b16 %v2222
      %v2545 = vunpack.c.l.b16 %v2232
      %v2546 = vunpack.c.l.b16 %v2246
      %v2547 = vunpack.c.l.b16 %v2256
      %v2548 = vunpack.c.l.b16 %v2270
      %v2549 = vunpack.c.l.b16 %v2280
      %v2550 = vunpack.c.l.b16 %v2294
      %v2551 = vunpack.c.l.b16 %v2304
      %v2552 = vunpack.c.l.b16 %v2318
      %v2553 = vunpack.c.l.b16 %v2328
      %v2554 = vunpack.c.l.b16 %v2342
      %v2555 = vunpack.c.l.b16 %v2352
      %v2556 = vunpack.c.l.b16 %v2366
      %v2557 = vunpack.c.l.b16 %v2376
      %v2558 = vunpack.c.l.b16 %v2390
      %v2559 = vunpack.c.l.b16 %v2400
      %v2560 = vunpack.c.l.b16 %v2414
      %v2561 = vunpack.c.l.b16 %v2424
      %v2562 = vunpack.c.l.b16 %v2438
      %v2563 = vunpack.c.l.b16 %v2448
      %v2564 = vunpack.c.l.b16 %v2462
      %v2565 = vunpack.c.l.b16 %v2472
      %v2566 = vunpack.c.l.b16 %v2486
      %v2567 = vunpack.c.l.b16 %v2496
      %v2568 = vunpack.c.l.b16 %v2510
      %v2569 = vunpack.c.l.b16 %v2520
      %v2570 = vpack.c.b16 %v2539, %v2538
      %v2571 = vpack.c.b16 %v2541, %v2540
      %v2572 = vpack.c.b16 %v2543, %v2542
      %v2573 = vpack.c.b16 %v2545, %v2544
      %v2574 = vpack.c.b16 %v2547, %v2546
      %v2575 = vpack.c.b16 %v2549, %v2548
      %v2576 = vpack.c.b16 %v2551, %v2550
      %v2577 = vpack.c.b16 %v2553, %v2552
      %v2578 = vpack.c.b16 %v2555, %v2554
      %v2579 = vpack.c.b16 %v2557, %v2556
      %v2580 = vpack.c.b16 %v2559, %v2558
      %v2581 = vpack.c.b16 %v2561, %v2560
      %v2582 = vpack.c.b16 %v2563, %v2562
      %v2583 = vpack.c.b16 %v2565, %v2564
      %v2584 = vpack.c.b16 %v2567, %v2566
      %v2585 = vpack.c.b16 %v2569, %v2568
      %v2618 = vunpack.c.l.b16 %v2522
      %v2619 = vunpack.c.l.b16 %v2523
      %v2620 = vunpack.c.l.b16 %v2524
      %v2621 = vunpack.c.l.b16 %v2525
      %v2622 = vunpack.c.l.b16 %v2526
      %v2623 = vunpack.c.l.b16 %v2527
      %v2624 = vunpack.c.l.b16 %v2528
      %v2625 = vunpack.c.l.b16 %v2529
      %v2626 = vunpack.c.l.b16 %v2530
      %v2627 = vunpack.c.l.b16 %v2531
      %v2628 = vunpack.c.l.b16 %v2532
      %v2629 = vunpack.c.l.b16 %v2533
      %v2630 = vunpack.c.l.b16 %v2534
      %v2631 = vunpack.c.l.b16 %v2535
      %v2632 = vunpack.c.l.b16 %v2536
      %v2633 = vunpack.c.l.b16 %v2537
      %v2634 = vpack.c.b16 %v2619, %v2618
      %v2635 = vpack.c.b16 %v2621, %v2620
      %v2636 = vpack.c.b16 %v2623, %v2622
      %v2637 = vpack.c.b16 %v2625, %v2624
      %v2638 = vpack.c.b16 %v2627, %v2626
      %v2639 = vpack.c.b16 %v2629, %v2628
      %v2640 = vpack.c.b16 %v2631, %v2630
      %v2641 = vpack.c.b16 %v2633, %v2632
      %2650 = vmatprep.subr.bf16.mxu0 0
      %2651 = vmatpush1.bf16.msra.mxu0 %v2634
      %2652 = vmatprep.subr.bf16.mxu0 0
      %2653 = vmatpush1.bf16.msra.mxu0 %v2635
      %2654 = vmatprep.subr.bf16.mxu0 0
      %2655 = vmatpush1.bf16.msra.mxu0 %v2636
      %2656 = vmatprep.subr.bf16.mxu0 0
      %2657 = vmatpush1.bf16.msra.mxu0 %v2637
      %2658 = vmatprep.subr.bf16.mxu0 0
      %2659 = vmatpush1.bf16.msra.mxu0 %v2638
      %2660 = vmatprep.subr.bf16.mxu0 0
      %2661 = vmatpush1.bf16.msra.mxu0 %v2639
      %2662 = vmatprep.subr.bf16.mxu0 0
      %2663 = vmatpush1.bf16.msra.mxu0 %v2640
      %2664 = vmatprep.subr.bf16.mxu0 0
      %2665 = vmatpush1.bf16.msra.mxu0 %v2641
      %2666 = vmatprep.subr.bf16.mxu0 0
      %2667 = vmatpush1.bf16.msra.mxu0 0
      %2668 = vmatprep.subr.bf16.mxu0 0
      %2669 = vmatpush1.bf16.msra.mxu0 0
      %2670 = vmatprep.subr.bf16.mxu0 0
      %2671 = vmatpush1.bf16.msra.mxu0 0
      %2672 = vmatprep.subr.bf16.mxu0 0
      %2673 = vmatpush1.bf16.msra.mxu0 0
      %2674 = vmatprep.subr.bf16.mxu0 0
      %2675 = vmatpush1.bf16.msra.mxu0 0
      %2676 = vmatprep.subr.bf16.mxu0 0
      %2677 = vmatpush1.bf16.msra.mxu0 0
      %2678 = vmatprep.subr.bf16.mxu0 0
      %2679 = vmatpush1.bf16.msra.mxu0 0
      %2680 = vmatprep.subr.bf16.mxu0 0
      %2681 = vmatpush1.bf16.msra.mxu0 0
      %2682 = vmatprep.mubr.bf16.mxu0 0
      %2683 = vmatmul.mubr.bf16.gmra.mrb[0].mxu0 %v2570
      %v2684 = vpop.f32.mrb[0].mxu0
      %v2685 = vadd.f32 0.0, %v2684
      %v2686 = vpop.f32.mrb[0].mxu0
      %v2687 = vpop.f32.mrb[0].mxu0
      %v2688 = vadd.f32 0.0, %v2687
      %v2689 = vpop.f32.mrb[0].mxu0
      %2690 = vmatprep.mubr.bf16.mxu0 0
      %2691 = vmatmul.mubr.bf16.gmra.mrb[0].mxu0 %v2571
      %v2692 = vpop.f32.mrb[0].mxu0
      %v2693 = vadd.f32 0.0, %v2692
      %v2694 = vpop.f32.mrb[0].mxu0
      %v2695 = vpop.f32.mrb[0].mxu0
      %v2696 = vadd.f32 0.0, %v2695
      %v2697 = vpop.f32.mrb[0].mxu0
      %2698 = vmatprep.mubr.bf16.mxu0 0
      %2699 = vmatmul.mubr.bf16.gmra.mrb[0].mxu0 %v2572
      %v2700 = vpop.f32.mrb[0].mxu0
      %v2701 = vadd.f32 0.0, %v2700
      %v2702 = vpop.f32.mrb[0].mxu0
      %v2703 = vpop.f32.mrb[0].mxu0
      %v2704 = vadd.f32 0.0, %v2703
      %v2705 = vpop.f32.mrb[0].mxu0
      %2706 = vmatprep.mubr.bf16.mxu0 0
      %2707 = vmatmul.mubr.bf16.gmra.mrb[0].mxu0 %v2573
      %v2708 = vpop.f32.mrb[0].mxu0
      %v2709 = vadd.f32 0.0, %v2708
      %v2710 = vpop.f32.mrb[0].mxu0
      %v2711 = vpop.f32.mrb[0].mxu0
      %v2712 = vadd.f32 0.0, %v2711
      %v2713 = vpop.f32.mrb[0].mxu0
      %2714 = vmatprep.mubr.bf16.mxu0 0
      %2715 = vmatmul.mubr.bf16.gmra.mrb[0].mxu0 %v2574
      %v2716 = vpop.f32.mrb[0].mxu0
      %v2717 = vadd.f32 0.0, %v2716
      %v2718 = vpop.f32.mrb[0].mxu0
      %v2719 = vpop.f32.mrb[0].mxu0
      %v2720 = vadd.f32 0.0, %v2719
      %v2721 = vpop.f32.mrb[0].mxu0
      %2722 = vmatprep.mubr.bf16.mxu0 0
      %2723 = vmatmul.mubr.bf16.gmra.mrb[0].mxu0 %v2575
      %v2724 = vpop.f32.mrb[0].mxu0
      %v2725 = vadd.f32 0.0, %v2724
      %v2726 = vpop.f32.mrb[0].mxu0
      %v2727 = vpop.f32.mrb[0].mxu0
      %v2728 = vadd.f32 0.0, %v2727
      %v2729 = vpop.f32.mrb[0].mxu0
      %2730 = vmatprep.mubr.bf16.mxu0 0
      %2731 = vmatmul.mubr.bf16.gmra.mrb[0].mxu0 %v2576
      %v2732 = vpop.f32.mrb[0].mxu0
      %v2733 = vadd.f32 0.0, %v2732
      %v2734 = vpop.f32.mrb[0].mxu0
      %v2735 = vpop.f32.mrb[0].mxu0
      %v2736 = vadd.f32 0.0, %v2735
      %v2737 = vpop.f32.mrb[0].mxu0
      %2738 = vmatprep.mubr.bf16.mxu0 0
      %2739 = vmatmul.mubr.bf16.gmra.mrb[0].mxu0 %v2577
      %v2740 = vpop.f32.mrb[0].mxu0
      %v2741 = vadd.f32 0.0, %v2740
      %v2742 = vpop.f32.mrb[0].mxu0
      %v2743 = vpop.f32.mrb[0].mxu0
      %v2744 = vadd.f32 0.0, %v2743
      %v2745 = vpop.f32.mrb[0].mxu0
      %2746 = vmatprep.mubr.bf16.mxu0 0
      %2747 = vmatmul.mubr.bf16.gmra.mrb[0].mxu0 %v2578
      %v2748 = vpop.f32.mrb[0].mxu0
      %v2749 = vadd.f32 0.0, %v2748
      %v2750 = vpop.f32.mrb[0].mxu0
      %v2751 = vpop.f32.mrb[0].mxu0
      %v2752 = vadd.f32 0.0, %v2751
      %v2753 = vpop.f32.mrb[0].mxu0
      %2754 = vmatprep.mubr.bf16.mxu0 0
      %2755 = vmatmul.mubr.bf16.gmra.mrb[0].mxu0 %v2579
      %v2756 = vpop.f32.mrb[0].mxu0
      %v2757 = vadd.f32 0.0, %v2756
      %v2758 = vpop.f32.mrb[0].mxu0
      %v2759 = vpop.f32.mrb[0].mxu0
      %v2760 = vadd.f32 0.0, %v2759
      %v2761 = vpop.f32.mrb[0].mxu0
      %2762 = vmatprep.mubr.bf16.mxu0 0
      %2763 = vmatmul.mubr.bf16.gmra.mrb[0].mxu0 %v2580
      %v2764 = vpop.f32.mrb[0].mxu0
      %v2765 = vadd.f32 0.0, %v2764
      %v2766 = vpop.f32.mrb[0].mxu0
      %v2767 = vpop.f32.mrb[0].mxu0
      %v2768 = vadd.f32 0.0, %v2767
      %v2769 = vpop.f32.mrb[0].mxu0
      %2770 = vmatprep.mubr.bf16.mxu0 0
      %2771 = vmatmul.mubr.bf16.gmra.mrb[0].mxu0 %v2581
      %v2772 = vpop.f32.mrb[0].mxu0
      %v2773 = vadd.f32 0.0, %v2772
      %v2774 = vpop.f32.mrb[0].mxu0
      %v2775 = vpop.f32.mrb[0].mxu0
      %v2776 = vadd.f32 0.0, %v2775
      %v2777 = vpop.f32.mrb[0].mxu0
      %2778 = vmatprep.mubr.bf16.mxu0 0
      %2779 = vmatmul.mubr.bf16.gmra.mrb[0].mxu0 %v2582
      %v2780 = vpop.f32.mrb[0].mxu0
      %v2781 = vadd.f32 0.0, %v2780
      %v2782 = vpop.f32.mrb[0].mxu0
      %v2783 = vpop.f32.mrb[0].mxu0
      %v2784 = vadd.f32 0.0, %v2783
      %v2785 = vpop.f32.mrb[0].mxu0
      %2786 = vmatprep.mubr.bf16.mxu0 0
      %2787 = vmatmul.mubr.bf16.gmra.mrb[0].mxu0 %v2583
      %v2788 = vpop.f32.mrb[0].mxu0
      %v2789 = vadd.f32 0.0, %v2788
      %v2790 = vpop.f32.mrb[0].mxu0
      %v2791 = vpop.f32.mrb[0].mxu0
      %v2792 = vadd.f32 0.0, %v2791
      %v2793 = vpop.f32.mrb[0].mxu0
      %2794 = vmatprep.mubr.bf16.mxu0 0
      %2795 = vmatmul.mubr.bf16.gmra.mrb[0].mxu0 %v2584
      %v2796 = vpop.f32.mrb[0].mxu0
      %v2797 = vadd.f32 0.0, %v2796
      %v2798 = vpop.f32.mrb[0].mxu0
      %v2799 = vpop.f32.mrb[0].mxu0
      %v2800 = vadd.f32 0.0, %v2799
      %v2801 = vpop.f32.mrb[0].mxu0
      %2802 = vmatprep.mubr.bf16.mxu0 0
      %2803 = vmatmul.mubr.bf16.gmra.mrb[0].mxu0 %v2585
      %v2804 = vpop.f32.mrb[0].mxu0
      %v2805 = vadd.f32 0.0, %v2804
      %v2806 = vpop.f32.mrb[0].mxu0
      %v2807 = vpop.f32.mrb[0].mxu0
      %v2808 = vadd.f32 0.0, %v2807
      %v2809 = vpop.f32.mrb[0].mxu0
      %2810 = vdwg.mxu0
      %v2811 = vadd.f32 %v2105, %v2685
      %v2812 = vadd.f32 %v2106, %v2688
      %v2813 = vadd.f32 %v2107, %v2693
      %v2814 = vadd.f32 %v2108, %v2696
      %v2815 = vadd.f32 %v2109, %v2701
      %v2816 = vadd.f32 %v2110, %v2704
      %v2817 = vadd.f32 %v2111, %v2709
      %v2818 = vadd.f32 %v2112, %v2712
      %v2819 = vadd.f32 %v2113, %v2717
      %v2820 = vadd.f32 %v2114, %v2720
      %v2821 = vadd.f32 %v2115, %v2725
      %v2822 = vadd.f32 %v2116, %v2728
      %v2823 = vadd.f32 %v2117, %v2733
      %v2824 = vadd.f32 %v2118, %v2736
      %v2825 = vadd.f32 %v2119, %v2741
      %v2826 = vadd.f32 %v2120, %v2744
      %v2827 = vadd.f32 %v2121, %v2749
      %v2828 = vadd.f32 %v2122, %v2752
      %v2829 = vadd.f32 %v2123, %v2757
      %v2830 = vadd.f32 %v2124, %v2760
      %v2831 = vadd.f32 %v2125, %v2765
      %v2832 = vadd.f32 %v2126, %v2768
      %v2833 = vadd.f32 %v2127, %v2773
      %v2834 = vadd.f32 %v2128, %v2776
      %v2835 = vadd.f32 %v2129, %v2781
      %v2836 = vadd.f32 %v2130, %v2784
      %v2837 = vadd.f32 %v2131, %v2789
      %v2838 = vadd.f32 %v2132, %v2792
      %v2839 = vadd.f32 %v2133, %v2797
      %v2840 = vadd.f32 %v2134, %v2800
      %v2841 = vadd.f32 %v2135, %v2805
      %v2842 = vadd.f32 %v2136, %v2808
      %v2859 = vrot.slane %v1735, 5
      %v2860 = vrot.slane %v2859, 4
      %v2861 = vrot.slane %v1736, 5
      %v2862 = vsel %vm1299, %v2860, %v2861
      %v2863 = vrot.slane %v2861, 4
      %v2864 = vrot.slane %v1737, 5
      %v2865 = vsel %vm1299, %v2863, %v2864
      %v2866 = vrot.slane %v1738, 5
      %v2867 = vrot.slane %v2866, 4
      %v2868 = vrot.slane %v1739, 5
      %v2869 = vsel %vm1299, %v2867, %v2868
      %v2870 = vrot.slane %v2868, 4
      %v2871 = vrot.slane %v1740, 5
      %v2872 = vsel %vm1299, %v2870, %v2871
      %v2873 = vrot.slane %v1741, 5
      %v2874 = vrot.slane %v2873, 4
      %v2875 = vrot.slane %v1742, 5
      %v2876 = vsel %vm1299, %v2874, %v2875
      %v2877 = vrot.slane %v2875, 4
      %v2878 = vrot.slane %v1743, 5
      %v2879 = vsel %vm1299, %v2877, %v2878
      %v2880 = vrot.slane %v1744, 5
      %v2881 = vrot.slane %v2880, 4
      %v2882 = vrot.slane %v1745, 5
      %v2883 = vsel %vm1299, %v2881, %v2882
      %v2884 = vrot.slane %v2882, 4
      %v2885 = vrot.slane %v1746, 5
      %v2886 = vsel %vm1299, %v2884, %v2885
      %v2887 = vrot.slane %v1747, 5
      %v2888 = vrot.slane %v2887, 4
      %v2889 = vrot.slane %v1748, 5
      %v2890 = vsel %vm1299, %v2888, %v2889
      %v2891 = vrot.slane %v2889, 4
      %v2892 = vrot.slane %v1749, 5
      %v2893 = vsel %vm1299, %v2891, %v2892
      %v2894 = vrot.slane %v1750, 5
      %v2895 = vrot.slane %v2894, 4
      %v2896 = vrot.slane %v1751, 5
      %v2897 = vsel %vm1299, %v2895, %v2896
      %v2898 = vrot.slane %v2896, 4
      %v2899 = vrot.slane %v1752, 5
      %v2900 = vsel %vm1299, %v2898, %v2899
      %v2901 = vrot.slane %v1753, 5
      %v2902 = vrot.slane %v2901, 4
      %v2903 = vrot.slane %v1754, 5
      %v2904 = vsel %vm1299, %v2902, %v2903
      %v2905 = vrot.slane %v2903, 4
      %v2906 = vrot.slane %v1755, 5
      %v2907 = vsel %vm1299, %v2905, %v2906
      %v2908 = vrot.slane %v1756, 5
      %v2909 = vrot.slane %v2908, 4
      %v2910 = vrot.slane %v1757, 5
      %v2911 = vsel %vm1299, %v2909, %v2910
      %v2912 = vrot.slane %v2910, 4
      %v2913 = vrot.slane %v1758, 5
      %v2914 = vsel %vm1299, %v2912, %v2913
      %v2915 = vrot.slane %v1759, 5
      %v2916 = vrot.slane %v2915, 4
      %v2917 = vrot.slane %v1760, 5
      %v2918 = vsel %vm1299, %v2916, %v2917
      %v2919 = vrot.slane %v2917, 4
      %v2920 = vrot.slane %v1761, 5
      %v2921 = vsel %vm1299, %v2919, %v2920
      %v2922 = vrot.slane %v1762, 5
      %v2923 = vrot.slane %v2922, 4
      %v2924 = vrot.slane %v1763, 5
      %v2925 = vsel %vm1299, %v2923, %v2924
      %v2926 = vrot.slane %v2924, 4
      %v2927 = vrot.slane %v1764, 5
      %v2928 = vsel %vm1299, %v2926, %v2927
      %v2929 = vrot.slane %v1765, 5
      %v2930 = vrot.slane %v2929, 4
      %v2931 = vrot.slane %v1766, 5
      %v2932 = vsel %vm1299, %v2930, %v2931
      %v2933 = vrot.slane %v2931, 4
      %v2934 = vrot.slane %v1767, 5
      %v2935 = vsel %vm1299, %v2933, %v2934
      %v2936 = vrot.slane %v1768, 5
      %v2937 = vrot.slane %v2936, 4
      %v2938 = vrot.slane %v1769, 5
      %v2939 = vsel %vm1299, %v2937, %v2938
      %v2940 = vrot.slane %v2938, 4
      %v2941 = vrot.slane %v1770, 5
      %v2942 = vsel %vm1299, %v2940, %v2941
      %v2943 = vrot.slane %v1771, 5
      %v2944 = vrot.slane %v2943, 4
      %v2945 = vrot.slane %v1772, 5
      %v2946 = vsel %vm1299, %v2944, %v2945
      %v2947 = vrot.slane %v2945, 4
      %v2948 = vrot.slane %v1773, 5
      %v2949 = vsel %vm1299, %v2947, %v2948
      %v2950 = vrot.slane %v1774, 5
      %v2951 = vrot.slane %v2950, 4
      %v2952 = vrot.slane %v1775, 5
      %v2953 = vsel %vm1299, %v2951, %v2952
      %v2954 = vrot.slane %v2952, 4
      %v2955 = vrot.slane %v1776, 5
      %v2956 = vsel %vm1299, %v2954, %v2955
      %v2957 = vrot.slane %v1777, 5
      %v2958 = vrot.slane %v2957, 4
      %v2959 = vrot.slane %v1778, 5
      %v2960 = vsel %vm1299, %v2958, %v2959
      %v2961 = vrot.slane %v2959, 4
      %v2962 = vrot.slane %v1779, 5
      %v2963 = vsel %vm1299, %v2961, %v2962
      %v2964 = vrot.slane %v1780, 5
      %v2965 = vrot.slane %v2964, 4
      %v2966 = vrot.slane %v1781, 5
      %v2967 = vsel %vm1299, %v2965, %v2966
      %v2968 = vrot.slane %v2966, 4
      %v2969 = vrot.slane %v1782, 5
      %v2970 = vsel %vm1299, %v2968, %v2969
      %s2971 = scalar_lea.vmem %s1, 320
      %v2972 = vld [vmem:[%s2971] sm:$0xf]
      %v2973 = vld [vmem:[%s2971 + $0x4] sm:$0xf]
      %v2974 = vld [vmem:[%s2971 + $0x8] sm:$0xf]
      %v2975 = vld [vmem:[%s2971 + $0xc] sm:$0xf]
      %v2976 = vld [vmem:[%s2971 + $0x10] sm:$0xf]
      %v2977 = vld [vmem:[%s2971 + $0x14] sm:$0xf]
      %v2978 = vld [vmem:[%s2971 + $0x18] sm:$0xf]
      %v2979 = vld [vmem:[%s2971 + $0x1c] sm:$0xf]
      %v2980 = vld [vmem:[%s2971 + $0x20] sm:$0xf]
      %v2981 = vld [vmem:[%s2971 + $0x24] sm:$0xf]
      %v2982 = vld [vmem:[%s2971 + $0x28] sm:$0xf]
      %v2983 = vld [vmem:[%s2971 + $0x2c] sm:$0xf]
      %v2984 = vld [vmem:[%s2971 + $0x30] sm:$0xf]
      %v2985 = vld [vmem:[%s2971 + $0x34] sm:$0xf]
      %v2986 = vld [vmem:[%s2971 + $0x38] sm:$0xf]
      %v2987 = vld [vmem:[%s2971 + $0x3c] sm:$0xf]
      %v2988 = vunpack.c.l.b16 %v2862
      %v2989 = vunpack.c.l.b16 %v2865
      %v2990 = vunpack.c.l.b16 %v2869
      %v2991 = vunpack.c.l.b16 %v2872
      %v2992 = vunpack.c.l.b16 %v2876
      %v2993 = vunpack.c.l.b16 %v2879
      %v2994 = vunpack.c.l.b16 %v2883
      %v2995 = vunpack.c.l.b16 %v2886
      %v2996 = vunpack.c.l.b16 %v2890
      %v2997 = vunpack.c.l.b16 %v2893
      %v2998 = vunpack.c.l.b16 %v2897
      %v2999 = vunpack.c.l.b16 %v2900
      %v3000 = vunpack.c.l.b16 %v2904
      %v3001 = vunpack.c.l.b16 %v2907
      %v3002 = vunpack.c.l.b16 %v2911
      %v3003 = vunpack.c.l.b16 %v2914
      %v3004 = vunpack.c.l.b16 %v2918
      %v3005 = vunpack.c.l.b16 %v2921
      %v3006 = vunpack.c.l.b16 %v2925
      %v3007 = vunpack.c.l.b16 %v2928
      %v3008 = vunpack.c.l.b16 %v2932
      %v3009 = vunpack.c.l.b16 %v2935
      %v3010 = vunpack.c.l.b16 %v2939
      %v3011 = vunpack.c.l.b16 %v2942
      %v3012 = vunpack.c.l.b16 %v2946
      %v3013 = vunpack.c.l.b16 %v2949
      %v3014 = vunpack.c.l.b16 %v2953
      %v3015 = vunpack.c.l.b16 %v2956
      %v3016 = vunpack.c.l.b16 %v2960
      %v3017 = vunpack.c.l.b16 %v2963
      %v3018 = vunpack.c.l.b16 %v2967
      %v3019 = vunpack.c.l.b16 %v2970
      %v3020 = vpack.c.b16 %v2989, %v2988
      %v3021 = vpack.c.b16 %v2991, %v2990
      %v3022 = vpack.c.b16 %v2993, %v2992
      %v3023 = vpack.c.b16 %v2995, %v2994
      %v3024 = vpack.c.b16 %v2997, %v2996
      %v3025 = vpack.c.b16 %v2999, %v2998
      %v3026 = vpack.c.b16 %v3001, %v3000
      %v3027 = vpack.c.b16 %v3003, %v3002
      %v3028 = vpack.c.b16 %v3005, %v3004
      %v3029 = vpack.c.b16 %v3007, %v3006
      %v3030 = vpack.c.b16 %v3009, %v3008
      %v3031 = vpack.c.b16 %v3011, %v3010
      %v3032 = vpack.c.b16 %v3013, %v3012
      %v3033 = vpack.c.b16 %v3015, %v3014
      %v3034 = vpack.c.b16 %v3017, %v3016
      %v3035 = vpack.c.b16 %v3019, %v3018
      %v3068 = vunpack.c.l.b16 %v2972
      %v3069 = vunpack.c.l.b16 %v2973
      %v3070 = vunpack.c.l.b16 %v2974
      %v3071 = vunpack.c.l.b16 %v2975
      %v3072 = vunpack.c.l.b16 %v2976
      %v3073 = vunpack.c.l.b16 %v2977
      %v3074 = vunpack.c.l.b16 %v2978
      %v3075 = vunpack.c.l.b16 %v2979
      %v3076 = vunpack.c.l.b16 %v2980
      %v3077 = vunpack.c.l.b16 %v2981
      %v3078 = vunpack.c.l.b16 %v2982
      %v3079 = vunpack.c.l.b16 %v2983
      %v3080 = vunpack.c.l.b16 %v2984
      %v3081 = vunpack.c.l.b16 %v2985
      %v3082 = vunpack.c.l.b16 %v2986
      %v3083 = vunpack.c.l.b16 %v2987
      %v3084 = vpack.c.b16 %v3069, %v3068
      %v3085 = vpack.c.b16 %v3071, %v3070
      %v3086 = vpack.c.b16 %v3073, %v3072
      %v3087 = vpack.c.b16 %v3075, %v3074
      %v3088 = vpack.c.b16 %v3077, %v3076
      %v3089 = vpack.c.b16 %v3079, %v3078
      %v3090 = vpack.c.b16 %v3081, %v3080
      %v3091 = vpack.c.b16 %v3083, %v3082
      %3100 = vmatprep.subr.bf16.mxu0 0
      %3101 = vmatpush1.bf16.msra.mxu0 %v3084
      %3102 = vmatprep.subr.bf16.mxu0 0
      %3103 = vmatpush1.bf16.msra.mxu0 %v3085
      %3104 = vmatprep.subr.bf16.mxu0 0
      %3105 = vmatpush1.bf16.msra.mxu0 %v3086
      %3106 = vmatprep.subr.bf16.mxu0 0
      %3107 = vmatpush1.bf16.msra.mxu0 %v3087
      %3108 = vmatprep.subr.bf16.mxu0 0
      %3109 = vmatpush1.bf16.msra.mxu0 %v3088
      %3110 = vmatprep.subr.bf16.mxu0 0
      %3111 = vmatpush1.bf16.msra.mxu0 %v3089
      %3112 = vmatprep.subr.bf16.mxu0 0
      %3113 = vmatpush1.bf16.msra.mxu0 %v3090
      %3114 = vmatprep.subr.bf16.mxu0 0
      %3115 = vmatpush1.bf16.msra.mxu0 %v3091
      %3116 = vmatprep.subr.bf16.mxu0 0
      %3117 = vmatpush1.bf16.msra.mxu0 0
      %3118 = vmatprep.subr.bf16.mxu0 0
      %3119 = vmatpush1.bf16.msra.mxu0 0
      %3120 = vmatprep.subr.bf16.mxu0 0
      %3121 = vmatpush1.bf16.msra.mxu0 0
      %3122 = vmatprep.subr.bf16.mxu0 0
      %3123 = vmatpush1.bf16.msra.mxu0 0
      %3124 = vmatprep.subr.bf16.mxu0 0
      %3125 = vmatpush1.bf16.msra.mxu0 0
      %3126 = vmatprep.subr.bf16.mxu0 0
      %3127 = vmatpush1.bf16.msra.mxu0 0
      %3128 = vmatprep.subr.bf16.mxu0 0
      %3129 = vmatpush1.bf16.msra.mxu0 0
      %3130 = vmatprep.subr.bf16.mxu0 0
      %3131 = vmatpush1.bf16.msra.mxu0 0
      %3132 = vmatprep.mubr.bf16.mxu0 0
      %3133 = vmatmul.mubr.bf16.gmra.mrb[0].mxu0 %v3020
      %v3134 = vpop.f32.mrb[0].mxu0
      %v3135 = vadd.f32 0.0, %v3134
      %v3136 = vpop.f32.mrb[0].mxu0
      %v3137 = vpop.f32.mrb[0].mxu0
      %v3138 = vadd.f32 0.0, %v3137
      %v3139 = vpop.f32.mrb[0].mxu0
      %3140 = vmatprep.mubr.bf16.mxu0 0
      %3141 = vmatmul.mubr.bf16.gmra.mrb[0].mxu0 %v3021
      %v3142 = vpop.f32.mrb[0].mxu0
      %v3143 = vadd.f32 0.0, %v3142
      %v3144 = vpop.f32.mrb[0].mxu0
      %v3145 = vpop.f32.mrb[0].mxu0
      %v3146 = vadd.f32 0.0, %v3145
      %v3147 = vpop.f32.mrb[0].mxu0
      %3148 = vmatprep.mubr.bf16.mxu0 0
      %3149 = vmatmul.mubr.bf16.gmra.mrb[0].mxu0 %v3022
      %v3150 = vpop.f32.mrb[0].mxu0
      %v3151 = vadd.f32 0.0, %v3150
      %v3152 = vpop.f32.mrb[0].mxu0
      %v3153 = vpop.f32.mrb[0].mxu0
      %v3154 = vadd.f32 0.0, %v3153
      %v3155 = vpop.f32.mrb[0].mxu0
      %3156 = vmatprep.mubr.bf16.mxu0 0
      %3157 = vmatmul.mubr.bf16.gmra.mrb[0].mxu0 %v3023
      %v3158 = vpop.f32.mrb[0].mxu0
      %v3159 = vadd.f32 0.0, %v3158
      %v3160 = vpop.f32.mrb[0].mxu0
      %v3161 = vpop.f32.mrb[0].mxu0
      %v3162 = vadd.f32 0.0, %v3161
      %v3163 = vpop.f32.mrb[0].mxu0
      %3164 = vmatprep.mubr.bf16.mxu0 0
      %3165 = vmatmul.mubr.bf16.gmra.mrb[0].mxu0 %v3024
      %v3166 = vpop.f32.mrb[0].mxu0
      %v3167 = vadd.f32 0.0, %v3166
      %v3168 = vpop.f32.mrb[0].mxu0
      %v3169 = vpop.f32.mrb[0].mxu0
      %v3170 = vadd.f32 0.0, %v3169
      %v3171 = vpop.f32.mrb[0].mxu0
      %3172 = vmatprep.mubr.bf16.mxu0 0
      %3173 = vmatmul.mubr.bf16.gmra.mrb[0].mxu0 %v3025
      %v3174 = vpop.f32.mrb[0].mxu0
      %v3175 = vadd.f32 0.0, %v3174
      %v3176 = vpop.f32.mrb[0].mxu0
      %v3177 = vpop.f32.mrb[0].mxu0
      %v3178 = vadd.f32 0.0, %v3177
      %v3179 = vpop.f32.mrb[0].mxu0
      %3180 = vmatprep.mubr.bf16.mxu0 0
      %3181 = vmatmul.mubr.bf16.gmra.mrb[0].mxu0 %v3026
      %v3182 = vpop.f32.mrb[0].mxu0
      %v3183 = vadd.f32 0.0, %v3182
      %v3184 = vpop.f32.mrb[0].mxu0
      %v3185 = vpop.f32.mrb[0].mxu0
      %v3186 = vadd.f32 0.0, %v3185
      %v3187 = vpop.f32.mrb[0].mxu0
      %3188 = vmatprep.mubr.bf16.mxu0 0
      %3189 = vmatmul.mubr.bf16.gmra.mrb[0].mxu0 %v3027
      %v3190 = vpop.f32.mrb[0].mxu0
      %v3191 = vadd.f32 0.0, %v3190
      %v3192 = vpop.f32.mrb[0].mxu0
      %v3193 = vpop.f32.mrb[0].mxu0
      %v3194 = vadd.f32 0.0, %v3193
      %v3195 = vpop.f32.mrb[0].mxu0
      %3196 = vmatprep.mubr.bf16.mxu0 0
      %3197 = vmatmul.mubr.bf16.gmra.mrb[0].mxu0 %v3028
      %v3198 = vpop.f32.mrb[0].mxu0
      %v3199 = vadd.f32 0.0, %v3198
      %v3200 = vpop.f32.mrb[0].mxu0
      %v3201 = vpop.f32.mrb[0].mxu0
      %v3202 = vadd.f32 0.0, %v3201
      %v3203 = vpop.f32.mrb[0].mxu0
      %3204 = vmatprep.mubr.bf16.mxu0 0
      %3205 = vmatmul.mubr.bf16.gmra.mrb[0].mxu0 %v3029
      %v3206 = vpop.f32.mrb[0].mxu0
      %v3207 = vadd.f32 0.0, %v3206
      %v3208 = vpop.f32.mrb[0].mxu0
      %v3209 = vpop.f32.mrb[0].mxu0
      %v3210 = vadd.f32 0.0, %v3209
      %v3211 = vpop.f32.mrb[0].mxu0
      %3212 = vmatprep.mubr.bf16.mxu0 0
      %3213 = vmatmul.mubr.bf16.gmra.mrb[0].mxu0 %v3030
      %v3214 = vpop.f32.mrb[0].mxu0
      %v3215 = vadd.f32 0.0, %v3214
      %v3216 = vpop.f32.mrb[0].mxu0
      %v3217 = vpop.f32.mrb[0].mxu0
      %v3218 = vadd.f32 0.0, %v3217
      %v3219 = vpop.f32.mrb[0].mxu0
      %3220 = vmatprep.mubr.bf16.mxu0 0
      %3221 = vmatmul.mubr.bf16.gmra.mrb[0].mxu0 %v3031
      %v3222 = vpop.f32.mrb[0].mxu0
      %v3223 = vadd.f32 0.0, %v3222
      %v3224 = vpop.f32.mrb[0].mxu0
      %v3225 = vpop.f32.mrb[0].mxu0
      %v3226 = vadd.f32 0.0, %v3225
      %v3227 = vpop.f32.mrb[0].mxu0
      %3228 = vmatprep.mubr.bf16.mxu0 0
      %3229 = vmatmul.mubr.bf16.gmra.mrb[0].mxu0 %v3032
      %v3230 = vpop.f32.mrb[0].mxu0
      %v3231 = vadd.f32 0.0, %v3230
      %v3232 = vpop.f32.mrb[0].mxu0
      %v3233 = vpop.f32.mrb[0].mxu0
      %v3234 = vadd.f32 0.0, %v3233
      %v3235 = vpop.f32.mrb[0].mxu0
      %3236 = vmatprep.mubr.bf16.mxu0 0
      %3237 = vmatmul.mubr.bf16.gmra.mrb[0].mxu0 %v3033
      %v3238 = vpop.f32.mrb[0].mxu0
      %v3239 = vadd.f32 0.0, %v3238
      %v3240 = vpop.f32.mrb[0].mxu0
      %v3241 = vpop.f32.mrb[0].mxu0
      %v3242 = vadd.f32 0.0, %v3241
      %v3243 = vpop.f32.mrb[0].mxu0
      %3244 = vmatprep.mubr.bf16.mxu0 0
      %3245 = vmatmul.mubr.bf16.gmra.mrb[0].mxu0 %v3034
      %v3246 = vpop.f32.mrb[0].mxu0
      %v3247 = vadd.f32 0.0, %v3246
      %v3248 = vpop.f32.mrb[0].mxu0
      %v3249 = vpop.f32.mrb[0].mxu0
      %v3250 = vadd.f32 0.0, %v3249
      %v3251 = vpop.f32.mrb[0].mxu0
      %3252 = vmatprep.mubr.bf16.mxu0 0
      %3253 = vmatmul.mubr.bf16.gmra.mrb[0].mxu0 %v3035
      %v3254 = vpop.f32.mrb[0].mxu0
      %v3255 = vadd.f32 0.0, %v3254
      %v3256 = vpop.f32.mrb[0].mxu0
      %v3257 = vpop.f32.mrb[0].mxu0
      %v3258 = vadd.f32 0.0, %v3257
      %v3259 = vpop.f32.mrb[0].mxu0
      %3260 = vdwg.mxu0
      %v3261 = vadd.f32 %v2811, %v3135
      %v3262 = vadd.f32 %v2812, %v3138
      %v3263 = vadd.f32 %v2813, %v3143
      %v3264 = vadd.f32 %v2814, %v3146
      %v3265 = vadd.f32 %v2815, %v3151
      %v3266 = vadd.f32 %v2816, %v3154
      %v3267 = vadd.f32 %v2817, %v3159
      %v3268 = vadd.f32 %v2818, %v3162
      %v3269 = vadd.f32 %v2819, %v3167
      %v3270 = vadd.f32 %v2820, %v3170
      %v3271 = vadd.f32 %v2821, %v3175
      %v3272 = vadd.f32 %v2822, %v3178
      %v3273 = vadd.f32 %v2823, %v3183
      %v3274 = vadd.f32 %v2824, %v3186
      %v3275 = vadd.f32 %v2825, %v3191
      %v3276 = vadd.f32 %v2826, %v3194
      %v3277 = vadd.f32 %v2827, %v3199
      %v3278 = vadd.f32 %v2828, %v3202
      %v3279 = vadd.f32 %v2829, %v3207
      %v3280 = vadd.f32 %v2830, %v3210
      %v3281 = vadd.f32 %v2831, %v3215
      %v3282 = vadd.f32 %v2832, %v3218
      %v3283 = vadd.f32 %v2833, %v3223
      %v3284 = vadd.f32 %v2834, %v3226
      %v3285 = vadd.f32 %v2835, %v3231
      %v3286 = vadd.f32 %v2836, %v3234
      %v3287 = vadd.f32 %v2837, %v3239
      %v3288 = vadd.f32 %v2838, %v3242
      %v3289 = vadd.f32 %v2839, %v3247
      %v3290 = vadd.f32 %v2840, %v3250
      %v3291 = vadd.f32 %v2841, %v3255
      %v3292 = vadd.f32 %v2842, %v3258
      %s3293 = scalar_lea.vmem %s214, 24
      %v3294 = vld [vmem:[%s3293] sm:$0xf]
      %v3295 = vld [vmem:[%s3293 + $0x4] sm:$0xf]
      %v3296 = vld [vmem:[%s3293 + $0x8] sm:$0x1]
      %v3297 = vld [vmem:[%s3293 + $0x24] sm:$0xf]
      %v3298 = vld [vmem:[%s3293 + $0x28] sm:$0xf]
      %v3299 = vld [vmem:[%s3293 + $0x2c] sm:$0x1]
      %v3300 = vld [vmem:[%s3293 + $0x48] sm:$0xf]
      %v3301 = vld [vmem:[%s3293 + $0x4c] sm:$0xf]
      %v3302 = vld [vmem:[%s3293 + $0x50] sm:$0x1]
      %v3303 = vld [vmem:[%s3293 + $0x6c] sm:$0xf]
      %v3304 = vld [vmem:[%s3293 + $0x70] sm:$0xf]
      %v3305 = vld [vmem:[%s3293 + $0x74] sm:$0x1]
      %v3306 = vld [vmem:[%s3293 + $0x90] sm:$0xf]
      %v3307 = vld [vmem:[%s3293 + $0x94] sm:$0xf]
      %v3308 = vld [vmem:[%s3293 + $0x98] sm:$0x1]
      %v3309 = vld [vmem:[%s3293 + $0xb4] sm:$0xf]
      %v3310 = vld [vmem:[%s3293 + $0xb8] sm:$0xf]
      %v3311 = vld [vmem:[%s3293 + $0xbc] sm:$0x1]
      %v3312 = vld [vmem:[%s3293 + $0xd8] sm:$0xf]
      %v3313 = vld [vmem:[%s3293 + $0xdc] sm:$0xf]
      %v3314 = vld [vmem:[%s3293 + $0xe0] sm:$0x1]
      %v3315 = vld [vmem:[%s3293 + $0xfc] sm:$0xf]
      %v3316 = vld [vmem:[%s3293 + $0x100] sm:$0xf]
      %v3317 = vld [vmem:[%s3293 + $0x104] sm:$0x1]
      %v3318 = vld [vmem:[%s3293 + $0x120] sm:$0xf]
      %v3319 = vld [vmem:[%s3293 + $0x124] sm:$0xf]
      %v3320 = vld [vmem:[%s3293 + $0x128] sm:$0x1]
      %v3321 = vld [vmem:[%s3293 + $0x144] sm:$0xf]
      %v3322 = vld [vmem:[%s3293 + $0x148] sm:$0xf]
      %v3323 = vld [vmem:[%s3293 + $0x14c] sm:$0x1]
      %v3324 = vld [vmem:[%s3293 + $0x168] sm:$0xf]
      %v3325 = vld [vmem:[%s3293 + $0x16c] sm:$0xf]
      %v3326 = vld [vmem:[%s3293 + $0x170] sm:$0x1]
      %v3327 = vld [vmem:[%s3293 + $0x18c] sm:$0xf]
      %v3328 = vld [vmem:[%s3293 + $0x190] sm:$0xf]
      %v3329 = vld [vmem:[%s3293 + $0x194] sm:$0x1]
      %v3330 = vld [vmem:[%s3293 + $0x1b0] sm:$0xf]
      %v3331 = vld [vmem:[%s3293 + $0x1b4] sm:$0xf]
      %v3332 = vld [vmem:[%s3293 + $0x1b8] sm:$0x1]
      %v3333 = vld [vmem:[%s3293 + $0x1d4] sm:$0xf]
      %v3334 = vld [vmem:[%s3293 + $0x1d8] sm:$0xf]
      %v3335 = vld [vmem:[%s3293 + $0x1dc] sm:$0x1]
      %v3336 = vld [vmem:[%s3293 + $0x1f8] sm:$0xf]
      %v3337 = vld [vmem:[%s3293 + $0x1fc] sm:$0xf]
      %v3338 = vld [vmem:[%s3293 + $0x200] sm:$0x1]
      %v3339 = vld [vmem:[%s3293 + $0x21c] sm:$0xf]
      %v3340 = vld [vmem:[%s3293 + $0x220] sm:$0xf]
      %v3341 = vld [vmem:[%s3293 + $0x224] sm:$0x1]
      %s3342 = scalar_lea.vmem %s1, 384
      %v3343 = vld [vmem:[%s3342] sm:$0xf]
      %v3344 = vld [vmem:[%s3342 + $0x4] sm:$0xf]
      %v3345 = vld [vmem:[%s3342 + $0x8] sm:$0xf]
      %v3346 = vld [vmem:[%s3342 + $0xc] sm:$0xf]
      %v3347 = vld [vmem:[%s3342 + $0x10] sm:$0xf]
      %v3348 = vld [vmem:[%s3342 + $0x14] sm:$0xf]
      %v3349 = vld [vmem:[%s3342 + $0x18] sm:$0xf]
      %v3350 = vld [vmem:[%s3342 + $0x1c] sm:$0xf]
      %v3351 = vld [vmem:[%s3342 + $0x20] sm:$0xf]
      %v3352 = vld [vmem:[%s3342 + $0x24] sm:$0xf]
      %v3353 = vld [vmem:[%s3342 + $0x28] sm:$0xf]
      %v3354 = vld [vmem:[%s3342 + $0x2c] sm:$0xf]
      %v3355 = vld [vmem:[%s3342 + $0x30] sm:$0xf]
      %v3356 = vld [vmem:[%s3342 + $0x34] sm:$0xf]
      %v3357 = vld [vmem:[%s3342 + $0x38] sm:$0xf]
      %v3358 = vld [vmem:[%s3342 + $0x3c] sm:$0xf]
      %v3391 = vunpack.c.l.b16 %v3294
      %v3392 = vunpack.c.l.b16 %v3295
      %v3393 = vunpack.c.l.b16 %v3297
      %v3394 = vunpack.c.l.b16 %v3298
      %v3395 = vunpack.c.l.b16 %v3300
      %v3396 = vunpack.c.l.b16 %v3301
      %v3397 = vunpack.c.l.b16 %v3303
      %v3398 = vunpack.c.l.b16 %v3304
      %v3399 = vunpack.c.l.b16 %v3306
      %v3400 = vunpack.c.l.b16 %v3307
      %v3401 = vunpack.c.l.b16 %v3309
      %v3402 = vunpack.c.l.b16 %v3310
      %v3403 = vunpack.c.l.b16 %v3312
      %v3404 = vunpack.c.l.b16 %v3313
      %v3405 = vunpack.c.l.b16 %v3315
      %v3406 = vunpack.c.l.b16 %v3316
      %v3407 = vunpack.c.l.b16 %v3318
      %v3408 = vunpack.c.l.b16 %v3319
      %v3409 = vunpack.c.l.b16 %v3321
      %v3410 = vunpack.c.l.b16 %v3322
      %v3411 = vunpack.c.l.b16 %v3324
      %v3412 = vunpack.c.l.b16 %v3325
      %v3413 = vunpack.c.l.b16 %v3327
      %v3414 = vunpack.c.l.b16 %v3328
      %v3415 = vunpack.c.l.b16 %v3330
      %v3416 = vunpack.c.l.b16 %v3331
      %v3417 = vunpack.c.l.b16 %v3333
      %v3418 = vunpack.c.l.b16 %v3334
      %v3419 = vunpack.c.l.b16 %v3336
      %v3420 = vunpack.c.l.b16 %v3337
      %v3421 = vunpack.c.l.b16 %v3339
      %v3422 = vunpack.c.l.b16 %v3340
      %v3423 = vpack.c.b16 %v3392, %v3391
      %v3424 = vpack.c.b16 %v3394, %v3393
      %v3425 = vpack.c.b16 %v3396, %v3395
      %v3426 = vpack.c.b16 %v3398, %v3397
      %v3427 = vpack.c.b16 %v3400, %v3399
      %v3428 = vpack.c.b16 %v3402, %v3401
      %v3429 = vpack.c.b16 %v3404, %v3403
      %v3430 = vpack.c.b16 %v3406, %v3405
      %v3431 = vpack.c.b16 %v3408, %v3407
      %v3432 = vpack.c.b16 %v3410, %v3409
      %v3433 = vpack.c.b16 %v3412, %v3411
      %v3434 = vpack.c.b16 %v3414, %v3413
      %v3435 = vpack.c.b16 %v3416, %v3415
      %v3436 = vpack.c.b16 %v3418, %v3417
      %v3437 = vpack.c.b16 %v3420, %v3419
      %v3438 = vpack.c.b16 %v3422, %v3421
      %v3471 = vunpack.c.l.b16 %v3343
      %v3472 = vunpack.c.l.b16 %v3344
      %v3473 = vunpack.c.l.b16 %v3345
      %v3474 = vunpack.c.l.b16 %v3346
      %v3475 = vunpack.c.l.b16 %v3347
      %v3476 = vunpack.c.l.b16 %v3348
      %v3477 = vunpack.c.l.b16 %v3349
      %v3478 = vunpack.c.l.b16 %v3350
      %v3479 = vunpack.c.l.b16 %v3351
      %v3480 = vunpack.c.l.b16 %v3352
      %v3481 = vunpack.c.l.b16 %v3353
      %v3482 = vunpack.c.l.b16 %v3354
      %v3483 = vunpack.c.l.b16 %v3355
      %v3484 = vunpack.c.l.b16 %v3356
      %v3485 = vunpack.c.l.b16 %v3357
      %v3486 = vunpack.c.l.b16 %v3358
      %v3487 = vpack.c.b16 %v3472, %v3471
      %v3488 = vpack.c.b16 %v3474, %v3473
      %v3489 = vpack.c.b16 %v3476, %v3475
      %v3490 = vpack.c.b16 %v3478, %v3477
      %v3491 = vpack.c.b16 %v3480, %v3479
      %v3492 = vpack.c.b16 %v3482, %v3481
      %v3493 = vpack.c.b16 %v3484, %v3483
      %v3494 = vpack.c.b16 %v3486, %v3485
      %3503 = vmatprep.subr.bf16.mxu0 0
      %3504 = vmatpush1.bf16.msra.mxu0 %v3487
      %3505 = vmatprep.subr.bf16.mxu0 0
      %3506 = vmatpush1.bf16.msra.mxu0 %v3488
      %3507 = vmatprep.subr.bf16.mxu0 0
      %3508 = vmatpush1.bf16.msra.mxu0 %v3489
      %3509 = vmatprep.subr.bf16.mxu0 0
      %3510 = vmatpush1.bf16.msra.mxu0 %v3490
      %3511 = vmatprep.subr.bf16.mxu0 0
      %3512 = vmatpush1.bf16.msra.mxu0 %v3491
      %3513 = vmatprep.subr.bf16.mxu0 0
      %3514 = vmatpush1.bf16.msra.mxu0 %v3492
      %3515 = vmatprep.subr.bf16.mxu0 0
      %3516 = vmatpush1.bf16.msra.mxu0 %v3493
      %3517 = vmatprep.subr.bf16.mxu0 0
      %3518 = vmatpush1.bf16.msra.mxu0 %v3494
      %3519 = vmatprep.subr.bf16.mxu0 0
      %3520 = vmatpush1.bf16.msra.mxu0 0
      %3521 = vmatprep.subr.bf16.mxu0 0
      %3522 = vmatpush1.bf16.msra.mxu0 0
      %3523 = vmatprep.subr.bf16.mxu0 0
      %3524 = vmatpush1.bf16.msra.mxu0 0
      %3525 = vmatprep.subr.bf16.mxu0 0
      %3526 = vmatpush1.bf16.msra.mxu0 0
      %3527 = vmatprep.subr.bf16.mxu0 0
      %3528 = vmatpush1.bf16.msra.mxu0 0
      %3529 = vmatprep.subr.bf16.mxu0 0
      %3530 = vmatpush1.bf16.msra.mxu0 0
      %3531 = vmatprep.subr.bf16.mxu0 0
      %3532 = vmatpush1.bf16.msra.mxu0 0
      %3533 = vmatprep.subr.bf16.mxu0 0
      %3534 = vmatpush1.bf16.msra.mxu0 0
      %3535 = vmatprep.mubr.bf16.mxu0 0
      %3536 = vmatmul.mubr.bf16.gmra.mrb[0].mxu0 %v3423
      %v3537 = vpop.f32.mrb[0].mxu0
      %v3538 = vadd.f32 0.0, %v3537
      %v3539 = vpop.f32.mrb[0].mxu0
      %v3540 = vpop.f32.mrb[0].mxu0
      %v3541 = vadd.f32 0.0, %v3540
      %v3542 = vpop.f32.mrb[0].mxu0
      %3543 = vmatprep.mubr.bf16.mxu0 0
      %3544 = vmatmul.mubr.bf16.gmra.mrb[0].mxu0 %v3424
      %v3545 = vpop.f32.mrb[0].mxu0
      %v3546 = vadd.f32 0.0, %v3545
      %v3547 = vpop.f32.mrb[0].mxu0
      %v3548 = vpop.f32.mrb[0].mxu0
      %v3549 = vadd.f32 0.0, %v3548
      %v3550 = vpop.f32.mrb[0].mxu0
      %3551 = vmatprep.mubr.bf16.mxu0 0
      %3552 = vmatmul.mubr.bf16.gmra.mrb[0].mxu0 %v3425
      %v3553 = vpop.f32.mrb[0].mxu0
      %v3554 = vadd.f32 0.0, %v3553
      %v3555 = vpop.f32.mrb[0].mxu0
      %v3556 = vpop.f32.mrb[0].mxu0
      %v3557 = vadd.f32 0.0, %v3556
      %v3558 = vpop.f32.mrb[0].mxu0
      %3559 = vmatprep.mubr.bf16.mxu0 0
      %3560 = vmatmul.mubr.bf16.gmra.mrb[0].mxu0 %v3426
      %v3561 = vpop.f32.mrb[0].mxu0
      %v3562 = vadd.f32 0.0, %v3561
      %v3563 = vpop.f32.mrb[0].mxu0
      %v3564 = vpop.f32.mrb[0].mxu0
      %v3565 = vadd.f32 0.0, %v3564
      %v3566 = vpop.f32.mrb[0].mxu0
      %3567 = vmatprep.mubr.bf16.mxu0 0
      %3568 = vmatmul.mubr.bf16.gmra.mrb[0].mxu0 %v3427
      %v3569 = vpop.f32.mrb[0].mxu0
      %v3570 = vadd.f32 0.0, %v3569
      %v3571 = vpop.f32.mrb[0].mxu0
      %v3572 = vpop.f32.mrb[0].mxu0
      %v3573 = vadd.f32 0.0, %v3572
      %v3574 = vpop.f32.mrb[0].mxu0
      %3575 = vmatprep.mubr.bf16.mxu0 0
      %3576 = vmatmul.mubr.bf16.gmra.mrb[0].mxu0 %v3428
      %v3577 = vpop.f32.mrb[0].mxu0
      %v3578 = vadd.f32 0.0, %v3577
      %v3579 = vpop.f32.mrb[0].mxu0
      %v3580 = vpop.f32.mrb[0].mxu0
      %v3581 = vadd.f32 0.0, %v3580
      %v3582 = vpop.f32.mrb[0].mxu0
      %3583 = vmatprep.mubr.bf16.mxu0 0
      %3584 = vmatmul.mubr.bf16.gmra.mrb[0].mxu0 %v3429
      %v3585 = vpop.f32.mrb[0].mxu0
      %v3586 = vadd.f32 0.0, %v3585
      %v3587 = vpop.f32.mrb[0].mxu0
      %v3588 = vpop.f32.mrb[0].mxu0
      %v3589 = vadd.f32 0.0, %v3588
      %v3590 = vpop.f32.mrb[0].mxu0
      %3591 = vmatprep.mubr.bf16.mxu0 0
      %3592 = vmatmul.mubr.bf16.gmra.mrb[0].mxu0 %v3430
      %v3593 = vpop.f32.mrb[0].mxu0
      %v3594 = vadd.f32 0.0, %v3593
      %v3595 = vpop.f32.mrb[0].mxu0
      %v3596 = vpop.f32.mrb[0].mxu0
      %v3597 = vadd.f32 0.0, %v3596
      %v3598 = vpop.f32.mrb[0].mxu0
      %3599 = vmatprep.mubr.bf16.mxu0 0
      %3600 = vmatmul.mubr.bf16.gmra.mrb[0].mxu0 %v3431
      %v3601 = vpop.f32.mrb[0].mxu0
      %v3602 = vadd.f32 0.0, %v3601
      %v3603 = vpop.f32.mrb[0].mxu0
      %v3604 = vpop.f32.mrb[0].mxu0
      %v3605 = vadd.f32 0.0, %v3604
      %v3606 = vpop.f32.mrb[0].mxu0
      %3607 = vmatprep.mubr.bf16.mxu0 0
      %3608 = vmatmul.mubr.bf16.gmra.mrb[0].mxu0 %v3432
      %v3609 = vpop.f32.mrb[0].mxu0
      %v3610 = vadd.f32 0.0, %v3609
      %v3611 = vpop.f32.mrb[0].mxu0
      %v3612 = vpop.f32.mrb[0].mxu0
      %v3613 = vadd.f32 0.0, %v3612
      %v3614 = vpop.f32.mrb[0].mxu0
      %3615 = vmatprep.mubr.bf16.mxu0 0
      %3616 = vmatmul.mubr.bf16.gmra.mrb[0].mxu0 %v3433
      %v3617 = vpop.f32.mrb[0].mxu0
      %v3618 = vadd.f32 0.0, %v3617
      %v3619 = vpop.f32.mrb[0].mxu0
      %v3620 = vpop.f32.mrb[0].mxu0
      %v3621 = vadd.f32 0.0, %v3620
      %v3622 = vpop.f32.mrb[0].mxu0
      %3623 = vmatprep.mubr.bf16.mxu0 0
      %3624 = vmatmul.mubr.bf16.gmra.mrb[0].mxu0 %v3434
      %v3625 = vpop.f32.mrb[0].mxu0
      %v3626 = vadd.f32 0.0, %v3625
      %v3627 = vpop.f32.mrb[0].mxu0
      %v3628 = vpop.f32.mrb[0].mxu0
      %v3629 = vadd.f32 0.0, %v3628
      %v3630 = vpop.f32.mrb[0].mxu0
      %3631 = vmatprep.mubr.bf16.mxu0 0
      %3632 = vmatmul.mubr.bf16.gmra.mrb[0].mxu0 %v3435
      %v3633 = vpop.f32.mrb[0].mxu0
      %v3634 = vadd.f32 0.0, %v3633
      %v3635 = vpop.f32.mrb[0].mxu0
      %v3636 = vpop.f32.mrb[0].mxu0
      %v3637 = vadd.f32 0.0, %v3636
      %v3638 = vpop.f32.mrb[0].mxu0
      %3639 = vmatprep.mubr.bf16.mxu0 0
      %3640 = vmatmul.mubr.bf16.gmra.mrb[0].mxu0 %v3436
      %v3641 = vpop.f32.mrb[0].mxu0
      %v3642 = vadd.f32 0.0, %v3641
      %v3643 = vpop.f32.mrb[0].mxu0
      %v3644 = vpop.f32.mrb[0].mxu0
      %v3645 = vadd.f32 0.0, %v3644
      %v3646 = vpop.f32.mrb[0].mxu0
      %3647 = vmatprep.mubr.bf16.mxu0 0
      %3648 = vmatmul.mubr.bf16.gmra.mrb[0].mxu0 %v3437
      %v3649 = vpop.f32.mrb[0].mxu0
      %v3650 = vadd.f32 0.0, %v3649
      %v3651 = vpop.f32.mrb[0].mxu0
      %v3652 = vpop.f32.mrb[0].mxu0
      %v3653 = vadd.f32 0.0, %v3652
      %v3654 = vpop.f32.mrb[0].mxu0
      %3655 = vmatprep.mubr.bf16.mxu0 0
      %3656 = vmatmul.mubr.bf16.gmra.mrb[0].mxu0 %v3438
      %v3657 = vpop.f32.mrb[0].mxu0
      %v3658 = vadd.f32 0.0, %v3657
      %v3659 = vpop.f32.mrb[0].mxu0
      %v3660 = vpop.f32.mrb[0].mxu0
      %v3661 = vadd.f32 0.0, %v3660
      %v3662 = vpop.f32.mrb[0].mxu0
      %3663 = vdwg.mxu0
      %v3664 = vadd.f32 %v3261, %v3538
      %v3665 = vadd.f32 %v3262, %v3541
      %v3666 = vadd.f32 %v3263, %v3546
      %v3667 = vadd.f32 %v3264, %v3549
      %v3668 = vadd.f32 %v3265, %v3554
      %v3669 = vadd.f32 %v3266, %v3557
      %v3670 = vadd.f32 %v3267, %v3562
      %v3671 = vadd.f32 %v3268, %v3565
      %v3672 = vadd.f32 %v3269, %v3570
      %v3673 = vadd.f32 %v3270, %v3573
      %v3674 = vadd.f32 %v3271, %v3578
      %v3675 = vadd.f32 %v3272, %v3581
      %v3676 = vadd.f32 %v3273, %v3586
      %v3677 = vadd.f32 %v3274, %v3589
      %v3678 = vadd.f32 %v3275, %v3594
      %v3679 = vadd.f32 %v3276, %v3597
      %v3680 = vadd.f32 %v3277, %v3602
      %v3681 = vadd.f32 %v3278, %v3605
      %v3682 = vadd.f32 %v3279, %v3610
      %v3683 = vadd.f32 %v3280, %v3613
      %v3684 = vadd.f32 %v3281, %v3618
      %v3685 = vadd.f32 %v3282, %v3621
      %v3686 = vadd.f32 %v3283, %v3626
      %v3687 = vadd.f32 %v3284, %v3629
      %v3688 = vadd.f32 %v3285, %v3634
      %v3689 = vadd.f32 %v3286, %v3637
      %v3690 = vadd.f32 %v3287, %v3642
      %v3691 = vadd.f32 %v3288, %v3645
      %v3692 = vadd.f32 %v3289, %v3650
      %v3693 = vadd.f32 %v3290, %v3653
      %v3694 = vadd.f32 %v3291, %v3658
      %v3695 = vadd.f32 %v3292, %v3661
      %v3697 = vshrl.u32 %v3294, 16
      %v3699 = vrot.slane %v3697, 4
      %v3700 = vshll.u32 %v3294, 16
      %v3702 = vrot.slane %v3700, 5
      %v3703 = vor.u32 %v3699, %v3702
      %v3704 = vrot.slane %v3703, 4
      %v3706 = vshll.u32 %v3295, 16
      %v3708 = vrot.slane %v3706, 5
      %v3709 = vsel %vm301, %v3704, %v3708
      %v3710 = vshrl.u32 %v3295, 16
      %v3712 = vrot.slane %v3710, 4
      %v3713 = vor.u32 %v3712, %v3708
      %v3714 = vrot.slane %v3713, 4
      %v3716 = vshll.u32 %v3296, 16
      %v3718 = vrot.slane %v3716, 5
      %v3719 = vsel %vm301, %v3714, %v3718
      %v3721 = vshrl.u32 %v3297, 16
      %v3723 = vrot.slane %v3721, 4
      %v3724 = vshll.u32 %v3297, 16
      %v3726 = vrot.slane %v3724, 5
      %v3727 = vor.u32 %v3723, %v3726
      %v3728 = vrot.slane %v3727, 4
      %v3730 = vshll.u32 %v3298, 16
      %v3732 = vrot.slane %v3730, 5
      %v3733 = vsel %vm301, %v3728, %v3732
      %v3734 = vshrl.u32 %v3298, 16
      %v3736 = vrot.slane %v3734, 4
      %v3737 = vor.u32 %v3736, %v3732
      %v3738 = vrot.slane %v3737, 4
      %v3740 = vshll.u32 %v3299, 16
      %v3742 = vrot.slane %v3740, 5
      %v3743 = vsel %vm301, %v3738, %v3742
      %v3745 = vshrl.u32 %v3300, 16
      %v3747 = vrot.slane %v3745, 4
      %v3748 = vshll.u32 %v3300, 16
      %v3750 = vrot.slane %v3748, 5
      %v3751 = vor.u32 %v3747, %v3750
      %v3752 = vrot.slane %v3751, 4
      %v3754 = vshll.u32 %v3301, 16
      %v3756 = vrot.slane %v3754, 5
      %v3757 = vsel %vm301, %v3752, %v3756
      %v3758 = vshrl.u32 %v3301, 16
      %v3760 = vrot.slane %v3758, 4
      %v3761 = vor.u32 %v3760, %v3756
      %v3762 = vrot.slane %v3761, 4
      %v3764 = vshll.u32 %v3302, 16
      %v3766 = vrot.slane %v3764, 5
      %v3767 = vsel %vm301, %v3762, %v3766
      %v3769 = vshrl.u32 %v3303, 16
      %v3771 = vrot.slane %v3769, 4
      %v3772 = vshll.u32 %v3303, 16
      %v3774 = vrot.slane %v3772, 5
      %v3775 = vor.u32 %v3771, %v3774
      %v3776 = vrot.slane %v3775, 4
      %v3778 = vshll.u32 %v3304, 16
      %v3780 = vrot.slane %v3778, 5
      %v3781 = vsel %vm301, %v3776, %v3780
      %v3782 = vshrl.u32 %v3304, 16
      %v3784 = vrot.slane %v3782, 4
      %v3785 = vor.u32 %v3784, %v3780
      %v3786 = vrot.slane %v3785, 4
      %v3788 = vshll.u32 %v3305, 16
      %v3790 = vrot.slane %v3788, 5
      %v3791 = vsel %vm301, %v3786, %v3790
      %v3793 = vshrl.u32 %v3306, 16
      %v3795 = vrot.slane %v3793, 4
      %v3796 = vshll.u32 %v3306, 16
      %v3798 = vrot.slane %v3796, 5
      %v3799 = vor.u32 %v3795, %v3798
      %v3800 = vrot.slane %v3799, 4
      %v3802 = vshll.u32 %v3307, 16
      %v3804 = vrot.slane %v3802, 5
      %v3805 = vsel %vm301, %v3800, %v3804
      %v3806 = vshrl.u32 %v3307, 16
      %v3808 = vrot.slane %v3806, 4
      %v3809 = vor.u32 %v3808, %v3804
      %v3810 = vrot.slane %v3809, 4
      %v3812 = vshll.u32 %v3308, 16
      %v3814 = vrot.slane %v3812, 5
      %v3815 = vsel %vm301, %v3810, %v3814
      %v3817 = vshrl.u32 %v3309, 16
      %v3819 = vrot.slane %v3817, 4
      %v3820 = vshll.u32 %v3309, 16
      %v3822 = vrot.slane %v3820, 5
      %v3823 = vor.u32 %v3819, %v3822
      %v3824 = vrot.slane %v3823, 4
      %v3826 = vshll.u32 %v3310, 16
      %v3828 = vrot.slane %v3826, 5
      %v3829 = vsel %vm301, %v3824, %v3828
      %v3830 = vshrl.u32 %v3310, 16
      %v3832 = vrot.slane %v3830, 4
      %v3833 = vor.u32 %v3832, %v3828
      %v3834 = vrot.slane %v3833, 4
      %v3836 = vshll.u32 %v3311, 16
      %v3838 = vrot.slane %v3836, 5
      %v3839 = vsel %vm301, %v3834, %v3838
      %v3841 = vshrl.u32 %v3312, 16
      %v3843 = vrot.slane %v3841, 4
      %v3844 = vshll.u32 %v3312, 16
      %v3846 = vrot.slane %v3844, 5
      %v3847 = vor.u32 %v3843, %v3846
      %v3848 = vrot.slane %v3847, 4
      %v3850 = vshll.u32 %v3313, 16
      %v3852 = vrot.slane %v3850, 5
      %v3853 = vsel %vm301, %v3848, %v3852
      %v3854 = vshrl.u32 %v3313, 16
      %v3856 = vrot.slane %v3854, 4
      %v3857 = vor.u32 %v3856, %v3852
      %v3858 = vrot.slane %v3857, 4
      %v3860 = vshll.u32 %v3314, 16
      %v3862 = vrot.slane %v3860, 5
      %v3863 = vsel %vm301, %v3858, %v3862
      %v3865 = vshrl.u32 %v3315, 16
      %v3867 = vrot.slane %v3865, 4
      %v3868 = vshll.u32 %v3315, 16
      %v3870 = vrot.slane %v3868, 5
      %v3871 = vor.u32 %v3867, %v3870
      %v3872 = vrot.slane %v3871, 4
      %v3874 = vshll.u32 %v3316, 16
      %v3876 = vrot.slane %v3874, 5
      %v3877 = vsel %vm301, %v3872, %v3876
      %v3878 = vshrl.u32 %v3316, 16
      %v3880 = vrot.slane %v3878, 4
      %v3881 = vor.u32 %v3880, %v3876
      %v3882 = vrot.slane %v3881, 4
      %v3884 = vshll.u32 %v3317, 16
      %v3886 = vrot.slane %v3884, 5
      %v3887 = vsel %vm301, %v3882, %v3886
      %v3889 = vshrl.u32 %v3318, 16
      %v3891 = vrot.slane %v3889, 4
      %v3892 = vshll.u32 %v3318, 16
      %v3894 = vrot.slane %v3892, 5
      %v3895 = vor.u32 %v3891, %v3894
      %v3896 = vrot.slane %v3895, 4
      %v3898 = vshll.u32 %v3319, 16
      %v3900 = vrot.slane %v3898, 5
      %v3901 = vsel %vm301, %v3896, %v3900
      %v3902 = vshrl.u32 %v3319, 16
      %v3904 = vrot.slane %v3902, 4
      %v3905 = vor.u32 %v3904, %v3900
      %v3906 = vrot.slane %v3905, 4
      %v3908 = vshll.u32 %v3320, 16
      %v3910 = vrot.slane %v3908, 5
      %v3911 = vsel %vm301, %v3906, %v3910
      %v3913 = vshrl.u32 %v3321, 16
      %v3915 = vrot.slane %v3913, 4
      %v3916 = vshll.u32 %v3321, 16
      %v3918 = vrot.slane %v3916, 5
      %v3919 = vor.u32 %v3915, %v3918
      %v3920 = vrot.slane %v3919, 4
      %v3922 = vshll.u32 %v3322, 16
      %v3924 = vrot.slane %v3922, 5
      %v3925 = vsel %vm301, %v3920, %v3924
      %v3926 = vshrl.u32 %v3322, 16
      %v3928 = vrot.slane %v3926, 4
      %v3929 = vor.u32 %v3928, %v3924
      %v3930 = vrot.slane %v3929, 4
      %v3932 = vshll.u32 %v3323, 16
      %v3934 = vrot.slane %v3932, 5
      %v3935 = vsel %vm301, %v3930, %v3934
      %v3937 = vshrl.u32 %v3324, 16
      %v3939 = vrot.slane %v3937, 4
      %v3940 = vshll.u32 %v3324, 16
      %v3942 = vrot.slane %v3940, 5
      %v3943 = vor.u32 %v3939, %v3942
      %v3944 = vrot.slane %v3943, 4
      %v3946 = vshll.u32 %v3325, 16
      %v3948 = vrot.slane %v3946, 5
      %v3949 = vsel %vm301, %v3944, %v3948
      %v3950 = vshrl.u32 %v3325, 16
      %v3952 = vrot.slane %v3950, 4
      %v3953 = vor.u32 %v3952, %v3948
      %v3954 = vrot.slane %v3953, 4
      %v3956 = vshll.u32 %v3326, 16
      %v3958 = vrot.slane %v3956, 5
      %v3959 = vsel %vm301, %v3954, %v3958
      %v3961 = vshrl.u32 %v3327, 16
      %v3963 = vrot.slane %v3961, 4
      %v3964 = vshll.u32 %v3327, 16
      %v3966 = vrot.slane %v3964, 5
      %v3967 = vor.u32 %v3963, %v3966
      %v3968 = vrot.slane %v3967, 4
      %v3970 = vshll.u32 %v3328, 16
      %v3972 = vrot.slane %v3970, 5
      %v3973 = vsel %vm301, %v3968, %v3972
      %v3974 = vshrl.u32 %v3328, 16
      %v3976 = vrot.slane %v3974, 4
      %v3977 = vor.u32 %v3976, %v3972
      %v3978 = vrot.slane %v3977, 4
      %v3980 = vshll.u32 %v3329, 16
      %v3982 = vrot.slane %v3980, 5
      %v3983 = vsel %vm301, %v3978, %v3982
      %v3985 = vshrl.u32 %v3330, 16
      %v3987 = vrot.slane %v3985, 4
      %v3988 = vshll.u32 %v3330, 16
      %v3990 = vrot.slane %v3988, 5
      %v3991 = vor.u32 %v3987, %v3990
      %v3992 = vrot.slane %v3991, 4
      %v3994 = vshll.u32 %v3331, 16
      %v3996 = vrot.slane %v3994, 5
      %v3997 = vsel %vm301, %v3992, %v3996
      %v3998 = vshrl.u32 %v3331, 16
      %v4000 = vrot.slane %v3998, 4
      %v4001 = vor.u32 %v4000, %v3996
      %v4002 = vrot.slane %v4001, 4
      %v4004 = vshll.u32 %v3332, 16
      %v4006 = vrot.slane %v4004, 5
      %v4007 = vsel %vm301, %v4002, %v4006
      %v4009 = vshrl.u32 %v3333, 16
      %v4011 = vrot.slane %v4009, 4
      %v4012 = vshll.u32 %v3333, 16
      %v4014 = vrot.slane %v4012, 5
      %v4015 = vor.u32 %v4011, %v4014
      %v4016 = vrot.slane %v4015, 4
      %v4018 = vshll.u32 %v3334, 16
      %v4020 = vrot.slane %v4018, 5
      %v4021 = vsel %vm301, %v4016, %v4020
      %v4022 = vshrl.u32 %v3334, 16
      %v4024 = vrot.slane %v4022, 4
      %v4025 = vor.u32 %v4024, %v4020
      %v4026 = vrot.slane %v4025, 4
      %v4028 = vshll.u32 %v3335, 16
      %v4030 = vrot.slane %v4028, 5
      %v4031 = vsel %vm301, %v4026, %v4030
      %v4033 = vshrl.u32 %v3336, 16
      %v4035 = vrot.slane %v4033, 4
      %v4036 = vshll.u32 %v3336, 16
      %v4038 = vrot.slane %v4036, 5
      %v4039 = vor.u32 %v4035, %v4038
      %v4040 = vrot.slane %v4039, 4
      %v4042 = vshll.u32 %v3337, 16
      %v4044 = vrot.slane %v4042, 5
      %v4045 = vsel %vm301, %v4040, %v4044
      %v4046 = vshrl.u32 %v3337, 16
      %v4048 = vrot.slane %v4046, 4
      %v4049 = vor.u32 %v4048, %v4044
      %v4050 = vrot.slane %v4049, 4
      %v4052 = vshll.u32 %v3338, 16
      %v4054 = vrot.slane %v4052, 5
      %v4055 = vsel %vm301, %v4050, %v4054
      %v4057 = vshrl.u32 %v3339, 16
      %v4059 = vrot.slane %v4057, 4
      %v4060 = vshll.u32 %v3339, 16
      %v4062 = vrot.slane %v4060, 5
      %v4063 = vor.u32 %v4059, %v4062
      %v4064 = vrot.slane %v4063, 4
      %v4066 = vshll.u32 %v3340, 16
      %v4068 = vrot.slane %v4066, 5
      %v4069 = vsel %vm301, %v4064, %v4068
      %v4070 = vshrl.u32 %v3340, 16
      %v4072 = vrot.slane %v4070, 4
      %v4073 = vor.u32 %v4072, %v4068
      %v4074 = vrot.slane %v4073, 4
      %v4076 = vshll.u32 %v3341, 16
      %v4078 = vrot.slane %v4076, 5
      %v4079 = vsel %vm301, %v4074, %v4078
      %s4080 = scalar_lea.vmem %s1, 448
      %v4081 = vld [vmem:[%s4080] sm:$0xf]
      %v4082 = vld [vmem:[%s4080 + $0x4] sm:$0xf]
      %v4083 = vld [vmem:[%s4080 + $0x8] sm:$0xf]
      %v4084 = vld [vmem:[%s4080 + $0xc] sm:$0xf]
      %v4085 = vld [vmem:[%s4080 + $0x10] sm:$0xf]
      %v4086 = vld [vmem:[%s4080 + $0x14] sm:$0xf]
      %v4087 = vld [vmem:[%s4080 + $0x18] sm:$0xf]
      %v4088 = vld [vmem:[%s4080 + $0x1c] sm:$0xf]
      %v4089 = vld [vmem:[%s4080 + $0x20] sm:$0xf]
      %v4090 = vld [vmem:[%s4080 + $0x24] sm:$0xf]
      %v4091 = vld [vmem:[%s4080 + $0x28] sm:$0xf]
      %v4092 = vld [vmem:[%s4080 + $0x2c] sm:$0xf]
      %v4093 = vld [vmem:[%s4080 + $0x30] sm:$0xf]
      %v4094 = vld [vmem:[%s4080 + $0x34] sm:$0xf]
      %v4095 = vld [vmem:[%s4080 + $0x38] sm:$0xf]
      %v4096 = vld [vmem:[%s4080 + $0x3c] sm:$0xf]
      %v4097 = vunpack.c.l.b16 %v3709
      %v4098 = vunpack.c.l.b16 %v3719
      %v4099 = vunpack.c.l.b16 %v3733
      %v4100 = vunpack.c.l.b16 %v3743
      %v4101 = vunpack.c.l.b16 %v3757
      %v4102 = vunpack.c.l.b16 %v3767
      %v4103 = vunpack.c.l.b16 %v3781
      %v4104 = vunpack.c.l.b16 %v3791
      %v4105 = vunpack.c.l.b16 %v3805
      %v4106 = vunpack.c.l.b16 %v3815
      %v4107 = vunpack.c.l.b16 %v3829
      %v4108 = vunpack.c.l.b16 %v3839
      %v4109 = vunpack.c.l.b16 %v3853
      %v4110 = vunpack.c.l.b16 %v3863
      %v4111 = vunpack.c.l.b16 %v3877
      %v4112 = vunpack.c.l.b16 %v3887
      %v4113 = vunpack.c.l.b16 %v3901
      %v4114 = vunpack.c.l.b16 %v3911
      %v4115 = vunpack.c.l.b16 %v3925
      %v4116 = vunpack.c.l.b16 %v3935
      %v4117 = vunpack.c.l.b16 %v3949
      %v4118 = vunpack.c.l.b16 %v3959
      %v4119 = vunpack.c.l.b16 %v3973
      %v4120 = vunpack.c.l.b16 %v3983
      %v4121 = vunpack.c.l.b16 %v3997
      %v4122 = vunpack.c.l.b16 %v4007
      %v4123 = vunpack.c.l.b16 %v4021
      %v4124 = vunpack.c.l.b16 %v4031
      %v4125 = vunpack.c.l.b16 %v4045
      %v4126 = vunpack.c.l.b16 %v4055
      %v4127 = vunpack.c.l.b16 %v4069
      %v4128 = vunpack.c.l.b16 %v4079
      %v4129 = vpack.c.b16 %v4098, %v4097
      %v4130 = vpack.c.b16 %v4100, %v4099
      %v4131 = vpack.c.b16 %v4102, %v4101
      %v4132 = vpack.c.b16 %v4104, %v4103
      %v4133 = vpack.c.b16 %v4106, %v4105
      %v4134 = vpack.c.b16 %v4108, %v4107
      %v4135 = vpack.c.b16 %v4110, %v4109
      %v4136 = vpack.c.b16 %v4112, %v4111
      %v4137 = vpack.c.b16 %v4114, %v4113
      %v4138 = vpack.c.b16 %v4116, %v4115
      %v4139 = vpack.c.b16 %v4118, %v4117
      %v4140 = vpack.c.b16 %v4120, %v4119
      %v4141 = vpack.c.b16 %v4122, %v4121
      %v4142 = vpack.c.b16 %v4124, %v4123
      %v4143 = vpack.c.b16 %v4126, %v4125
      %v4144 = vpack.c.b16 %v4128, %v4127
      %v4177 = vunpack.c.l.b16 %v4081
      %v4178 = vunpack.c.l.b16 %v4082
      %v4179 = vunpack.c.l.b16 %v4083
      %v4180 = vunpack.c.l.b16 %v4084
      %v4181 = vunpack.c.l.b16 %v4085
      %v4182 = vunpack.c.l.b16 %v4086
      %v4183 = vunpack.c.l.b16 %v4087
      %v4184 = vunpack.c.l.b16 %v4088
      %v4185 = vunpack.c.l.b16 %v4089
      %v4186 = vunpack.c.l.b16 %v4090
      %v4187 = vunpack.c.l.b16 %v4091
      %v4188 = vunpack.c.l.b16 %v4092
      %v4189 = vunpack.c.l.b16 %v4093
      %v4190 = vunpack.c.l.b16 %v4094
      %v4191 = vunpack.c.l.b16 %v4095
      %v4192 = vunpack.c.l.b16 %v4096
      %v4193 = vpack.c.b16 %v4178, %v4177
      %v4194 = vpack.c.b16 %v4180, %v4179
      %v4195 = vpack.c.b16 %v4182, %v4181
      %v4196 = vpack.c.b16 %v4184, %v4183
      %v4197 = vpack.c.b16 %v4186, %v4185
      %v4198 = vpack.c.b16 %v4188, %v4187
      %v4199 = vpack.c.b16 %v4190, %v4189
      %v4200 = vpack.c.b16 %v4192, %v4191
      %4209 = vmatprep.subr.bf16.mxu0 0
      %4210 = vmatpush1.bf16.msra.mxu0 %v4193
      %4211 = vmatprep.subr.bf16.mxu0 0
      %4212 = vmatpush1.bf16.msra.mxu0 %v4194
      %4213 = vmatprep.subr.bf16.mxu0 0
      %4214 = vmatpush1.bf16.msra.mxu0 %v4195
      %4215 = vmatprep.subr.bf16.mxu0 0
      %4216 = vmatpush1.bf16.msra.mxu0 %v4196
      %4217 = vmatprep.subr.bf16.mxu0 0
      %4218 = vmatpush1.bf16.msra.mxu0 %v4197
      %4219 = vmatprep.subr.bf16.mxu0 0
      %4220 = vmatpush1.bf16.msra.mxu0 %v4198
      %4221 = vmatprep.subr.bf16.mxu0 0
      %4222 = vmatpush1.bf16.msra.mxu0 %v4199
      %4223 = vmatprep.subr.bf16.mxu0 0
      %4224 = vmatpush1.bf16.msra.mxu0 %v4200
      %4225 = vmatprep.subr.bf16.mxu0 0
      %4226 = vmatpush1.bf16.msra.mxu0 0
      %4227 = vmatprep.subr.bf16.mxu0 0
      %4228 = vmatpush1.bf16.msra.mxu0 0
      %4229 = vmatprep.subr.bf16.mxu0 0
      %4230 = vmatpush1.bf16.msra.mxu0 0
      %4231 = vmatprep.subr.bf16.mxu0 0
      %4232 = vmatpush1.bf16.msra.mxu0 0
      %4233 = vmatprep.subr.bf16.mxu0 0
      %4234 = vmatpush1.bf16.msra.mxu0 0
      %4235 = vmatprep.subr.bf16.mxu0 0
      %4236 = vmatpush1.bf16.msra.mxu0 0
      %4237 = vmatprep.subr.bf16.mxu0 0
      %4238 = vmatpush1.bf16.msra.mxu0 0
      %4239 = vmatprep.subr.bf16.mxu0 0
      %4240 = vmatpush1.bf16.msra.mxu0 0
      %4241 = vmatprep.mubr.bf16.mxu0 0
      %4242 = vmatmul.mubr.bf16.gmra.mrb[0].mxu0 %v4129
      %v4243 = vpop.f32.mrb[0].mxu0
      %v4244 = vadd.f32 0.0, %v4243
      %v4245 = vpop.f32.mrb[0].mxu0
      %v4246 = vpop.f32.mrb[0].mxu0
      %v4247 = vadd.f32 0.0, %v4246
      %v4248 = vpop.f32.mrb[0].mxu0
      %4249 = vmatprep.mubr.bf16.mxu0 0
      %4250 = vmatmul.mubr.bf16.gmra.mrb[0].mxu0 %v4130
      %v4251 = vpop.f32.mrb[0].mxu0
      %v4252 = vadd.f32 0.0, %v4251
      %v4253 = vpop.f32.mrb[0].mxu0
      %v4254 = vpop.f32.mrb[0].mxu0
      %v4255 = vadd.f32 0.0, %v4254
      %v4256 = vpop.f32.mrb[0].mxu0
      %4257 = vmatprep.mubr.bf16.mxu0 0
      %4258 = vmatmul.mubr.bf16.gmra.mrb[0].mxu0 %v4131
      %v4259 = vpop.f32.mrb[0].mxu0
      %v4260 = vadd.f32 0.0, %v4259
      %v4261 = vpop.f32.mrb[0].mxu0
      %v4262 = vpop.f32.mrb[0].mxu0
      %v4263 = vadd.f32 0.0, %v4262
      %v4264 = vpop.f32.mrb[0].mxu0
      %4265 = vmatprep.mubr.bf16.mxu0 0
      %4266 = vmatmul.mubr.bf16.gmra.mrb[0].mxu0 %v4132
      %v4267 = vpop.f32.mrb[0].mxu0
      %v4268 = vadd.f32 0.0, %v4267
      %v4269 = vpop.f32.mrb[0].mxu0
      %v4270 = vpop.f32.mrb[0].mxu0
      %v4271 = vadd.f32 0.0, %v4270
      %v4272 = vpop.f32.mrb[0].mxu0
      %4273 = vmatprep.mubr.bf16.mxu0 0
      %4274 = vmatmul.mubr.bf16.gmra.mrb[0].mxu0 %v4133
      %v4275 = vpop.f32.mrb[0].mxu0
      %v4276 = vadd.f32 0.0, %v4275
      %v4277 = vpop.f32.mrb[0].mxu0
      %v4278 = vpop.f32.mrb[0].mxu0
      %v4279 = vadd.f32 0.0, %v4278
      %v4280 = vpop.f32.mrb[0].mxu0
      %4281 = vmatprep.mubr.bf16.mxu0 0
      %4282 = vmatmul.mubr.bf16.gmra.mrb[0].mxu0 %v4134
      %v4283 = vpop.f32.mrb[0].mxu0
      %v4284 = vadd.f32 0.0, %v4283
      %v4285 = vpop.f32.mrb[0].mxu0
      %v4286 = vpop.f32.mrb[0].mxu0
      %v4287 = vadd.f32 0.0, %v4286
      %v4288 = vpop.f32.mrb[0].mxu0
      %4289 = vmatprep.mubr.bf16.mxu0 0
      %4290 = vmatmul.mubr.bf16.gmra.mrb[0].mxu0 %v4135
      %v4291 = vpop.f32.mrb[0].mxu0
      %v4292 = vadd.f32 0.0, %v4291
      %v4293 = vpop.f32.mrb[0].mxu0
      %v4294 = vpop.f32.mrb[0].mxu0
      %v4295 = vadd.f32 0.0, %v4294
      %v4296 = vpop.f32.mrb[0].mxu0
      %4297 = vmatprep.mubr.bf16.mxu0 0
      %4298 = vmatmul.mubr.bf16.gmra.mrb[0].mxu0 %v4136
      %v4299 = vpop.f32.mrb[0].mxu0
      %v4300 = vadd.f32 0.0, %v4299
      %v4301 = vpop.f32.mrb[0].mxu0
      %v4302 = vpop.f32.mrb[0].mxu0
      %v4303 = vadd.f32 0.0, %v4302
      %v4304 = vpop.f32.mrb[0].mxu0
      %4305 = vmatprep.mubr.bf16.mxu0 0
      %4306 = vmatmul.mubr.bf16.gmra.mrb[0].mxu0 %v4137
      %v4307 = vpop.f32.mrb[0].mxu0
      %v4308 = vadd.f32 0.0, %v4307
      %v4309 = vpop.f32.mrb[0].mxu0
      %v4310 = vpop.f32.mrb[0].mxu0
      %v4311 = vadd.f32 0.0, %v4310
      %v4312 = vpop.f32.mrb[0].mxu0
      %4313 = vmatprep.mubr.bf16.mxu0 0
      %4314 = vmatmul.mubr.bf16.gmra.mrb[0].mxu0 %v4138
      %v4315 = vpop.f32.mrb[0].mxu0
      %v4316 = vadd.f32 0.0, %v4315
      %v4317 = vpop.f32.mrb[0].mxu0
      %v4318 = vpop.f32.mrb[0].mxu0
      %v4319 = vadd.f32 0.0, %v4318
      %v4320 = vpop.f32.mrb[0].mxu0
      %4321 = vmatprep.mubr.bf16.mxu0 0
      %4322 = vmatmul.mubr.bf16.gmra.mrb[0].mxu0 %v4139
      %v4323 = vpop.f32.mrb[0].mxu0
      %v4324 = vadd.f32 0.0, %v4323
      %v4325 = vpop.f32.mrb[0].mxu0
      %v4326 = vpop.f32.mrb[0].mxu0
      %v4327 = vadd.f32 0.0, %v4326
      %v4328 = vpop.f32.mrb[0].mxu0
      %4329 = vmatprep.mubr.bf16.mxu0 0
      %4330 = vmatmul.mubr.bf16.gmra.mrb[0].mxu0 %v4140
      %v4331 = vpop.f32.mrb[0].mxu0
      %v4332 = vadd.f32 0.0, %v4331
      %v4333 = vpop.f32.mrb[0].mxu0
      %v4334 = vpop.f32.mrb[0].mxu0
      %v4335 = vadd.f32 0.0, %v4334
      %v4336 = vpop.f32.mrb[0].mxu0
      %4337 = vmatprep.mubr.bf16.mxu0 0
      %4338 = vmatmul.mubr.bf16.gmra.mrb[0].mxu0 %v4141
      %v4339 = vpop.f32.mrb[0].mxu0
      %v4340 = vadd.f32 0.0, %v4339
      %v4341 = vpop.f32.mrb[0].mxu0
      %v4342 = vpop.f32.mrb[0].mxu0
      %v4343 = vadd.f32 0.0, %v4342
      %v4344 = vpop.f32.mrb[0].mxu0
      %4345 = vmatprep.mubr.bf16.mxu0 0
      %4346 = vmatmul.mubr.bf16.gmra.mrb[0].mxu0 %v4142
      %v4347 = vpop.f32.mrb[0].mxu0
      %v4348 = vadd.f32 0.0, %v4347
      %v4349 = vpop.f32.mrb[0].mxu0
      %v4350 = vpop.f32.mrb[0].mxu0
      %v4351 = vadd.f32 0.0, %v4350
      %v4352 = vpop.f32.mrb[0].mxu0
      %4353 = vmatprep.mubr.bf16.mxu0 0
      %4354 = vmatmul.mubr.bf16.gmra.mrb[0].mxu0 %v4143
      %v4355 = vpop.f32.mrb[0].mxu0
      %v4356 = vadd.f32 0.0, %v4355
      %v4357 = vpop.f32.mrb[0].mxu0
      %v4358 = vpop.f32.mrb[0].mxu0
      %v4359 = vadd.f32 0.0, %v4358
      %v4360 = vpop.f32.mrb[0].mxu0
      %4361 = vmatprep.mubr.bf16.mxu0 0
      %4362 = vmatmul.mubr.bf16.gmra.mrb[0].mxu0 %v4144
      %v4363 = vpop.f32.mrb[0].mxu0
      %v4364 = vadd.f32 0.0, %v4363
      %v4365 = vpop.f32.mrb[0].mxu0
      %v4366 = vpop.f32.mrb[0].mxu0
      %v4367 = vadd.f32 0.0, %v4366
      %v4368 = vpop.f32.mrb[0].mxu0
      %4369 = vdwg.mxu0
      %v4370 = vadd.f32 %v3664, %v4244
      %v4371 = vadd.f32 %v3665, %v4247
      %v4372 = vadd.f32 %v3666, %v4252
      %v4373 = vadd.f32 %v3667, %v4255
      %v4374 = vadd.f32 %v3668, %v4260
      %v4375 = vadd.f32 %v3669, %v4263
      %v4376 = vadd.f32 %v3670, %v4268
      %v4377 = vadd.f32 %v3671, %v4271
      %v4378 = vadd.f32 %v3672, %v4276
      %v4379 = vadd.f32 %v3673, %v4279
      %v4380 = vadd.f32 %v3674, %v4284
      %v4381 = vadd.f32 %v3675, %v4287
      %v4382 = vadd.f32 %v3676, %v4292
      %v4383 = vadd.f32 %v3677, %v4295
      %v4384 = vadd.f32 %v3678, %v4300
      %v4385 = vadd.f32 %v3679, %v4303
      %v4386 = vadd.f32 %v3680, %v4308
      %v4387 = vadd.f32 %v3681, %v4311
      %v4388 = vadd.f32 %v3682, %v4316
      %v4389 = vadd.f32 %v3683, %v4319
      %v4390 = vadd.f32 %v3684, %v4324
      %v4391 = vadd.f32 %v3685, %v4327
      %v4392 = vadd.f32 %v3686, %v4332
      %v4393 = vadd.f32 %v3687, %v4335
      %v4394 = vadd.f32 %v3688, %v4340
      %v4395 = vadd.f32 %v3689, %v4343
      %v4396 = vadd.f32 %v3690, %v4348
      %v4397 = vadd.f32 %v3691, %v4351
      %v4398 = vadd.f32 %v3692, %v4356
      %v4399 = vadd.f32 %v3693, %v4359
      %v4400 = vadd.f32 %v3694, %v4364
      %v4401 = vadd.f32 %v3695, %v4367
      %v4418 = vrot.slane %v3294, 5
      %v4419 = vrot.slane %v4418, 4
      %v4420 = vrot.slane %v3295, 5
      %v4421 = vsel %vm1299, %v4419, %v4420
      %v4422 = vrot.slane %v4420, 4
      %v4423 = vrot.slane %v3296, 5
      %v4424 = vsel %vm1299, %v4422, %v4423
      %v4425 = vrot.slane %v3297, 5
      %v4426 = vrot.slane %v4425, 4
      %v4427 = vrot.slane %v3298, 5
      %v4428 = vsel %vm1299, %v4426, %v4427
      %v4429 = vrot.slane %v4427, 4
      %v4430 = vrot.slane %v3299, 5
      %v4431 = vsel %vm1299, %v4429, %v4430
      %v4432 = vrot.slane %v3300, 5
      %v4433 = vrot.slane %v4432, 4
      %v4434 = vrot.slane %v3301, 5
      %v4435 = vsel %vm1299, %v4433, %v4434
      %v4436 = vrot.slane %v4434, 4
      %v4437 = vrot.slane %v3302, 5
      %v4438 = vsel %vm1299, %v4436, %v4437
      %v4439 = vrot.slane %v3303, 5
      %v4440 = vrot.slane %v4439, 4
      %v4441 = vrot.slane %v3304, 5
      %v4442 = vsel %vm1299, %v4440, %v4441
      %v4443 = vrot.slane %v4441, 4
      %v4444 = vrot.slane %v3305, 5
      %v4445 = vsel %vm1299, %v4443, %v4444
      %v4446 = vrot.slane %v3306, 5
      %v4447 = vrot.slane %v4446, 4
      %v4448 = vrot.slane %v3307, 5
      %v4449 = vsel %vm1299, %v4447, %v4448
      %v4450 = vrot.slane %v4448, 4
      %v4451 = vrot.slane %v3308, 5
      %v4452 = vsel %vm1299, %v4450, %v4451
      %v4453 = vrot.slane %v3309, 5
      %v4454 = vrot.slane %v4453, 4
      %v4455 = vrot.slane %v3310, 5
      %v4456 = vsel %vm1299, %v4454, %v4455
      %v4457 = vrot.slane %v4455, 4
      %v4458 = vrot.slane %v3311, 5
      %v4459 = vsel %vm1299, %v4457, %v4458
      %v4460 = vrot.slane %v3312, 5
      %v4461 = vrot.slane %v4460, 4
      %v4462 = vrot.slane %v3313, 5
      %v4463 = vsel %vm1299, %v4461, %v4462
      %v4464 = vrot.slane %v4462, 4
      %v4465 = vrot.slane %v3314, 5
      %v4466 = vsel %vm1299, %v4464, %v4465
      %v4467 = vrot.slane %v3315, 5
      %v4468 = vrot.slane %v4467, 4
      %v4469 = vrot.slane %v3316, 5
      %v4470 = vsel %vm1299, %v4468, %v4469
      %v4471 = vrot.slane %v4469, 4
      %v4472 = vrot.slane %v3317, 5
      %v4473 = vsel %vm1299, %v4471, %v4472
      %v4474 = vrot.slane %v3318, 5
      %v4475 = vrot.slane %v4474, 4
      %v4476 = vrot.slane %v3319, 5
      %v4477 = vsel %vm1299, %v4475, %v4476
      %v4478 = vrot.slane %v4476, 4
      %v4479 = vrot.slane %v3320, 5
      %v4480 = vsel %vm1299, %v4478, %v4479
      %v4481 = vrot.slane %v3321, 5
      %v4482 = vrot.slane %v4481, 4
      %v4483 = vrot.slane %v3322, 5
      %v4484 = vsel %vm1299, %v4482, %v4483
      %v4485 = vrot.slane %v4483, 4
      %v4486 = vrot.slane %v3323, 5
      %v4487 = vsel %vm1299, %v4485, %v4486
      %v4488 = vrot.slane %v3324, 5
      %v4489 = vrot.slane %v4488, 4
      %v4490 = vrot.slane %v3325, 5
      %v4491 = vsel %vm1299, %v4489, %v4490
      %v4492 = vrot.slane %v4490, 4
      %v4493 = vrot.slane %v3326, 5
      %v4494 = vsel %vm1299, %v4492, %v4493
      %v4495 = vrot.slane %v3327, 5
      %v4496 = vrot.slane %v4495, 4
      %v4497 = vrot.slane %v3328, 5
      %v4498 = vsel %vm1299, %v4496, %v4497
      %v4499 = vrot.slane %v4497, 4
      %v4500 = vrot.slane %v3329, 5
      %v4501 = vsel %vm1299, %v4499, %v4500
      %v4502 = vrot.slane %v3330, 5
      %v4503 = vrot.slane %v4502, 4
      %v4504 = vrot.slane %v3331, 5
      %v4505 = vsel %vm1299, %v4503, %v4504
      %v4506 = vrot.slane %v4504, 4
      %v4507 = vrot.slane %v3332, 5
      %v4508 = vsel %vm1299, %v4506, %v4507
      %v4509 = vrot.slane %v3333, 5
      %v4510 = vrot.slane %v4509, 4
      %v4511 = vrot.slane %v3334, 5
      %v4512 = vsel %vm1299, %v4510, %v4511
      %v4513 = vrot.slane %v4511, 4
      %v4514 = vrot.slane %v3335, 5
      %v4515 = vsel %vm1299, %v4513, %v4514
      %v4516 = vrot.slane %v3336, 5
      %v4517 = vrot.slane %v4516, 4
      %v4518 = vrot.slane %v3337, 5
      %v4519 = vsel %vm1299, %v4517, %v4518
      %v4520 = vrot.slane %v4518, 4
      %v4521 = vrot.slane %v3338, 5
      %v4522 = vsel %vm1299, %v4520, %v4521
      %v4523 = vrot.slane %v3339, 5
      %v4524 = vrot.slane %v4523, 4
      %v4525 = vrot.slane %v3340, 5
      %v4526 = vsel %vm1299, %v4524, %v4525
      %v4527 = vrot.slane %v4525, 4
      %v4528 = vrot.slane %v3341, 5
      %v4529 = vsel %vm1299, %v4527, %v4528
      %s4530 = scalar_lea.vmem %s1, 512
      %v4531 = vld [vmem:[%s4530] sm:$0xf]
      %v4532 = vld [vmem:[%s4530 + $0x4] sm:$0xf]
      %v4533 = vld [vmem:[%s4530 + $0x8] sm:$0xf]
      %v4534 = vld [vmem:[%s4530 + $0xc] sm:$0xf]
      %v4535 = vld [vmem:[%s4530 + $0x10] sm:$0xf]
      %v4536 = vld [vmem:[%s4530 + $0x14] sm:$0xf]
      %v4537 = vld [vmem:[%s4530 + $0x18] sm:$0xf]
      %v4538 = vld [vmem:[%s4530 + $0x1c] sm:$0xf]
      %v4539 = vld [vmem:[%s4530 + $0x20] sm:$0xf]
      %v4540 = vld [vmem:[%s4530 + $0x24] sm:$0xf]
      %v4541 = vld [vmem:[%s4530 + $0x28] sm:$0xf]
      %v4542 = vld [vmem:[%s4530 + $0x2c] sm:$0xf]
      %v4543 = vld [vmem:[%s4530 + $0x30] sm:$0xf]
      %v4544 = vld [vmem:[%s4530 + $0x34] sm:$0xf]
      %v4545 = vld [vmem:[%s4530 + $0x38] sm:$0xf]
      %v4546 = vld [vmem:[%s4530 + $0x3c] sm:$0xf]
      %v4547 = vunpack.c.l.b16 %v4421
      %v4548 = vunpack.c.l.b16 %v4424
      %v4549 = vunpack.c.l.b16 %v4428
      %v4550 = vunpack.c.l.b16 %v4431
      %v4551 = vunpack.c.l.b16 %v4435
      %v4552 = vunpack.c.l.b16 %v4438
      %v4553 = vunpack.c.l.b16 %v4442
      %v4554 = vunpack.c.l.b16 %v4445
      %v4555 = vunpack.c.l.b16 %v4449
      %v4556 = vunpack.c.l.b16 %v4452
      %v4557 = vunpack.c.l.b16 %v4456
      %v4558 = vunpack.c.l.b16 %v4459
      %v4559 = vunpack.c.l.b16 %v4463
      %v4560 = vunpack.c.l.b16 %v4466
      %v4561 = vunpack.c.l.b16 %v4470
      %v4562 = vunpack.c.l.b16 %v4473
      %v4563 = vunpack.c.l.b16 %v4477
      %v4564 = vunpack.c.l.b16 %v4480
      %v4565 = vunpack.c.l.b16 %v4484
      %v4566 = vunpack.c.l.b16 %v4487
      %v4567 = vunpack.c.l.b16 %v4491
      %v4568 = vunpack.c.l.b16 %v4494
      %v4569 = vunpack.c.l.b16 %v4498
      %v4570 = vunpack.c.l.b16 %v4501
      %v4571 = vunpack.c.l.b16 %v4505
      %v4572 = vunpack.c.l.b16 %v4508
      %v4573 = vunpack.c.l.b16 %v4512
      %v4574 = vunpack.c.l.b16 %v4515
      %v4575 = vunpack.c.l.b16 %v4519
      %v4576 = vunpack.c.l.b16 %v4522
      %v4577 = vunpack.c.l.b16 %v4526
      %v4578 = vunpack.c.l.b16 %v4529
      %v4579 = vpack.c.b16 %v4548, %v4547
      %v4580 = vpack.c.b16 %v4550, %v4549
      %v4581 = vpack.c.b16 %v4552, %v4551
      %v4582 = vpack.c.b16 %v4554, %v4553
      %v4583 = vpack.c.b16 %v4556, %v4555
      %v4584 = vpack.c.b16 %v4558, %v4557
      %v4585 = vpack.c.b16 %v4560, %v4559
      %v4586 = vpack.c.b16 %v4562, %v4561
      %v4587 = vpack.c.b16 %v4564, %v4563
      %v4588 = vpack.c.b16 %v4566, %v4565
      %v4589 = vpack.c.b16 %v4568, %v4567
      %v4590 = vpack.c.b16 %v4570, %v4569
      %v4591 = vpack.c.b16 %v4572, %v4571
      %v4592 = vpack.c.b16 %v4574, %v4573
      %v4593 = vpack.c.b16 %v4576, %v4575
      %v4594 = vpack.c.b16 %v4578, %v4577
      %v4627 = vunpack.c.l.b16 %v4531
      %v4628 = vunpack.c.l.b16 %v4532
      %v4629 = vunpack.c.l.b16 %v4533
      %v4630 = vunpack.c.l.b16 %v4534
      %v4631 = vunpack.c.l.b16 %v4535
      %v4632 = vunpack.c.l.b16 %v4536
      %v4633 = vunpack.c.l.b16 %v4537
      %v4634 = vunpack.c.l.b16 %v4538
      %v4635 = vunpack.c.l.b16 %v4539
      %v4636 = vunpack.c.l.b16 %v4540
      %v4637 = vunpack.c.l.b16 %v4541
      %v4638 = vunpack.c.l.b16 %v4542
      %v4639 = vunpack.c.l.b16 %v4543
      %v4640 = vunpack.c.l.b16 %v4544
      %v4641 = vunpack.c.l.b16 %v4545
      %v4642 = vunpack.c.l.b16 %v4546
      %v4643 = vpack.c.b16 %v4628, %v4627
      %v4644 = vpack.c.b16 %v4630, %v4629
      %v4645 = vpack.c.b16 %v4632, %v4631
      %v4646 = vpack.c.b16 %v4634, %v4633
      %v4647 = vpack.c.b16 %v4636, %v4635
      %v4648 = vpack.c.b16 %v4638, %v4637
      %v4649 = vpack.c.b16 %v4640, %v4639
      %v4650 = vpack.c.b16 %v4642, %v4641
      %4659 = vmatprep.subr.bf16.mxu0 0
      %4660 = vmatpush1.bf16.msra.mxu0 %v4643
      %4661 = vmatprep.subr.bf16.mxu0 0
      %4662 = vmatpush1.bf16.msra.mxu0 %v4644
      %4663 = vmatprep.subr.bf16.mxu0 0
      %4664 = vmatpush1.bf16.msra.mxu0 %v4645
      %4665 = vmatprep.subr.bf16.mxu0 0
      %4666 = vmatpush1.bf16.msra.mxu0 %v4646
      %4667 = vmatprep.subr.bf16.mxu0 0
      %4668 = vmatpush1.bf16.msra.mxu0 %v4647
      %4669 = vmatprep.subr.bf16.mxu0 0
      %4670 = vmatpush1.bf16.msra.mxu0 %v4648
      %4671 = vmatprep.subr.bf16.mxu0 0
      %4672 = vmatpush1.bf16.msra.mxu0 %v4649
      %4673 = vmatprep.subr.bf16.mxu0 0
      %4674 = vmatpush1.bf16.msra.mxu0 %v4650
      %4675 = vmatprep.subr.bf16.mxu0 0
      %4676 = vmatpush1.bf16.msra.mxu0 0
      %4677 = vmatprep.subr.bf16.mxu0 0
      %4678 = vmatpush1.bf16.msra.mxu0 0
      %4679 = vmatprep.subr.bf16.mxu0 0
      %4680 = vmatpush1.bf16.msra.mxu0 0
      %4681 = vmatprep.subr.bf16.mxu0 0
      %4682 = vmatpush1.bf16.msra.mxu0 0
      %4683 = vmatprep.subr.bf16.mxu0 0
      %4684 = vmatpush1.bf16.msra.mxu0 0
      %4685 = vmatprep.subr.bf16.mxu0 0
      %4686 = vmatpush1.bf16.msra.mxu0 0
      %4687 = vmatprep.subr.bf16.mxu0 0
      %4688 = vmatpush1.bf16.msra.mxu0 0
      %4689 = vmatprep.subr.bf16.mxu0 0
      %4690 = vmatpush1.bf16.msra.mxu0 0
      %4691 = vmatprep.mubr.bf16.mxu0 0
      %4692 = vmatmul.mubr.bf16.gmra.mrb[0].mxu0 %v4579
      %v4693 = vpop.f32.mrb[0].mxu0
      %v4694 = vadd.f32 0.0, %v4693
      %v4695 = vpop.f32.mrb[0].mxu0
      %v4696 = vpop.f32.mrb[0].mxu0
      %v4697 = vadd.f32 0.0, %v4696
      %v4698 = vpop.f32.mrb[0].mxu0
      %4699 = vmatprep.mubr.bf16.mxu0 0
      %4700 = vmatmul.mubr.bf16.gmra.mrb[0].mxu0 %v4580
      %v4701 = vpop.f32.mrb[0].mxu0
      %v4702 = vadd.f32 0.0, %v4701
      %v4703 = vpop.f32.mrb[0].mxu0
      %v4704 = vpop.f32.mrb[0].mxu0
      %v4705 = vadd.f32 0.0, %v4704
      %v4706 = vpop.f32.mrb[0].mxu0
      %4707 = vmatprep.mubr.bf16.mxu0 0
      %4708 = vmatmul.mubr.bf16.gmra.mrb[0].mxu0 %v4581
      %v4709 = vpop.f32.mrb[0].mxu0
      %v4710 = vadd.f32 0.0, %v4709
      %v4711 = vpop.f32.mrb[0].mxu0
      %v4712 = vpop.f32.mrb[0].mxu0
      %v4713 = vadd.f32 0.0, %v4712
      %v4714 = vpop.f32.mrb[0].mxu0
      %4715 = vmatprep.mubr.bf16.mxu0 0
      %4716 = vmatmul.mubr.bf16.gmra.mrb[0].mxu0 %v4582
      %v4717 = vpop.f32.mrb[0].mxu0
      %v4718 = vadd.f32 0.0, %v4717
      %v4719 = vpop.f32.mrb[0].mxu0
      %v4720 = vpop.f32.mrb[0].mxu0
      %v4721 = vadd.f32 0.0, %v4720
      %v4722 = vpop.f32.mrb[0].mxu0
      %4723 = vmatprep.mubr.bf16.mxu0 0
      %4724 = vmatmul.mubr.bf16.gmra.mrb[0].mxu0 %v4583
      %v4725 = vpop.f32.mrb[0].mxu0
      %v4726 = vadd.f32 0.0, %v4725
      %v4727 = vpop.f32.mrb[0].mxu0
      %v4728 = vpop.f32.mrb[0].mxu0
      %v4729 = vadd.f32 0.0, %v4728
      %v4730 = vpop.f32.mrb[0].mxu0
      %4731 = vmatprep.mubr.bf16.mxu0 0
      %4732 = vmatmul.mubr.bf16.gmra.mrb[0].mxu0 %v4584
      %v4733 = vpop.f32.mrb[0].mxu0
      %v4734 = vadd.f32 0.0, %v4733
      %v4735 = vpop.f32.mrb[0].mxu0
      %v4736 = vpop.f32.mrb[0].mxu0
      %v4737 = vadd.f32 0.0, %v4736
      %v4738 = vpop.f32.mrb[0].mxu0
      %4739 = vmatprep.mubr.bf16.mxu0 0
      %4740 = vmatmul.mubr.bf16.gmra.mrb[0].mxu0 %v4585
      %v4741 = vpop.f32.mrb[0].mxu0
      %v4742 = vadd.f32 0.0, %v4741
      %v4743 = vpop.f32.mrb[0].mxu0
      %v4744 = vpop.f32.mrb[0].mxu0
      %v4745 = vadd.f32 0.0, %v4744
      %v4746 = vpop.f32.mrb[0].mxu0
      %4747 = vmatprep.mubr.bf16.mxu0 0
      %4748 = vmatmul.mubr.bf16.gmra.mrb[0].mxu0 %v4586
      %v4749 = vpop.f32.mrb[0].mxu0
      %v4750 = vadd.f32 0.0, %v4749
      %v4751 = vpop.f32.mrb[0].mxu0
      %v4752 = vpop.f32.mrb[0].mxu0
      %v4753 = vadd.f32 0.0, %v4752
      %v4754 = vpop.f32.mrb[0].mxu0
      %4755 = vmatprep.mubr.bf16.mxu0 0
      %4756 = vmatmul.mubr.bf16.gmra.mrb[0].mxu0 %v4587
      %v4757 = vpop.f32.mrb[0].mxu0
      %v4758 = vadd.f32 0.0, %v4757
      %v4759 = vpop.f32.mrb[0].mxu0
      %v4760 = vpop.f32.mrb[0].mxu0
      %v4761 = vadd.f32 0.0, %v4760
      %v4762 = vpop.f32.mrb[0].mxu0
      %4763 = vmatprep.mubr.bf16.mxu0 0
      %4764 = vmatmul.mubr.bf16.gmra.mrb[0].mxu0 %v4588
      %v4765 = vpop.f32.mrb[0].mxu0
      %v4766 = vadd.f32 0.0, %v4765
      %v4767 = vpop.f32.mrb[0].mxu0
      %v4768 = vpop.f32.mrb[0].mxu0
      %v4769 = vadd.f32 0.0, %v4768
      %v4770 = vpop.f32.mrb[0].mxu0
      %4771 = vmatprep.mubr.bf16.mxu0 0
      %4772 = vmatmul.mubr.bf16.gmra.mrb[0].mxu0 %v4589
      %v4773 = vpop.f32.mrb[0].mxu0
      %v4774 = vadd.f32 0.0, %v4773
      %v4775 = vpop.f32.mrb[0].mxu0
      %v4776 = vpop.f32.mrb[0].mxu0
      %v4777 = vadd.f32 0.0, %v4776
      %v4778 = vpop.f32.mrb[0].mxu0
      %4779 = vmatprep.mubr.bf16.mxu0 0
      %4780 = vmatmul.mubr.bf16.gmra.mrb[0].mxu0 %v4590
      %v4781 = vpop.f32.mrb[0].mxu0
      %v4782 = vadd.f32 0.0, %v4781
      %v4783 = vpop.f32.mrb[0].mxu0
      %v4784 = vpop.f32.mrb[0].mxu0
      %v4785 = vadd.f32 0.0, %v4784
      %v4786 = vpop.f32.mrb[0].mxu0
      %4787 = vmatprep.mubr.bf16.mxu0 0
      %4788 = vmatmul.mubr.bf16.gmra.mrb[0].mxu0 %v4591
      %v4789 = vpop.f32.mrb[0].mxu0
      %v4790 = vadd.f32 0.0, %v4789
      %v4791 = vpop.f32.mrb[0].mxu0
      %v4792 = vpop.f32.mrb[0].mxu0
      %v4793 = vadd.f32 0.0, %v4792
      %v4794 = vpop.f32.mrb[0].mxu0
      %4795 = vmatprep.mubr.bf16.mxu0 0
      %4796 = vmatmul.mubr.bf16.gmra.mrb[0].mxu0 %v4592
      %v4797 = vpop.f32.mrb[0].mxu0
      %v4798 = vadd.f32 0.0, %v4797
      %v4799 = vpop.f32.mrb[0].mxu0
      %v4800 = vpop.f32.mrb[0].mxu0
      %v4801 = vadd.f32 0.0, %v4800
      %v4802 = vpop.f32.mrb[0].mxu0
      %4803 = vmatprep.mubr.bf16.mxu0 0
      %4804 = vmatmul.mubr.bf16.gmra.mrb[0].mxu0 %v4593
      %v4805 = vpop.f32.mrb[0].mxu0
      %v4806 = vadd.f32 0.0, %v4805
      %v4807 = vpop.f32.mrb[0].mxu0
      %v4808 = vpop.f32.mrb[0].mxu0
      %v4809 = vadd.f32 0.0, %v4808
      %v4810 = vpop.f32.mrb[0].mxu0
      %4811 = vmatprep.mubr.bf16.mxu0 0
      %4812 = vmatmul.mubr.bf16.gmra.mrb[0].mxu0 %v4594
      %v4813 = vpop.f32.mrb[0].mxu0
      %v4814 = vadd.f32 0.0, %v4813
      %v4815 = vpop.f32.mrb[0].mxu0
      %v4816 = vpop.f32.mrb[0].mxu0
      %v4817 = vadd.f32 0.0, %v4816
      %v4818 = vpop.f32.mrb[0].mxu0
      %4819 = vdwg.mxu0
      %v4820 = vadd.f32 %v4370, %v4694
      %v4821 = vadd.f32 %v4371, %v4697
      %v4822 = vadd.f32 %v4372, %v4702
      %v4823 = vadd.f32 %v4373, %v4705
      %v4824 = vadd.f32 %v4374, %v4710
      %v4825 = vadd.f32 %v4375, %v4713
      %v4826 = vadd.f32 %v4376, %v4718
      %v4827 = vadd.f32 %v4377, %v4721
      %v4828 = vadd.f32 %v4378, %v4726
      %v4829 = vadd.f32 %v4379, %v4729
      %v4830 = vadd.f32 %v4380, %v4734
      %v4831 = vadd.f32 %v4381, %v4737
      %v4832 = vadd.f32 %v4382, %v4742
      %v4833 = vadd.f32 %v4383, %v4745
      %v4834 = vadd.f32 %v4384, %v4750
      %v4835 = vadd.f32 %v4385, %v4753
      %v4836 = vadd.f32 %v4386, %v4758
      %v4837 = vadd.f32 %v4387, %v4761
      %v4838 = vadd.f32 %v4388, %v4766
      %v4839 = vadd.f32 %v4389, %v4769
      %v4840 = vadd.f32 %v4390, %v4774
      %v4841 = vadd.f32 %v4391, %v4777
      %v4842 = vadd.f32 %v4392, %v4782
      %v4843 = vadd.f32 %v4393, %v4785
      %v4844 = vadd.f32 %v4394, %v4790
      %v4845 = vadd.f32 %v4395, %v4793
      %v4846 = vadd.f32 %v4396, %v4798
      %v4847 = vadd.f32 %v4397, %v4801
      %v4848 = vadd.f32 %v4398, %v4806
      %v4849 = vadd.f32 %v4399, %v4809
      %v4850 = vadd.f32 %v4400, %v4814
      %v4851 = vadd.f32 %v4401, %v4817
      %4852 = vst [vmem:[%s225] sm:$0xff] %v4820
      %4853 = vst [vmem:[%s225 + $0x8] sm:$0xff] %v4821
      %4854 = vst [vmem:[%s225 + $0x10] sm:$0xff] %v4822
      %4855 = vst [vmem:[%s225 + $0x18] sm:$0xff] %v4823
      %4856 = vst [vmem:[%s225 + $0x20] sm:$0xff] %v4824
      %4857 = vst [vmem:[%s225 + $0x28] sm:$0xff] %v4825
      %4858 = vst [vmem:[%s225 + $0x30] sm:$0xff] %v4826
      %4859 = vst [vmem:[%s225 + $0x38] sm:$0xff] %v4827
      %4860 = vst [vmem:[%s225 + $0x40] sm:$0xff] %v4828
      %4861 = vst [vmem:[%s225 + $0x48] sm:$0xff] %v4829
      %4862 = vst [vmem:[%s225 + $0x50] sm:$0xff] %v4830
      %4863 = vst [vmem:[%s225 + $0x58] sm:$0xff] %v4831
      %4864 = vst [vmem:[%s225 + $0x60] sm:$0xff] %v4832
      %4865 = vst [vmem:[%s225 + $0x68] sm:$0xff] %v4833
      %4866 = vst [vmem:[%s225 + $0x70] sm:$0xff] %v4834
      %4867 = vst [vmem:[%s225 + $0x78] sm:$0xff] %v4835
      %4868 = vst [vmem:[%s225 + $0x80] sm:$0xff] %v4836
      %4869 = vst [vmem:[%s225 + $0x88] sm:$0xff] %v4837
      %4870 = vst [vmem:[%s225 + $0x90] sm:$0xff] %v4838
      %4871 = vst [vmem:[%s225 + $0x98] sm:$0xff] %v4839
      %4872 = vst [vmem:[%s225 + $0xa0] sm:$0xff] %v4840
      %4873 = vst [vmem:[%s225 + $0xa8] sm:$0xff] %v4841
      %4874 = vst [vmem:[%s225 + $0xb0] sm:$0xff] %v4842
      %4875 = vst [vmem:[%s225 + $0xb8] sm:$0xff] %v4843
      %4876 = vst [vmem:[%s225 + $0xc0] sm:$0xff] %v4844
      %4877 = vst [vmem:[%s225 + $0xc8] sm:$0xff] %v4845
      %4878 = vst [vmem:[%s225 + $0xd0] sm:$0xff] %v4846
      %4879 = vst [vmem:[%s225 + $0xd8] sm:$0xff] %v4847
      %4880 = vst [vmem:[%s225 + $0xe0] sm:$0xff] %v4848
      %4881 = vst [vmem:[%s225 + $0xe8] sm:$0xff] %v4849
      %4882 = vst [vmem:[%s225 + $0xf0] sm:$0xff] %v4850
      %4883 = vst [vmem:[%s225 + $0xf8] sm:$0xff] %v4851
      %v4884 = vadd.f32 %v4820, %v4821
      %v4885 = vadd.f32 %v4884, %v4822
      %v4886 = vadd.f32 %v4885, %v4823
      %v4887 = vadd.f32 %v4886, %v4824
      %v4888 = vadd.f32 %v4887, %v4825
      %v4889 = vadd.f32 %v4888, %v4826
      %v4890 = vadd.f32 %v4889, %v4827
      %v4891 = vadd.f32 %v4890, %v4828
      %v4892 = vadd.f32 %v4891, %v4829
      %v4893 = vadd.f32 %v4892, %v4830
      %v4894 = vadd.f32 %v4893, %v4831
      %v4895 = vadd.f32 %v4894, %v4832
      %v4896 = vadd.f32 %v4895, %v4833
      %v4897 = vadd.f32 %v4896, %v4834
      %v4898 = vadd.f32 %v4897, %v4835
      %v4899 = vadd.f32 %v4898, %v4836
      %v4900 = vadd.f32 %v4899, %v4837
      %v4901 = vadd.f32 %v4900, %v4838
      %v4902 = vadd.f32 %v4901, %v4839
      %v4903 = vadd.f32 %v4902, %v4840
      %v4904 = vadd.f32 %v4903, %v4841
      %v4905 = vadd.f32 %v4904, %v4842
      %v4906 = vadd.f32 %v4905, %v4843
      %v4907 = vadd.f32 %v4906, %v4844
      %v4908 = vadd.f32 %v4907, %v4845
      %v4909 = vadd.f32 %v4908, %v4846
      %v4910 = vadd.f32 %v4909, %v4847
      %v4911 = vadd.f32 %v4910, %v4848
      %v4912 = vadd.f32 %v4911, %v4849
      %v4913 = vadd.f32 %v4912, %v4850
      %v4914 = vadd.f32 %v4913, %v4851
      %v4915 = vrot.slane %v4914, 4
      %v4916 = vadd.f32 %v4914, %v4915
      %v4917 = vrot.slane %v4916, 2
      %v4918 = vadd.f32 %v4916, %v4917
      %v4919 = vrot.slane %v4918, 1
      %v4920 = vadd.f32 %v4918, %v4919
      %v4921 = vmul.f32 %v4820, %v4820
      %v4922 = vmul.f32 %v4821, %v4821
      %v4923 = vmul.f32 %v4822, %v4822
      %v4924 = vmul.f32 %v4823, %v4823
      %v4925 = vmul.f32 %v4824, %v4824
      %v4926 = vmul.f32 %v4825, %v4825
      %v4927 = vmul.f32 %v4826, %v4826
      %v4928 = vmul.f32 %v4827, %v4827
      %v4929 = vmul.f32 %v4828, %v4828
      %v4930 = vmul.f32 %v4829, %v4829
      %v4931 = vmul.f32 %v4830, %v4830
      %v4932 = vmul.f32 %v4831, %v4831
      %v4933 = vmul.f32 %v4832, %v4832
      %v4934 = vmul.f32 %v4833, %v4833
      %v4935 = vmul.f32 %v4834, %v4834
      %v4936 = vmul.f32 %v4835, %v4835
      %v4937 = vmul.f32 %v4836, %v4836
      %v4938 = vmul.f32 %v4837, %v4837
      %v4939 = vmul.f32 %v4838, %v4838
      %v4940 = vmul.f32 %v4839, %v4839
      %v4941 = vmul.f32 %v4840, %v4840
      %v4942 = vmul.f32 %v4841, %v4841
      %v4943 = vmul.f32 %v4842, %v4842
      %v4944 = vmul.f32 %v4843, %v4843
      %v4945 = vmul.f32 %v4844, %v4844
      %v4946 = vmul.f32 %v4845, %v4845
      %v4947 = vmul.f32 %v4846, %v4846
      %v4948 = vmul.f32 %v4847, %v4847
      %v4949 = vmul.f32 %v4848, %v4848
      %v4950 = vmul.f32 %v4849, %v4849
      %v4951 = vmul.f32 %v4850, %v4850
      %v4952 = vmul.f32 %v4851, %v4851
      %v4953 = vadd.f32 %v4921, %v4922
      %v4954 = vadd.f32 %v4953, %v4923
      %v4955 = vadd.f32 %v4954, %v4924
      %v4956 = vadd.f32 %v4955, %v4925
      %v4957 = vadd.f32 %v4956, %v4926
      %v4958 = vadd.f32 %v4957, %v4927
      %v4959 = vadd.f32 %v4958, %v4928
      %v4960 = vadd.f32 %v4959, %v4929
      %v4961 = vadd.f32 %v4960, %v4930
      %v4962 = vadd.f32 %v4961, %v4931
      %v4963 = vadd.f32 %v4962, %v4932
      %v4964 = vadd.f32 %v4963, %v4933
      %v4965 = vadd.f32 %v4964, %v4934
      %v4966 = vadd.f32 %v4965, %v4935
      %v4967 = vadd.f32 %v4966, %v4936
      %v4968 = vadd.f32 %v4967, %v4937
      %v4969 = vadd.f32 %v4968, %v4938
      %v4970 = vadd.f32 %v4969, %v4939
      %v4971 = vadd.f32 %v4970, %v4940
      %v4972 = vadd.f32 %v4971, %v4941
      %v4973 = vadd.f32 %v4972, %v4942
      %v4974 = vadd.f32 %v4973, %v4943
      %v4975 = vadd.f32 %v4974, %v4944
      %v4976 = vadd.f32 %v4975, %v4945
      %v4977 = vadd.f32 %v4976, %v4946
      %v4978 = vadd.f32 %v4977, %v4947
      %v4979 = vadd.f32 %v4978, %v4948
      %v4980 = vadd.f32 %v4979, %v4949
      %v4981 = vadd.f32 %v4980, %v4950
      %v4982 = vadd.f32 %v4981, %v4951
      %v4983 = vadd.f32 %v4982, %v4952
      %v4984 = vrot.slane %v4983, 4
      %v4985 = vadd.f32 %v4983, %v4984
      %v4986 = vrot.slane %v4985, 2
      %v4987 = vadd.f32 %v4985, %v4986
      %v4988 = vrot.slane %v4987, 1
      %v4989 = vadd.f32 %v4987, %v4988
      %vm4990 = vcmask 1040384
      %v4991 = vsel %vm4990, %v4920, %v4989
      %4992 = vst [vmem:[%s233] sm:$0x3] %v4991
      %s4993 = smul.u32 16, %s20
      %p4994 = scmp.lt.s32.totalorder %s19, 1
      %s4995 = scalar_select %p4994, %s19, 1
      %p4996 = scmp.lt.s32.totalorder %s4993, 15
      %s4997 = scalar_select %p4996, %s4993, 15
      %s4998 = smul.addr %s4997, 2
      %s4999 = smul.addr %s4995, 32
      %s5000 = sadd.s32 %s4998, %s4999
      %s5001 = smul.addr %s5000, 8
      %s5002 = scalar_lea.vmem %s2, %s5001
      %p5003 = scmp.lt.s32.totalorder %s19, 1
      %s5004 = scalar_select %p5003, %s19, 1
      %p5005 = scmp.lt.s32.totalorder %s20, 0
      %s5006 = scalar_select %p5005, %s20, 0
      %s5007 = sadd.s32 %s5006, %s5004
      %s5008 = smul.addr %s5007, 2
      %s5009 = scalar_lea.vmem %s3, %s5008
      // Predicated region
      $region29: #{up_transition_forward.6} parent=27 // pred_check
        %p5010 = pneg %p96
      $region30: #{up_transition_forward.6} parent=27 // pred_check_branch
        %5012 = sbr.rel (%p5010) target = $region32
      $region31: #{up_transition_forward.6} parent=27 // pred_region
        %s5013 = smul.u32 16, %s20
      $region32: #{up_transition_forward.6} parent=27 // pred_fallthru
        _
      // Predicated region
      $region33: #{up_transition_forward.6} parent=27 // pred_check
        %p5014 = pneg %p124
      $region34: #{up_transition_forward.6} parent=27 // pred_check_branch
        %5016 = sbr.rel (%p5014) target = $region36
      $region35: #{up_transition_forward.6} parent=27 // pred_region
        _
      $region36: #{up_transition_forward.6} parent=27 // pred_fallthru
        _
    $region28: #{up_transition_forward.6} parent=5 // pred_fallthru
      _
    %p5017 = scmp.le.s32.totalorder 2, %s10
    // Predicated region
    $region37: #{up_transition_forward.6} parent=5 // pred_check
      %p5018 = pneg %p5017
    $region38: #{up_transition_forward.6} parent=5 // pred_check_branch
      %5020 = sbr.rel (%p5018) target = $region40
    $region39: #{up_transition_forward.6} parent=5 // pred_region
      %s5021 = ssub.s32 %s10, 2
      // Predicated region
      $region41: #{up_transition_forward.6} parent=39 // pred_check
        %p5022 = pneg %p102
      $region42: #{up_transition_forward.6} parent=39 // pred_check_branch
        %5024 = sbr.rel (%p5022) target = $region44
      $region43: #{up_transition_forward.6} parent=39 // pred_region
        %s5025 = smul.u32 16, %s22
        %p5026 = scmp.lt.s32.totalorder %s21, 1
        %s5027 = scalar_select %p5026, %s21, 1
        %p5028 = scmp.lt.s32.totalorder %s5025, 15
        %s5029 = scalar_select %p5028, %s5025, 15
        %s5030 = smul.addr %s5029, 2
        %s5031 = smul.addr %s5027, 32
        %s5032 = sadd.s32 %s5030, %s5031
        %s5033 = smul.addr %s5032, 8
        %s5034 = scalar_lea.vmem %s2, %s5033
      $region44: #{up_transition_forward.6} parent=39 // pred_fallthru
        _
      // Predicated region
      $region45: #{up_transition_forward.6} parent=39 // pred_check
        %p5035 = pneg %p130
      $region46: #{up_transition_forward.6} parent=39 // pred_check_branch
        %5037 = sbr.rel (%p5035) target = $region48
      $region47: #{up_transition_forward.6} parent=39 // pred_region
        %p5038 = scmp.lt.s32.totalorder %s21, 1
        %s5039 = scalar_select %p5038, %s21, 1
        %p5040 = scmp.lt.s32.totalorder %s22, 0
        %s5041 = scalar_select %p5040, %s22, 0
        %s5042 = sadd.s32 %s5041, %s5039
        %s5043 = smul.addr %s5042, 2
        %s5044 = scalar_lea.vmem %s3, %s5043
      $region48: #{up_transition_forward.6} parent=39 // pred_fallthru
        _
    $region40: #{up_transition_forward.6} parent=5 // pred_fallthru
      _
  $region6: #{up_transition_forward.6} parent=0 // loop_footer
    %s14 = sadd.s32 1, %s10
  $region7: #{up_transition_forward.6} parent=0 // loop_footer_branch
    %9 = sbr.rel target = $region3
  $region8: #{up_transition_forward.6} parent=0 // loop_exit
    _

// kernel: up_transition_forward.8
$region0: #{up_transition_forward.8}
  #allocation0 [shape = 'u32[]', space=smem, size = 0x4, offset = 0x4, fixed_abs, tag = 'smem constant byte address 0x4 - core index']
  #allocation1 [shape = 'u32[144,128]{1,0:T(1,128)}', space=vmem, size = 0x12000, scoped, tag = 'internal scratch']
  %s0 = inlined_call_operand.vmem [shape: bf16[2,16,3,18,128], index: 0, kind: input, shape index: {}]
  %s1 = inlined_call_operand.vmem [shape: bf16[9,128,256], index: 1, kind: input, shape index: {}]
  %s2 = inlined_call_operand.vmem [shape: f32[2,16,16,256], index: 2, kind: output, shape index: {0}]
  %s3 = inlined_call_operand.vmem [shape: f32[2,1,2,256], index: 3, kind: output, shape index: {1}]
  %4 = xla_tuple %s2, %s3
  %s5 = sld [smem:[#allocation0]]
  $region49: #{up_transition_forward.8} parent=0
    _
  %s7 = ssub.s32 1, %s5
  %s8 = scalar_select 0, %s7, %s5
  loop: start=0, step=1, limit=4
  $region2: #{up_transition_forward.8} parent=0 // loop_pre_header
    _
  $region3: #{up_transition_forward.8} parent=0 // loop_header
    %s10 = sphi 0, %s14
    %p11 = scmp.ge.s32.totalorder %s10, 4
    %s17 = sphi 0, %s29
    %s18 = sphi 0, %s25
    %s19 = sphi 0, %s17
    %s20 = sphi 0, %s18
    %s21 = sphi 0, %s19
    %s22 = sphi 0, %s20
    %s34 = sphi 0, %s36
    %s37 = sphi 0, %s34
    %s38 = sphi 0, %s37
    %s54 = sphi 0, %s38
    %s58 = sphi 0, %s58
    %s60 = sphi 0, %s58
    %s61 = sphi 0, %s60
    %s75 = sphi 0, %s61
    %s83 = sphi 0, %s85
    %s86 = sphi 0, %s83
    %s87 = sphi 0, %s86
    %s103 = sphi 0, %s87
    %s111 = sphi 0, %s113
    %s114 = sphi 0, %s111
    %s115 = sphi 0, %s114
    %s131 = sphi 0, %s115
  $region4: #{up_transition_forward.8} parent=0 // loop_header_branch
    %13 = sbr.rel (%p11) target = $region8
  $region5: #{up_transition_forward.8} parent=0 // loop_body
    %s15 = ssub.s32 %s10, 1
    %s16 = ssub.s32 %s10, 2
    %s23 = sadd.s32 1, %s18
    %p24 = scmp.ge.s32.totalorder %s23, 1
    %s25 = scalar_select %p24, 0, %s23
    %s26 = sadd.s32 1, %s17
    %s27 = scalar_select %p24, %s26, %s17
    %p28 = scmp.ge.s32.totalorder %s27, 2
    %s29 = scalar_select %p28, 0, %s27
    %s30 = ssub.s32 %s17, %s29
    %s31 = ssub.s32 %s18, %s25
    %s32 = sor.u32 %s30, %s31
    %p33 = scmp.eq.s32.totalorder %s32, 0
    %s35 = sadd.s32 %s34, 1
    %s36 = scalar_select %p33, %s34, %s35
    %p39 = pneg %p33
    %p40 = scmp.eq.s32.totalorder %s10, 1
    %p41 = por %p39, %p40
    %p42 = scmp.ne.s32.totalorder %s34, %s37
    %p43 = scmp.eq.s32.totalorder %s10, 0
    %p44 = por %p42, %p43
    %p45 = scmp.ne.s32.totalorder %s34, %s37
    %p46 = scmp.eq.s32.totalorder %s15, 1
    %p47 = por %p45, %p46
    %p48 = scmp.ne.s32.totalorder %s37, %s38
    %p49 = scmp.eq.s32.totalorder %s15, 0
    %p50 = por %p48, %p49
    %p51 = scmp.ne.s32.totalorder %s37, %s38
    %p52 = scmp.eq.s32.totalorder %s16, 1
    %p53 = por %p51, %p52
    %p55 = scmp.ne.s32.totalorder %s38, %s54
    %p56 = scmp.eq.s32.totalorder %s16, 0
    %p57 = por %p55, %p56
    %s59 = sadd.s32 %s58, 1
    %p62 = scmp.eq.s32.totalorder %s10, 1
    %p63 = scmp.ne.s32.totalorder %s58, %s60
    %p64 = scmp.eq.s32.totalorder %s10, 0
    %p65 = por %p63, %p64
    %p66 = scmp.ne.s32.totalorder %s58, %s60
    %p67 = scmp.eq.s32.totalorder %s15, 1
    %p68 = por %p66, %p67
    %p69 = scmp.ne.s32.totalorder %s60, %s61
    %p70 = scmp.eq.s32.totalorder %s15, 0
    %p71 = por %p69, %p70
    %p72 = scmp.ne.s32.totalorder %s60, %s61
    %p73 = scmp.eq.s32.totalorder %s16, 1
    %p74 = por %p72, %p73
    %p76 = scmp.ne.s32.totalorder %s61, %s75
    %p77 = scmp.eq.s32.totalorder %s16, 0
    %p78 = por %p76, %p77
    %s79 = ssub.s32 %s17, %s29
    %s80 = ssub.s32 %s18, %s25
    %s81 = sor.u32 %s79, %s80
    %p82 = scmp.eq.s32.totalorder %s81, 0
    %s84 = sadd.s32 %s83, 1
    %s85 = scalar_select %p82, %s83, %s84
    %p88 = pneg %p82
    %p89 = scmp.eq.s32.totalorder %s10, 1
    %p90 = por %p88, %p89
    %p91 = scmp.ne.s32.totalorder %s83, %s86
    %p92 = scmp.eq.s32.totalorder %s10, 0
    %p93 = por %p91, %p92
    %p94 = scmp.ne.s32.totalorder %s83, %s86
    %p95 = scmp.eq.s32.totalorder %s15, 1
    %p96 = por %p94, %p95
    %p97 = scmp.ne.s32.totalorder %s86, %s87
    %p98 = scmp.eq.s32.totalorder %s15, 0
    %p99 = por %p97, %p98
    %p100 = scmp.ne.s32.totalorder %s86, %s87
    %p101 = scmp.eq.s32.totalorder %s16, 1
    %p102 = por %p100, %p101
    %p104 = scmp.ne.s32.totalorder %s87, %s103
    %p105 = scmp.eq.s32.totalorder %s16, 0
    %p106 = por %p104, %p105
    %s107 = ssub.s32 %s17, %s29
    %s108 = ssub.s32 %s18, %s25
    %s109 = sor.u32 %s107, %s108
    %p110 = scmp.eq.s32.totalorder %s109, 0
    %s112 = sadd.s32 %s111, 1
    %s113 = scalar_select %p110, %s111, %s112
    %p116 = pneg %p110
    %p117 = scmp.eq.s32.totalorder %s10, 1
    %p118 = por %p116, %p117
    %p119 = scmp.ne.s32.totalorder %s111, %s114
    %p120 = scmp.eq.s32.totalorder %s10, 0
    %p121 = por %p119, %p120
    %p122 = scmp.ne.s32.totalorder %s111, %s114
    %p123 = scmp.eq.s32.totalorder %s15, 1
    %p124 = por %p122, %p123
    %p125 = scmp.ne.s32.totalorder %s114, %s115
    %p126 = scmp.eq.s32.totalorder %s15, 0
    %p127 = por %p125, %p126
    %p128 = scmp.ne.s32.totalorder %s114, %s115
    %p129 = scmp.eq.s32.totalorder %s16, 1
    %p130 = por %p128, %p129
    %p132 = scmp.ne.s32.totalorder %s115, %s131
    %p133 = scmp.eq.s32.totalorder %s16, 0
    %p134 = por %p132, %p133
    %p135 = scmp.le.s32.totalorder 1, %s10
    %p136 = scmp.lt.s32.totalorder %s10, 3
    %p137 = pnand %p135, %p136
    %p138 = pneg %p137
    // Predicated region
    $region9: #{up_transition_forward.8} parent=5 // pred_check
      _
    $region10: #{up_transition_forward.8} parent=5 // pred_check_branch
      %140 = sbr.rel (%p137) target = $region12
    $region11: #{up_transition_forward.8} parent=5 // pred_region
      %s141 = ssub.s32 %s10, 1
      // Predicated region
      $region13: #{up_transition_forward.8} parent=11 // pred_check
        %p142 = pneg %p71
      $region14: #{up_transition_forward.8} parent=11 // pred_check_branch
        %144 = sbr.rel (%p142) target = $region16
      $region15: #{up_transition_forward.8} parent=11 // pred_region
        _
      $region16: #{up_transition_forward.8} parent=11 // pred_fallthru
        _
    $region12: #{up_transition_forward.8} parent=5 // pred_fallthru
      _
    %p145 = scmp.lt.s32.totalorder %s10, 2
    // Predicated region
    $region17: #{up_transition_forward.8} parent=5 // pred_check
      %p146 = pneg %p145
    $region18: #{up_transition_forward.8} parent=5 // pred_check_branch
      %148 = sbr.rel (%p146) target = $region20
    $region19: #{up_transition_forward.8} parent=5 // pred_region
      // Predicated region
      $region21: #{up_transition_forward.8} parent=19 // pred_check
        %p149 = pneg %p44
      $region22: #{up_transition_forward.8} parent=19 // pred_check_branch
        %151 = sbr.rel (%p149) target = $region24
      $region23: #{up_transition_forward.8} parent=19 // pred_region
        %s152 = smul.u32 16, %s18
        %p153 = scmp.lt.s32.totalorder %s17, 1
        %s154 = scalar_select %p153, %s17, 1
        %p155 = scmp.lt.s32.totalorder %s152, 15
        %s156 = scalar_select %p155, %s152, 15
        %s157 = smul.addr %s156, 9
        %s158 = smul.addr %s154, 144
        %s159 = sadd.s32 %s157, %s158
        %s160 = smul.addr %s159, 4
        %s161 = scalar_lea.vmem %s0, %s160
        %s162 = smul.u32 16, %s18
      $region24: #{up_transition_forward.8} parent=19 // pred_fallthru
        _
    $region20: #{up_transition_forward.8} parent=5 // pred_fallthru
      _
    %p163 = scmp.le.s32.totalorder 1, %s10
    %p164 = scmp.lt.s32.totalorder %s10, 3
    %p165 = pnand %p163, %p164
    %p166 = pneg %p165
    // Predicated region
    $region25: #{up_transition_forward.8} parent=5 // pred_check
      _
    $region26: #{up_transition_forward.8} parent=5 // pred_check_branch
      %168 = sbr.rel (%p165) target = $region28
    $region27: #{up_transition_forward.8} parent=5 // pred_region
      %s169 = ssub.s32 %s10, 1
      %s170 = smul.u32 16, %s20
      %p171 = scmp.lt.s32.totalorder %s19, 1
      %s172 = scalar_select %p171, %s19, 1
      %p173 = scmp.lt.s32.totalorder %s170, 15
      %s174 = scalar_select %p173, %s170, 15
      %s175 = smul.addr %s174, 9
      %s176 = smul.addr %s172, 144
      %s177 = sadd.s32 %s175, %s176
      %s178 = smul.addr %s177, 4
      %s179 = scalar_lea.vmem %s0, %s178
      %p180 = pneg %p50
      %p181 = pneg %p47
      %p182 = pneg %p71
      %p183 = pneg %p68
      %p184 = pneg %p99
      %p185 = pneg %p96
      %s186 = smul.u32 16, %s20
      %p187 = scmp.lt.s32.totalorder %s19, 1
      %s188 = scalar_select %p187, %s19, 1
      %p189 = scmp.lt.s32.totalorder %s186, 15
      %s190 = scalar_select %p189, %s186, 15
      %s191 = smul.addr %s190, 4
      %s192 = smul.addr %s188, 64
      %s193 = sadd.s32 %s191, %s192
      %s194 = smul.addr %s193, 8
      %s195 = scalar_lea.vmem %s2, %s194
      %p196 = pneg %p127
      %p197 = pneg %p124
      %p198 = scmp.lt.s32.totalorder %s19, 1
      %s199 = scalar_select %p198, %s19, 1
      %p200 = scmp.lt.s32.totalorder %s20, 0
      %s201 = scalar_select %p200, %s20, 0
      %s202 = smul.addr %s201, 2
      %s203 = smul.addr %s199, 2
      %s204 = sadd.s32 %s202, %s203
      %s205 = smul.addr %s204, 2
      %s206 = scalar_lea.vmem %s3, %s205
      %s207 = smul.u32 16, %s20
      %p208 = scmp.lt.s32.totalorder %s19, 1
      %s209 = scalar_select %p208, %s19, 1
      %p210 = scmp.lt.s32.totalorder %s207, 15
      %s211 = scalar_select %p210, %s207, 15
      %s212 = smul.addr %s211, 9
      %s213 = smul.addr %s209, 144
      %s214 = sadd.s32 %s212, %s213
      %s215 = smul.addr %s214, 4
      %s216 = scalar_lea.vmem %s0, %s215
      %s217 = smul.u32 16, %s20
      %s218 = smul.u32 16, %s20
      %p219 = scmp.lt.s32.totalorder %s19, 1
      %s220 = scalar_select %p219, %s19, 1
      %p221 = scmp.lt.s32.totalorder %s218, 15
      %s222 = scalar_select %p221, %s218, 15
      %s223 = smul.addr %s222, 4
      %s224 = smul.addr %s220, 64
      %s225 = sadd.s32 %s223, %s224
      %s226 = smul.addr %s225, 8
      %s227 = scalar_lea.vmem %s2, %s226
      %s228 = smul.u32 16, %s20
      %p229 = scmp.lt.s32.totalorder %s19, 1
      %s230 = scalar_select %p229, %s19, 1
      %p231 = scmp.lt.s32.totalorder %s20, 0
      %s232 = scalar_select %p231, %s20, 0
      %s233 = smul.addr %s232, 2
      %s234 = smul.addr %s230, 2
      %s235 = sadd.s32 %s233, %s234
      %s236 = smul.addr %s235, 2
      %s237 = scalar_lea.vmem %s3, %s236
      %v239 = vld [vmem:[%s216] sm:$0xf]
      %v240 = vld [vmem:[%s216 + $0x4] sm:$0xf]
      %v241 = vld [vmem:[%s216 + $0x8] sm:$0x1]
      %v242 = vld [vmem:[%s216 + $0x24] sm:$0xf]
      %v243 = vld [vmem:[%s216 + $0x28] sm:$0xf]
      %v244 = vld [vmem:[%s216 + $0x2c] sm:$0x1]
      %v245 = vld [vmem:[%s216 + $0x48] sm:$0xf]
      %v246 = vld [vmem:[%s216 + $0x4c] sm:$0xf]
      %v247 = vld [vmem:[%s216 + $0x50] sm:$0x1]
      %v248 = vld [vmem:[%s216 + $0x6c] sm:$0xf]
      %v249 = vld [vmem:[%s216 + $0x70] sm:$0xf]
      %v250 = vld [vmem:[%s216 + $0x74] sm:$0x1]
      %v251 = vld [vmem:[%s216 + $0x90] sm:$0xf]
      %v252 = vld [vmem:[%s216 + $0x94] sm:$0xf]
      %v253 = vld [vmem:[%s216 + $0x98] sm:$0x1]
      %v254 = vld [vmem:[%s216 + $0xb4] sm:$0xf]
      %v255 = vld [vmem:[%s216 + $0xb8] sm:$0xf]
      %v256 = vld [vmem:[%s216 + $0xbc] sm:$0x1]
      %v257 = vld [vmem:[%s216 + $0xd8] sm:$0xf]
      %v258 = vld [vmem:[%s216 + $0xdc] sm:$0xf]
      %v259 = vld [vmem:[%s216 + $0xe0] sm:$0x1]
      %v260 = vld [vmem:[%s216 + $0xfc] sm:$0xf]
      %v261 = vld [vmem:[%s216 + $0x100] sm:$0xf]
      %v262 = vld [vmem:[%s216 + $0x104] sm:$0x1]
      %v263 = vld [vmem:[%s216 + $0x120] sm:$0xf]
      %v264 = vld [vmem:[%s216 + $0x124] sm:$0xf]
      %v265 = vld [vmem:[%s216 + $0x128] sm:$0x1]
      %v266 = vld [vmem:[%s216 + $0x144] sm:$0xf]
      %v267 = vld [vmem:[%s216 + $0x148] sm:$0xf]
      %v268 = vld [vmem:[%s216 + $0x14c] sm:$0x1]
      %v269 = vld [vmem:[%s216 + $0x168] sm:$0xf]
      %v270 = vld [vmem:[%s216 + $0x16c] sm:$0xf]
      %v271 = vld [vmem:[%s216 + $0x170] sm:$0x1]
      %v272 = vld [vmem:[%s216 + $0x18c] sm:$0xf]
      %v273 = vld [vmem:[%s216 + $0x190] sm:$0xf]
      %v274 = vld [vmem:[%s216 + $0x194] sm:$0x1]
      %v275 = vld [vmem:[%s216 + $0x1b0] sm:$0xf]
      %v276 = vld [vmem:[%s216 + $0x1b4] sm:$0xf]
      %v277 = vld [vmem:[%s216 + $0x1b8] sm:$0x1]
      %v278 = vld [vmem:[%s216 + $0x1d4] sm:$0xf]
      %v279 = vld [vmem:[%s216 + $0x1d8] sm:$0xf]
      %v280 = vld [vmem:[%s216 + $0x1dc] sm:$0x1]
      %v281 = vld [vmem:[%s216 + $0x1f8] sm:$0xf]
      %v282 = vld [vmem:[%s216 + $0x1fc] sm:$0xf]
      %v283 = vld [vmem:[%s216 + $0x200] sm:$0x1]
      %v284 = vld [vmem:[%s216 + $0x21c] sm:$0xf]
      %v285 = vld [vmem:[%s216 + $0x220] sm:$0xf]
      %v286 = vld [vmem:[%s216 + $0x224] sm:$0x1]
      %v287 = vld [vmem:[%s1] sm:$0xff]
      %v288 = vld [vmem:[%s1 + $0x8] sm:$0xff]
      %v289 = vld [vmem:[%s1 + $0x10] sm:$0xff]
      %v290 = vld [vmem:[%s1 + $0x18] sm:$0xff]
      %v291 = vld [vmem:[%s1 + $0x20] sm:$0xff]
      %v292 = vld [vmem:[%s1 + $0x28] sm:$0xff]
      %v293 = vld [vmem:[%s1 + $0x30] sm:$0xff]
      %v294 = vld [vmem:[%s1 + $0x38] sm:$0xff]
      %v295 = vld [vmem:[%s1 + $0x40] sm:$0xff]
      %v296 = vld [vmem:[%s1 + $0x48] sm:$0xff]
      %v297 = vld [vmem:[%s1 + $0x50] sm:$0xff]
      %v298 = vld [vmem:[%s1 + $0x58] sm:$0xff]
      %v299 = vld [vmem:[%s1 + $0x60] sm:$0xff]
      %v300 = vld [vmem:[%s1 + $0x68] sm:$0xff]
      %v301 = vld [vmem:[%s1 + $0x70] sm:$0xff]
      %v302 = vld [vmem:[%s1 + $0x78] sm:$0xff]
      %vm303 = vsmask.f32 3328
      %vm304 = vsmask.f32 7440
      %vm305 = vmor %vm303, %vm304
      %v307 = vshrl.u32 %v239, 16
      %v309 = vrot.slane %v307, 4
      %v310 = vshll.u32 %v239, 16
      %v312 = vrot.slane %v310, 5
      %v313 = vor.u32 %v309, %v312
      %v314 = vrot.slane %v313, 4
      %v316 = vshll.u32 %v240, 16
      %v318 = vrot.slane %v316, 5
      %v319 = vsel %vm305, %v314, %v318
      %v320 = vshrl.u32 %v240, 16
      %v322 = vrot.slane %v320, 4
      %v323 = vor.u32 %v322, %v318
      %v324 = vrot.slane %v323, 4
      %v326 = vshll.u32 %v241, 16
      %v328 = vrot.slane %v326, 5
      %v329 = vsel %vm305, %v324, %v328
      %v331 = vshrl.u32 %v242, 16
      %v333 = vrot.slane %v331, 4
      %v334 = vshll.u32 %v242, 16
      %v336 = vrot.slane %v334, 5
      %v337 = vor.u32 %v333, %v336
      %v338 = vrot.slane %v337, 4
      %v340 = vshll.u32 %v243, 16
      %v342 = vrot.slane %v340, 5
      %v343 = vsel %vm305, %v338, %v342
      %v344 = vshrl.u32 %v243, 16
      %v346 = vrot.slane %v344, 4
      %v347 = vor.u32 %v346, %v342
      %v348 = vrot.slane %v347, 4
      %v350 = vshll.u32 %v244, 16
      %v352 = vrot.slane %v350, 5
      %v353 = vsel %vm305, %v348, %v352
      %v355 = vshrl.u32 %v245, 16
      %v357 = vrot.slane %v355, 4
      %v358 = vshll.u32 %v245, 16
      %v360 = vrot.slane %v358, 5
      %v361 = vor.u32 %v357, %v360
      %v362 = vrot.slane %v361, 4
      %v364 = vshll.u32 %v246, 16
      %v366 = vrot.slane %v364, 5
      %v367 = vsel %vm305, %v362, %v366
      %v368 = vshrl.u32 %v246, 16
      %v370 = vrot.slane %v368, 4
      %v371 = vor.u32 %v370, %v366
      %v372 = vrot.slane %v371, 4
      %v374 = vshll.u32 %v247, 16
      %v376 = vrot.slane %v374, 5
      %v377 = vsel %vm305, %v372, %v376
      %v379 = vshrl.u32 %v248, 16
      %v381 = vrot.slane %v379, 4
      %v382 = vshll.u32 %v248, 16
      %v384 = vrot.slane %v382, 5
      %v385 = vor.u32 %v381, %v384
      %v386 = vrot.slane %v385, 4
      %v388 = vshll.u32 %v249, 16
      %v390 = vrot.slane %v388, 5
      %v391 = vsel %vm305, %v386, %v390
      %v392 = vshrl.u32 %v249, 16
      %v394 = vrot.slane %v392, 4
      %v395 = vor.u32 %v394, %v390
      %v396 = vrot.slane %v395, 4
      %v398 = vshll.u32 %v250, 16
      %v400 = vrot.slane %v398, 5
      %v401 = vsel %vm305, %v396, %v400
      %v403 = vshrl.u32 %v251, 16
      %v405 = vrot.slane %v403, 4
      %v406 = vshll.u32 %v251, 16
      %v408 = vrot.slane %v406, 5
      %v409 = vor.u32 %v405, %v408
      %v410 = vrot.slane %v409, 4
      %v412 = vshll.u32 %v252, 16
      %v414 = vrot.slane %v412, 5
      %v415 = vsel %vm305, %v410, %v414
      %v416 = vshrl.u32 %v252, 16
      %v418 = vrot.slane %v416, 4
      %v419 = vor.u32 %v418, %v414
      %v420 = vrot.slane %v419, 4
      %v422 = vshll.u32 %v253, 16
      %v424 = vrot.slane %v422, 5
      %v425 = vsel %vm305, %v420, %v424
      %v427 = vshrl.u32 %v254, 16
      %v429 = vrot.slane %v427, 4
      %v430 = vshll.u32 %v254, 16
      %v432 = vrot.slane %v430, 5
      %v433 = vor.u32 %v429, %v432
      %v434 = vrot.slane %v433, 4
      %v436 = vshll.u32 %v255, 16
      %v438 = vrot.slane %v436, 5
      %v439 = vsel %vm305, %v434, %v438
      %v440 = vshrl.u32 %v255, 16
      %v442 = vrot.slane %v440, 4
      %v443 = vor.u32 %v442, %v438
      %v444 = vrot.slane %v443, 4
      %v446 = vshll.u32 %v256, 16
      %v448 = vrot.slane %v446, 5
      %v449 = vsel %vm305, %v444, %v448
      %v451 = vshrl.u32 %v257, 16
      %v453 = vrot.slane %v451, 4
      %v454 = vshll.u32 %v257, 16
      %v456 = vrot.slane %v454, 5
      %v457 = vor.u32 %v453, %v456
      %v458 = vrot.slane %v457, 4
      %v460 = vshll.u32 %v258, 16
      %v462 = vrot.slane %v460, 5
      %v463 = vsel %vm305, %v458, %v462
      %v464 = vshrl.u32 %v258, 16
      %v466 = vrot.slane %v464, 4
      %v467 = vor.u32 %v466, %v462
      %v468 = vrot.slane %v467, 4
      %v470 = vshll.u32 %v259, 16
      %v472 = vrot.slane %v470, 5
      %v473 = vsel %vm305, %v468, %v472
      %v475 = vshrl.u32 %v260, 16
      %v477 = vrot.slane %v475, 4
      %v478 = vshll.u32 %v260, 16
      %v480 = vrot.slane %v478, 5
      %v481 = vor.u32 %v477, %v480
      %v482 = vrot.slane %v481, 4
      %v484 = vshll.u32 %v261, 16
      %v486 = vrot.slane %v484, 5
      %v487 = vsel %vm305, %v482, %v486
      %v488 = vshrl.u32 %v261, 16
      %v490 = vrot.slane %v488, 4
      %v491 = vor.u32 %v490, %v486
      %v492 = vrot.slane %v491, 4
      %v494 = vshll.u32 %v262, 16
      %v496 = vrot.slane %v494, 5
      %v497 = vsel %vm305, %v492, %v496
      %v499 = vshrl.u32 %v263, 16
      %v501 = vrot.slane %v499, 4
      %v502 = vshll.u32 %v263, 16
      %v504 = vrot.slane %v502, 5
      %v505 = vor.u32 %v501, %v504
      %v506 = vrot.slane %v505, 4
      %v508 = vshll.u32 %v264, 16
      %v510 = vrot.slane %v508, 5
      %v511 = vsel %vm305, %v506, %v510
      %v512 = vshrl.u32 %v264, 16
      %v514 = vrot.slane %v512, 4
      %v515 = vor.u32 %v514, %v510
      %v516 = vrot.slane %v515, 4
      %v518 = vshll.u32 %v265, 16
      %v520 = vrot.slane %v518, 5
      %v521 = vsel %vm305, %v516, %v520
      %v523 = vshrl.u32 %v266, 16
      %v525 = vrot.slane %v523, 4
      %v526 = vshll.u32 %v266, 16
      %v528 = vrot.slane %v526, 5
      %v529 = vor.u32 %v525, %v528
      %v530 = vrot.slane %v529, 4
      %v532 = vshll.u32 %v267, 16
      %v534 = vrot.slane %v532, 5
      %v535 = vsel %vm305, %v530, %v534
      %v536 = vshrl.u32 %v267, 16
      %v538 = vrot.slane %v536, 4
      %v539 = vor.u32 %v538, %v534
      %v540 = vrot.slane %v539, 4
      %v542 = vshll.u32 %v268, 16
      %v544 = vrot.slane %v542, 5
      %v545 = vsel %vm305, %v540, %v544
      %v547 = vshrl.u32 %v269, 16
      %v549 = vrot.slane %v547, 4
      %v550 = vshll.u32 %v269, 16
      %v552 = vrot.slane %v550, 5
      %v553 = vor.u32 %v549, %v552
      %v554 = vrot.slane %v553, 4
      %v556 = vshll.u32 %v270, 16
      %v558 = vrot.slane %v556, 5
      %v559 = vsel %vm305, %v554, %v558
      %v560 = vshrl.u32 %v270, 16
      %v562 = vrot.slane %v560, 4
      %v563 = vor.u32 %v562, %v558
      %v564 = vrot.slane %v563, 4
      %v566 = vshll.u32 %v271, 16
      %v568 = vrot.slane %v566, 5
      %v569 = vsel %vm305, %v564, %v568
      %v571 = vshrl.u32 %v272, 16
      %v573 = vrot.slane %v571, 4
      %v574 = vshll.u32 %v272, 16
      %v576 = vrot.slane %v574, 5
      %v577 = vor.u32 %v573, %v576
      %v578 = vrot.slane %v577, 4
      %v580 = vshll.u32 %v273, 16
      %v582 = vrot.slane %v580, 5
      %v583 = vsel %vm305, %v578, %v582
      %v584 = vshrl.u32 %v273, 16
      %v586 = vrot.slane %v584, 4
      %v587 = vor.u32 %v586, %v582
      %v588 = vrot.slane %v587, 4
      %v590 = vshll.u32 %v274, 16
      %v592 = vrot.slane %v590, 5
      %v593 = vsel %vm305, %v588, %v592
      %v595 = vshrl.u32 %v275, 16
      %v597 = vrot.slane %v595, 4
      %v598 = vshll.u32 %v275, 16
      %v600 = vrot.slane %v598, 5
      %v601 = vor.u32 %v597, %v600
      %v602 = vrot.slane %v601, 4
      %v604 = vshll.u32 %v276, 16
      %v606 = vrot.slane %v604, 5
      %v607 = vsel %vm305, %v602, %v606
      %v608 = vshrl.u32 %v276, 16
      %v610 = vrot.slane %v608, 4
      %v611 = vor.u32 %v610, %v606
      %v612 = vrot.slane %v611, 4
      %v614 = vshll.u32 %v277, 16
      %v616 = vrot.slane %v614, 5
      %v617 = vsel %vm305, %v612, %v616
      %v619 = vshrl.u32 %v278, 16
      %v621 = vrot.slane %v619, 4
      %v622 = vshll.u32 %v278, 16
      %v624 = vrot.slane %v622, 5
      %v625 = vor.u32 %v621, %v624
      %v626 = vrot.slane %v625, 4
      %v628 = vshll.u32 %v279, 16
      %v630 = vrot.slane %v628, 5
      %v631 = vsel %vm305, %v626, %v630
      %v632 = vshrl.u32 %v279, 16
      %v634 = vrot.slane %v632, 4
      %v635 = vor.u32 %v634, %v630
      %v636 = vrot.slane %v635, 4
      %v638 = vshll.u32 %v280, 16
      %v640 = vrot.slane %v638, 5
      %v641 = vsel %vm305, %v636, %v640
      %v643 = vshrl.u32 %v281, 16
      %v645 = vrot.slane %v643, 4
      %v646 = vshll.u32 %v281, 16
      %v648 = vrot.slane %v646, 5
      %v649 = vor.u32 %v645, %v648
      %v650 = vrot.slane %v649, 4
      %v652 = vshll.u32 %v282, 16
      %v654 = vrot.slane %v652, 5
      %v655 = vsel %vm305, %v650, %v654
      %v656 = vshrl.u32 %v282, 16
      %v658 = vrot.slane %v656, 4
      %v659 = vor.u32 %v658, %v654
      %v660 = vrot.slane %v659, 4
      %v662 = vshll.u32 %v283, 16
      %v664 = vrot.slane %v662, 5
      %v665 = vsel %vm305, %v660, %v664
      %v667 = vshrl.u32 %v284, 16
      %v669 = vrot.slane %v667, 4
      %v670 = vshll.u32 %v284, 16
      %v672 = vrot.slane %v670, 5
      %v673 = vor.u32 %v669, %v672
      %v674 = vrot.slane %v673, 4
      %v676 = vshll.u32 %v285, 16
      %v678 = vrot.slane %v676, 5
      %v679 = vsel %vm305, %v674, %v678
      %v680 = vshrl.u32 %v285, 16
      %v682 = vrot.slane %v680, 4
      %v683 = vor.u32 %v682, %v678
      %v684 = vrot.slane %v683, 4
      %v686 = vshll.u32 %v286, 16
      %v688 = vrot.slane %v686, 5
      %v689 = vsel %vm305, %v684, %v688
      %s690 = scalar_lea.vmem %s1, 128
      %v691 = vld [vmem:[%s690] sm:$0xff]
      %v692 = vld [vmem:[%s690 + $0x8] sm:$0xff]
      %v693 = vld [vmem:[%s690 + $0x10] sm:$0xff]
      %v694 = vld [vmem:[%s690 + $0x18] sm:$0xff]
      %v695 = vld [vmem:[%s690 + $0x20] sm:$0xff]
      %v696 = vld [vmem:[%s690 + $0x28] sm:$0xff]
      %v697 = vld [vmem:[%s690 + $0x30] sm:$0xff]
      %v698 = vld [vmem:[%s690 + $0x38] sm:$0xff]
      %v699 = vld [vmem:[%s690 + $0x40] sm:$0xff]
      %v700 = vld [vmem:[%s690 + $0x48] sm:$0xff]
      %v701 = vld [vmem:[%s690 + $0x50] sm:$0xff]
      %v702 = vld [vmem:[%s690 + $0x58] sm:$0xff]
      %v703 = vld [vmem:[%s690 + $0x60] sm:$0xff]
      %v704 = vld [vmem:[%s690 + $0x68] sm:$0xff]
      %v705 = vld [vmem:[%s690 + $0x70] sm:$0xff]
      %v706 = vld [vmem:[%s690 + $0x78] sm:$0xff]
      %v707 = vunpack.c.l.b16 %v319
      %v708 = vunpack.c.l.b16 %v329
      %v709 = vunpack.c.l.b16 %v343
      %v710 = vunpack.c.l.b16 %v353
      %v711 = vunpack.c.l.b16 %v367
      %v712 = vunpack.c.l.b16 %v377
      %v713 = vunpack.c.l.b16 %v391
      %v714 = vunpack.c.l.b16 %v401
      %v715 = vunpack.c.l.b16 %v415
      %v716 = vunpack.c.l.b16 %v425
      %v717 = vunpack.c.l.b16 %v439
      %v718 = vunpack.c.l.b16 %v449
      %v719 = vunpack.c.l.b16 %v463
      %v720 = vunpack.c.l.b16 %v473
      %v721 = vunpack.c.l.b16 %v487
      %v722 = vunpack.c.l.b16 %v497
      %v723 = vunpack.c.l.b16 %v511
      %v724 = vunpack.c.l.b16 %v521
      %v725 = vunpack.c.l.b16 %v535
      %v726 = vunpack.c.l.b16 %v545
      %v727 = vunpack.c.l.b16 %v559
      %v728 = vunpack.c.l.b16 %v569
      %v729 = vunpack.c.l.b16 %v583
      %v730 = vunpack.c.l.b16 %v593
      %v731 = vunpack.c.l.b16 %v607
      %v732 = vunpack.c.l.b16 %v617
      %v733 = vunpack.c.l.b16 %v631
      %v734 = vunpack.c.l.b16 %v641
      %v735 = vunpack.c.l.b16 %v655
      %v736 = vunpack.c.l.b16 %v665
      %v737 = vunpack.c.l.b16 %v679
      %v738 = vunpack.c.l.b16 %v689
      %v739 = vpack.c.b16 %v708, %v707
      %v740 = vpack.c.b16 %v710, %v709
      %v741 = vpack.c.b16 %v712, %v711
      %v742 = vpack.c.b16 %v714, %v713
      %v743 = vpack.c.b16 %v716, %v715
      %v744 = vpack.c.b16 %v718, %v717
      %v745 = vpack.c.b16 %v720, %v719
      %v746 = vpack.c.b16 %v722, %v721
      %v747 = vpack.c.b16 %v724, %v723
      %v748 = vpack.c.b16 %v726, %v725
      %v749 = vpack.c.b16 %v728, %v727
      %v750 = vpack.c.b16 %v730, %v729
      %v751 = vpack.c.b16 %v732, %v731
      %v752 = vpack.c.b16 %v734, %v733
      %v753 = vpack.c.b16 %v736, %v735
      %v754 = vpack.c.b16 %v738, %v737
      %v787 = vunpack.c.l.b16 %v691
      %v788 = vunpack.c.h.b16 %v691
      %v789 = vunpack.c.l.b16 %v692
      %v790 = vunpack.c.h.b16 %v692
      %v791 = vunpack.c.l.b16 %v693
      %v792 = vunpack.c.h.b16 %v693
      %v793 = vunpack.c.l.b16 %v694
      %v794 = vunpack.c.h.b16 %v694
      %v795 = vunpack.c.l.b16 %v695
      %v796 = vunpack.c.h.b16 %v695
      %v797 = vunpack.c.l.b16 %v696
      %v798 = vunpack.c.h.b16 %v696
      %v799 = vunpack.c.l.b16 %v697
      %v800 = vunpack.c.h.b16 %v697
      %v801 = vunpack.c.l.b16 %v698
      %v802 = vunpack.c.h.b16 %v698
      %v803 = vunpack.c.l.b16 %v699
      %v804 = vunpack.c.h.b16 %v699
      %v805 = vunpack.c.l.b16 %v700
      %v806 = vunpack.c.h.b16 %v700
      %v807 = vunpack.c.l.b16 %v701
      %v808 = vunpack.c.h.b16 %v701
      %v809 = vunpack.c.l.b16 %v702
      %v810 = vunpack.c.h.b16 %v702
      %v811 = vunpack.c.l.b16 %v703
      %v812 = vunpack.c.h.b16 %v703
      %v813 = vunpack.c.l.b16 %v704
      %v814 = vunpack.c.h.b16 %v704
      %v815 = vunpack.c.l.b16 %v705
      %v816 = vunpack.c.h.b16 %v705
      %v817 = vunpack.c.l.b16 %v706
      %v818 = vunpack.c.h.b16 %v706
      %v819 = vpack.c.b16 %v789, %v787
      %v820 = vpack.c.b16 %v790, %v788
      %v821 = vpack.c.b16 %v793, %v791
      %v822 = vpack.c.b16 %v794, %v792
      %v823 = vpack.c.b16 %v797, %v795
      %v824 = vpack.c.b16 %v798, %v796
      %v825 = vpack.c.b16 %v801, %v799
      %v826 = vpack.c.b16 %v802, %v800
      %v827 = vpack.c.b16 %v805, %v803
      %v828 = vpack.c.b16 %v806, %v804
      %v829 = vpack.c.b16 %v809, %v807
      %v830 = vpack.c.b16 %v810, %v808
      %v831 = vpack.c.b16 %v813, %v811
      %v832 = vpack.c.b16 %v814, %v812
      %v833 = vpack.c.b16 %v817, %v815
      %v834 = vpack.c.b16 %v818, %v816
      %851 = vmatprep.subr.bf16.mxu0 %v820
      %852 = vmatpush1.bf16.msra.mxu0 %v819
      %853 = vmatprep.subr.bf16.mxu0 %v822
      %854 = vmatpush1.bf16.msra.mxu0 %v821
      %855 = vmatprep.subr.bf16.mxu0 %v824
      %856 = vmatpush1.bf16.msra.mxu0 %v823
      %857 = vmatprep.subr.bf16.mxu0 %v826
      %858 = vmatpush1.bf16.msra.mxu0 %v825
      %859 = vmatprep.subr.bf16.mxu0 %v828
      %860 = vmatpush1.bf16.msra.mxu0 %v827
      %861 = vmatprep.subr.bf16.mxu0 %v830
      %862 = vmatpush1.bf16.msra.mxu0 %v829
      %863 = vmatprep.subr.bf16.mxu0 %v832
      %864 = vmatpush1.bf16.msra.mxu0 %v831
      %865 = vmatprep.subr.bf16.mxu0 %v834
      %866 = vmatpush1.bf16.msra.mxu0 %v833
      %867 = vmatprep.subr.bf16.mxu0 0
      %868 = vmatpush1.bf16.msra.mxu0 0
      %869 = vmatprep.subr.bf16.mxu0 0
      %870 = vmatpush1.bf16.msra.mxu0 0
      %871 = vmatprep.subr.bf16.mxu0 0
      %872 = vmatpush1.bf16.msra.mxu0 0
      %873 = vmatprep.subr.bf16.mxu0 0
      %874 = vmatpush1.bf16.msra.mxu0 0
      %875 = vmatprep.subr.bf16.mxu0 0
      %876 = vmatpush1.bf16.msra.mxu0 0
      %877 = vmatprep.subr.bf16.mxu0 0
      %878 = vmatpush1.bf16.msra.mxu0 0
      %879 = vmatprep.subr.bf16.mxu0 0
      %880 = vmatpush1.bf16.msra.mxu0 0
      %881 = vmatprep.subr.bf16.mxu0 0
      %882 = vmatpush1.bf16.msra.mxu0 0
      %883 = vmatprep.mubr.bf16.mxu0 0
      %884 = vmatmul.mubr.bf16.gmra.mrb[0].mxu0 %v739
      %v885 = vpop.f32.mrb[0].mxu0
      %v886 = vadd.f32 0.0, %v885
      %v887 = vpop.f32.mrb[0].mxu0
      %v888 = vadd.f32 0.0, %v887
      %v889 = vpop.f32.mrb[0].mxu0
      %v890 = vadd.f32 0.0, %v889
      %v891 = vpop.f32.mrb[0].mxu0
      %v892 = vadd.f32 0.0, %v891
      %893 = vmatprep.mubr.bf16.mxu0 0
      %894 = vmatmul.mubr.bf16.gmra.mrb[0].mxu0 %v740
      %v895 = vpop.f32.mrb[0].mxu0
      %v896 = vadd.f32 0.0, %v895
      %v897 = vpop.f32.mrb[0].mxu0
      %v898 = vadd.f32 0.0, %v897
      %v899 = vpop.f32.mrb[0].mxu0
      %v900 = vadd.f32 0.0, %v899
      %v901 = vpop.f32.mrb[0].mxu0
      %v902 = vadd.f32 0.0, %v901
      %903 = vmatprep.mubr.bf16.mxu0 0
      %904 = vmatmul.mubr.bf16.gmra.mrb[0].mxu0 %v741
      %v905 = vpop.f32.mrb[0].mxu0
      %v906 = vadd.f32 0.0, %v905
      %v907 = vpop.f32.mrb[0].mxu0
      %v908 = vadd.f32 0.0, %v907
      %v909 = vpop.f32.mrb[0].mxu0
      %v910 = vadd.f32 0.0, %v909
      %v911 = vpop.f32.mrb[0].mxu0
      %v912 = vadd.f32 0.0, %v911
      %913 = vmatprep.mubr.bf16.mxu0 0
      %914 = vmatmul.mubr.bf16.gmra.mrb[0].mxu0 %v742
      %v915 = vpop.f32.mrb[0].mxu0
      %v916 = vadd.f32 0.0, %v915
      %v917 = vpop.f32.mrb[0].mxu0
      %v918 = vadd.f32 0.0, %v917
      %v919 = vpop.f32.mrb[0].mxu0
      %v920 = vadd.f32 0.0, %v919
      %v921 = vpop.f32.mrb[0].mxu0
      %v922 = vadd.f32 0.0, %v921
      %923 = vmatprep.mubr.bf16.mxu0 0
      %924 = vmatmul.mubr.bf16.gmra.mrb[0].mxu0 %v743
      %v925 = vpop.f32.mrb[0].mxu0
      %v926 = vadd.f32 0.0, %v925
      %v927 = vpop.f32.mrb[0].mxu0
      %v928 = vadd.f32 0.0, %v927
      %v929 = vpop.f32.mrb[0].mxu0
      %v930 = vadd.f32 0.0, %v929
      %v931 = vpop.f32.mrb[0].mxu0
      %v932 = vadd.f32 0.0, %v931
      %933 = vmatprep.mubr.bf16.mxu0 0
      %934 = vmatmul.mubr.bf16.gmra.mrb[0].mxu0 %v744
      %v935 = vpop.f32.mrb[0].mxu0
      %v936 = vadd.f32 0.0, %v935
      %v937 = vpop.f32.mrb[0].mxu0
      %v938 = vadd.f32 0.0, %v937
      %v939 = vpop.f32.mrb[0].mxu0
      %v940 = vadd.f32 0.0, %v939
      %v941 = vpop.f32.mrb[0].mxu0
      %v942 = vadd.f32 0.0, %v941
      %943 = vmatprep.mubr.bf16.mxu0 0
      %944 = vmatmul.mubr.bf16.gmra.mrb[0].mxu0 %v745
      %v945 = vpop.f32.mrb[0].mxu0
      %v946 = vadd.f32 0.0, %v945
      %v947 = vpop.f32.mrb[0].mxu0
      %v948 = vadd.f32 0.0, %v947
      %v949 = vpop.f32.mrb[0].mxu0
      %v950 = vadd.f32 0.0, %v949
      %v951 = vpop.f32.mrb[0].mxu0
      %v952 = vadd.f32 0.0, %v951
      %953 = vmatprep.mubr.bf16.mxu0 0
      %954 = vmatmul.mubr.bf16.gmra.mrb[0].mxu0 %v746
      %v955 = vpop.f32.mrb[0].mxu0
      %v956 = vadd.f32 0.0, %v955
      %v957 = vpop.f32.mrb[0].mxu0
      %v958 = vadd.f32 0.0, %v957
      %v959 = vpop.f32.mrb[0].mxu0
      %v960 = vadd.f32 0.0, %v959
      %v961 = vpop.f32.mrb[0].mxu0
      %v962 = vadd.f32 0.0, %v961
      %963 = vmatprep.mubr.bf16.mxu0 0
      %964 = vmatmul.mubr.bf16.gmra.mrb[0].mxu0 %v747
      %v965 = vpop.f32.mrb[0].mxu0
      %v966 = vadd.f32 0.0, %v965
      %v967 = vpop.f32.mrb[0].mxu0
      %v968 = vadd.f32 0.0, %v967
      %v969 = vpop.f32.mrb[0].mxu0
      %v970 = vadd.f32 0.0, %v969
      %v971 = vpop.f32.mrb[0].mxu0
      %v972 = vadd.f32 0.0, %v971
      %973 = vmatprep.mubr.bf16.mxu0 0
      %974 = vmatmul.mubr.bf16.gmra.mrb[0].mxu0 %v748
      %v975 = vpop.f32.mrb[0].mxu0
      %v976 = vadd.f32 0.0, %v975
      %v977 = vpop.f32.mrb[0].mxu0
      %v978 = vadd.f32 0.0, %v977
      %v979 = vpop.f32.mrb[0].mxu0
      %v980 = vadd.f32 0.0, %v979
      %v981 = vpop.f32.mrb[0].mxu0
      %v982 = vadd.f32 0.0, %v981
      %983 = vmatprep.mubr.bf16.mxu0 0
      %984 = vmatmul.mubr.bf16.gmra.mrb[0].mxu0 %v749
      %v985 = vpop.f32.mrb[0].mxu0
      %v986 = vadd.f32 0.0, %v985
      %v987 = vpop.f32.mrb[0].mxu0
      %v988 = vadd.f32 0.0, %v987
      %v989 = vpop.f32.mrb[0].mxu0
      %v990 = vadd.f32 0.0, %v989
      %v991 = vpop.f32.mrb[0].mxu0
      %v992 = vadd.f32 0.0, %v991
      %993 = vmatprep.mubr.bf16.mxu0 0
      %994 = vmatmul.mubr.bf16.gmra.mrb[0].mxu0 %v750
      %v995 = vpop.f32.mrb[0].mxu0
      %v996 = vadd.f32 0.0, %v995
      %v997 = vpop.f32.mrb[0].mxu0
      %v998 = vadd.f32 0.0, %v997
      %v999 = vpop.f32.mrb[0].mxu0
      %v1000 = vadd.f32 0.0, %v999
      %v1001 = vpop.f32.mrb[0].mxu0
      %v1002 = vadd.f32 0.0, %v1001
      %1003 = vmatprep.mubr.bf16.mxu0 0
      %1004 = vmatmul.mubr.bf16.gmra.mrb[0].mxu0 %v751
      %v1005 = vpop.f32.mrb[0].mxu0
      %v1006 = vadd.f32 0.0, %v1005
      %v1007 = vpop.f32.mrb[0].mxu0
      %v1008 = vadd.f32 0.0, %v1007
      %v1009 = vpop.f32.mrb[0].mxu0
      %v1010 = vadd.f32 0.0, %v1009
      %v1011 = vpop.f32.mrb[0].mxu0
      %v1012 = vadd.f32 0.0, %v1011
      %1013 = vmatprep.mubr.bf16.mxu0 0
      %1014 = vmatmul.mubr.bf16.gmra.mrb[0].mxu0 %v752
      %v1015 = vpop.f32.mrb[0].mxu0
      %v1016 = vadd.f32 0.0, %v1015
      %v1017 = vpop.f32.mrb[0].mxu0
      %v1018 = vadd.f32 0.0, %v1017
      %v1019 = vpop.f32.mrb[0].mxu0
      %v1020 = vadd.f32 0.0, %v1019
      %v1021 = vpop.f32.mrb[0].mxu0
      %v1022 = vadd.f32 0.0, %v1021
      %1023 = vmatprep.mubr.bf16.mxu0 0
      %1024 = vmatmul.mubr.bf16.gmra.mrb[0].mxu0 %v753
      %v1025 = vpop.f32.mrb[0].mxu0
      %v1026 = vadd.f32 0.0, %v1025
      %v1027 = vpop.f32.mrb[0].mxu0
      %v1028 = vadd.f32 0.0, %v1027
      %v1029 = vpop.f32.mrb[0].mxu0
      %v1030 = vadd.f32 0.0, %v1029
      %v1031 = vpop.f32.mrb[0].mxu0
      %v1032 = vadd.f32 0.0, %v1031
      %1033 = vmatprep.mubr.bf16.mxu0 0
      %1034 = vmatmul.mubr.bf16.gmra.mrb[0].mxu0 %v754
      %v1035 = vpop.f32.mrb[0].mxu0
      %v1036 = vadd.f32 0.0, %v1035
      %v1037 = vpop.f32.mrb[0].mxu0
      %v1038 = vadd.f32 0.0, %v1037
      %v1039 = vpop.f32.mrb[0].mxu0
      %v1040 = vadd.f32 0.0, %v1039
      %v1041 = vpop.f32.mrb[0].mxu0
      %v1042 = vadd.f32 0.0, %v1041
      %1043 = vdwg.mxu0
      %v1076 = vunpack.c.l.b16 %v239
      %v1077 = vunpack.c.l.b16 %v240
      %v1078 = vunpack.c.l.b16 %v242
      %v1079 = vunpack.c.l.b16 %v243
      %v1080 = vunpack.c.l.b16 %v245
      %v1081 = vunpack.c.l.b16 %v246
      %v1082 = vunpack.c.l.b16 %v248
      %v1083 = vunpack.c.l.b16 %v249
      %v1084 = vunpack.c.l.b16 %v251
      %v1085 = vunpack.c.l.b16 %v252
      %v1086 = vunpack.c.l.b16 %v254
      %v1087 = vunpack.c.l.b16 %v255
      %v1088 = vunpack.c.l.b16 %v257
      %v1089 = vunpack.c.l.b16 %v258
      %v1090 = vunpack.c.l.b16 %v260
      %v1091 = vunpack.c.l.b16 %v261
      %v1092 = vunpack.c.l.b16 %v263
      %v1093 = vunpack.c.l.b16 %v264
      %v1094 = vunpack.c.l.b16 %v266
      %v1095 = vunpack.c.l.b16 %v267
      %v1096 = vunpack.c.l.b16 %v269
      %v1097 = vunpack.c.l.b16 %v270
      %v1098 = vunpack.c.l.b16 %v272
      %v1099 = vunpack.c.l.b16 %v273
      %v1100 = vunpack.c.l.b16 %v275
      %v1101 = vunpack.c.l.b16 %v276
      %v1102 = vunpack.c.l.b16 %v278
      %v1103 = vunpack.c.l.b16 %v279
      %v1104 = vunpack.c.l.b16 %v281
      %v1105 = vunpack.c.l.b16 %v282
      %v1106 = vunpack.c.l.b16 %v284
      %v1107 = vunpack.c.l.b16 %v285
      %v1108 = vpack.c.b16 %v1077, %v1076
      %v1109 = vpack.c.b16 %v1079, %v1078
      %v1110 = vpack.c.b16 %v1081, %v1080
      %v1111 = vpack.c.b16 %v1083, %v1082
      %v1112 = vpack.c.b16 %v1085, %v1084
      %v1113 = vpack.c.b16 %v1087, %v1086
      %v1114 = vpack.c.b16 %v1089, %v1088
      %v1115 = vpack.c.b16 %v1091, %v1090
      %v1116 = vpack.c.b16 %v1093, %v1092
      %v1117 = vpack.c.b16 %v1095, %v1094
      %v1118 = vpack.c.b16 %v1097, %v1096
      %v1119 = vpack.c.b16 %v1099, %v1098
      %v1120 = vpack.c.b16 %v1101, %v1100
      %v1121 = vpack.c.b16 %v1103, %v1102
      %v1122 = vpack.c.b16 %v1105, %v1104
      %v1123 = vpack.c.b16 %v1107, %v1106
      %v1156 = vunpack.c.l.b16 %v287
      %v1157 = vunpack.c.h.b16 %v287
      %v1158 = vunpack.c.l.b16 %v288
      %v1159 = vunpack.c.h.b16 %v288
      %v1160 = vunpack.c.l.b16 %v289
      %v1161 = vunpack.c.h.b16 %v289
      %v1162 = vunpack.c.l.b16 %v290
      %v1163 = vunpack.c.h.b16 %v290
      %v1164 = vunpack.c.l.b16 %v291
      %v1165 = vunpack.c.h.b16 %v291
      %v1166 = vunpack.c.l.b16 %v292
      %v1167 = vunpack.c.h.b16 %v292
      %v1168 = vunpack.c.l.b16 %v293
      %v1169 = vunpack.c.h.b16 %v293
      %v1170 = vunpack.c.l.b16 %v294
      %v1171 = vunpack.c.h.b16 %v294
      %v1172 = vunpack.c.l.b16 %v295
      %v1173 = vunpack.c.h.b16 %v295
      %v1174 = vunpack.c.l.b16 %v296
      %v1175 = vunpack.c.h.b16 %v296
      %v1176 = vunpack.c.l.b16 %v297
      %v1177 = vunpack.c.h.b16 %v297
      %v1178 = vunpack.c.l.b16 %v298
      %v1179 = vunpack.c.h.b16 %v298
      %v1180 = vunpack.c.l.b16 %v299
      %v1181 = vunpack.c.h.b16 %v299
      %v1182 = vunpack.c.l.b16 %v300
      %v1183 = vunpack.c.h.b16 %v300
      %v1184 = vunpack.c.l.b16 %v301
      %v1185 = vunpack.c.h.b16 %v301
      %v1186 = vunpack.c.l.b16 %v302
      %v1187 = vunpack.c.h.b16 %v302
      %v1188 = vpack.c.b16 %v1158, %v1156
      %v1189 = vpack.c.b16 %v1159, %v1157
      %v1190 = vpack.c.b16 %v1162, %v1160
      %v1191 = vpack.c.b16 %v1163, %v1161
      %v1192 = vpack.c.b16 %v1166, %v1164
      %v1193 = vpack.c.b16 %v1167, %v1165
      %v1194 = vpack.c.b16 %v1170, %v1168
      %v1195 = vpack.c.b16 %v1171, %v1169
      %v1196 = vpack.c.b16 %v1174, %v1172
      %v1197 = vpack.c.b16 %v1175, %v1173
      %v1198 = vpack.c.b16 %v1178, %v1176
      %v1199 = vpack.c.b16 %v1179, %v1177
      %v1200 = vpack.c.b16 %v1182, %v1180
      %v1201 = vpack.c.b16 %v1183, %v1181
      %v1202 = vpack.c.b16 %v1186, %v1184
      %v1203 = vpack.c.b16 %v1187, %v1185
      %1220 = vmatprep.subr.bf16.mxu0 %v1189
      %1221 = vmatpush1.bf16.msra.mxu0 %v1188
      %1222 = vmatprep.subr.bf16.mxu0 %v1191
      %1223 = vmatpush1.bf16.msra.mxu0 %v1190
      %1224 = vmatprep.subr.bf16.mxu0 %v1193
      %1225 = vmatpush1.bf16.msra.mxu0 %v1192
      %1226 = vmatprep.subr.bf16.mxu0 %v1195
      %1227 = vmatpush1.bf16.msra.mxu0 %v1194
      %1228 = vmatprep.subr.bf16.mxu0 %v1197
      %1229 = vmatpush1.bf16.msra.mxu0 %v1196
      %1230 = vmatprep.subr.bf16.mxu0 %v1199
      %1231 = vmatpush1.bf16.msra.mxu0 %v1198
      %1232 = vmatprep.subr.bf16.mxu0 %v1201
      %1233 = vmatpush1.bf16.msra.mxu0 %v1200
      %1234 = vmatprep.subr.bf16.mxu0 %v1203
      %1235 = vmatpush1.bf16.msra.mxu0 %v1202
      %1236 = vmatprep.subr.bf16.mxu0 0
      %1237 = vmatpush1.bf16.msra.mxu0 0
      %1238 = vmatprep.subr.bf16.mxu0 0
      %1239 = vmatpush1.bf16.msra.mxu0 0
      %1240 = vmatprep.subr.bf16.mxu0 0
      %1241 = vmatpush1.bf16.msra.mxu0 0
      %1242 = vmatprep.subr.bf16.mxu0 0
      %1243 = vmatpush1.bf16.msra.mxu0 0
      %1244 = vmatprep.subr.bf16.mxu0 0
      %1245 = vmatpush1.bf16.msra.mxu0 0
      %1246 = vmatprep.subr.bf16.mxu0 0
      %1247 = vmatpush1.bf16.msra.mxu0 0
      %1248 = vmatprep.subr.bf16.mxu0 0
      %1249 = vmatpush1.bf16.msra.mxu0 0
      %1250 = vmatprep.subr.bf16.mxu0 0
      %1251 = vmatpush1.bf16.msra.mxu0 0
      %1252 = vmatprep.mubr.bf16.mxu0 0
      %1253 = vmatmul.mubr.bf16.gmra.mrb[0].mxu0 %v1108
      %v1254 = vpop.f32.mrb[0].mxu0
      %v1255 = vadd.f32 %v886, %v1254
      %v1256 = vpop.f32.mrb[0].mxu0
      %v1257 = vadd.f32 %v888, %v1256
      %v1258 = vpop.f32.mrb[0].mxu0
      %v1259 = vadd.f32 %v890, %v1258
      %v1260 = vpop.f32.mrb[0].mxu0
      %v1261 = vadd.f32 %v892, %v1260
      %1262 = vmatprep.mubr.bf16.mxu0 0
      %1263 = vmatmul.mubr.bf16.gmra.mrb[0].mxu0 %v1109
      %v1264 = vpop.f32.mrb[0].mxu0
      %v1265 = vadd.f32 %v896, %v1264
      %v1266 = vpop.f32.mrb[0].mxu0
      %v1267 = vadd.f32 %v898, %v1266
      %v1268 = vpop.f32.mrb[0].mxu0
      %v1269 = vadd.f32 %v900, %v1268
      %v1270 = vpop.f32.mrb[0].mxu0
      %v1271 = vadd.f32 %v902, %v1270
      %1272 = vmatprep.mubr.bf16.mxu0 0
      %1273 = vmatmul.mubr.bf16.gmra.mrb[0].mxu0 %v1110
      %v1274 = vpop.f32.mrb[0].mxu0
      %v1275 = vadd.f32 %v906, %v1274
      %v1276 = vpop.f32.mrb[0].mxu0
      %v1277 = vadd.f32 %v908, %v1276
      %v1278 = vpop.f32.mrb[0].mxu0
      %v1279 = vadd.f32 %v910, %v1278
      %v1280 = vpop.f32.mrb[0].mxu0
      %v1281 = vadd.f32 %v912, %v1280
      %1282 = vmatprep.mubr.bf16.mxu0 0
      %1283 = vmatmul.mubr.bf16.gmra.mrb[0].mxu0 %v1111
      %v1284 = vpop.f32.mrb[0].mxu0
      %v1285 = vadd.f32 %v916, %v1284
      %v1286 = vpop.f32.mrb[0].mxu0
      %v1287 = vadd.f32 %v918, %v1286
      %v1288 = vpop.f32.mrb[0].mxu0
      %v1289 = vadd.f32 %v920, %v1288
      %v1290 = vpop.f32.mrb[0].mxu0
      %v1291 = vadd.f32 %v922, %v1290
      %1292 = vmatprep.mubr.bf16.mxu0 0
      %1293 = vmatmul.mubr.bf16.gmra.mrb[0].mxu0 %v1112
      %v1294 = vpop.f32.mrb[0].mxu0
      %v1295 = vadd.f32 %v926, %v1294
      %v1296 = vpop.f32.mrb[0].mxu0
      %v1297 = vadd.f32 %v928, %v1296
      %v1298 = vpop.f32.mrb[0].mxu0
      %v1299 = vadd.f32 %v930, %v1298
      %v1300 = vpop.f32.mrb[0].mxu0
      %v1301 = vadd.f32 %v932, %v1300
      %1302 = vmatprep.mubr.bf16.mxu0 0
      %1303 = vmatmul.mubr.bf16.gmra.mrb[0].mxu0 %v1113
      %v1304 = vpop.f32.mrb[0].mxu0
      %v1305 = vadd.f32 %v936, %v1304
      %v1306 = vpop.f32.mrb[0].mxu0
      %v1307 = vadd.f32 %v938, %v1306
      %v1308 = vpop.f32.mrb[0].mxu0
      %v1309 = vadd.f32 %v940, %v1308
      %v1310 = vpop.f32.mrb[0].mxu0
      %v1311 = vadd.f32 %v942, %v1310
      %1312 = vmatprep.mubr.bf16.mxu0 0
      %1313 = vmatmul.mubr.bf16.gmra.mrb[0].mxu0 %v1114
      %v1314 = vpop.f32.mrb[0].mxu0
      %v1315 = vadd.f32 %v946, %v1314
      %v1316 = vpop.f32.mrb[0].mxu0
      %v1317 = vadd.f32 %v948, %v1316
      %v1318 = vpop.f32.mrb[0].mxu0
      %v1319 = vadd.f32 %v950, %v1318
      %v1320 = vpop.f32.mrb[0].mxu0
      %v1321 = vadd.f32 %v952, %v1320
      %1322 = vmatprep.mubr.bf16.mxu0 0
      %1323 = vmatmul.mubr.bf16.gmra.mrb[0].mxu0 %v1115
      %v1324 = vpop.f32.mrb[0].mxu0
      %v1325 = vadd.f32 %v956, %v1324
      %v1326 = vpop.f32.mrb[0].mxu0
      %v1327 = vadd.f32 %v958, %v1326
      %v1328 = vpop.f32.mrb[0].mxu0
      %v1329 = vadd.f32 %v960, %v1328
      %v1330 = vpop.f32.mrb[0].mxu0
      %v1331 = vadd.f32 %v962, %v1330
      %1332 = vmatprep.mubr.bf16.mxu0 0
      %1333 = vmatmul.mubr.bf16.gmra.mrb[0].mxu0 %v1116
      %v1334 = vpop.f32.mrb[0].mxu0
      %v1335 = vadd.f32 %v966, %v1334
      %v1336 = vpop.f32.mrb[0].mxu0
      %v1337 = vadd.f32 %v968, %v1336
      %v1338 = vpop.f32.mrb[0].mxu0
      %v1339 = vadd.f32 %v970, %v1338
      %v1340 = vpop.f32.mrb[0].mxu0
      %v1341 = vadd.f32 %v972, %v1340
      %1342 = vmatprep.mubr.bf16.mxu0 0
      %1343 = vmatmul.mubr.bf16.gmra.mrb[0].mxu0 %v1117
      %v1344 = vpop.f32.mrb[0].mxu0
      %v1345 = vadd.f32 %v976, %v1344
      %v1346 = vpop.f32.mrb[0].mxu0
      %v1347 = vadd.f32 %v978, %v1346
      %v1348 = vpop.f32.mrb[0].mxu0
      %v1349 = vadd.f32 %v980, %v1348
      %v1350 = vpop.f32.mrb[0].mxu0
      %v1351 = vadd.f32 %v982, %v1350
      %1352 = vmatprep.mubr.bf16.mxu0 0
      %1353 = vmatmul.mubr.bf16.gmra.mrb[0].mxu0 %v1118
      %v1354 = vpop.f32.mrb[0].mxu0
      %v1355 = vadd.f32 %v986, %v1354
      %v1356 = vpop.f32.mrb[0].mxu0
      %v1357 = vadd.f32 %v988, %v1356
      %v1358 = vpop.f32.mrb[0].mxu0
      %v1359 = vadd.f32 %v990, %v1358
      %v1360 = vpop.f32.mrb[0].mxu0
      %v1361 = vadd.f32 %v992, %v1360
      %1362 = vmatprep.mubr.bf16.mxu0 0
      %1363 = vmatmul.mubr.bf16.gmra.mrb[0].mxu0 %v1119
      %v1364 = vpop.f32.mrb[0].mxu0
      %v1365 = vadd.f32 %v996, %v1364
      %v1366 = vpop.f32.mrb[0].mxu0
      %v1367 = vadd.f32 %v998, %v1366
      %v1368 = vpop.f32.mrb[0].mxu0
      %v1369 = vadd.f32 %v1000, %v1368
      %v1370 = vpop.f32.mrb[0].mxu0
      %v1371 = vadd.f32 %v1002, %v1370
      %1372 = vmatprep.mubr.bf16.mxu0 0
      %1373 = vmatmul.mubr.bf16.gmra.mrb[0].mxu0 %v1120
      %v1374 = vpop.f32.mrb[0].mxu0
      %v1375 = vadd.f32 %v1006, %v1374
      %v1376 = vpop.f32.mrb[0].mxu0
      %v1377 = vadd.f32 %v1008, %v1376
      %v1378 = vpop.f32.mrb[0].mxu0
      %v1379 = vadd.f32 %v1010, %v1378
      %v1380 = vpop.f32.mrb[0].mxu0
      %v1381 = vadd.f32 %v1012, %v1380
      %1382 = vmatprep.mubr.bf16.mxu0 0
      %1383 = vmatmul.mubr.bf16.gmra.mrb[0].mxu0 %v1121
      %v1384 = vpop.f32.mrb[0].mxu0
      %v1385 = vadd.f32 %v1016, %v1384
      %v1386 = vpop.f32.mrb[0].mxu0
      %v1387 = vadd.f32 %v1018, %v1386
      %v1388 = vpop.f32.mrb[0].mxu0
      %v1389 = vadd.f32 %v1020, %v1388
      %v1390 = vpop.f32.mrb[0].mxu0
      %v1391 = vadd.f32 %v1022, %v1390
      %1392 = vmatprep.mubr.bf16.mxu0 0
      %1393 = vmatmul.mubr.bf16.gmra.mrb[0].mxu0 %v1122
      %v1394 = vpop.f32.mrb[0].mxu0
      %v1395 = vadd.f32 %v1026, %v1394
      %v1396 = vpop.f32.mrb[0].mxu0
      %v1397 = vadd.f32 %v1028, %v1396
      %v1398 = vpop.f32.mrb[0].mxu0
      %v1399 = vadd.f32 %v1030, %v1398
      %v1400 = vpop.f32.mrb[0].mxu0
      %v1401 = vadd.f32 %v1032, %v1400
      %1402 = vmatprep.mubr.bf16.mxu0 0
      %1403 = vmatmul.mubr.bf16.gmra.mrb[0].mxu0 %v1123
      %v1404 = vpop.f32.mrb[0].mxu0
      %v1405 = vadd.f32 %v1036, %v1404
      %v1406 = vpop.f32.mrb[0].mxu0
      %v1407 = vadd.f32 %v1038, %v1406
      %v1408 = vpop.f32.mrb[0].mxu0
      %v1409 = vadd.f32 %v1040, %v1408
      %v1410 = vpop.f32.mrb[0].mxu0
      %v1411 = vadd.f32 %v1042, %v1410
      %1412 = vdwg.mxu0
      %vm1429 = vcmask 1042432
      %vm1430 = vcmask 1046532
      %vm1431 = vmor %vm1429, %vm1430
      %v1432 = vrot.slane %v239, 5
      %v1433 = vrot.slane %v1432, 4
      %v1434 = vrot.slane %v240, 5
      %v1435 = vsel %vm1431, %v1433, %v1434
      %v1436 = vrot.slane %v1434, 4
      %v1437 = vrot.slane %v241, 5
      %v1438 = vsel %vm1431, %v1436, %v1437
      %v1439 = vrot.slane %v242, 5
      %v1440 = vrot.slane %v1439, 4
      %v1441 = vrot.slane %v243, 5
      %v1442 = vsel %vm1431, %v1440, %v1441
      %v1443 = vrot.slane %v1441, 4
      %v1444 = vrot.slane %v244, 5
      %v1445 = vsel %vm1431, %v1443, %v1444
      %v1446 = vrot.slane %v245, 5
      %v1447 = vrot.slane %v1446, 4
      %v1448 = vrot.slane %v246, 5
      %v1449 = vsel %vm1431, %v1447, %v1448
      %v1450 = vrot.slane %v1448, 4
      %v1451 = vrot.slane %v247, 5
      %v1452 = vsel %vm1431, %v1450, %v1451
      %v1453 = vrot.slane %v248, 5
      %v1454 = vrot.slane %v1453, 4
      %v1455 = vrot.slane %v249, 5
      %v1456 = vsel %vm1431, %v1454, %v1455
      %v1457 = vrot.slane %v1455, 4
      %v1458 = vrot.slane %v250, 5
      %v1459 = vsel %vm1431, %v1457, %v1458
      %v1460 = vrot.slane %v251, 5
      %v1461 = vrot.slane %v1460, 4
      %v1462 = vrot.slane %v252, 5
      %v1463 = vsel %vm1431, %v1461, %v1462
      %v1464 = vrot.slane %v1462, 4
      %v1465 = vrot.slane %v253, 5
      %v1466 = vsel %vm1431, %v1464, %v1465
      %v1467 = vrot.slane %v254, 5
      %v1468 = vrot.slane %v1467, 4
      %v1469 = vrot.slane %v255, 5
      %v1470 = vsel %vm1431, %v1468, %v1469
      %v1471 = vrot.slane %v1469, 4
      %v1472 = vrot.slane %v256, 5
      %v1473 = vsel %vm1431, %v1471, %v1472
      %v1474 = vrot.slane %v257, 5
      %v1475 = vrot.slane %v1474, 4
      %v1476 = vrot.slane %v258, 5
      %v1477 = vsel %vm1431, %v1475, %v1476
      %v1478 = vrot.slane %v1476, 4
      %v1479 = vrot.slane %v259, 5
      %v1480 = vsel %vm1431, %v1478, %v1479
      %v1481 = vrot.slane %v260, 5
      %v1482 = vrot.slane %v1481, 4
      %v1483 = vrot.slane %v261, 5
      %v1484 = vsel %vm1431, %v1482, %v1483
      %v1485 = vrot.slane %v1483, 4
      %v1486 = vrot.slane %v262, 5
      %v1487 = vsel %vm1431, %v1485, %v1486
      %v1488 = vrot.slane %v263, 5
      %v1489 = vrot.slane %v1488, 4
      %v1490 = vrot.slane %v264, 5
      %v1491 = vsel %vm1431, %v1489, %v1490
      %v1492 = vrot.slane %v1490, 4
      %v1493 = vrot.slane %v265, 5
      %v1494 = vsel %vm1431, %v1492, %v1493
      %v1495 = vrot.slane %v266, 5
      %v1496 = vrot.slane %v1495, 4
      %v1497 = vrot.slane %v267, 5
      %v1498 = vsel %vm1431, %v1496, %v1497
      %v1499 = vrot.slane %v1497, 4
      %v1500 = vrot.slane %v268, 5
      %v1501 = vsel %vm1431, %v1499, %v1500
      %v1502 = vrot.slane %v269, 5
      %v1503 = vrot.slane %v1502, 4
      %v1504 = vrot.slane %v270, 5
      %v1505 = vsel %vm1431, %v1503, %v1504
      %v1506 = vrot.slane %v1504, 4
      %v1507 = vrot.slane %v271, 5
      %v1508 = vsel %vm1431, %v1506, %v1507
      %v1509 = vrot.slane %v272, 5
      %v1510 = vrot.slane %v1509, 4
      %v1511 = vrot.slane %v273, 5
      %v1512 = vsel %vm1431, %v1510, %v1511
      %v1513 = vrot.slane %v1511, 4
      %v1514 = vrot.slane %v274, 5
      %v1515 = vsel %vm1431, %v1513, %v1514
      %v1516 = vrot.slane %v275, 5
      %v1517 = vrot.slane %v1516, 4
      %v1518 = vrot.slane %v276, 5
      %v1519 = vsel %vm1431, %v1517, %v1518
      %v1520 = vrot.slane %v1518, 4
      %v1521 = vrot.slane %v277, 5
      %v1522 = vsel %vm1431, %v1520, %v1521
      %v1523 = vrot.slane %v278, 5
      %v1524 = vrot.slane %v1523, 4
      %v1525 = vrot.slane %v279, 5
      %v1526 = vsel %vm1431, %v1524, %v1525
      %v1527 = vrot.slane %v1525, 4
      %v1528 = vrot.slane %v280, 5
      %v1529 = vsel %vm1431, %v1527, %v1528
      %v1530 = vrot.slane %v281, 5
      %v1531 = vrot.slane %v1530, 4
      %v1532 = vrot.slane %v282, 5
      %v1533 = vsel %vm1431, %v1531, %v1532
      %v1534 = vrot.slane %v1532, 4
      %v1535 = vrot.slane %v283, 5
      %v1536 = vsel %vm1431, %v1534, %v1535
      %v1537 = vrot.slane %v284, 5
      %v1538 = vrot.slane %v1537, 4
      %v1539 = vrot.slane %v285, 5
      %v1540 = vsel %vm1431, %v1538, %v1539
      %v1541 = vrot.slane %v1539, 4
      %v1542 = vrot.slane %v286, 5
      %v1543 = vsel %vm1431, %v1541, %v1542
      %s1544 = scalar_lea.vmem %s1, 256
      %v1545 = vld [vmem:[%s1544] sm:$0xff]
      %v1546 = vld [vmem:[%s1544 + $0x8] sm:$0xff]
      %v1547 = vld [vmem:[%s1544 + $0x10] sm:$0xff]
      %v1548 = vld [vmem:[%s1544 + $0x18] sm:$0xff]
      %v1549 = vld [vmem:[%s1544 + $0x20] sm:$0xff]
      %v1550 = vld [vmem:[%s1544 + $0x28] sm:$0xff]
      %v1551 = vld [vmem:[%s1544 + $0x30] sm:$0xff]
      %v1552 = vld [vmem:[%s1544 + $0x38] sm:$0xff]
      %v1553 = vld [vmem:[%s1544 + $0x40] sm:$0xff]
      %v1554 = vld [vmem:[%s1544 + $0x48] sm:$0xff]
      %v1555 = vld [vmem:[%s1544 + $0x50] sm:$0xff]
      %v1556 = vld [vmem:[%s1544 + $0x58] sm:$0xff]
      %v1557 = vld [vmem:[%s1544 + $0x60] sm:$0xff]
      %v1558 = vld [vmem:[%s1544 + $0x68] sm:$0xff]
      %v1559 = vld [vmem:[%s1544 + $0x70] sm:$0xff]
      %v1560 = vld [vmem:[%s1544 + $0x78] sm:$0xff]
      %v1561 = vunpack.c.l.b16 %v1435
      %v1562 = vunpack.c.l.b16 %v1438
      %v1563 = vunpack.c.l.b16 %v1442
      %v1564 = vunpack.c.l.b16 %v1445
      %v1565 = vunpack.c.l.b16 %v1449
      %v1566 = vunpack.c.l.b16 %v1452
      %v1567 = vunpack.c.l.b16 %v1456
      %v1568 = vunpack.c.l.b16 %v1459
      %v1569 = vunpack.c.l.b16 %v1463
      %v1570 = vunpack.c.l.b16 %v1466
      %v1571 = vunpack.c.l.b16 %v1470
      %v1572 = vunpack.c.l.b16 %v1473
      %v1573 = vunpack.c.l.b16 %v1477
      %v1574 = vunpack.c.l.b16 %v1480
      %v1575 = vunpack.c.l.b16 %v1484
      %v1576 = vunpack.c.l.b16 %v1487
      %v1577 = vunpack.c.l.b16 %v1491
      %v1578 = vunpack.c.l.b16 %v1494
      %v1579 = vunpack.c.l.b16 %v1498
      %v1580 = vunpack.c.l.b16 %v1501
      %v1581 = vunpack.c.l.b16 %v1505
      %v1582 = vunpack.c.l.b16 %v1508
      %v1583 = vunpack.c.l.b16 %v1512
      %v1584 = vunpack.c.l.b16 %v1515
      %v1585 = vunpack.c.l.b16 %v1519
      %v1586 = vunpack.c.l.b16 %v1522
      %v1587 = vunpack.c.l.b16 %v1526
      %v1588 = vunpack.c.l.b16 %v1529
      %v1589 = vunpack.c.l.b16 %v1533
      %v1590 = vunpack.c.l.b16 %v1536
      %v1591 = vunpack.c.l.b16 %v1540
      %v1592 = vunpack.c.l.b16 %v1543
      %v1593 = vpack.c.b16 %v1562, %v1561
      %v1594 = vpack.c.b16 %v1564, %v1563
      %v1595 = vpack.c.b16 %v1566, %v1565
      %v1596 = vpack.c.b16 %v1568, %v1567
      %v1597 = vpack.c.b16 %v1570, %v1569
      %v1598 = vpack.c.b16 %v1572, %v1571
      %v1599 = vpack.c.b16 %v1574, %v1573
      %v1600 = vpack.c.b16 %v1576, %v1575
      %v1601 = vpack.c.b16 %v1578, %v1577
      %v1602 = vpack.c.b16 %v1580, %v1579
      %v1603 = vpack.c.b16 %v1582, %v1581
      %v1604 = vpack.c.b16 %v1584, %v1583
      %v1605 = vpack.c.b16 %v1586, %v1585
      %v1606 = vpack.c.b16 %v1588, %v1587
      %v1607 = vpack.c.b16 %v1590, %v1589
      %v1608 = vpack.c.b16 %v1592, %v1591
      %v1641 = vunpack.c.l.b16 %v1545
      %v1642 = vunpack.c.h.b16 %v1545
      %v1643 = vunpack.c.l.b16 %v1546
      %v1644 = vunpack.c.h.b16 %v1546
      %v1645 = vunpack.c.l.b16 %v1547
      %v1646 = vunpack.c.h.b16 %v1547
      %v1647 = vunpack.c.l.b16 %v1548
      %v1648 = vunpack.c.h.b16 %v1548
      %v1649 = vunpack.c.l.b16 %v1549
      %v1650 = vunpack.c.h.b16 %v1549
      %v1651 = vunpack.c.l.b16 %v1550
      %v1652 = vunpack.c.h.b16 %v1550
      %v1653 = vunpack.c.l.b16 %v1551
      %v1654 = vunpack.c.h.b16 %v1551
      %v1655 = vunpack.c.l.b16 %v1552
      %v1656 = vunpack.c.h.b16 %v1552
      %v1657 = vunpack.c.l.b16 %v1553
      %v1658 = vunpack.c.h.b16 %v1553
      %v1659 = vunpack.c.l.b16 %v1554
      %v1660 = vunpack.c.h.b16 %v1554
      %v1661 = vunpack.c.l.b16 %v1555
      %v1662 = vunpack.c.h.b16 %v1555
      %v1663 = vunpack.c.l.b16 %v1556
      %v1664 = vunpack.c.h.b16 %v1556
      %v1665 = vunpack.c.l.b16 %v1557
      %v1666 = vunpack.c.h.b16 %v1557
      %v1667 = vunpack.c.l.b16 %v1558
      %v1668 = vunpack.c.h.b16 %v1558
      %v1669 = vunpack.c.l.b16 %v1559
      %v1670 = vunpack.c.h.b16 %v1559
      %v1671 = vunpack.c.l.b16 %v1560
      %v1672 = vunpack.c.h.b16 %v1560
      %v1673 = vpack.c.b16 %v1643, %v1641
      %v1674 = vpack.c.b16 %v1644, %v1642
      %v1675 = vpack.c.b16 %v1647, %v1645
      %v1676 = vpack.c.b16 %v1648, %v1646
      %v1677 = vpack.c.b16 %v1651, %v1649
      %v1678 = vpack.c.b16 %v1652, %v1650
      %v1679 = vpack.c.b16 %v1655, %v1653
      %v1680 = vpack.c.b16 %v1656, %v1654
      %v1681 = vpack.c.b16 %v1659, %v1657
      %v1682 = vpack.c.b16 %v1660, %v1658
      %v1683 = vpack.c.b16 %v1663, %v1661
      %v1684 = vpack.c.b16 %v1664, %v1662
      %v1685 = vpack.c.b16 %v1667, %v1665
      %v1686 = vpack.c.b16 %v1668, %v1666
      %v1687 = vpack.c.b16 %v1671, %v1669
      %v1688 = vpack.c.b16 %v1672, %v1670
      %1705 = vmatprep.subr.bf16.mxu0 %v1674
      %1706 = vmatpush1.bf16.msra.mxu0 %v1673
      %1707 = vmatprep.subr.bf16.mxu0 %v1676
      %1708 = vmatpush1.bf16.msra.mxu0 %v1675
      %1709 = vmatprep.subr.bf16.mxu0 %v1678
      %1710 = vmatpush1.bf16.msra.mxu0 %v1677
      %1711 = vmatprep.subr.bf16.mxu0 %v1680
      %1712 = vmatpush1.bf16.msra.mxu0 %v1679
      %1713 = vmatprep.subr.bf16.mxu0 %v1682
      %1714 = vmatpush1.bf16.msra.mxu0 %v1681
      %1715 = vmatprep.subr.bf16.mxu0 %v1684
      %1716 = vmatpush1.bf16.msra.mxu0 %v1683
      %1717 = vmatprep.subr.bf16.mxu0 %v1686
      %1718 = vmatpush1.bf16.msra.mxu0 %v1685
      %1719 = vmatprep.subr.bf16.mxu0 %v1688
      %1720 = vmatpush1.bf16.msra.mxu0 %v1687
      %1721 = vmatprep.subr.bf16.mxu0 0
      %1722 = vmatpush1.bf16.msra.mxu0 0
      %1723 = vmatprep.subr.bf16.mxu0 0
      %1724 = vmatpush1.bf16.msra.mxu0 0
      %1725 = vmatprep.subr.bf16.mxu0 0
      %1726 = vmatpush1.bf16.msra.mxu0 0
      %1727 = vmatprep.subr.bf16.mxu0 0
      %1728 = vmatpush1.bf16.msra.mxu0 0
      %1729 = vmatprep.subr.bf16.mxu0 0
      %1730 = vmatpush1.bf16.msra.mxu0 0
      %1731 = vmatprep.subr.bf16.mxu0 0
      %1732 = vmatpush1.bf16.msra.mxu0 0
      %1733 = vmatprep.subr.bf16.mxu0 0
      %1734 = vmatpush1.bf16.msra.mxu0 0
      %1735 = vmatprep.subr.bf16.mxu0 0
      %1736 = vmatpush1.bf16.msra.mxu0 0
      %1737 = vmatprep.mubr.bf16.mxu0 0
      %1738 = vmatmul.mubr.bf16.gmra.mrb[0].mxu0 %v1593
      %v1739 = vpop.f32.mrb[0].mxu0
      %v1740 = vadd.f32 0.0, %v1739
      %v1741 = vpop.f32.mrb[0].mxu0
      %v1742 = vadd.f32 0.0, %v1741
      %v1743 = vpop.f32.mrb[0].mxu0
      %v1744 = vadd.f32 0.0, %v1743
      %v1745 = vpop.f32.mrb[0].mxu0
      %v1746 = vadd.f32 0.0, %v1745
      %1747 = vmatprep.mubr.bf16.mxu0 0
      %1748 = vmatmul.mubr.bf16.gmra.mrb[0].mxu0 %v1594
      %v1749 = vpop.f32.mrb[0].mxu0
      %v1750 = vadd.f32 0.0, %v1749
      %v1751 = vpop.f32.mrb[0].mxu0
      %v1752 = vadd.f32 0.0, %v1751
      %v1753 = vpop.f32.mrb[0].mxu0
      %v1754 = vadd.f32 0.0, %v1753
      %v1755 = vpop.f32.mrb[0].mxu0
      %v1756 = vadd.f32 0.0, %v1755
      %1757 = vmatprep.mubr.bf16.mxu0 0
      %1758 = vmatmul.mubr.bf16.gmra.mrb[0].mxu0 %v1595
      %v1759 = vpop.f32.mrb[0].mxu0
      %v1760 = vadd.f32 0.0, %v1759
      %v1761 = vpop.f32.mrb[0].mxu0
      %v1762 = vadd.f32 0.0, %v1761
      %v1763 = vpop.f32.mrb[0].mxu0
      %v1764 = vadd.f32 0.0, %v1763
      %v1765 = vpop.f32.mrb[0].mxu0
      %v1766 = vadd.f32 0.0, %v1765
      %1767 = vmatprep.mubr.bf16.mxu0 0
      %1768 = vmatmul.mubr.bf16.gmra.mrb[0].mxu0 %v1596
      %v1769 = vpop.f32.mrb[0].mxu0
      %v1770 = vadd.f32 0.0, %v1769
      %v1771 = vpop.f32.mrb[0].mxu0
      %v1772 = vadd.f32 0.0, %v1771
      %v1773 = vpop.f32.mrb[0].mxu0
      %v1774 = vadd.f32 0.0, %v1773
      %v1775 = vpop.f32.mrb[0].mxu0
      %v1776 = vadd.f32 0.0, %v1775
      %1777 = vmatprep.mubr.bf16.mxu0 0
      %1778 = vmatmul.mubr.bf16.gmra.mrb[0].mxu0 %v1597
      %v1779 = vpop.f32.mrb[0].mxu0
      %v1780 = vadd.f32 0.0, %v1779
      %v1781 = vpop.f32.mrb[0].mxu0
      %v1782 = vadd.f32 0.0, %v1781
      %v1783 = vpop.f32.mrb[0].mxu0
      %v1784 = vadd.f32 0.0, %v1783
      %v1785 = vpop.f32.mrb[0].mxu0
      %v1786 = vadd.f32 0.0, %v1785
      %1787 = vmatprep.mubr.bf16.mxu0 0
      %1788 = vmatmul.mubr.bf16.gmra.mrb[0].mxu0 %v1598
      %v1789 = vpop.f32.mrb[0].mxu0
      %v1790 = vadd.f32 0.0, %v1789
      %v1791 = vpop.f32.mrb[0].mxu0
      %v1792 = vadd.f32 0.0, %v1791
      %v1793 = vpop.f32.mrb[0].mxu0
      %v1794 = vadd.f32 0.0, %v1793
      %v1795 = vpop.f32.mrb[0].mxu0
      %v1796 = vadd.f32 0.0, %v1795
      %1797 = vmatprep.mubr.bf16.mxu0 0
      %1798 = vmatmul.mubr.bf16.gmra.mrb[0].mxu0 %v1599
      %v1799 = vpop.f32.mrb[0].mxu0
      %v1800 = vadd.f32 0.0, %v1799
      %v1801 = vpop.f32.mrb[0].mxu0
      %v1802 = vadd.f32 0.0, %v1801
      %v1803 = vpop.f32.mrb[0].mxu0
      %v1804 = vadd.f32 0.0, %v1803
      %v1805 = vpop.f32.mrb[0].mxu0
      %v1806 = vadd.f32 0.0, %v1805
      %1807 = vmatprep.mubr.bf16.mxu0 0
      %1808 = vmatmul.mubr.bf16.gmra.mrb[0].mxu0 %v1600
      %v1809 = vpop.f32.mrb[0].mxu0
      %v1810 = vadd.f32 0.0, %v1809
      %v1811 = vpop.f32.mrb[0].mxu0
      %v1812 = vadd.f32 0.0, %v1811
      %v1813 = vpop.f32.mrb[0].mxu0
      %v1814 = vadd.f32 0.0, %v1813
      %v1815 = vpop.f32.mrb[0].mxu0
      %v1816 = vadd.f32 0.0, %v1815
      %1817 = vmatprep.mubr.bf16.mxu0 0
      %1818 = vmatmul.mubr.bf16.gmra.mrb[0].mxu0 %v1601
      %v1819 = vpop.f32.mrb[0].mxu0
      %v1820 = vadd.f32 0.0, %v1819
      %v1821 = vpop.f32.mrb[0].mxu0
      %v1822 = vadd.f32 0.0, %v1821
      %v1823 = vpop.f32.mrb[0].mxu0
      %v1824 = vadd.f32 0.0, %v1823
      %v1825 = vpop.f32.mrb[0].mxu0
      %v1826 = vadd.f32 0.0, %v1825
      %1827 = vmatprep.mubr.bf16.mxu0 0
      %1828 = vmatmul.mubr.bf16.gmra.mrb[0].mxu0 %v1602
      %v1829 = vpop.f32.mrb[0].mxu0
      %v1830 = vadd.f32 0.0, %v1829
      %v1831 = vpop.f32.mrb[0].mxu0
      %v1832 = vadd.f32 0.0, %v1831
      %v1833 = vpop.f32.mrb[0].mxu0
      %v1834 = vadd.f32 0.0, %v1833
      %v1835 = vpop.f32.mrb[0].mxu0
      %v1836 = vadd.f32 0.0, %v1835
      %1837 = vmatprep.mubr.bf16.mxu0 0
      %1838 = vmatmul.mubr.bf16.gmra.mrb[0].mxu0 %v1603
      %v1839 = vpop.f32.mrb[0].mxu0
      %v1840 = vadd.f32 0.0, %v1839
      %v1841 = vpop.f32.mrb[0].mxu0
      %v1842 = vadd.f32 0.0, %v1841
      %v1843 = vpop.f32.mrb[0].mxu0
      %v1844 = vadd.f32 0.0, %v1843
      %v1845 = vpop.f32.mrb[0].mxu0
      %v1846 = vadd.f32 0.0, %v1845
      %1847 = vmatprep.mubr.bf16.mxu0 0
      %1848 = vmatmul.mubr.bf16.gmra.mrb[0].mxu0 %v1604
      %v1849 = vpop.f32.mrb[0].mxu0
      %v1850 = vadd.f32 0.0, %v1849
      %v1851 = vpop.f32.mrb[0].mxu0
      %v1852 = vadd.f32 0.0, %v1851
      %v1853 = vpop.f32.mrb[0].mxu0
      %v1854 = vadd.f32 0.0, %v1853
      %v1855 = vpop.f32.mrb[0].mxu0
      %v1856 = vadd.f32 0.0, %v1855
      %1857 = vmatprep.mubr.bf16.mxu0 0
      %1858 = vmatmul.mubr.bf16.gmra.mrb[0].mxu0 %v1605
      %v1859 = vpop.f32.mrb[0].mxu0
      %v1860 = vadd.f32 0.0, %v1859
      %v1861 = vpop.f32.mrb[0].mxu0
      %v1862 = vadd.f32 0.0, %v1861
      %v1863 = vpop.f32.mrb[0].mxu0
      %v1864 = vadd.f32 0.0, %v1863
      %v1865 = vpop.f32.mrb[0].mxu0
      %v1866 = vadd.f32 0.0, %v1865
      %1867 = vmatprep.mubr.bf16.mxu0 0
      %1868 = vmatmul.mubr.bf16.gmra.mrb[0].mxu0 %v1606
      %v1869 = vpop.f32.mrb[0].mxu0
      %v1870 = vadd.f32 0.0, %v1869
      %v1871 = vpop.f32.mrb[0].mxu0
      %v1872 = vadd.f32 0.0, %v1871
      %v1873 = vpop.f32.mrb[0].mxu0
      %v1874 = vadd.f32 0.0, %v1873
      %v1875 = vpop.f32.mrb[0].mxu0
      %v1876 = vadd.f32 0.0, %v1875
      %1877 = vmatprep.mubr.bf16.mxu0 0
      %1878 = vmatmul.mubr.bf16.gmra.mrb[0].mxu0 %v1607
      %v1879 = vpop.f32.mrb[0].mxu0
      %v1880 = vadd.f32 0.0, %v1879
      %v1881 = vpop.f32.mrb[0].mxu0
      %v1882 = vadd.f32 0.0, %v1881
      %v1883 = vpop.f32.mrb[0].mxu0
      %v1884 = vadd.f32 0.0, %v1883
      %v1885 = vpop.f32.mrb[0].mxu0
      %v1886 = vadd.f32 0.0, %v1885
      %1887 = vmatprep.mubr.bf16.mxu0 0
      %1888 = vmatmul.mubr.bf16.gmra.mrb[0].mxu0 %v1608
      %v1889 = vpop.f32.mrb[0].mxu0
      %v1890 = vadd.f32 0.0, %v1889
      %v1891 = vpop.f32.mrb[0].mxu0
      %v1892 = vadd.f32 0.0, %v1891
      %v1893 = vpop.f32.mrb[0].mxu0
      %v1894 = vadd.f32 0.0, %v1893
      %v1895 = vpop.f32.mrb[0].mxu0
      %v1896 = vadd.f32 0.0, %v1895
      %1897 = vdwg.mxu0
      %v1898 = vadd.f32 %v1255, %v1740
      %v1899 = vadd.f32 %v1257, %v1742
      %v1900 = vadd.f32 %v1259, %v1744
      %v1901 = vadd.f32 %v1261, %v1746
      %v1902 = vadd.f32 %v1265, %v1750
      %v1903 = vadd.f32 %v1267, %v1752
      %v1904 = vadd.f32 %v1269, %v1754
      %v1905 = vadd.f32 %v1271, %v1756
      %v1906 = vadd.f32 %v1275, %v1760
      %v1907 = vadd.f32 %v1277, %v1762
      %v1908 = vadd.f32 %v1279, %v1764
      %v1909 = vadd.f32 %v1281, %v1766
      %v1910 = vadd.f32 %v1285, %v1770
      %v1911 = vadd.f32 %v1287, %v1772
      %v1912 = vadd.f32 %v1289, %v1774
      %v1913 = vadd.f32 %v1291, %v1776
      %v1914 = vadd.f32 %v1295, %v1780
      %v1915 = vadd.f32 %v1297, %v1782
      %v1916 = vadd.f32 %v1299, %v1784
      %v1917 = vadd.f32 %v1301, %v1786
      %v1918 = vadd.f32 %v1305, %v1790
      %v1919 = vadd.f32 %v1307, %v1792
      %v1920 = vadd.f32 %v1309, %v1794
      %v1921 = vadd.f32 %v1311, %v1796
      %v1922 = vadd.f32 %v1315, %v1800
      %v1923 = vadd.f32 %v1317, %v1802
      %v1924 = vadd.f32 %v1319, %v1804
      %v1925 = vadd.f32 %v1321, %v1806
      %v1926 = vadd.f32 %v1325, %v1810
      %v1927 = vadd.f32 %v1327, %v1812
      %v1928 = vadd.f32 %v1329, %v1814
      %v1929 = vadd.f32 %v1331, %v1816
      %v1930 = vadd.f32 %v1335, %v1820
      %v1931 = vadd.f32 %v1337, %v1822
      %v1932 = vadd.f32 %v1339, %v1824
      %v1933 = vadd.f32 %v1341, %v1826
      %v1934 = vadd.f32 %v1345, %v1830
      %v1935 = vadd.f32 %v1347, %v1832
      %v1936 = vadd.f32 %v1349, %v1834
      %v1937 = vadd.f32 %v1351, %v1836
      %v1938 = vadd.f32 %v1355, %v1840
      %v1939 = vadd.f32 %v1357, %v1842
      %v1940 = vadd.f32 %v1359, %v1844
      %v1941 = vadd.f32 %v1361, %v1846
      %v1942 = vadd.f32 %v1365, %v1850
      %v1943 = vadd.f32 %v1367, %v1852
      %v1944 = vadd.f32 %v1369, %v1854
      %v1945 = vadd.f32 %v1371, %v1856
      %v1946 = vadd.f32 %v1375, %v1860
      %v1947 = vadd.f32 %v1377, %v1862
      %v1948 = vadd.f32 %v1379, %v1864
      %v1949 = vadd.f32 %v1381, %v1866
      %v1950 = vadd.f32 %v1385, %v1870
      %v1951 = vadd.f32 %v1387, %v1872
      %v1952 = vadd.f32 %v1389, %v1874
      %v1953 = vadd.f32 %v1391, %v1876
      %v1954 = vadd.f32 %v1395, %v1880
      %v1955 = vadd.f32 %v1397, %v1882
      %v1956 = vadd.f32 %v1399, %v1884
      %v1957 = vadd.f32 %v1401, %v1886
      %v1958 = vadd.f32 %v1405, %v1890
      %v1959 = vadd.f32 %v1407, %v1892
      %v1960 = vadd.f32 %v1409, %v1894
      %v1961 = vadd.f32 %v1411, %v1896
      %s1962 = scalar_lea.vmem %s216, 12
      %v1963 = vld [vmem:[%s1962] sm:$0xf]
      %v1964 = vld [vmem:[%s1962 + $0x4] sm:$0xf]
      %v1965 = vld [vmem:[%s1962 + $0x8] sm:$0x1]
      %v1966 = vld [vmem:[%s1962 + $0x24] sm:$0xf]
      %v1967 = vld [vmem:[%s1962 + $0x28] sm:$0xf]
      %v1968 = vld [vmem:[%s1962 + $0x2c] sm:$0x1]
      %v1969 = vld [vmem:[%s1962 + $0x48] sm:$0xf]
      %v1970 = vld [vmem:[%s1962 + $0x4c] sm:$0xf]
      %v1971 = vld [vmem:[%s1962 + $0x50] sm:$0x1]
      %v1972 = vld [vmem:[%s1962 + $0x6c] sm:$0xf]
      %v1973 = vld [vmem:[%s1962 + $0x70] sm:$0xf]
      %v1974 = vld [vmem:[%s1962 + $0x74] sm:$0x1]
      %v1975 = vld [vmem:[%s1962 + $0x90] sm:$0xf]
      %v1976 = vld [vmem:[%s1962 + $0x94] sm:$0xf]
      %v1977 = vld [vmem:[%s1962 + $0x98] sm:$0x1]
      %v1978 = vld [vmem:[%s1962 + $0xb4] sm:$0xf]
      %v1979 = vld [vmem:[%s1962 + $0xb8] sm:$0xf]
      %v1980 = vld [vmem:[%s1962 + $0xbc] sm:$0x1]
      %v1981 = vld [vmem:[%s1962 + $0xd8] sm:$0xf]
      %v1982 = vld [vmem:[%s1962 + $0xdc] sm:$0xf]
      %v1983 = vld [vmem:[%s1962 + $0xe0] sm:$0x1]
      %v1984 = vld [vmem:[%s1962 + $0xfc] sm:$0xf]
      %v1985 = vld [vmem:[%s1962 + $0x100] sm:$0xf]
      %v1986 = vld [vmem:[%s1962 + $0x104] sm:$0x1]
      %v1987 = vld [vmem:[%s1962 + $0x120] sm:$0xf]
      %v1988 = vld [vmem:[%s1962 + $0x124] sm:$0xf]
      %v1989 = vld [vmem:[%s1962 + $0x128] sm:$0x1]
      %v1990 = vld [vmem:[%s1962 + $0x144] sm:$0xf]
      %v1991 = vld [vmem:[%s1962 + $0x148] sm:$0xf]
      %v1992 = vld [vmem:[%s1962 + $0x14c] sm:$0x1]
      %v1993 = vld [vmem:[%s1962 + $0x168] sm:$0xf]
      %v1994 = vld [vmem:[%s1962 + $0x16c] sm:$0xf]
      %v1995 = vld [vmem:[%s1962 + $0x170] sm:$0x1]
      %v1996 = vld [vmem:[%s1962 + $0x18c] sm:$0xf]
      %v1997 = vld [vmem:[%s1962 + $0x190] sm:$0xf]
      %v1998 = vld [vmem:[%s1962 + $0x194] sm:$0x1]
      %v1999 = vld [vmem:[%s1962 + $0x1b0] sm:$0xf]
      %v2000 = vld [vmem:[%s1962 + $0x1b4] sm:$0xf]
      %v2001 = vld [vmem:[%s1962 + $0x1b8] sm:$0x1]
      %v2002 = vld [vmem:[%s1962 + $0x1d4] sm:$0xf]
      %v2003 = vld [vmem:[%s1962 + $0x1d8] sm:$0xf]
      %v2004 = vld [vmem:[%s1962 + $0x1dc] sm:$0x1]
      %v2005 = vld [vmem:[%s1962 + $0x1f8] sm:$0xf]
      %v2006 = vld [vmem:[%s1962 + $0x1fc] sm:$0xf]
      %v2007 = vld [vmem:[%s1962 + $0x200] sm:$0x1]
      %v2008 = vld [vmem:[%s1962 + $0x21c] sm:$0xf]
      %v2009 = vld [vmem:[%s1962 + $0x220] sm:$0xf]
      %v2010 = vld [vmem:[%s1962 + $0x224] sm:$0x1]
      %s2011 = scalar_lea.vmem %s1, 384
      %v2012 = vld [vmem:[%s2011] sm:$0xff]
      %v2013 = vld [vmem:[%s2011 + $0x8] sm:$0xff]
      %v2014 = vld [vmem:[%s2011 + $0x10] sm:$0xff]
      %v2015 = vld [vmem:[%s2011 + $0x18] sm:$0xff]
      %v2016 = vld [vmem:[%s2011 + $0x20] sm:$0xff]
      %v2017 = vld [vmem:[%s2011 + $0x28] sm:$0xff]
      %v2018 = vld [vmem:[%s2011 + $0x30] sm:$0xff]
      %v2019 = vld [vmem:[%s2011 + $0x38] sm:$0xff]
      %v2020 = vld [vmem:[%s2011 + $0x40] sm:$0xff]
      %v2021 = vld [vmem:[%s2011 + $0x48] sm:$0xff]
      %v2022 = vld [vmem:[%s2011 + $0x50] sm:$0xff]
      %v2023 = vld [vmem:[%s2011 + $0x58] sm:$0xff]
      %v2024 = vld [vmem:[%s2011 + $0x60] sm:$0xff]
      %v2025 = vld [vmem:[%s2011 + $0x68] sm:$0xff]
      %v2026 = vld [vmem:[%s2011 + $0x70] sm:$0xff]
      %v2027 = vld [vmem:[%s2011 + $0x78] sm:$0xff]
      %v2060 = vunpack.c.l.b16 %v1963
      %v2061 = vunpack.c.l.b16 %v1964
      %v2062 = vunpack.c.l.b16 %v1966
      %v2063 = vunpack.c.l.b16 %v1967
      %v2064 = vunpack.c.l.b16 %v1969
      %v2065 = vunpack.c.l.b16 %v1970
      %v2066 = vunpack.c.l.b16 %v1972
      %v2067 = vunpack.c.l.b16 %v1973
      %v2068 = vunpack.c.l.b16 %v1975
      %v2069 = vunpack.c.l.b16 %v1976
      %v2070 = vunpack.c.l.b16 %v1978
      %v2071 = vunpack.c.l.b16 %v1979
      %v2072 = vunpack.c.l.b16 %v1981
      %v2073 = vunpack.c.l.b16 %v1982
      %v2074 = vunpack.c.l.b16 %v1984
      %v2075 = vunpack.c.l.b16 %v1985
      %v2076 = vunpack.c.l.b16 %v1987
      %v2077 = vunpack.c.l.b16 %v1988
      %v2078 = vunpack.c.l.b16 %v1990
      %v2079 = vunpack.c.l.b16 %v1991
      %v2080 = vunpack.c.l.b16 %v1993
      %v2081 = vunpack.c.l.b16 %v1994
      %v2082 = vunpack.c.l.b16 %v1996
      %v2083 = vunpack.c.l.b16 %v1997
      %v2084 = vunpack.c.l.b16 %v1999
      %v2085 = vunpack.c.l.b16 %v2000
      %v2086 = vunpack.c.l.b16 %v2002
      %v2087 = vunpack.c.l.b16 %v2003
      %v2088 = vunpack.c.l.b16 %v2005
      %v2089 = vunpack.c.l.b16 %v2006
      %v2090 = vunpack.c.l.b16 %v2008
      %v2091 = vunpack.c.l.b16 %v2009
      %v2092 = vpack.c.b16 %v2061, %v2060
      %v2093 = vpack.c.b16 %v2063, %v2062
      %v2094 = vpack.c.b16 %v2065, %v2064
      %v2095 = vpack.c.b16 %v2067, %v2066
      %v2096 = vpack.c.b16 %v2069, %v2068
      %v2097 = vpack.c.b16 %v2071, %v2070
      %v2098 = vpack.c.b16 %v2073, %v2072
      %v2099 = vpack.c.b16 %v2075, %v2074
      %v2100 = vpack.c.b16 %v2077, %v2076
      %v2101 = vpack.c.b16 %v2079, %v2078
      %v2102 = vpack.c.b16 %v2081, %v2080
      %v2103 = vpack.c.b16 %v2083, %v2082
      %v2104 = vpack.c.b16 %v2085, %v2084
      %v2105 = vpack.c.b16 %v2087, %v2086
      %v2106 = vpack.c.b16 %v2089, %v2088
      %v2107 = vpack.c.b16 %v2091, %v2090
      %v2140 = vunpack.c.l.b16 %v2012
      %v2141 = vunpack.c.h.b16 %v2012
      %v2142 = vunpack.c.l.b16 %v2013
      %v2143 = vunpack.c.h.b16 %v2013
      %v2144 = vunpack.c.l.b16 %v2014
      %v2145 = vunpack.c.h.b16 %v2014
      %v2146 = vunpack.c.l.b16 %v2015
      %v2147 = vunpack.c.h.b16 %v2015
      %v2148 = vunpack.c.l.b16 %v2016
      %v2149 = vunpack.c.h.b16 %v2016
      %v2150 = vunpack.c.l.b16 %v2017
      %v2151 = vunpack.c.h.b16 %v2017
      %v2152 = vunpack.c.l.b16 %v2018
      %v2153 = vunpack.c.h.b16 %v2018
      %v2154 = vunpack.c.l.b16 %v2019
      %v2155 = vunpack.c.h.b16 %v2019
      %v2156 = vunpack.c.l.b16 %v2020
      %v2157 = vunpack.c.h.b16 %v2020
      %v2158 = vunpack.c.l.b16 %v2021
      %v2159 = vunpack.c.h.b16 %v2021
      %v2160 = vunpack.c.l.b16 %v2022
      %v2161 = vunpack.c.h.b16 %v2022
      %v2162 = vunpack.c.l.b16 %v2023
      %v2163 = vunpack.c.h.b16 %v2023
      %v2164 = vunpack.c.l.b16 %v2024
      %v2165 = vunpack.c.h.b16 %v2024
      %v2166 = vunpack.c.l.b16 %v2025
      %v2167 = vunpack.c.h.b16 %v2025
      %v2168 = vunpack.c.l.b16 %v2026
      %v2169 = vunpack.c.h.b16 %v2026
      %v2170 = vunpack.c.l.b16 %v2027
      %v2171 = vunpack.c.h.b16 %v2027
      %v2172 = vpack.c.b16 %v2142, %v2140
      %v2173 = vpack.c.b16 %v2143, %v2141
      %v2174 = vpack.c.b16 %v2146, %v2144
      %v2175 = vpack.c.b16 %v2147, %v2145
      %v2176 = vpack.c.b16 %v2150, %v2148
      %v2177 = vpack.c.b16 %v2151, %v2149
      %v2178 = vpack.c.b16 %v2154, %v2152
      %v2179 = vpack.c.b16 %v2155, %v2153
      %v2180 = vpack.c.b16 %v2158, %v2156
      %v2181 = vpack.c.b16 %v2159, %v2157
      %v2182 = vpack.c.b16 %v2162, %v2160
      %v2183 = vpack.c.b16 %v2163, %v2161
      %v2184 = vpack.c.b16 %v2166, %v2164
      %v2185 = vpack.c.b16 %v2167, %v2165
      %v2186 = vpack.c.b16 %v2170, %v2168
      %v2187 = vpack.c.b16 %v2171, %v2169
      %2204 = vmatprep.subr.bf16.mxu0 %v2173
      %2205 = vmatpush1.bf16.msra.mxu0 %v2172
      %2206 = vmatprep.subr.bf16.mxu0 %v2175
      %2207 = vmatpush1.bf16.msra.mxu0 %v2174
      %2208 = vmatprep.subr.bf16.mxu0 %v2177
      %2209 = vmatpush1.bf16.msra.mxu0 %v2176
      %2210 = vmatprep.subr.bf16.mxu0 %v2179
      %2211 = vmatpush1.bf16.msra.mxu0 %v2178
      %2212 = vmatprep.subr.bf16.mxu0 %v2181
      %2213 = vmatpush1.bf16.msra.mxu0 %v2180
      %2214 = vmatprep.subr.bf16.mxu0 %v2183
      %2215 = vmatpush1.bf16.msra.mxu0 %v2182
      %2216 = vmatprep.subr.bf16.mxu0 %v2185
      %2217 = vmatpush1.bf16.msra.mxu0 %v2184
      %2218 = vmatprep.subr.bf16.mxu0 %v2187
      %2219 = vmatpush1.bf16.msra.mxu0 %v2186
      %2220 = vmatprep.subr.bf16.mxu0 0
      %2221 = vmatpush1.bf16.msra.mxu0 0
      %2222 = vmatprep.subr.bf16.mxu0 0
      %2223 = vmatpush1.bf16.msra.mxu0 0
      %2224 = vmatprep.subr.bf16.mxu0 0
      %2225 = vmatpush1.bf16.msra.mxu0 0
      %2226 = vmatprep.subr.bf16.mxu0 0
      %2227 = vmatpush1.bf16.msra.mxu0 0
      %2228 = vmatprep.subr.bf16.mxu0 0
      %2229 = vmatpush1.bf16.msra.mxu0 0
      %2230 = vmatprep.subr.bf16.mxu0 0
      %2231 = vmatpush1.bf16.msra.mxu0 0
      %2232 = vmatprep.subr.bf16.mxu0 0
      %2233 = vmatpush1.bf16.msra.mxu0 0
      %2234 = vmatprep.subr.bf16.mxu0 0
      %2235 = vmatpush1.bf16.msra.mxu0 0
      %2236 = vmatprep.mubr.bf16.mxu0 0
      %2237 = vmatmul.mubr.bf16.gmra.mrb[0].mxu0 %v2092
      %v2238 = vpop.f32.mrb[0].mxu0
      %v2239 = vadd.f32 0.0, %v2238
      %v2240 = vpop.f32.mrb[0].mxu0
      %v2241 = vadd.f32 0.0, %v2240
      %v2242 = vpop.f32.mrb[0].mxu0
      %v2243 = vadd.f32 0.0, %v2242
      %v2244 = vpop.f32.mrb[0].mxu0
      %v2245 = vadd.f32 0.0, %v2244
      %2246 = vmatprep.mubr.bf16.mxu0 0
      %2247 = vmatmul.mubr.bf16.gmra.mrb[0].mxu0 %v2093
      %v2248 = vpop.f32.mrb[0].mxu0
      %v2249 = vadd.f32 0.0, %v2248
      %v2250 = vpop.f32.mrb[0].mxu0
      %v2251 = vadd.f32 0.0, %v2250
      %v2252 = vpop.f32.mrb[0].mxu0
      %v2253 = vadd.f32 0.0, %v2252
      %v2254 = vpop.f32.mrb[0].mxu0
      %v2255 = vadd.f32 0.0, %v2254
      %2256 = vmatprep.mubr.bf16.mxu0 0
      %2257 = vmatmul.mubr.bf16.gmra.mrb[0].mxu0 %v2094
      %v2258 = vpop.f32.mrb[0].mxu0
      %v2259 = vadd.f32 0.0, %v2258
      %v2260 = vpop.f32.mrb[0].mxu0
      %v2261 = vadd.f32 0.0, %v2260
      %v2262 = vpop.f32.mrb[0].mxu0
      %v2263 = vadd.f32 0.0, %v2262
      %v2264 = vpop.f32.mrb[0].mxu0
      %v2265 = vadd.f32 0.0, %v2264
      %2266 = vmatprep.mubr.bf16.mxu0 0
      %2267 = vmatmul.mubr.bf16.gmra.mrb[0].mxu0 %v2095
      %v2268 = vpop.f32.mrb[0].mxu0
      %v2269 = vadd.f32 0.0, %v2268
      %v2270 = vpop.f32.mrb[0].mxu0
      %v2271 = vadd.f32 0.0, %v2270
      %v2272 = vpop.f32.mrb[0].mxu0
      %v2273 = vadd.f32 0.0, %v2272
      %v2274 = vpop.f32.mrb[0].mxu0
      %v2275 = vadd.f32 0.0, %v2274
      %2276 = vmatprep.mubr.bf16.mxu0 0
      %2277 = vmatmul.mubr.bf16.gmra.mrb[0].mxu0 %v2096
      %v2278 = vpop.f32.mrb[0].mxu0
      %v2279 = vadd.f32 0.0, %v2278
      %v2280 = vpop.f32.mrb[0].mxu0
      %v2281 = vadd.f32 0.0, %v2280
      %v2282 = vpop.f32.mrb[0].mxu0
      %v2283 = vadd.f32 0.0, %v2282
      %v2284 = vpop.f32.mrb[0].mxu0
      %v2285 = vadd.f32 0.0, %v2284
      %2286 = vmatprep.mubr.bf16.mxu0 0
      %2287 = vmatmul.mubr.bf16.gmra.mrb[0].mxu0 %v2097
      %v2288 = vpop.f32.mrb[0].mxu0
      %v2289 = vadd.f32 0.0, %v2288
      %v2290 = vpop.f32.mrb[0].mxu0
      %v2291 = vadd.f32 0.0, %v2290
      %v2292 = vpop.f32.mrb[0].mxu0
      %v2293 = vadd.f32 0.0, %v2292
      %v2294 = vpop.f32.mrb[0].mxu0
      %v2295 = vadd.f32 0.0, %v2294
      %2296 = vmatprep.mubr.bf16.mxu0 0
      %2297 = vmatmul.mubr.bf16.gmra.mrb[0].mxu0 %v2098
      %v2298 = vpop.f32.mrb[0].mxu0
      %v2299 = vadd.f32 0.0, %v2298
      %v2300 = vpop.f32.mrb[0].mxu0
      %v2301 = vadd.f32 0.0, %v2300
      %v2302 = vpop.f32.mrb[0].mxu0
      %v2303 = vadd.f32 0.0, %v2302
      %v2304 = vpop.f32.mrb[0].mxu0
      %v2305 = vadd.f32 0.0, %v2304
      %2306 = vmatprep.mubr.bf16.mxu0 0
      %2307 = vmatmul.mubr.bf16.gmra.mrb[0].mxu0 %v2099
      %v2308 = vpop.f32.mrb[0].mxu0
      %v2309 = vadd.f32 0.0, %v2308
      %v2310 = vpop.f32.mrb[0].mxu0
      %v2311 = vadd.f32 0.0, %v2310
      %v2312 = vpop.f32.mrb[0].mxu0
      %v2313 = vadd.f32 0.0, %v2312
      %v2314 = vpop.f32.mrb[0].mxu0
      %v2315 = vadd.f32 0.0, %v2314
      %2316 = vmatprep.mubr.bf16.mxu0 0
      %2317 = vmatmul.mubr.bf16.gmra.mrb[0].mxu0 %v2100
      %v2318 = vpop.f32.mrb[0].mxu0
      %v2319 = vadd.f32 0.0, %v2318
      %v2320 = vpop.f32.mrb[0].mxu0
      %v2321 = vadd.f32 0.0, %v2320
      %v2322 = vpop.f32.mrb[0].mxu0
      %v2323 = vadd.f32 0.0, %v2322
      %v2324 = vpop.f32.mrb[0].mxu0
      %v2325 = vadd.f32 0.0, %v2324
      %2326 = vmatprep.mubr.bf16.mxu0 0
      %2327 = vmatmul.mubr.bf16.gmra.mrb[0].mxu0 %v2101
      %v2328 = vpop.f32.mrb[0].mxu0
      %v2329 = vadd.f32 0.0, %v2328
      %v2330 = vpop.f32.mrb[0].mxu0
      %v2331 = vadd.f32 0.0, %v2330
      %v2332 = vpop.f32.mrb[0].mxu0
      %v2333 = vadd.f32 0.0, %v2332
      %v2334 = vpop.f32.mrb[0].mxu0
      %v2335 = vadd.f32 0.0, %v2334
      %2336 = vmatprep.mubr.bf16.mxu0 0
      %2337 = vmatmul.mubr.bf16.gmra.mrb[0].mxu0 %v2102
      %v2338 = vpop.f32.mrb[0].mxu0
      %v2339 = vadd.f32 0.0, %v2338
      %v2340 = vpop.f32.mrb[0].mxu0
      %v2341 = vadd.f32 0.0, %v2340
      %v2342 = vpop.f32.mrb[0].mxu0
      %v2343 = vadd.f32 0.0, %v2342
      %v2344 = vpop.f32.mrb[0].mxu0
      %v2345 = vadd.f32 0.0, %v2344
      %2346 = vmatprep.mubr.bf16.mxu0 0
      %2347 = vmatmul.mubr.bf16.gmra.mrb[0].mxu0 %v2103
      %v2348 = vpop.f32.mrb[0].mxu0
      %v2349 = vadd.f32 0.0, %v2348
      %v2350 = vpop.f32.mrb[0].mxu0
      %v2351 = vadd.f32 0.0, %v2350
      %v2352 = vpop.f32.mrb[0].mxu0
      %v2353 = vadd.f32 0.0, %v2352
      %v2354 = vpop.f32.mrb[0].mxu0
      %v2355 = vadd.f32 0.0, %v2354
      %2356 = vmatprep.mubr.bf16.mxu0 0
      %2357 = vmatmul.mubr.bf16.gmra.mrb[0].mxu0 %v2104
      %v2358 = vpop.f32.mrb[0].mxu0
      %v2359 = vadd.f32 0.0, %v2358
      %v2360 = vpop.f32.mrb[0].mxu0
      %v2361 = vadd.f32 0.0, %v2360
      %v2362 = vpop.f32.mrb[0].mxu0
      %v2363 = vadd.f32 0.0, %v2362
      %v2364 = vpop.f32.mrb[0].mxu0
      %v2365 = vadd.f32 0.0, %v2364
      %2366 = vmatprep.mubr.bf16.mxu0 0
      %2367 = vmatmul.mubr.bf16.gmra.mrb[0].mxu0 %v2105
      %v2368 = vpop.f32.mrb[0].mxu0
      %v2369 = vadd.f32 0.0, %v2368
      %v2370 = vpop.f32.mrb[0].mxu0
      %v2371 = vadd.f32 0.0, %v2370
      %v2372 = vpop.f32.mrb[0].mxu0
      %v2373 = vadd.f32 0.0, %v2372
      %v2374 = vpop.f32.mrb[0].mxu0
      %v2375 = vadd.f32 0.0, %v2374
      %2376 = vmatprep.mubr.bf16.mxu0 0
      %2377 = vmatmul.mubr.bf16.gmra.mrb[0].mxu0 %v2106
      %v2378 = vpop.f32.mrb[0].mxu0
      %v2379 = vadd.f32 0.0, %v2378
      %v2380 = vpop.f32.mrb[0].mxu0
      %v2381 = vadd.f32 0.0, %v2380
      %v2382 = vpop.f32.mrb[0].mxu0
      %v2383 = vadd.f32 0.0, %v2382
      %v2384 = vpop.f32.mrb[0].mxu0
      %v2385 = vadd.f32 0.0, %v2384
      %2386 = vmatprep.mubr.bf16.mxu0 0
      %2387 = vmatmul.mubr.bf16.gmra.mrb[0].mxu0 %v2107
      %v2388 = vpop.f32.mrb[0].mxu0
      %v2389 = vadd.f32 0.0, %v2388
      %v2390 = vpop.f32.mrb[0].mxu0
      %v2391 = vadd.f32 0.0, %v2390
      %v2392 = vpop.f32.mrb[0].mxu0
      %v2393 = vadd.f32 0.0, %v2392
      %v2394 = vpop.f32.mrb[0].mxu0
      %v2395 = vadd.f32 0.0, %v2394
      %2396 = vdwg.mxu0
      %v2397 = vadd.f32 %v1898, %v2239
      %v2398 = vadd.f32 %v1899, %v2241
      %v2399 = vadd.f32 %v1900, %v2243
      %v2400 = vadd.f32 %v1901, %v2245
      %v2401 = vadd.f32 %v1902, %v2249
      %v2402 = vadd.f32 %v1903, %v2251
      %v2403 = vadd.f32 %v1904, %v2253
      %v2404 = vadd.f32 %v1905, %v2255
      %v2405 = vadd.f32 %v1906, %v2259
      %v2406 = vadd.f32 %v1907, %v2261
      %v2407 = vadd.f32 %v1908, %v2263
      %v2408 = vadd.f32 %v1909, %v2265
      %v2409 = vadd.f32 %v1910, %v2269
      %v2410 = vadd.f32 %v1911, %v2271
      %v2411 = vadd.f32 %v1912, %v2273
      %v2412 = vadd.f32 %v1913, %v2275
      %v2413 = vadd.f32 %v1914, %v2279
      %v2414 = vadd.f32 %v1915, %v2281
      %v2415 = vadd.f32 %v1916, %v2283
      %v2416 = vadd.f32 %v1917, %v2285
      %v2417 = vadd.f32 %v1918, %v2289
      %v2418 = vadd.f32 %v1919, %v2291
      %v2419 = vadd.f32 %v1920, %v2293
      %v2420 = vadd.f32 %v1921, %v2295
      %v2421 = vadd.f32 %v1922, %v2299
      %v2422 = vadd.f32 %v1923, %v2301
      %v2423 = vadd.f32 %v1924, %v2303
      %v2424 = vadd.f32 %v1925, %v2305
      %v2425 = vadd.f32 %v1926, %v2309
      %v2426 = vadd.f32 %v1927, %v2311
      %v2427 = vadd.f32 %v1928, %v2313
      %v2428 = vadd.f32 %v1929, %v2315
      %v2429 = vadd.f32 %v1930, %v2319
      %v2430 = vadd.f32 %v1931, %v2321
      %v2431 = vadd.f32 %v1932, %v2323
      %v2432 = vadd.f32 %v1933, %v2325
      %v2433 = vadd.f32 %v1934, %v2329
      %v2434 = vadd.f32 %v1935, %v2331
      %v2435 = vadd.f32 %v1936, %v2333
      %v2436 = vadd.f32 %v1937, %v2335
      %v2437 = vadd.f32 %v1938, %v2339
      %v2438 = vadd.f32 %v1939, %v2341
      %v2439 = vadd.f32 %v1940, %v2343
      %v2440 = vadd.f32 %v1941, %v2345
      %v2441 = vadd.f32 %v1942, %v2349
      %v2442 = vadd.f32 %v1943, %v2351
      %v2443 = vadd.f32 %v1944, %v2353
      %v2444 = vadd.f32 %v1945, %v2355
      %v2445 = vadd.f32 %v1946, %v2359
      %v2446 = vadd.f32 %v1947, %v2361
      %v2447 = vadd.f32 %v1948, %v2363
      %v2448 = vadd.f32 %v1949, %v2365
      %v2449 = vadd.f32 %v1950, %v2369
      %v2450 = vadd.f32 %v1951, %v2371
      %v2451 = vadd.f32 %v1952, %v2373
      %v2452 = vadd.f32 %v1953, %v2375
      %v2453 = vadd.f32 %v1954, %v2379
      %v2454 = vadd.f32 %v1955, %v2381
      %v2455 = vadd.f32 %v1956, %v2383
      %v2456 = vadd.f32 %v1957, %v2385
      %v2457 = vadd.f32 %v1958, %v2389
      %v2458 = vadd.f32 %v1959, %v2391
      %v2459 = vadd.f32 %v1960, %v2393
      %v2460 = vadd.f32 %v1961, %v2395
      %v2462 = vshrl.u32 %v1963, 16
      %v2464 = vrot.slane %v2462, 4
      %v2465 = vshll.u32 %v1963, 16
      %v2467 = vrot.slane %v2465, 5
      %v2468 = vor.u32 %v2464, %v2467
      %v2469 = vrot.slane %v2468, 4
      %v2471 = vshll.u32 %v1964, 16
      %v2473 = vrot.slane %v2471, 5
      %v2474 = vsel %vm305, %v2469, %v2473
      %v2475 = vshrl.u32 %v1964, 16
      %v2477 = vrot.slane %v2475, 4
      %v2478 = vor.u32 %v2477, %v2473
      %v2479 = vrot.slane %v2478, 4
      %v2481 = vshll.u32 %v1965, 16
      %v2483 = vrot.slane %v2481, 5
      %v2484 = vsel %vm305, %v2479, %v2483
      %v2486 = vshrl.u32 %v1966, 16
      %v2488 = vrot.slane %v2486, 4
      %v2489 = vshll.u32 %v1966, 16
      %v2491 = vrot.slane %v2489, 5
      %v2492 = vor.u32 %v2488, %v2491
      %v2493 = vrot.slane %v2492, 4
      %v2495 = vshll.u32 %v1967, 16
      %v2497 = vrot.slane %v2495, 5
      %v2498 = vsel %vm305, %v2493, %v2497
      %v2499 = vshrl.u32 %v1967, 16
      %v2501 = vrot.slane %v2499, 4
      %v2502 = vor.u32 %v2501, %v2497
      %v2503 = vrot.slane %v2502, 4
      %v2505 = vshll.u32 %v1968, 16
      %v2507 = vrot.slane %v2505, 5
      %v2508 = vsel %vm305, %v2503, %v2507
      %v2510 = vshrl.u32 %v1969, 16
      %v2512 = vrot.slane %v2510, 4
      %v2513 = vshll.u32 %v1969, 16
      %v2515 = vrot.slane %v2513, 5
      %v2516 = vor.u32 %v2512, %v2515
      %v2517 = vrot.slane %v2516, 4
      %v2519 = vshll.u32 %v1970, 16
      %v2521 = vrot.slane %v2519, 5
      %v2522 = vsel %vm305, %v2517, %v2521
      %v2523 = vshrl.u32 %v1970, 16
      %v2525 = vrot.slane %v2523, 4
      %v2526 = vor.u32 %v2525, %v2521
      %v2527 = vrot.slane %v2526, 4
      %v2529 = vshll.u32 %v1971, 16
      %v2531 = vrot.slane %v2529, 5
      %v2532 = vsel %vm305, %v2527, %v2531
      %v2534 = vshrl.u32 %v1972, 16
      %v2536 = vrot.slane %v2534, 4
      %v2537 = vshll.u32 %v1972, 16
      %v2539 = vrot.slane %v2537, 5
      %v2540 = vor.u32 %v2536, %v2539
      %v2541 = vrot.slane %v2540, 4
      %v2543 = vshll.u32 %v1973, 16
      %v2545 = vrot.slane %v2543, 5
      %v2546 = vsel %vm305, %v2541, %v2545
      %v2547 = vshrl.u32 %v1973, 16
      %v2549 = vrot.slane %v2547, 4
      %v2550 = vor.u32 %v2549, %v2545
      %v2551 = vrot.slane %v2550, 4
      %v2553 = vshll.u32 %v1974, 16
      %v2555 = vrot.slane %v2553, 5
      %v2556 = vsel %vm305, %v2551, %v2555
      %v2558 = vshrl.u32 %v1975, 16
      %v2560 = vrot.slane %v2558, 4
      %v2561 = vshll.u32 %v1975, 16
      %v2563 = vrot.slane %v2561, 5
      %v2564 = vor.u32 %v2560, %v2563
      %v2565 = vrot.slane %v2564, 4
      %v2567 = vshll.u32 %v1976, 16
      %v2569 = vrot.slane %v2567, 5
      %v2570 = vsel %vm305, %v2565, %v2569
      %v2571 = vshrl.u32 %v1976, 16
      %v2573 = vrot.slane %v2571, 4
      %v2574 = vor.u32 %v2573, %v2569
      %v2575 = vrot.slane %v2574, 4
      %v2577 = vshll.u32 %v1977, 16
      %v2579 = vrot.slane %v2577, 5
      %v2580 = vsel %vm305, %v2575, %v2579
      %v2582 = vshrl.u32 %v1978, 16
      %v2584 = vrot.slane %v2582, 4
      %v2585 = vshll.u32 %v1978, 16
      %v2587 = vrot.slane %v2585, 5
      %v2588 = vor.u32 %v2584, %v2587
      %v2589 = vrot.slane %v2588, 4
      %v2591 = vshll.u32 %v1979, 16
      %v2593 = vrot.slane %v2591, 5
      %v2594 = vsel %vm305, %v2589, %v2593
      %v2595 = vshrl.u32 %v1979, 16
      %v2597 = vrot.slane %v2595, 4
      %v2598 = vor.u32 %v2597, %v2593
      %v2599 = vrot.slane %v2598, 4
      %v2601 = vshll.u32 %v1980, 16
      %v2603 = vrot.slane %v2601, 5
      %v2604 = vsel %vm305, %v2599, %v2603
      %v2606 = vshrl.u32 %v1981, 16
      %v2608 = vrot.slane %v2606, 4
      %v2609 = vshll.u32 %v1981, 16
      %v2611 = vrot.slane %v2609, 5
      %v2612 = vor.u32 %v2608, %v2611
      %v2613 = vrot.slane %v2612, 4
      %v2615 = vshll.u32 %v1982, 16
      %v2617 = vrot.slane %v2615, 5
      %v2618 = vsel %vm305, %v2613, %v2617
      %v2619 = vshrl.u32 %v1982, 16
      %v2621 = vrot.slane %v2619, 4
      %v2622 = vor.u32 %v2621, %v2617
      %v2623 = vrot.slane %v2622, 4
      %v2625 = vshll.u32 %v1983, 16
      %v2627 = vrot.slane %v2625, 5
      %v2628 = vsel %vm305, %v2623, %v2627
      %v2630 = vshrl.u32 %v1984, 16
      %v2632 = vrot.slane %v2630, 4
      %v2633 = vshll.u32 %v1984, 16
      %v2635 = vrot.slane %v2633, 5
      %v2636 = vor.u32 %v2632, %v2635
      %v2637 = vrot.slane %v2636, 4
      %v2639 = vshll.u32 %v1985, 16
      %v2641 = vrot.slane %v2639, 5
      %v2642 = vsel %vm305, %v2637, %v2641
      %v2643 = vshrl.u32 %v1985, 16
      %v2645 = vrot.slane %v2643, 4
      %v2646 = vor.u32 %v2645, %v2641
      %v2647 = vrot.slane %v2646, 4
      %v2649 = vshll.u32 %v1986, 16
      %v2651 = vrot.slane %v2649, 5
      %v2652 = vsel %vm305, %v2647, %v2651
      %v2654 = vshrl.u32 %v1987, 16
      %v2656 = vrot.slane %v2654, 4
      %v2657 = vshll.u32 %v1987, 16
      %v2659 = vrot.slane %v2657, 5
      %v2660 = vor.u32 %v2656, %v2659
      %v2661 = vrot.slane %v2660, 4
      %v2663 = vshll.u32 %v1988, 16
      %v2665 = vrot.slane %v2663, 5
      %v2666 = vsel %vm305, %v2661, %v2665
      %v2667 = vshrl.u32 %v1988, 16
      %v2669 = vrot.slane %v2667, 4
      %v2670 = vor.u32 %v2669, %v2665
      %v2671 = vrot.slane %v2670, 4
      %v2673 = vshll.u32 %v1989, 16
      %v2675 = vrot.slane %v2673, 5
      %v2676 = vsel %vm305, %v2671, %v2675
      %v2678 = vshrl.u32 %v1990, 16
      %v2680 = vrot.slane %v2678, 4
      %v2681 = vshll.u32 %v1990, 16
      %v2683 = vrot.slane %v2681, 5
      %v2684 = vor.u32 %v2680, %v2683
      %v2685 = vrot.slane %v2684, 4
      %v2687 = vshll.u32 %v1991, 16
      %v2689 = vrot.slane %v2687, 5
      %v2690 = vsel %vm305, %v2685, %v2689
      %v2691 = vshrl.u32 %v1991, 16
      %v2693 = vrot.slane %v2691, 4
      %v2694 = vor.u32 %v2693, %v2689
      %v2695 = vrot.slane %v2694, 4
      %v2697 = vshll.u32 %v1992, 16
      %v2699 = vrot.slane %v2697, 5
      %v2700 = vsel %vm305, %v2695, %v2699
      %v2702 = vshrl.u32 %v1993, 16
      %v2704 = vrot.slane %v2702, 4
      %v2705 = vshll.u32 %v1993, 16
      %v2707 = vrot.slane %v2705, 5
      %v2708 = vor.u32 %v2704, %v2707
      %v2709 = vrot.slane %v2708, 4
      %v2711 = vshll.u32 %v1994, 16
      %v2713 = vrot.slane %v2711, 5
      %v2714 = vsel %vm305, %v2709, %v2713
      %v2715 = vshrl.u32 %v1994, 16
      %v2717 = vrot.slane %v2715, 4
      %v2718 = vor.u32 %v2717, %v2713
      %v2719 = vrot.slane %v2718, 4
      %v2721 = vshll.u32 %v1995, 16
      %v2723 = vrot.slane %v2721, 5
      %v2724 = vsel %vm305, %v2719, %v2723
      %v2726 = vshrl.u32 %v1996, 16
      %v2728 = vrot.slane %v2726, 4
      %v2729 = vshll.u32 %v1996, 16
      %v2731 = vrot.slane %v2729, 5
      %v2732 = vor.u32 %v2728, %v2731
      %v2733 = vrot.slane %v2732, 4
      %v2735 = vshll.u32 %v1997, 16
      %v2737 = vrot.slane %v2735, 5
      %v2738 = vsel %vm305, %v2733, %v2737
      %v2739 = vshrl.u32 %v1997, 16
      %v2741 = vrot.slane %v2739, 4
      %v2742 = vor.u32 %v2741, %v2737
      %v2743 = vrot.slane %v2742, 4
      %v2745 = vshll.u32 %v1998, 16
      %v2747 = vrot.slane %v2745, 5
      %v2748 = vsel %vm305, %v2743, %v2747
      %v2750 = vshrl.u32 %v1999, 16
      %v2752 = vrot.slane %v2750, 4
      %v2753 = vshll.u32 %v1999, 16
      %v2755 = vrot.slane %v2753, 5
      %v2756 = vor.u32 %v2752, %v2755
      %v2757 = vrot.slane %v2756, 4
      %v2759 = vshll.u32 %v2000, 16
      %v2761 = vrot.slane %v2759, 5
      %v2762 = vsel %vm305, %v2757, %v2761
      %v2763 = vshrl.u32 %v2000, 16
      %v2765 = vrot.slane %v2763, 4
      %v2766 = vor.u32 %v2765, %v2761
      %v2767 = vrot.slane %v2766, 4
      %v2769 = vshll.u32 %v2001, 16
      %v2771 = vrot.slane %v2769, 5
      %v2772 = vsel %vm305, %v2767, %v2771
      %v2774 = vshrl.u32 %v2002, 16
      %v2776 = vrot.slane %v2774, 4
      %v2777 = vshll.u32 %v2002, 16
      %v2779 = vrot.slane %v2777, 5
      %v2780 = vor.u32 %v2776, %v2779
      %v2781 = vrot.slane %v2780, 4
      %v2783 = vshll.u32 %v2003, 16
      %v2785 = vrot.slane %v2783, 5
      %v2786 = vsel %vm305, %v2781, %v2785
      %v2787 = vshrl.u32 %v2003, 16
      %v2789 = vrot.slane %v2787, 4
      %v2790 = vor.u32 %v2789, %v2785
      %v2791 = vrot.slane %v2790, 4
      %v2793 = vshll.u32 %v2004, 16
      %v2795 = vrot.slane %v2793, 5
      %v2796 = vsel %vm305, %v2791, %v2795
      %v2798 = vshrl.u32 %v2005, 16
      %v2800 = vrot.slane %v2798, 4
      %v2801 = vshll.u32 %v2005, 16
      %v2803 = vrot.slane %v2801, 5
      %v2804 = vor.u32 %v2800, %v2803
      %v2805 = vrot.slane %v2804, 4
      %v2807 = vshll.u32 %v2006, 16
      %v2809 = vrot.slane %v2807, 5
      %v2810 = vsel %vm305, %v2805, %v2809
      %v2811 = vshrl.u32 %v2006, 16
      %v2813 = vrot.slane %v2811, 4
      %v2814 = vor.u32 %v2813, %v2809
      %v2815 = vrot.slane %v2814, 4
      %v2817 = vshll.u32 %v2007, 16
      %v2819 = vrot.slane %v2817, 5
      %v2820 = vsel %vm305, %v2815, %v2819
      %v2822 = vshrl.u32 %v2008, 16
      %v2824 = vrot.slane %v2822, 4
      %v2825 = vshll.u32 %v2008, 16
      %v2827 = vrot.slane %v2825, 5
      %v2828 = vor.u32 %v2824, %v2827
      %v2829 = vrot.slane %v2828, 4
      %v2831 = vshll.u32 %v2009, 16
      %v2833 = vrot.slane %v2831, 5
      %v2834 = vsel %vm305, %v2829, %v2833
      %v2835 = vshrl.u32 %v2009, 16
      %v2837 = vrot.slane %v2835, 4
      %v2838 = vor.u32 %v2837, %v2833
      %v2839 = vrot.slane %v2838, 4
      %v2841 = vshll.u32 %v2010, 16
      %v2843 = vrot.slane %v2841, 5
      %v2844 = vsel %vm305, %v2839, %v2843
      %s2845 = scalar_lea.vmem %s1, 512
      %v2846 = vld [vmem:[%s2845] sm:$0xff]
      %v2847 = vld [vmem:[%s2845 + $0x8] sm:$0xff]
      %v2848 = vld [vmem:[%s2845 + $0x10] sm:$0xff]
      %v2849 = vld [vmem:[%s2845 + $0x18] sm:$0xff]
      %v2850 = vld [vmem:[%s2845 + $0x20] sm:$0xff]
      %v2851 = vld [vmem:[%s2845 + $0x28] sm:$0xff]
      %v2852 = vld [vmem:[%s2845 + $0x30] sm:$0xff]
      %v2853 = vld [vmem:[%s2845 + $0x38] sm:$0xff]
      %v2854 = vld [vmem:[%s2845 + $0x40] sm:$0xff]
      %v2855 = vld [vmem:[%s2845 + $0x48] sm:$0xff]
      %v2856 = vld [vmem:[%s2845 + $0x50] sm:$0xff]
      %v2857 = vld [vmem:[%s2845 + $0x58] sm:$0xff]
      %v2858 = vld [vmem:[%s2845 + $0x60] sm:$0xff]
      %v2859 = vld [vmem:[%s2845 + $0x68] sm:$0xff]
      %v2860 = vld [vmem:[%s2845 + $0x70] sm:$0xff]
      %v2861 = vld [vmem:[%s2845 + $0x78] sm:$0xff]
      %v2862 = vunpack.c.l.b16 %v2474
      %v2863 = vunpack.c.l.b16 %v2484
      %v2864 = vunpack.c.l.b16 %v2498
      %v2865 = vunpack.c.l.b16 %v2508
      %v2866 = vunpack.c.l.b16 %v2522
      %v2867 = vunpack.c.l.b16 %v2532
      %v2868 = vunpack.c.l.b16 %v2546
      %v2869 = vunpack.c.l.b16 %v2556
      %v2870 = vunpack.c.l.b16 %v2570
      %v2871 = vunpack.c.l.b16 %v2580
      %v2872 = vunpack.c.l.b16 %v2594
      %v2873 = vunpack.c.l.b16 %v2604
      %v2874 = vunpack.c.l.b16 %v2618
      %v2875 = vunpack.c.l.b16 %v2628
      %v2876 = vunpack.c.l.b16 %v2642
      %v2877 = vunpack.c.l.b16 %v2652
      %v2878 = vunpack.c.l.b16 %v2666
      %v2879 = vunpack.c.l.b16 %v2676
      %v2880 = vunpack.c.l.b16 %v2690
      %v2881 = vunpack.c.l.b16 %v2700
      %v2882 = vunpack.c.l.b16 %v2714
      %v2883 = vunpack.c.l.b16 %v2724
      %v2884 = vunpack.c.l.b16 %v2738
      %v2885 = vunpack.c.l.b16 %v2748
      %v2886 = vunpack.c.l.b16 %v2762
      %v2887 = vunpack.c.l.b16 %v2772
      %v2888 = vunpack.c.l.b16 %v2786
      %v2889 = vunpack.c.l.b16 %v2796
      %v2890 = vunpack.c.l.b16 %v2810
      %v2891 = vunpack.c.l.b16 %v2820
      %v2892 = vunpack.c.l.b16 %v2834
      %v2893 = vunpack.c.l.b16 %v2844
      %v2894 = vpack.c.b16 %v2863, %v2862
      %v2895 = vpack.c.b16 %v2865, %v2864
      %v2896 = vpack.c.b16 %v2867, %v2866
      %v2897 = vpack.c.b16 %v2869, %v2868
      %v2898 = vpack.c.b16 %v2871, %v2870
      %v2899 = vpack.c.b16 %v2873, %v2872
      %v2900 = vpack.c.b16 %v2875, %v2874
      %v2901 = vpack.c.b16 %v2877, %v2876
      %v2902 = vpack.c.b16 %v2879, %v2878
      %v2903 = vpack.c.b16 %v2881, %v2880
      %v2904 = vpack.c.b16 %v2883, %v2882
      %v2905 = vpack.c.b16 %v2885, %v2884
      %v2906 = vpack.c.b16 %v2887, %v2886
      %v2907 = vpack.c.b16 %v2889, %v2888
      %v2908 = vpack.c.b16 %v2891, %v2890
      %v2909 = vpack.c.b16 %v2893, %v2892
      %v2942 = vunpack.c.l.b16 %v2846
      %v2943 = vunpack.c.h.b16 %v2846
      %v2944 = vunpack.c.l.b16 %v2847
      %v2945 = vunpack.c.h.b16 %v2847
      %v2946 = vunpack.c.l.b16 %v2848
      %v2947 = vunpack.c.h.b16 %v2848
      %v2948 = vunpack.c.l.b16 %v2849
      %v2949 = vunpack.c.h.b16 %v2849
      %v2950 = vunpack.c.l.b16 %v2850
      %v2951 = vunpack.c.h.b16 %v2850
      %v2952 = vunpack.c.l.b16 %v2851
      %v2953 = vunpack.c.h.b16 %v2851
      %v2954 = vunpack.c.l.b16 %v2852
      %v2955 = vunpack.c.h.b16 %v2852
      %v2956 = vunpack.c.l.b16 %v2853
      %v2957 = vunpack.c.h.b16 %v2853
      %v2958 = vunpack.c.l.b16 %v2854
      %v2959 = vunpack.c.h.b16 %v2854
      %v2960 = vunpack.c.l.b16 %v2855
      %v2961 = vunpack.c.h.b16 %v2855
      %v2962 = vunpack.c.l.b16 %v2856
      %v2963 = vunpack.c.h.b16 %v2856
      %v2964 = vunpack.c.l.b16 %v2857
      %v2965 = vunpack.c.h.b16 %v2857
      %v2966 = vunpack.c.l.b16 %v2858
      %v2967 = vunpack.c.h.b16 %v2858
      %v2968 = vunpack.c.l.b16 %v2859
      %v2969 = vunpack.c.h.b16 %v2859
      %v2970 = vunpack.c.l.b16 %v2860
      %v2971 = vunpack.c.h.b16 %v2860
      %v2972 = vunpack.c.l.b16 %v2861
      %v2973 = vunpack.c.h.b16 %v2861
      %v2974 = vpack.c.b16 %v2944, %v2942
      %v2975 = vpack.c.b16 %v2945, %v2943
      %v2976 = vpack.c.b16 %v2948, %v2946
      %v2977 = vpack.c.b16 %v2949, %v2947
      %v2978 = vpack.c.b16 %v2952, %v2950
      %v2979 = vpack.c.b16 %v2953, %v2951
      %v2980 = vpack.c.b16 %v2956, %v2954
      %v2981 = vpack.c.b16 %v2957, %v2955
      %v2982 = vpack.c.b16 %v2960, %v2958
      %v2983 = vpack.c.b16 %v2961, %v2959
      %v2984 = vpack.c.b16 %v2964, %v2962
      %v2985 = vpack.c.b16 %v2965, %v2963
      %v2986 = vpack.c.b16 %v2968, %v2966
      %v2987 = vpack.c.b16 %v2969, %v2967
      %v2988 = vpack.c.b16 %v2972, %v2970
      %v2989 = vpack.c.b16 %v2973, %v2971
      %3006 = vmatprep.subr.bf16.mxu0 %v2975
      %3007 = vmatpush1.bf16.msra.mxu0 %v2974
      %3008 = vmatprep.subr.bf16.mxu0 %v2977
      %3009 = vmatpush1.bf16.msra.mxu0 %v2976
      %3010 = vmatprep.subr.bf16.mxu0 %v2979
      %3011 = vmatpush1.bf16.msra.mxu0 %v2978
      %3012 = vmatprep.subr.bf16.mxu0 %v2981
      %3013 = vmatpush1.bf16.msra.mxu0 %v2980
      %3014 = vmatprep.subr.bf16.mxu0 %v2983
      %3015 = vmatpush1.bf16.msra.mxu0 %v2982
      %3016 = vmatprep.subr.bf16.mxu0 %v2985
      %3017 = vmatpush1.bf16.msra.mxu0 %v2984
      %3018 = vmatprep.subr.bf16.mxu0 %v2987
      %3019 = vmatpush1.bf16.msra.mxu0 %v2986
      %3020 = vmatprep.subr.bf16.mxu0 %v2989
      %3021 = vmatpush1.bf16.msra.mxu0 %v2988
      %3022 = vmatprep.subr.bf16.mxu0 0
      %3023 = vmatpush1.bf16.msra.mxu0 0
      %3024 = vmatprep.subr.bf16.mxu0 0
      %3025 = vmatpush1.bf16.msra.mxu0 0
      %3026 = vmatprep.subr.bf16.mxu0 0
      %3027 = vmatpush1.bf16.msra.mxu0 0
      %3028 = vmatprep.subr.bf16.mxu0 0
      %3029 = vmatpush1.bf16.msra.mxu0 0
      %3030 = vmatprep.subr.bf16.mxu0 0
      %3031 = vmatpush1.bf16.msra.mxu0 0
      %3032 = vmatprep.subr.bf16.mxu0 0
      %3033 = vmatpush1.bf16.msra.mxu0 0
      %3034 = vmatprep.subr.bf16.mxu0 0
      %3035 = vmatpush1.bf16.msra.mxu0 0
      %3036 = vmatprep.subr.bf16.mxu0 0
      %3037 = vmatpush1.bf16.msra.mxu0 0
      %3038 = vmatprep.mubr.bf16.mxu0 0
      %3039 = vmatmul.mubr.bf16.gmra.mrb[0].mxu0 %v2894
      %v3040 = vpop.f32.mrb[0].mxu0
      %v3041 = vadd.f32 0.0, %v3040
      %v3042 = vpop.f32.mrb[0].mxu0
      %v3043 = vadd.f32 0.0, %v3042
      %v3044 = vpop.f32.mrb[0].mxu0
      %v3045 = vadd.f32 0.0, %v3044
      %v3046 = vpop.f32.mrb[0].mxu0
      %v3047 = vadd.f32 0.0, %v3046
      %3048 = vmatprep.mubr.bf16.mxu0 0
      %3049 = vmatmul.mubr.bf16.gmra.mrb[0].mxu0 %v2895
      %v3050 = vpop.f32.mrb[0].mxu0
      %v3051 = vadd.f32 0.0, %v3050
      %v3052 = vpop.f32.mrb[0].mxu0
      %v3053 = vadd.f32 0.0, %v3052
      %v3054 = vpop.f32.mrb[0].mxu0
      %v3055 = vadd.f32 0.0, %v3054
      %v3056 = vpop.f32.mrb[0].mxu0
      %v3057 = vadd.f32 0.0, %v3056
      %3058 = vmatprep.mubr.bf16.mxu0 0
      %3059 = vmatmul.mubr.bf16.gmra.mrb[0].mxu0 %v2896
      %v3060 = vpop.f32.mrb[0].mxu0
      %v3061 = vadd.f32 0.0, %v3060
      %v3062 = vpop.f32.mrb[0].mxu0
      %v3063 = vadd.f32 0.0, %v3062
      %v3064 = vpop.f32.mrb[0].mxu0
      %v3065 = vadd.f32 0.0, %v3064
      %v3066 = vpop.f32.mrb[0].mxu0
      %v3067 = vadd.f32 0.0, %v3066
      %3068 = vmatprep.mubr.bf16.mxu0 0
      %3069 = vmatmul.mubr.bf16.gmra.mrb[0].mxu0 %v2897
      %v3070 = vpop.f32.mrb[0].mxu0
      %v3071 = vadd.f32 0.0, %v3070
      %v3072 = vpop.f32.mrb[0].mxu0
      %v3073 = vadd.f32 0.0, %v3072
      %v3074 = vpop.f32.mrb[0].mxu0
      %v3075 = vadd.f32 0.0, %v3074
      %v3076 = vpop.f32.mrb[0].mxu0
      %v3077 = vadd.f32 0.0, %v3076
      %3078 = vmatprep.mubr.bf16.mxu0 0
      %3079 = vmatmul.mubr.bf16.gmra.mrb[0].mxu0 %v2898
      %v3080 = vpop.f32.mrb[0].mxu0
      %v3081 = vadd.f32 0.0, %v3080
      %v3082 = vpop.f32.mrb[0].mxu0
      %v3083 = vadd.f32 0.0, %v3082
      %v3084 = vpop.f32.mrb[0].mxu0
      %v3085 = vadd.f32 0.0, %v3084
      %v3086 = vpop.f32.mrb[0].mxu0
      %v3087 = vadd.f32 0.0, %v3086
      %3088 = vmatprep.mubr.bf16.mxu0 0
      %3089 = vmatmul.mubr.bf16.gmra.mrb[0].mxu0 %v2899
      %v3090 = vpop.f32.mrb[0].mxu0
      %v3091 = vadd.f32 0.0, %v3090
      %v3092 = vpop.f32.mrb[0].mxu0
      %v3093 = vadd.f32 0.0, %v3092
      %v3094 = vpop.f32.mrb[0].mxu0
      %v3095 = vadd.f32 0.0, %v3094
      %v3096 = vpop.f32.mrb[0].mxu0
      %v3097 = vadd.f32 0.0, %v3096
      %3098 = vmatprep.mubr.bf16.mxu0 0
      %3099 = vmatmul.mubr.bf16.gmra.mrb[0].mxu0 %v2900
      %v3100 = vpop.f32.mrb[0].mxu0
      %v3101 = vadd.f32 0.0, %v3100
      %v3102 = vpop.f32.mrb[0].mxu0
      %v3103 = vadd.f32 0.0, %v3102
      %v3104 = vpop.f32.mrb[0].mxu0
      %v3105 = vadd.f32 0.0, %v3104
      %v3106 = vpop.f32.mrb[0].mxu0
      %v3107 = vadd.f32 0.0, %v3106
      %3108 = vmatprep.mubr.bf16.mxu0 0
      %3109 = vmatmul.mubr.bf16.gmra.mrb[0].mxu0 %v2901
      %v3110 = vpop.f32.mrb[0].mxu0
      %v3111 = vadd.f32 0.0, %v3110
      %v3112 = vpop.f32.mrb[0].mxu0
      %v3113 = vadd.f32 0.0, %v3112
      %v3114 = vpop.f32.mrb[0].mxu0
      %v3115 = vadd.f32 0.0, %v3114
      %v3116 = vpop.f32.mrb[0].mxu0
      %v3117 = vadd.f32 0.0, %v3116
      %3118 = vmatprep.mubr.bf16.mxu0 0
      %3119 = vmatmul.mubr.bf16.gmra.mrb[0].mxu0 %v2902
      %v3120 = vpop.f32.mrb[0].mxu0
      %v3121 = vadd.f32 0.0, %v3120
      %v3122 = vpop.f32.mrb[0].mxu0
      %v3123 = vadd.f32 0.0, %v3122
      %v3124 = vpop.f32.mrb[0].mxu0
      %v3125 = vadd.f32 0.0, %v3124
      %v3126 = vpop.f32.mrb[0].mxu0
      %v3127 = vadd.f32 0.0, %v3126
      %3128 = vmatprep.mubr.bf16.mxu0 0
      %3129 = vmatmul.mubr.bf16.gmra.mrb[0].mxu0 %v2903
      %v3130 = vpop.f32.mrb[0].mxu0
      %v3131 = vadd.f32 0.0, %v3130
      %v3132 = vpop.f32.mrb[0].mxu0
      %v3133 = vadd.f32 0.0, %v3132
      %v3134 = vpop.f32.mrb[0].mxu0
      %v3135 = vadd.f32 0.0, %v3134
      %v3136 = vpop.f32.mrb[0].mxu0
      %v3137 = vadd.f32 0.0, %v3136
      %3138 = vmatprep.mubr.bf16.mxu0 0
      %3139 = vmatmul.mubr.bf16.gmra.mrb[0].mxu0 %v2904
      %v3140 = vpop.f32.mrb[0].mxu0
      %v3141 = vadd.f32 0.0, %v3140
      %v3142 = vpop.f32.mrb[0].mxu0
      %v3143 = vadd.f32 0.0, %v3142
      %v3144 = vpop.f32.mrb[0].mxu0
      %v3145 = vadd.f32 0.0, %v3144
      %v3146 = vpop.f32.mrb[0].mxu0
      %v3147 = vadd.f32 0.0, %v3146
      %3148 = vmatprep.mubr.bf16.mxu0 0
      %3149 = vmatmul.mubr.bf16.gmra.mrb[0].mxu0 %v2905
      %v3150 = vpop.f32.mrb[0].mxu0
      %v3151 = vadd.f32 0.0, %v3150
      %v3152 = vpop.f32.mrb[0].mxu0
      %v3153 = vadd.f32 0.0, %v3152
      %v3154 = vpop.f32.mrb[0].mxu0
      %v3155 = vadd.f32 0.0, %v3154
      %v3156 = vpop.f32.mrb[0].mxu0
      %v3157 = vadd.f32 0.0, %v3156
      %3158 = vmatprep.mubr.bf16.mxu0 0
      %3159 = vmatmul.mubr.bf16.gmra.mrb[0].mxu0 %v2906
      %v3160 = vpop.f32.mrb[0].mxu0
      %v3161 = vadd.f32 0.0, %v3160
      %v3162 = vpop.f32.mrb[0].mxu0
      %v3163 = vadd.f32 0.0, %v3162
      %v3164 = vpop.f32.mrb[0].mxu0
      %v3165 = vadd.f32 0.0, %v3164
      %v3166 = vpop.f32.mrb[0].mxu0
      %v3167 = vadd.f32 0.0, %v3166
      %3168 = vmatprep.mubr.bf16.mxu0 0
      %3169 = vmatmul.mubr.bf16.gmra.mrb[0].mxu0 %v2907
      %v3170 = vpop.f32.mrb[0].mxu0
      %v3171 = vadd.f32 0.0, %v3170
      %v3172 = vpop.f32.mrb[0].mxu0
      %v3173 = vadd.f32 0.0, %v3172
      %v3174 = vpop.f32.mrb[0].mxu0
      %v3175 = vadd.f32 0.0, %v3174
      %v3176 = vpop.f32.mrb[0].mxu0
      %v3177 = vadd.f32 0.0, %v3176
      %3178 = vmatprep.mubr.bf16.mxu0 0
      %3179 = vmatmul.mubr.bf16.gmra.mrb[0].mxu0 %v2908
      %v3180 = vpop.f32.mrb[0].mxu0
      %v3181 = vadd.f32 0.0, %v3180
      %v3182 = vpop.f32.mrb[0].mxu0
      %v3183 = vadd.f32 0.0, %v3182
      %v3184 = vpop.f32.mrb[0].mxu0
      %v3185 = vadd.f32 0.0, %v3184
      %v3186 = vpop.f32.mrb[0].mxu0
      %v3187 = vadd.f32 0.0, %v3186
      %3188 = vmatprep.mubr.bf16.mxu0 0
      %3189 = vmatmul.mubr.bf16.gmra.mrb[0].mxu0 %v2909
      %v3190 = vpop.f32.mrb[0].mxu0
      %v3191 = vadd.f32 0.0, %v3190
      %v3192 = vpop.f32.mrb[0].mxu0
      %v3193 = vadd.f32 0.0, %v3192
      %v3194 = vpop.f32.mrb[0].mxu0
      %v3195 = vadd.f32 0.0, %v3194
      %v3196 = vpop.f32.mrb[0].mxu0
      %v3197 = vadd.f32 0.0, %v3196
      %3198 = vdwg.mxu0
      %v3199 = vadd.f32 %v2397, %v3041
      %v3200 = vadd.f32 %v2398, %v3043
      %v3201 = vadd.f32 %v2399, %v3045
      %v3202 = vadd.f32 %v2400, %v3047
      %v3203 = vadd.f32 %v2401, %v3051
      %v3204 = vadd.f32 %v2402, %v3053
      %v3205 = vadd.f32 %v2403, %v3055
      %v3206 = vadd.f32 %v2404, %v3057
      %v3207 = vadd.f32 %v2405, %v3061
      %v3208 = vadd.f32 %v2406, %v3063
      %v3209 = vadd.f32 %v2407, %v3065
      %v3210 = vadd.f32 %v2408, %v3067
      %v3211 = vadd.f32 %v2409, %v3071
      %v3212 = vadd.f32 %v2410, %v3073
      %v3213 = vadd.f32 %v2411, %v3075
      %v3214 = vadd.f32 %v2412, %v3077
      %v3215 = vadd.f32 %v2413, %v3081
      %v3216 = vadd.f32 %v2414, %v3083
      %v3217 = vadd.f32 %v2415, %v3085
      %v3218 = vadd.f32 %v2416, %v3087
      %v3219 = vadd.f32 %v2417, %v3091
      %v3220 = vadd.f32 %v2418, %v3093
      %v3221 = vadd.f32 %v2419, %v3095
      %v3222 = vadd.f32 %v2420, %v3097
      %v3223 = vadd.f32 %v2421, %v3101
      %v3224 = vadd.f32 %v2422, %v3103
      %v3225 = vadd.f32 %v2423, %v3105
      %v3226 = vadd.f32 %v2424, %v3107
      %v3227 = vadd.f32 %v2425, %v3111
      %v3228 = vadd.f32 %v2426, %v3113
      %v3229 = vadd.f32 %v2427, %v3115
      %v3230 = vadd.f32 %v2428, %v3117
      %v3231 = vadd.f32 %v2429, %v3121
      %v3232 = vadd.f32 %v2430, %v3123
      %v3233 = vadd.f32 %v2431, %v3125
      %v3234 = vadd.f32 %v2432, %v3127
      %v3235 = vadd.f32 %v2433, %v3131
      %v3236 = vadd.f32 %v2434, %v3133
      %v3237 = vadd.f32 %v2435, %v3135
      %v3238 = vadd.f32 %v2436, %v3137
      %v3239 = vadd.f32 %v2437, %v3141
      %v3240 = vadd.f32 %v2438, %v3143
      %v3241 = vadd.f32 %v2439, %v3145
      %v3242 = vadd.f32 %v2440, %v3147
      %v3243 = vadd.f32 %v2441, %v3151
      %v3244 = vadd.f32 %v2442, %v3153
      %v3245 = vadd.f32 %v2443, %v3155
      %v3246 = vadd.f32 %v2444, %v3157
      %v3247 = vadd.f32 %v2445, %v3161
      %v3248 = vadd.f32 %v2446, %v3163
      %v3249 = vadd.f32 %v2447, %v3165
      %v3250 = vadd.f32 %v2448, %v3167
      %v3251 = vadd.f32 %v2449, %v3171
      %v3252 = vadd.f32 %v2450, %v3173
      %v3253 = vadd.f32 %v2451, %v3175
      %v3254 = vadd.f32 %v2452, %v3177
      %v3255 = vadd.f32 %v2453, %v3181
      %v3256 = vadd.f32 %v2454, %v3183
      %v3257 = vadd.f32 %v2455, %v3185
      %v3258 = vadd.f32 %v2456, %v3187
      %v3259 = vadd.f32 %v2457, %v3191
      %v3260 = vadd.f32 %v2458, %v3193
      %v3261 = vadd.f32 %v2459, %v3195
      %v3262 = vadd.f32 %v2460, %v3197
      %v3279 = vrot.slane %v1963, 5
      %v3280 = vrot.slane %v3279, 4
      %v3281 = vrot.slane %v1964, 5
      %v3282 = vsel %vm1431, %v3280, %v3281
      %v3283 = vrot.slane %v3281, 4
      %v3284 = vrot.slane %v1965, 5
      %v3285 = vsel %vm1431, %v3283, %v3284
      %v3286 = vrot.slane %v1966, 5
      %v3287 = vrot.slane %v3286, 4
      %v3288 = vrot.slane %v1967, 5
      %v3289 = vsel %vm1431, %v3287, %v3288
      %v3290 = vrot.slane %v3288, 4
      %v3291 = vrot.slane %v1968, 5
      %v3292 = vsel %vm1431, %v3290, %v3291
      %v3293 = vrot.slane %v1969, 5
      %v3294 = vrot.slane %v3293, 4
      %v3295 = vrot.slane %v1970, 5
      %v3296 = vsel %vm1431, %v3294, %v3295
      %v3297 = vrot.slane %v3295, 4
      %v3298 = vrot.slane %v1971, 5
      %v3299 = vsel %vm1431, %v3297, %v3298
      %v3300 = vrot.slane %v1972, 5
      %v3301 = vrot.slane %v3300, 4
      %v3302 = vrot.slane %v1973, 5
      %v3303 = vsel %vm1431, %v3301, %v3302
      %v3304 = vrot.slane %v3302, 4
      %v3305 = vrot.slane %v1974, 5
      %v3306 = vsel %vm1431, %v3304, %v3305
      %v3307 = vrot.slane %v1975, 5
      %v3308 = vrot.slane %v3307, 4
      %v3309 = vrot.slane %v1976, 5
      %v3310 = vsel %vm1431, %v3308, %v3309
      %v3311 = vrot.slane %v3309, 4
      %v3312 = vrot.slane %v1977, 5
      %v3313 = vsel %vm1431, %v3311, %v3312
      %v3314 = vrot.slane %v1978, 5
      %v3315 = vrot.slane %v3314, 4
      %v3316 = vrot.slane %v1979, 5
      %v3317 = vsel %vm1431, %v3315, %v3316
      %v3318 = vrot.slane %v3316, 4
      %v3319 = vrot.slane %v1980, 5
      %v3320 = vsel %vm1431, %v3318, %v3319
      %v3321 = vrot.slane %v1981, 5
      %v3322 = vrot.slane %v3321, 4
      %v3323 = vrot.slane %v1982, 5
      %v3324 = vsel %vm1431, %v3322, %v3323
      %v3325 = vrot.slane %v3323, 4
      %v3326 = vrot.slane %v1983, 5
      %v3327 = vsel %vm1431, %v3325, %v3326
      %v3328 = vrot.slane %v1984, 5
      %v3329 = vrot.slane %v3328, 4
      %v3330 = vrot.slane %v1985, 5
      %v3331 = vsel %vm1431, %v3329, %v3330
      %v3332 = vrot.slane %v3330, 4
      %v3333 = vrot.slane %v1986, 5
      %v3334 = vsel %vm1431, %v3332, %v3333
      %v3335 = vrot.slane %v1987, 5
      %v3336 = vrot.slane %v3335, 4
      %v3337 = vrot.slane %v1988, 5
      %v3338 = vsel %vm1431, %v3336, %v3337
      %v3339 = vrot.slane %v3337, 4
      %v3340 = vrot.slane %v1989, 5
      %v3341 = vsel %vm1431, %v3339, %v3340
      %v3342 = vrot.slane %v1990, 5
      %v3343 = vrot.slane %v3342, 4
      %v3344 = vrot.slane %v1991, 5
      %v3345 = vsel %vm1431, %v3343, %v3344
      %v3346 = vrot.slane %v3344, 4
      %v3347 = vrot.slane %v1992, 5
      %v3348 = vsel %vm1431, %v3346, %v3347
      %v3349 = vrot.slane %v1993, 5
      %v3350 = vrot.slane %v3349, 4
      %v3351 = vrot.slane %v1994, 5
      %v3352 = vsel %vm1431, %v3350, %v3351
      %v3353 = vrot.slane %v3351, 4
      %v3354 = vrot.slane %v1995, 5
      %v3355 = vsel %vm1431, %v3353, %v3354
      %v3356 = vrot.slane %v1996, 5
      %v3357 = vrot.slane %v3356, 4
      %v3358 = vrot.slane %v1997, 5
      %v3359 = vsel %vm1431, %v3357, %v3358
      %v3360 = vrot.slane %v3358, 4
      %v3361 = vrot.slane %v1998, 5
      %v3362 = vsel %vm1431, %v3360, %v3361
      %v3363 = vrot.slane %v1999, 5
      %v3364 = vrot.slane %v3363, 4
      %v3365 = vrot.slane %v2000, 5
      %v3366 = vsel %vm1431, %v3364, %v3365
      %v3367 = vrot.slane %v3365, 4
      %v3368 = vrot.slane %v2001, 5
      %v3369 = vsel %vm1431, %v3367, %v3368
      %v3370 = vrot.slane %v2002, 5
      %v3371 = vrot.slane %v3370, 4
      %v3372 = vrot.slane %v2003, 5
      %v3373 = vsel %vm1431, %v3371, %v3372
      %v3374 = vrot.slane %v3372, 4
      %v3375 = vrot.slane %v2004, 5
      %v3376 = vsel %vm1431, %v3374, %v3375
      %v3377 = vrot.slane %v2005, 5
      %v3378 = vrot.slane %v3377, 4
      %v3379 = vrot.slane %v2006, 5
      %v3380 = vsel %vm1431, %v3378, %v3379
      %v3381 = vrot.slane %v3379, 4
      %v3382 = vrot.slane %v2007, 5
      %v3383 = vsel %vm1431, %v3381, %v3382
      %v3384 = vrot.slane %v2008, 5
      %v3385 = vrot.slane %v3384, 4
      %v3386 = vrot.slane %v2009, 5
      %v3387 = vsel %vm1431, %v3385, %v3386
      %v3388 = vrot.slane %v3386, 4
      %v3389 = vrot.slane %v2010, 5
      %v3390 = vsel %vm1431, %v3388, %v3389
      %s3391 = scalar_lea.vmem %s1, 640
      %v3392 = vld [vmem:[%s3391] sm:$0xff]
      %v3393 = vld [vmem:[%s3391 + $0x8] sm:$0xff]
      %v3394 = vld [vmem:[%s3391 + $0x10] sm:$0xff]
      %v3395 = vld [vmem:[%s3391 + $0x18] sm:$0xff]
      %v3396 = vld [vmem:[%s3391 + $0x20] sm:$0xff]
      %v3397 = vld [vmem:[%s3391 + $0x28] sm:$0xff]
      %v3398 = vld [vmem:[%s3391 + $0x30] sm:$0xff]
      %v3399 = vld [vmem:[%s3391 + $0x38] sm:$0xff]
      %v3400 = vld [vmem:[%s3391 + $0x40] sm:$0xff]
      %v3401 = vld [vmem:[%s3391 + $0x48] sm:$0xff]
      %v3402 = vld [vmem:[%s3391 + $0x50] sm:$0xff]
      %v3403 = vld [vmem:[%s3391 + $0x58] sm:$0xff]
      %v3404 = vld [vmem:[%s3391 + $0x60] sm:$0xff]
      %v3405 = vld [vmem:[%s3391 + $0x68] sm:$0xff]
      %v3406 = vld [vmem:[%s3391 + $0x70] sm:$0xff]
      %v3407 = vld [vmem:[%s3391 + $0x78] sm:$0xff]
      %v3408 = vunpack.c.l.b16 %v3282
      %v3409 = vunpack.c.l.b16 %v3285
      %v3410 = vunpack.c.l.b16 %v3289
      %v3411 = vunpack.c.l.b16 %v3292
      %v3412 = vunpack.c.l.b16 %v3296
      %v3413 = vunpack.c.l.b16 %v3299
      %v3414 = vunpack.c.l.b16 %v3303
      %v3415 = vunpack.c.l.b16 %v3306
      %v3416 = vunpack.c.l.b16 %v3310
      %v3417 = vunpack.c.l.b16 %v3313
      %v3418 = vunpack.c.l.b16 %v3317
      %v3419 = vunpack.c.l.b16 %v3320
      %v3420 = vunpack.c.l.b16 %v3324
      %v3421 = vunpack.c.l.b16 %v3327
      %v3422 = vunpack.c.l.b16 %v3331
      %v3423 = vunpack.c.l.b16 %v3334
      %v3424 = vunpack.c.l.b16 %v3338
      %v3425 = vunpack.c.l.b16 %v3341
      %v3426 = vunpack.c.l.b16 %v3345
      %v3427 = vunpack.c.l.b16 %v3348
      %v3428 = vunpack.c.l.b16 %v3352
      %v3429 = vunpack.c.l.b16 %v3355
      %v3430 = vunpack.c.l.b16 %v3359
      %v3431 = vunpack.c.l.b16 %v3362
      %v3432 = vunpack.c.l.b16 %v3366
      %v3433 = vunpack.c.l.b16 %v3369
      %v3434 = vunpack.c.l.b16 %v3373
      %v3435 = vunpack.c.l.b16 %v3376
      %v3436 = vunpack.c.l.b16 %v3380
      %v3437 = vunpack.c.l.b16 %v3383
      %v3438 = vunpack.c.l.b16 %v3387
      %v3439 = vunpack.c.l.b16 %v3390
      %v3440 = vpack.c.b16 %v3409, %v3408
      %v3441 = vpack.c.b16 %v3411, %v3410
      %v3442 = vpack.c.b16 %v3413, %v3412
      %v3443 = vpack.c.b16 %v3415, %v3414
      %v3444 = vpack.c.b16 %v3417, %v3416
      %v3445 = vpack.c.b16 %v3419, %v3418
      %v3446 = vpack.c.b16 %v3421, %v3420
      %v3447 = vpack.c.b16 %v3423, %v3422
      %v3448 = vpack.c.b16 %v3425, %v3424
      %v3449 = vpack.c.b16 %v3427, %v3426
      %v3450 = vpack.c.b16 %v3429, %v3428
      %v3451 = vpack.c.b16 %v3431, %v3430
      %v3452 = vpack.c.b16 %v3433, %v3432
      %v3453 = vpack.c.b16 %v3435, %v3434
      %v3454 = vpack.c.b16 %v3437, %v3436
      %v3455 = vpack.c.b16 %v3439, %v3438
      %v3488 = vunpack.c.l.b16 %v3392
      %v3489 = vunpack.c.h.b16 %v3392
      %v3490 = vunpack.c.l.b16 %v3393
      %v3491 = vunpack.c.h.b16 %v3393
      %v3492 = vunpack.c.l.b16 %v3394
      %v3493 = vunpack.c.h.b16 %v3394
      %v3494 = vunpack.c.l.b16 %v3395
      %v3495 = vunpack.c.h.b16 %v3395
      %v3496 = vunpack.c.l.b16 %v3396
      %v3497 = vunpack.c.h.b16 %v3396
      %v3498 = vunpack.c.l.b16 %v3397
      %v3499 = vunpack.c.h.b16 %v3397
      %v3500 = vunpack.c.l.b16 %v3398
      %v3501 = vunpack.c.h.b16 %v3398
      %v3502 = vunpack.c.l.b16 %v3399
      %v3503 = vunpack.c.h.b16 %v3399
      %v3504 = vunpack.c.l.b16 %v3400
      %v3505 = vunpack.c.h.b16 %v3400
      %v3506 = vunpack.c.l.b16 %v3401
      %v3507 = vunpack.c.h.b16 %v3401
      %v3508 = vunpack.c.l.b16 %v3402
      %v3509 = vunpack.c.h.b16 %v3402
      %v3510 = vunpack.c.l.b16 %v3403
      %v3511 = vunpack.c.h.b16 %v3403
      %v3512 = vunpack.c.l.b16 %v3404
      %v3513 = vunpack.c.h.b16 %v3404
      %v3514 = vunpack.c.l.b16 %v3405
      %v3515 = vunpack.c.h.b16 %v3405
      %v3516 = vunpack.c.l.b16 %v3406
      %v3517 = vunpack.c.h.b16 %v3406
      %v3518 = vunpack.c.l.b16 %v3407
      %v3519 = vunpack.c.h.b16 %v3407
      %v3520 = vpack.c.b16 %v3490, %v3488
      %v3521 = vpack.c.b16 %v3491, %v3489
      %v3522 = vpack.c.b16 %v3494, %v3492
      %v3523 = vpack.c.b16 %v3495, %v3493
      %v3524 = vpack.c.b16 %v3498, %v3496
      %v3525 = vpack.c.b16 %v3499, %v3497
      %v3526 = vpack.c.b16 %v3502, %v3500
      %v3527 = vpack.c.b16 %v3503, %v3501
      %v3528 = vpack.c.b16 %v3506, %v3504
      %v3529 = vpack.c.b16 %v3507, %v3505
      %v3530 = vpack.c.b16 %v3510, %v3508
      %v3531 = vpack.c.b16 %v3511, %v3509
      %v3532 = vpack.c.b16 %v3514, %v3512
      %v3533 = vpack.c.b16 %v3515, %v3513
      %v3534 = vpack.c.b16 %v3518, %v3516
      %v3535 = vpack.c.b16 %v3519, %v3517
      %3552 = vmatprep.subr.bf16.mxu0 %v3521
      %3553 = vmatpush1.bf16.msra.mxu0 %v3520
      %3554 = vmatprep.subr.bf16.mxu0 %v3523
      %3555 = vmatpush1.bf16.msra.mxu0 %v3522
      %3556 = vmatprep.subr.bf16.mxu0 %v3525
      %3557 = vmatpush1.bf16.msra.mxu0 %v3524
      %3558 = vmatprep.subr.bf16.mxu0 %v3527
      %3559 = vmatpush1.bf16.msra.mxu0 %v3526
      %3560 = vmatprep.subr.bf16.mxu0 %v3529
      %3561 = vmatpush1.bf16.msra.mxu0 %v3528
      %3562 = vmatprep.subr.bf16.mxu0 %v3531
      %3563 = vmatpush1.bf16.msra.mxu0 %v3530
      %3564 = vmatprep.subr.bf16.mxu0 %v3533
      %3565 = vmatpush1.bf16.msra.mxu0 %v3532
      %3566 = vmatprep.subr.bf16.mxu0 %v3535
      %3567 = vmatpush1.bf16.msra.mxu0 %v3534
      %3568 = vmatprep.subr.bf16.mxu0 0
      %3569 = vmatpush1.bf16.msra.mxu0 0
      %3570 = vmatprep.subr.bf16.mxu0 0
      %3571 = vmatpush1.bf16.msra.mxu0 0
      %3572 = vmatprep.subr.bf16.mxu0 0
      %3573 = vmatpush1.bf16.msra.mxu0 0
      %3574 = vmatprep.subr.bf16.mxu0 0
      %3575 = vmatpush1.bf16.msra.mxu0 0
      %3576 = vmatprep.subr.bf16.mxu0 0
      %3577 = vmatpush1.bf16.msra.mxu0 0
      %3578 = vmatprep.subr.bf16.mxu0 0
      %3579 = vmatpush1.bf16.msra.mxu0 0
      %3580 = vmatprep.subr.bf16.mxu0 0
      %3581 = vmatpush1.bf16.msra.mxu0 0
      %3582 = vmatprep.subr.bf16.mxu0 0
      %3583 = vmatpush1.bf16.msra.mxu0 0
      %3584 = vmatprep.mubr.bf16.mxu0 0
      %3585 = vmatmul.mubr.bf16.gmra.mrb[0].mxu0 %v3440
      %v3586 = vpop.f32.mrb[0].mxu0
      %v3587 = vadd.f32 0.0, %v3586
      %v3588 = vpop.f32.mrb[0].mxu0
      %v3589 = vadd.f32 0.0, %v3588
      %v3590 = vpop.f32.mrb[0].mxu0
      %v3591 = vadd.f32 0.0, %v3590
      %v3592 = vpop.f32.mrb[0].mxu0
      %v3593 = vadd.f32 0.0, %v3592
      %3594 = vmatprep.mubr.bf16.mxu0 0
      %3595 = vmatmul.mubr.bf16.gmra.mrb[0].mxu0 %v3441
      %v3596 = vpop.f32.mrb[0].mxu0
      %v3597 = vadd.f32 0.0, %v3596
      %v3598 = vpop.f32.mrb[0].mxu0
      %v3599 = vadd.f32 0.0, %v3598
      %v3600 = vpop.f32.mrb[0].mxu0
      %v3601 = vadd.f32 0.0, %v3600
      %v3602 = vpop.f32.mrb[0].mxu0
      %v3603 = vadd.f32 0.0, %v3602
      %3604 = vmatprep.mubr.bf16.mxu0 0
      %3605 = vmatmul.mubr.bf16.gmra.mrb[0].mxu0 %v3442
      %v3606 = vpop.f32.mrb[0].mxu0
      %v3607 = vadd.f32 0.0, %v3606
      %v3608 = vpop.f32.mrb[0].mxu0
      %v3609 = vadd.f32 0.0, %v3608
      %v3610 = vpop.f32.mrb[0].mxu0
      %v3611 = vadd.f32 0.0, %v3610
      %v3612 = vpop.f32.mrb[0].mxu0
      %v3613 = vadd.f32 0.0, %v3612
      %3614 = vmatprep.mubr.bf16.mxu0 0
      %3615 = vmatmul.mubr.bf16.gmra.mrb[0].mxu0 %v3443
      %v3616 = vpop.f32.mrb[0].mxu0
      %v3617 = vadd.f32 0.0, %v3616
      %v3618 = vpop.f32.mrb[0].mxu0
      %v3619 = vadd.f32 0.0, %v3618
      %v3620 = vpop.f32.mrb[0].mxu0
      %v3621 = vadd.f32 0.0, %v3620
      %v3622 = vpop.f32.mrb[0].mxu0
      %v3623 = vadd.f32 0.0, %v3622
      %3624 = vmatprep.mubr.bf16.mxu0 0
      %3625 = vmatmul.mubr.bf16.gmra.mrb[0].mxu0 %v3444
      %v3626 = vpop.f32.mrb[0].mxu0
      %v3627 = vadd.f32 0.0, %v3626
      %v3628 = vpop.f32.mrb[0].mxu0
      %v3629 = vadd.f32 0.0, %v3628
      %v3630 = vpop.f32.mrb[0].mxu0
      %v3631 = vadd.f32 0.0, %v3630
      %v3632 = vpop.f32.mrb[0].mxu0
      %v3633 = vadd.f32 0.0, %v3632
      %3634 = vmatprep.mubr.bf16.mxu0 0
      %3635 = vmatmul.mubr.bf16.gmra.mrb[0].mxu0 %v3445
      %v3636 = vpop.f32.mrb[0].mxu0
      %v3637 = vadd.f32 0.0, %v3636
      %v3638 = vpop.f32.mrb[0].mxu0
      %v3639 = vadd.f32 0.0, %v3638
      %v3640 = vpop.f32.mrb[0].mxu0
      %v3641 = vadd.f32 0.0, %v3640
      %v3642 = vpop.f32.mrb[0].mxu0
      %v3643 = vadd.f32 0.0, %v3642
      %3644 = vmatprep.mubr.bf16.mxu0 0
      %3645 = vmatmul.mubr.bf16.gmra.mrb[0].mxu0 %v3446
      %v3646 = vpop.f32.mrb[0].mxu0
      %v3647 = vadd.f32 0.0, %v3646
      %v3648 = vpop.f32.mrb[0].mxu0
      %v3649 = vadd.f32 0.0, %v3648
      %v3650 = vpop.f32.mrb[0].mxu0
      %v3651 = vadd.f32 0.0, %v3650
      %v3652 = vpop.f32.mrb[0].mxu0
      %v3653 = vadd.f32 0.0, %v3652
      %3654 = vmatprep.mubr.bf16.mxu0 0
      %3655 = vmatmul.mubr.bf16.gmra.mrb[0].mxu0 %v3447
      %v3656 = vpop.f32.mrb[0].mxu0
      %v3657 = vadd.f32 0.0, %v3656
      %v3658 = vpop.f32.mrb[0].mxu0
      %v3659 = vadd.f32 0.0, %v3658
      %v3660 = vpop.f32.mrb[0].mxu0
      %v3661 = vadd.f32 0.0, %v3660
      %v3662 = vpop.f32.mrb[0].mxu0
      %v3663 = vadd.f32 0.0, %v3662
      %3664 = vmatprep.mubr.bf16.mxu0 0
      %3665 = vmatmul.mubr.bf16.gmra.mrb[0].mxu0 %v3448
      %v3666 = vpop.f32.mrb[0].mxu0
      %v3667 = vadd.f32 0.0, %v3666
      %v3668 = vpop.f32.mrb[0].mxu0
      %v3669 = vadd.f32 0.0, %v3668
      %v3670 = vpop.f32.mrb[0].mxu0
      %v3671 = vadd.f32 0.0, %v3670
      %v3672 = vpop.f32.mrb[0].mxu0
      %v3673 = vadd.f32 0.0, %v3672
      %3674 = vmatprep.mubr.bf16.mxu0 0
      %3675 = vmatmul.mubr.bf16.gmra.mrb[0].mxu0 %v3449
      %v3676 = vpop.f32.mrb[0].mxu0
      %v3677 = vadd.f32 0.0, %v3676
      %v3678 = vpop.f32.mrb[0].mxu0
      %v3679 = vadd.f32 0.0, %v3678
      %v3680 = vpop.f32.mrb[0].mxu0
      %v3681 = vadd.f32 0.0, %v3680
      %v3682 = vpop.f32.mrb[0].mxu0
      %v3683 = vadd.f32 0.0, %v3682
      %3684 = vmatprep.mubr.bf16.mxu0 0
      %3685 = vmatmul.mubr.bf16.gmra.mrb[0].mxu0 %v3450
      %v3686 = vpop.f32.mrb[0].mxu0
      %v3687 = vadd.f32 0.0, %v3686
      %v3688 = vpop.f32.mrb[0].mxu0
      %v3689 = vadd.f32 0.0, %v3688
      %v3690 = vpop.f32.mrb[0].mxu0
      %v3691 = vadd.f32 0.0, %v3690
      %v3692 = vpop.f32.mrb[0].mxu0
      %v3693 = vadd.f32 0.0, %v3692
      %3694 = vmatprep.mubr.bf16.mxu0 0
      %3695 = vmatmul.mubr.bf16.gmra.mrb[0].mxu0 %v3451
      %v3696 = vpop.f32.mrb[0].mxu0
      %v3697 = vadd.f32 0.0, %v3696
      %v3698 = vpop.f32.mrb[0].mxu0
      %v3699 = vadd.f32 0.0, %v3698
      %v3700 = vpop.f32.mrb[0].mxu0
      %v3701 = vadd.f32 0.0, %v3700
      %v3702 = vpop.f32.mrb[0].mxu0
      %v3703 = vadd.f32 0.0, %v3702
      %3704 = vmatprep.mubr.bf16.mxu0 0
      %3705 = vmatmul.mubr.bf16.gmra.mrb[0].mxu0 %v3452
      %v3706 = vpop.f32.mrb[0].mxu0
      %v3707 = vadd.f32 0.0, %v3706
      %v3708 = vpop.f32.mrb[0].mxu0
      %v3709 = vadd.f32 0.0, %v3708
      %v3710 = vpop.f32.mrb[0].mxu0
      %v3711 = vadd.f32 0.0, %v3710
      %v3712 = vpop.f32.mrb[0].mxu0
      %v3713 = vadd.f32 0.0, %v3712
      %3714 = vmatprep.mubr.bf16.mxu0 0
      %3715 = vmatmul.mubr.bf16.gmra.mrb[0].mxu0 %v3453
      %v3716 = vpop.f32.mrb[0].mxu0
      %v3717 = vadd.f32 0.0, %v3716
      %v3718 = vpop.f32.mrb[0].mxu0
      %v3719 = vadd.f32 0.0, %v3718
      %v3720 = vpop.f32.mrb[0].mxu0
      %v3721 = vadd.f32 0.0, %v3720
      %v3722 = vpop.f32.mrb[0].mxu0
      %v3723 = vadd.f32 0.0, %v3722
      %3724 = vmatprep.mubr.bf16.mxu0 0
      %3725 = vmatmul.mubr.bf16.gmra.mrb[0].mxu0 %v3454
      %v3726 = vpop.f32.mrb[0].mxu0
      %v3727 = vadd.f32 0.0, %v3726
      %v3728 = vpop.f32.mrb[0].mxu0
      %v3729 = vadd.f32 0.0, %v3728
      %v3730 = vpop.f32.mrb[0].mxu0
      %v3731 = vadd.f32 0.0, %v3730
      %v3732 = vpop.f32.mrb[0].mxu0
      %v3733 = vadd.f32 0.0, %v3732
      %3734 = vmatprep.mubr.bf16.mxu0 0
      %3735 = vmatmul.mubr.bf16.gmra.mrb[0].mxu0 %v3455
      %v3736 = vpop.f32.mrb[0].mxu0
      %v3737 = vadd.f32 0.0, %v3736
      %v3738 = vpop.f32.mrb[0].mxu0
      %v3739 = vadd.f32 0.0, %v3738
      %v3740 = vpop.f32.mrb[0].mxu0
      %v3741 = vadd.f32 0.0, %v3740
      %v3742 = vpop.f32.mrb[0].mxu0
      %v3743 = vadd.f32 0.0, %v3742
      %3744 = vdwg.mxu0
      %v3745 = vadd.f32 %v3199, %v3587
      %v3746 = vadd.f32 %v3200, %v3589
      %v3747 = vadd.f32 %v3201, %v3591
      %v3748 = vadd.f32 %v3202, %v3593
      %v3749 = vadd.f32 %v3203, %v3597
      %v3750 = vadd.f32 %v3204, %v3599
      %v3751 = vadd.f32 %v3205, %v3601
      %v3752 = vadd.f32 %v3206, %v3603
      %v3753 = vadd.f32 %v3207, %v3607
      %v3754 = vadd.f32 %v3208, %v3609
      %v3755 = vadd.f32 %v3209, %v3611
      %v3756 = vadd.f32 %v3210, %v3613
      %v3757 = vadd.f32 %v3211, %v3617
      %v3758 = vadd.f32 %v3212, %v3619
      %v3759 = vadd.f32 %v3213, %v3621
      %v3760 = vadd.f32 %v3214, %v3623
      %v3761 = vadd.f32 %v3215, %v3627
      %v3762 = vadd.f32 %v3216, %v3629
      %v3763 = vadd.f32 %v3217, %v3631
      %v3764 = vadd.f32 %v3218, %v3633
      %v3765 = vadd.f32 %v3219, %v3637
      %v3766 = vadd.f32 %v3220, %v3639
      %v3767 = vadd.f32 %v3221, %v3641
      %v3768 = vadd.f32 %v3222, %v3643
      %v3769 = vadd.f32 %v3223, %v3647
      %v3770 = vadd.f32 %v3224, %v3649
      %v3771 = vadd.f32 %v3225, %v3651
      %v3772 = vadd.f32 %v3226, %v3653
      %v3773 = vadd.f32 %v3227, %v3657
      %v3774 = vadd.f32 %v3228, %v3659
      %v3775 = vadd.f32 %v3229, %v3661
      %v3776 = vadd.f32 %v3230, %v3663
      %v3777 = vadd.f32 %v3231, %v3667
      %v3778 = vadd.f32 %v3232, %v3669
      %v3779 = vadd.f32 %v3233, %v3671
      %v3780 = vadd.f32 %v3234, %v3673
      %v3781 = vadd.f32 %v3235, %v3677
      %v3782 = vadd.f32 %v3236, %v3679
      %v3783 = vadd.f32 %v3237, %v3681
      %v3784 = vadd.f32 %v3238, %v3683
      %v3785 = vadd.f32 %v3239, %v3687
      %v3786 = vadd.f32 %v3240, %v3689
      %v3787 = vadd.f32 %v3241, %v3691
      %v3788 = vadd.f32 %v3242, %v3693
      %v3789 = vadd.f32 %v3243, %v3697
      %v3790 = vadd.f32 %v3244, %v3699
      %v3791 = vadd.f32 %v3245, %v3701
      %v3792 = vadd.f32 %v3246, %v3703
      %v3793 = vadd.f32 %v3247, %v3707
      %v3794 = vadd.f32 %v3248, %v3709
      %v3795 = vadd.f32 %v3249, %v3711
      %v3796 = vadd.f32 %v3250, %v3713
      %v3797 = vadd.f32 %v3251, %v3717
      %v3798 = vadd.f32 %v3252, %v3719
      %v3799 = vadd.f32 %v3253, %v3721
      %v3800 = vadd.f32 %v3254, %v3723
      %v3801 = vadd.f32 %v3255, %v3727
      %v3802 = vadd.f32 %v3256, %v3729
      %v3803 = vadd.f32 %v3257, %v3731
      %v3804 = vadd.f32 %v3258, %v3733
      %v3805 = vadd.f32 %v3259, %v3737
      %v3806 = vadd.f32 %v3260, %v3739
      %v3807 = vadd.f32 %v3261, %v3741
      %v3808 = vadd.f32 %v3262, %v3743
      %s3809 = scalar_lea.vmem %s216, 24
      %v3810 = vld [vmem:[%s3809] sm:$0xf]
      %v3811 = vld [vmem:[%s3809 + $0x4] sm:$0xf]
      %v3812 = vld [vmem:[%s3809 + $0x8] sm:$0x1]
      %v3813 = vld [vmem:[%s3809 + $0x24] sm:$0xf]
      %v3814 = vld [vmem:[%s3809 + $0x28] sm:$0xf]
      %v3815 = vld [vmem:[%s3809 + $0x2c] sm:$0x1]
      %v3816 = vld [vmem:[%s3809 + $0x48] sm:$0xf]
      %v3817 = vld [vmem:[%s3809 + $0x4c] sm:$0xf]
      %v3818 = vld [vmem:[%s3809 + $0x50] sm:$0x1]
      %v3819 = vld [vmem:[%s3809 + $0x6c] sm:$0xf]
      %v3820 = vld [vmem:[%s3809 + $0x70] sm:$0xf]
      %v3821 = vld [vmem:[%s3809 + $0x74] sm:$0x1]
      %v3822 = vld [vmem:[%s3809 + $0x90] sm:$0xf]
      %v3823 = vld [vmem:[%s3809 + $0x94] sm:$0xf]
      %v3824 = vld [vmem:[%s3809 + $0x98] sm:$0x1]
      %v3825 = vld [vmem:[%s3809 + $0xb4] sm:$0xf]
      %v3826 = vld [vmem:[%s3809 + $0xb8] sm:$0xf]
      %v3827 = vld [vmem:[%s3809 + $0xbc] sm:$0x1]
      %v3828 = vld [vmem:[%s3809 + $0xd8] sm:$0xf]
      %v3829 = vld [vmem:[%s3809 + $0xdc] sm:$0xf]
      %v3830 = vld [vmem:[%s3809 + $0xe0] sm:$0x1]
      %v3831 = vld [vmem:[%s3809 + $0xfc] sm:$0xf]
      %v3832 = vld [vmem:[%s3809 + $0x100] sm:$0xf]
      %v3833 = vld [vmem:[%s3809 + $0x104] sm:$0x1]
      %v3834 = vld [vmem:[%s3809 + $0x120] sm:$0xf]
      %v3835 = vld [vmem:[%s3809 + $0x124] sm:$0xf]
      %v3836 = vld [vmem:[%s3809 + $0x128] sm:$0x1]
      %v3837 = vld [vmem:[%s3809 + $0x144] sm:$0xf]
      %v3838 = vld [vmem:[%s3809 + $0x148] sm:$0xf]
      %v3839 = vld [vmem:[%s3809 + $0x14c] sm:$0x1]
      %v3840 = vld [vmem:[%s3809 + $0x168] sm:$0xf]
      %v3841 = vld [vmem:[%s3809 + $0x16c] sm:$0xf]
      %v3842 = vld [vmem:[%s3809 + $0x170] sm:$0x1]
      %v3843 = vld [vmem:[%s3809 + $0x18c] sm:$0xf]
      %v3844 = vld [vmem:[%s3809 + $0x190] sm:$0xf]
      %v3845 = vld [vmem:[%s3809 + $0x194] sm:$0x1]
      %v3846 = vld [vmem:[%s3809 + $0x1b0] sm:$0xf]
      %v3847 = vld [vmem:[%s3809 + $0x1b4] sm:$0xf]
      %v3848 = vld [vmem:[%s3809 + $0x1b8] sm:$0x1]
      %v3849 = vld [vmem:[%s3809 + $0x1d4] sm:$0xf]
      %v3850 = vld [vmem:[%s3809 + $0x1d8] sm:$0xf]
      %v3851 = vld [vmem:[%s3809 + $0x1dc] sm:$0x1]
      %v3852 = vld [vmem:[%s3809 + $0x1f8] sm:$0xf]
      %v3853 = vld [vmem:[%s3809 + $0x1fc] sm:$0xf]
      %v3854 = vld [vmem:[%s3809 + $0x200] sm:$0x1]
      %v3855 = vld [vmem:[%s3809 + $0x21c] sm:$0xf]
      %v3856 = vld [vmem:[%s3809 + $0x220] sm:$0xf]
      %v3857 = vld [vmem:[%s3809 + $0x224] sm:$0x1]
      %s3858 = scalar_lea.vmem %s1, 768
      %v3859 = vld [vmem:[%s3858] sm:$0xff]
      %v3860 = vld [vmem:[%s3858 + $0x8] sm:$0xff]
      %v3861 = vld [vmem:[%s3858 + $0x10] sm:$0xff]
      %v3862 = vld [vmem:[%s3858 + $0x18] sm:$0xff]
      %v3863 = vld [vmem:[%s3858 + $0x20] sm:$0xff]
      %v3864 = vld [vmem:[%s3858 + $0x28] sm:$0xff]
      %v3865 = vld [vmem:[%s3858 + $0x30] sm:$0xff]
      %v3866 = vld [vmem:[%s3858 + $0x38] sm:$0xff]
      %v3867 = vld [vmem:[%s3858 + $0x40] sm:$0xff]
      %v3868 = vld [vmem:[%s3858 + $0x48] sm:$0xff]
      %v3869 = vld [vmem:[%s3858 + $0x50] sm:$0xff]
      %v3870 = vld [vmem:[%s3858 + $0x58] sm:$0xff]
      %v3871 = vld [vmem:[%s3858 + $0x60] sm:$0xff]
      %v3872 = vld [vmem:[%s3858 + $0x68] sm:$0xff]
      %v3873 = vld [vmem:[%s3858 + $0x70] sm:$0xff]
      %v3874 = vld [vmem:[%s3858 + $0x78] sm:$0xff]
      %v3907 = vunpack.c.l.b16 %v3810
      %v3908 = vunpack.c.l.b16 %v3811
      %v3909 = vunpack.c.l.b16 %v3813
      %v3910 = vunpack.c.l.b16 %v3814
      %v3911 = vunpack.c.l.b16 %v3816
      %v3912 = vunpack.c.l.b16 %v3817
      %v3913 = vunpack.c.l.b16 %v3819
      %v3914 = vunpack.c.l.b16 %v3820
      %v3915 = vunpack.c.l.b16 %v3822
      %v3916 = vunpack.c.l.b16 %v3823
      %v3917 = vunpack.c.l.b16 %v3825
      %v3918 = vunpack.c.l.b16 %v3826
      %v3919 = vunpack.c.l.b16 %v3828
      %v3920 = vunpack.c.l.b16 %v3829
      %v3921 = vunpack.c.l.b16 %v3831
      %v3922 = vunpack.c.l.b16 %v3832
      %v3923 = vunpack.c.l.b16 %v3834
      %v3924 = vunpack.c.l.b16 %v3835
      %v3925 = vunpack.c.l.b16 %v3837
      %v3926 = vunpack.c.l.b16 %v3838
      %v3927 = vunpack.c.l.b16 %v3840
      %v3928 = vunpack.c.l.b16 %v3841
      %v3929 = vunpack.c.l.b16 %v3843
      %v3930 = vunpack.c.l.b16 %v3844
      %v3931 = vunpack.c.l.b16 %v3846
      %v3932 = vunpack.c.l.b16 %v3847
      %v3933 = vunpack.c.l.b16 %v3849
      %v3934 = vunpack.c.l.b16 %v3850
      %v3935 = vunpack.c.l.b16 %v3852
      %v3936 = vunpack.c.l.b16 %v3853
      %v3937 = vunpack.c.l.b16 %v3855
      %v3938 = vunpack.c.l.b16 %v3856
      %v3939 = vpack.c.b16 %v3908, %v3907
      %v3940 = vpack.c.b16 %v3910, %v3909
      %v3941 = vpack.c.b16 %v3912, %v3911
      %v3942 = vpack.c.b16 %v3914, %v3913
      %v3943 = vpack.c.b16 %v3916, %v3915
      %v3944 = vpack.c.b16 %v3918, %v3917
      %v3945 = vpack.c.b16 %v3920, %v3919
      %v3946 = vpack.c.b16 %v3922, %v3921
      %v3947 = vpack.c.b16 %v3924, %v3923
      %v3948 = vpack.c.b16 %v3926, %v3925
      %v3949 = vpack.c.b16 %v3928, %v3927
      %v3950 = vpack.c.b16 %v3930, %v3929
      %v3951 = vpack.c.b16 %v3932, %v3931
      %v3952 = vpack.c.b16 %v3934, %v3933
      %v3953 = vpack.c.b16 %v3936, %v3935
      %v3954 = vpack.c.b16 %v3938, %v3937
      %v3987 = vunpack.c.l.b16 %v3859
      %v3988 = vunpack.c.h.b16 %v3859
      %v3989 = vunpack.c.l.b16 %v3860
      %v3990 = vunpack.c.h.b16 %v3860
      %v3991 = vunpack.c.l.b16 %v3861
      %v3992 = vunpack.c.h.b16 %v3861
      %v3993 = vunpack.c.l.b16 %v3862
      %v3994 = vunpack.c.h.b16 %v3862
      %v3995 = vunpack.c.l.b16 %v3863
      %v3996 = vunpack.c.h.b16 %v3863
      %v3997 = vunpack.c.l.b16 %v3864
      %v3998 = vunpack.c.h.b16 %v3864
      %v3999 = vunpack.c.l.b16 %v3865
      %v4000 = vunpack.c.h.b16 %v3865
      %v4001 = vunpack.c.l.b16 %v3866
      %v4002 = vunpack.c.h.b16 %v3866
      %v4003 = vunpack.c.l.b16 %v3867
      %v4004 = vunpack.c.h.b16 %v3867
      %v4005 = vunpack.c.l.b16 %v3868
      %v4006 = vunpack.c.h.b16 %v3868
      %v4007 = vunpack.c.l.b16 %v3869
      %v4008 = vunpack.c.h.b16 %v3869
      %v4009 = vunpack.c.l.b16 %v3870
      %v4010 = vunpack.c.h.b16 %v3870
      %v4011 = vunpack.c.l.b16 %v3871
      %v4012 = vunpack.c.h.b16 %v3871
      %v4013 = vunpack.c.l.b16 %v3872
      %v4014 = vunpack.c.h.b16 %v3872
      %v4015 = vunpack.c.l.b16 %v3873
      %v4016 = vunpack.c.h.b16 %v3873
      %v4017 = vunpack.c.l.b16 %v3874
      %v4018 = vunpack.c.h.b16 %v3874
      %v4019 = vpack.c.b16 %v3989, %v3987
      %v4020 = vpack.c.b16 %v3990, %v3988
      %v4021 = vpack.c.b16 %v3993, %v3991
      %v4022 = vpack.c.b16 %v3994, %v3992
      %v4023 = vpack.c.b16 %v3997, %v3995
      %v4024 = vpack.c.b16 %v3998, %v3996
      %v4025 = vpack.c.b16 %v4001, %v3999
      %v4026 = vpack.c.b16 %v4002, %v4000
      %v4027 = vpack.c.b16 %v4005, %v4003
      %v4028 = vpack.c.b16 %v4006, %v4004
      %v4029 = vpack.c.b16 %v4009, %v4007
      %v4030 = vpack.c.b16 %v4010, %v4008
      %v4031 = vpack.c.b16 %v4013, %v4011
      %v4032 = vpack.c.b16 %v4014, %v4012
      %v4033 = vpack.c.b16 %v4017, %v4015
      %v4034 = vpack.c.b16 %v4018, %v4016
      %4051 = vmatprep.subr.bf16.mxu0 %v4020
      %4052 = vmatpush1.bf16.msra.mxu0 %v4019
      %4053 = vmatprep.subr.bf16.mxu0 %v4022
      %4054 = vmatpush1.bf16.msra.mxu0 %v4021
      %4055 = vmatprep.subr.bf16.mxu0 %v4024
      %4056 = vmatpush1.bf16.msra.mxu0 %v4023
      %4057 = vmatprep.subr.bf16.mxu0 %v4026
      %4058 = vmatpush1.bf16.msra.mxu0 %v4025
      %4059 = vmatprep.subr.bf16.mxu0 %v4028
      %4060 = vmatpush1.bf16.msra.mxu0 %v4027
      %4061 = vmatprep.subr.bf16.mxu0 %v4030
      %4062 = vmatpush1.bf16.msra.mxu0 %v4029
      %4063 = vmatprep.subr.bf16.mxu0 %v4032
      %4064 = vmatpush1.bf16.msra.mxu0 %v4031
      %4065 = vmatprep.subr.bf16.mxu0 %v4034
      %4066 = vmatpush1.bf16.msra.mxu0 %v4033
      %4067 = vmatprep.subr.bf16.mxu0 0
      %4068 = vmatpush1.bf16.msra.mxu0 0
      %4069 = vmatprep.subr.bf16.mxu0 0
      %4070 = vmatpush1.bf16.msra.mxu0 0
      %4071 = vmatprep.subr.bf16.mxu0 0
      %4072 = vmatpush1.bf16.msra.mxu0 0
      %4073 = vmatprep.subr.bf16.mxu0 0
      %4074 = vmatpush1.bf16.msra.mxu0 0
      %4075 = vmatprep.subr.bf16.mxu0 0
      %4076 = vmatpush1.bf16.msra.mxu0 0
      %4077 = vmatprep.subr.bf16.mxu0 0
      %4078 = vmatpush1.bf16.msra.mxu0 0
      %4079 = vmatprep.subr.bf16.mxu0 0
      %4080 = vmatpush1.bf16.msra.mxu0 0
      %4081 = vmatprep.subr.bf16.mxu0 0
      %4082 = vmatpush1.bf16.msra.mxu0 0
      %4083 = vmatprep.mubr.bf16.mxu0 0
      %4084 = vmatmul.mubr.bf16.gmra.mrb[0].mxu0 %v3939
      %v4085 = vpop.f32.mrb[0].mxu0
      %v4086 = vadd.f32 0.0, %v4085
      %v4087 = vpop.f32.mrb[0].mxu0
      %v4088 = vadd.f32 0.0, %v4087
      %v4089 = vpop.f32.mrb[0].mxu0
      %v4090 = vadd.f32 0.0, %v4089
      %v4091 = vpop.f32.mrb[0].mxu0
      %v4092 = vadd.f32 0.0, %v4091
      %4093 = vmatprep.mubr.bf16.mxu0 0
      %4094 = vmatmul.mubr.bf16.gmra.mrb[0].mxu0 %v3940
      %v4095 = vpop.f32.mrb[0].mxu0
      %v4096 = vadd.f32 0.0, %v4095
      %v4097 = vpop.f32.mrb[0].mxu0
      %v4098 = vadd.f32 0.0, %v4097
      %v4099 = vpop.f32.mrb[0].mxu0
      %v4100 = vadd.f32 0.0, %v4099
      %v4101 = vpop.f32.mrb[0].mxu0
      %v4102 = vadd.f32 0.0, %v4101
      %4103 = vmatprep.mubr.bf16.mxu0 0
      %4104 = vmatmul.mubr.bf16.gmra.mrb[0].mxu0 %v3941
      %v4105 = vpop.f32.mrb[0].mxu0
      %v4106 = vadd.f32 0.0, %v4105
      %v4107 = vpop.f32.mrb[0].mxu0
      %v4108 = vadd.f32 0.0, %v4107
      %v4109 = vpop.f32.mrb[0].mxu0
      %v4110 = vadd.f32 0.0, %v4109
      %v4111 = vpop.f32.mrb[0].mxu0
      %v4112 = vadd.f32 0.0, %v4111
      %4113 = vmatprep.mubr.bf16.mxu0 0
      %4114 = vmatmul.mubr.bf16.gmra.mrb[0].mxu0 %v3942
      %v4115 = vpop.f32.mrb[0].mxu0
      %v4116 = vadd.f32 0.0, %v4115
      %v4117 = vpop.f32.mrb[0].mxu0
      %v4118 = vadd.f32 0.0, %v4117
      %v4119 = vpop.f32.mrb[0].mxu0
      %v4120 = vadd.f32 0.0, %v4119
      %v4121 = vpop.f32.mrb[0].mxu0
      %v4122 = vadd.f32 0.0, %v4121
      %4123 = vmatprep.mubr.bf16.mxu0 0
      %4124 = vmatmul.mubr.bf16.gmra.mrb[0].mxu0 %v3943
      %v4125 = vpop.f32.mrb[0].mxu0
      %v4126 = vadd.f32 0.0, %v4125
      %v4127 = vpop.f32.mrb[0].mxu0
      %v4128 = vadd.f32 0.0, %v4127
      %v4129 = vpop.f32.mrb[0].mxu0
      %v4130 = vadd.f32 0.0, %v4129
      %v4131 = vpop.f32.mrb[0].mxu0
      %v4132 = vadd.f32 0.0, %v4131
      %4133 = vmatprep.mubr.bf16.mxu0 0
      %4134 = vmatmul.mubr.bf16.gmra.mrb[0].mxu0 %v3944
      %v4135 = vpop.f32.mrb[0].mxu0
      %v4136 = vadd.f32 0.0, %v4135
      %v4137 = vpop.f32.mrb[0].mxu0
      %v4138 = vadd.f32 0.0, %v4137
      %v4139 = vpop.f32.mrb[0].mxu0
      %v4140 = vadd.f32 0.0, %v4139
      %v4141 = vpop.f32.mrb[0].mxu0
      %v4142 = vadd.f32 0.0, %v4141
      %4143 = vmatprep.mubr.bf16.mxu0 0
      %4144 = vmatmul.mubr.bf16.gmra.mrb[0].mxu0 %v3945
      %v4145 = vpop.f32.mrb[0].mxu0
      %v4146 = vadd.f32 0.0, %v4145
      %v4147 = vpop.f32.mrb[0].mxu0
      %v4148 = vadd.f32 0.0, %v4147
      %v4149 = vpop.f32.mrb[0].mxu0
      %v4150 = vadd.f32 0.0, %v4149
      %v4151 = vpop.f32.mrb[0].mxu0
      %v4152 = vadd.f32 0.0, %v4151
      %4153 = vmatprep.mubr.bf16.mxu0 0
      %4154 = vmatmul.mubr.bf16.gmra.mrb[0].mxu0 %v3946
      %v4155 = vpop.f32.mrb[0].mxu0
      %v4156 = vadd.f32 0.0, %v4155
      %v4157 = vpop.f32.mrb[0].mxu0
      %v4158 = vadd.f32 0.0, %v4157
      %v4159 = vpop.f32.mrb[0].mxu0
      %v4160 = vadd.f32 0.0, %v4159
      %v4161 = vpop.f32.mrb[0].mxu0
      %v4162 = vadd.f32 0.0, %v4161
      %4163 = vmatprep.mubr.bf16.mxu0 0
      %4164 = vmatmul.mubr.bf16.gmra.mrb[0].mxu0 %v3947
      %v4165 = vpop.f32.mrb[0].mxu0
      %v4166 = vadd.f32 0.0, %v4165
      %v4167 = vpop.f32.mrb[0].mxu0
      %v4168 = vadd.f32 0.0, %v4167
      %v4169 = vpop.f32.mrb[0].mxu0
      %v4170 = vadd.f32 0.0, %v4169
      %v4171 = vpop.f32.mrb[0].mxu0
      %v4172 = vadd.f32 0.0, %v4171
      %4173 = vmatprep.mubr.bf16.mxu0 0
      %4174 = vmatmul.mubr.bf16.gmra.mrb[0].mxu0 %v3948
      %v4175 = vpop.f32.mrb[0].mxu0
      %v4176 = vadd.f32 0.0, %v4175
      %v4177 = vpop.f32.mrb[0].mxu0
      %v4178 = vadd.f32 0.0, %v4177
      %v4179 = vpop.f32.mrb[0].mxu0
      %v4180 = vadd.f32 0.0, %v4179
      %v4181 = vpop.f32.mrb[0].mxu0
      %v4182 = vadd.f32 0.0, %v4181
      %4183 = vmatprep.mubr.bf16.mxu0 0
      %4184 = vmatmul.mubr.bf16.gmra.mrb[0].mxu0 %v3949
      %v4185 = vpop.f32.mrb[0].mxu0
      %v4186 = vadd.f32 0.0, %v4185
      %v4187 = vpop.f32.mrb[0].mxu0
      %v4188 = vadd.f32 0.0, %v4187
      %v4189 = vpop.f32.mrb[0].mxu0
      %v4190 = vadd.f32 0.0, %v4189
      %v4191 = vpop.f32.mrb[0].mxu0
      %v4192 = vadd.f32 0.0, %v4191
      %4193 = vmatprep.mubr.bf16.mxu0 0
      %4194 = vmatmul.mubr.bf16.gmra.mrb[0].mxu0 %v3950
      %v4195 = vpop.f32.mrb[0].mxu0
      %v4196 = vadd.f32 0.0, %v4195
      %v4197 = vpop.f32.mrb[0].mxu0
      %v4198 = vadd.f32 0.0, %v4197
      %v4199 = vpop.f32.mrb[0].mxu0
      %v4200 = vadd.f32 0.0, %v4199
      %v4201 = vpop.f32.mrb[0].mxu0
      %v4202 = vadd.f32 0.0, %v4201
      %4203 = vmatprep.mubr.bf16.mxu0 0
      %4204 = vmatmul.mubr.bf16.gmra.mrb[0].mxu0 %v3951
      %v4205 = vpop.f32.mrb[0].mxu0
      %v4206 = vadd.f32 0.0, %v4205
      %v4207 = vpop.f32.mrb[0].mxu0
      %v4208 = vadd.f32 0.0, %v4207
      %v4209 = vpop.f32.mrb[0].mxu0
      %v4210 = vadd.f32 0.0, %v4209
      %v4211 = vpop.f32.mrb[0].mxu0
      %v4212 = vadd.f32 0.0, %v4211
      %4213 = vmatprep.mubr.bf16.mxu0 0
      %4214 = vmatmul.mubr.bf16.gmra.mrb[0].mxu0 %v3952
      %v4215 = vpop.f32.mrb[0].mxu0
      %v4216 = vadd.f32 0.0, %v4215
      %v4217 = vpop.f32.mrb[0].mxu0
      %v4218 = vadd.f32 0.0, %v4217
      %v4219 = vpop.f32.mrb[0].mxu0
      %v4220 = vadd.f32 0.0, %v4219
      %v4221 = vpop.f32.mrb[0].mxu0
      %v4222 = vadd.f32 0.0, %v4221
      %4223 = vmatprep.mubr.bf16.mxu0 0
      %4224 = vmatmul.mubr.bf16.gmra.mrb[0].mxu0 %v3953
      %v4225 = vpop.f32.mrb[0].mxu0
      %v4226 = vadd.f32 0.0, %v4225
      %v4227 = vpop.f32.mrb[0].mxu0
      %v4228 = vadd.f32 0.0, %v4227
      %v4229 = vpop.f32.mrb[0].mxu0
      %v4230 = vadd.f32 0.0, %v4229
      %v4231 = vpop.f32.mrb[0].mxu0
      %v4232 = vadd.f32 0.0, %v4231
      %4233 = vmatprep.mubr.bf16.mxu0 0
      %4234 = vmatmul.mubr.bf16.gmra.mrb[0].mxu0 %v3954
      %v4235 = vpop.f32.mrb[0].mxu0
      %v4236 = vadd.f32 0.0, %v4235
      %v4237 = vpop.f32.mrb[0].mxu0
      %v4238 = vadd.f32 0.0, %v4237
      %v4239 = vpop.f32.mrb[0].mxu0
      %v4240 = vadd.f32 0.0, %v4239
      %v4241 = vpop.f32.mrb[0].mxu0
      %v4242 = vadd.f32 0.0, %v4241
      %4243 = vdwg.mxu0
      %v4244 = vadd.f32 %v3745, %v4086
      %v4245 = vadd.f32 %v3746, %v4088
      %v4246 = vadd.f32 %v3747, %v4090
      %v4247 = vadd.f32 %v3748, %v4092
      %v4248 = vadd.f32 %v3749, %v4096
      %v4249 = vadd.f32 %v3750, %v4098
      %v4250 = vadd.f32 %v3751, %v4100
      %v4251 = vadd.f32 %v3752, %v4102
      %v4252 = vadd.f32 %v3753, %v4106
      %v4253 = vadd.f32 %v3754, %v4108
      %v4254 = vadd.f32 %v3755, %v4110
      %v4255 = vadd.f32 %v3756, %v4112
      %v4256 = vadd.f32 %v3757, %v4116
      %v4257 = vadd.f32 %v3758, %v4118
      %v4258 = vadd.f32 %v3759, %v4120
      %v4259 = vadd.f32 %v3760, %v4122
      %v4260 = vadd.f32 %v3761, %v4126
      %v4261 = vadd.f32 %v3762, %v4128
      %v4262 = vadd.f32 %v3763, %v4130
      %v4263 = vadd.f32 %v3764, %v4132
      %v4264 = vadd.f32 %v3765, %v4136
      %v4265 = vadd.f32 %v3766, %v4138
      %v4266 = vadd.f32 %v3767, %v4140
      %v4267 = vadd.f32 %v3768, %v4142
      %v4268 = vadd.f32 %v3769, %v4146
      %v4269 = vadd.f32 %v3770, %v4148
      %v4270 = vadd.f32 %v3771, %v4150
      %v4271 = vadd.f32 %v3772, %v4152
      %v4272 = vadd.f32 %v3773, %v4156
      %v4273 = vadd.f32 %v3774, %v4158
      %v4274 = vadd.f32 %v3775, %v4160
      %v4275 = vadd.f32 %v3776, %v4162
      %v4276 = vadd.f32 %v3777, %v4166
      %v4277 = vadd.f32 %v3778, %v4168
      %v4278 = vadd.f32 %v3779, %v4170
      %v4279 = vadd.f32 %v3780, %v4172
      %v4280 = vadd.f32 %v3781, %v4176
      %v4281 = vadd.f32 %v3782, %v4178
      %v4282 = vadd.f32 %v3783, %v4180
      %v4283 = vadd.f32 %v3784, %v4182
      %v4284 = vadd.f32 %v3785, %v4186
      %v4285 = vadd.f32 %v3786, %v4188
      %v4286 = vadd.f32 %v3787, %v4190
      %v4287 = vadd.f32 %v3788, %v4192
      %v4288 = vadd.f32 %v3789, %v4196
      %v4289 = vadd.f32 %v3790, %v4198
      %v4290 = vadd.f32 %v3791, %v4200
      %v4291 = vadd.f32 %v3792, %v4202
      %v4292 = vadd.f32 %v3793, %v4206
      %v4293 = vadd.f32 %v3794, %v4208
      %v4294 = vadd.f32 %v3795, %v4210
      %v4295 = vadd.f32 %v3796, %v4212
      %v4296 = vadd.f32 %v3797, %v4216
      %v4297 = vadd.f32 %v3798, %v4218
      %v4298 = vadd.f32 %v3799, %v4220
      %v4299 = vadd.f32 %v3800, %v4222
      %v4300 = vadd.f32 %v3801, %v4226
      %v4301 = vadd.f32 %v3802, %v4228
      %v4302 = vadd.f32 %v3803, %v4230
      %v4303 = vadd.f32 %v3804, %v4232
      %v4304 = vadd.f32 %v3805, %v4236
      %v4305 = vadd.f32 %v3806, %v4238
      %v4306 = vadd.f32 %v3807, %v4240
      %v4307 = vadd.f32 %v3808, %v4242
      %v4309 = vshrl.u32 %v3810, 16
      %v4311 = vrot.slane %v4309, 4
      %v4312 = vshll.u32 %v3810, 16
      %v4314 = vrot.slane %v4312, 5
      %v4315 = vor.u32 %v4311, %v4314
      %v4316 = vrot.slane %v4315, 4
      %v4318 = vshll.u32 %v3811, 16
      %v4320 = vrot.slane %v4318, 5
      %v4321 = vsel %vm305, %v4316, %v4320
      %v4322 = vshrl.u32 %v3811, 16
      %v4324 = vrot.slane %v4322, 4
      %v4325 = vor.u32 %v4324, %v4320
      %v4326 = vrot.slane %v4325, 4
      %v4328 = vshll.u32 %v3812, 16
      %v4330 = vrot.slane %v4328, 5
      %v4331 = vsel %vm305, %v4326, %v4330
      %v4333 = vshrl.u32 %v3813, 16
      %v4335 = vrot.slane %v4333, 4
      %v4336 = vshll.u32 %v3813, 16
      %v4338 = vrot.slane %v4336, 5
      %v4339 = vor.u32 %v4335, %v4338
      %v4340 = vrot.slane %v4339, 4
      %v4342 = vshll.u32 %v3814, 16
      %v4344 = vrot.slane %v4342, 5
      %v4345 = vsel %vm305, %v4340, %v4344
      %v4346 = vshrl.u32 %v3814, 16
      %v4348 = vrot.slane %v4346, 4
      %v4349 = vor.u32 %v4348, %v4344
      %v4350 = vrot.slane %v4349, 4
      %v4352 = vshll.u32 %v3815, 16
      %v4354 = vrot.slane %v4352, 5
      %v4355 = vsel %vm305, %v4350, %v4354
      %v4357 = vshrl.u32 %v3816, 16
      %v4359 = vrot.slane %v4357, 4
      %v4360 = vshll.u32 %v3816, 16
      %v4362 = vrot.slane %v4360, 5
      %v4363 = vor.u32 %v4359, %v4362
      %v4364 = vrot.slane %v4363, 4
      %v4366 = vshll.u32 %v3817, 16
      %v4368 = vrot.slane %v4366, 5
      %v4369 = vsel %vm305, %v4364, %v4368
      %v4370 = vshrl.u32 %v3817, 16
      %v4372 = vrot.slane %v4370, 4
      %v4373 = vor.u32 %v4372, %v4368
      %v4374 = vrot.slane %v4373, 4
      %v4376 = vshll.u32 %v3818, 16
      %v4378 = vrot.slane %v4376, 5
      %v4379 = vsel %vm305, %v4374, %v4378
      %v4381 = vshrl.u32 %v3819, 16
      %v4383 = vrot.slane %v4381, 4
      %v4384 = vshll.u32 %v3819, 16
      %v4386 = vrot.slane %v4384, 5
      %v4387 = vor.u32 %v4383, %v4386
      %v4388 = vrot.slane %v4387, 4
      %v4390 = vshll.u32 %v3820, 16
      %v4392 = vrot.slane %v4390, 5
      %v4393 = vsel %vm305, %v4388, %v4392
      %v4394 = vshrl.u32 %v3820, 16
      %v4396 = vrot.slane %v4394, 4
      %v4397 = vor.u32 %v4396, %v4392
      %v4398 = vrot.slane %v4397, 4
      %v4400 = vshll.u32 %v3821, 16
      %v4402 = vrot.slane %v4400, 5
      %v4403 = vsel %vm305, %v4398, %v4402
      %v4405 = vshrl.u32 %v3822, 16
      %v4407 = vrot.slane %v4405, 4
      %v4408 = vshll.u32 %v3822, 16
      %v4410 = vrot.slane %v4408, 5
      %v4411 = vor.u32 %v4407, %v4410
      %v4412 = vrot.slane %v4411, 4
      %v4414 = vshll.u32 %v3823, 16
      %v4416 = vrot.slane %v4414, 5
      %v4417 = vsel %vm305, %v4412, %v4416
      %v4418 = vshrl.u32 %v3823, 16
      %v4420 = vrot.slane %v4418, 4
      %v4421 = vor.u32 %v4420, %v4416
      %v4422 = vrot.slane %v4421, 4
      %v4424 = vshll.u32 %v3824, 16
      %v4426 = vrot.slane %v4424, 5
      %v4427 = vsel %vm305, %v4422, %v4426
      %v4429 = vshrl.u32 %v3825, 16
      %v4431 = vrot.slane %v4429, 4
      %v4432 = vshll.u32 %v3825, 16
      %v4434 = vrot.slane %v4432, 5
      %v4435 = vor.u32 %v4431, %v4434
      %v4436 = vrot.slane %v4435, 4
      %v4438 = vshll.u32 %v3826, 16
      %v4440 = vrot.slane %v4438, 5
      %v4441 = vsel %vm305, %v4436, %v4440
      %v4442 = vshrl.u32 %v3826, 16
      %v4444 = vrot.slane %v4442, 4
      %v4445 = vor.u32 %v4444, %v4440
      %v4446 = vrot.slane %v4445, 4
      %v4448 = vshll.u32 %v3827, 16
      %v4450 = vrot.slane %v4448, 5
      %v4451 = vsel %vm305, %v4446, %v4450
      %v4453 = vshrl.u32 %v3828, 16
      %v4455 = vrot.slane %v4453, 4
      %v4456 = vshll.u32 %v3828, 16
      %v4458 = vrot.slane %v4456, 5
      %v4459 = vor.u32 %v4455, %v4458
      %v4460 = vrot.slane %v4459, 4
      %v4462 = vshll.u32 %v3829, 16
      %v4464 = vrot.slane %v4462, 5
      %v4465 = vsel %vm305, %v4460, %v4464
      %v4466 = vshrl.u32 %v3829, 16
      %v4468 = vrot.slane %v4466, 4
      %v4469 = vor.u32 %v4468, %v4464
      %v4470 = vrot.slane %v4469, 4
      %v4472 = vshll.u32 %v3830, 16
      %v4474 = vrot.slane %v4472, 5
      %v4475 = vsel %vm305, %v4470, %v4474
      %v4477 = vshrl.u32 %v3831, 16
      %v4479 = vrot.slane %v4477, 4
      %v4480 = vshll.u32 %v3831, 16
      %v4482 = vrot.slane %v4480, 5
      %v4483 = vor.u32 %v4479, %v4482
      %v4484 = vrot.slane %v4483, 4
      %v4486 = vshll.u32 %v3832, 16
      %v4488 = vrot.slane %v4486, 5
      %v4489 = vsel %vm305, %v4484, %v4488
      %v4490 = vshrl.u32 %v3832, 16
      %v4492 = vrot.slane %v4490, 4
      %v4493 = vor.u32 %v4492, %v4488
      %v4494 = vrot.slane %v4493, 4
      %v4496 = vshll.u32 %v3833, 16
      %v4498 = vrot.slane %v4496, 5
      %v4499 = vsel %vm305, %v4494, %v4498
      %v4501 = vshrl.u32 %v3834, 16
      %v4503 = vrot.slane %v4501, 4
      %v4504 = vshll.u32 %v3834, 16
      %v4506 = vrot.slane %v4504, 5
      %v4507 = vor.u32 %v4503, %v4506
      %v4508 = vrot.slane %v4507, 4
      %v4510 = vshll.u32 %v3835, 16
      %v4512 = vrot.slane %v4510, 5
      %v4513 = vsel %vm305, %v4508, %v4512
      %v4514 = vshrl.u32 %v3835, 16
      %v4516 = vrot.slane %v4514, 4
      %v4517 = vor.u32 %v4516, %v4512
      %v4518 = vrot.slane %v4517, 4
      %v4520 = vshll.u32 %v3836, 16
      %v4522 = vrot.slane %v4520, 5
      %v4523 = vsel %vm305, %v4518, %v4522
      %v4525 = vshrl.u32 %v3837, 16
      %v4527 = vrot.slane %v4525, 4
      %v4528 = vshll.u32 %v3837, 16
      %v4530 = vrot.slane %v4528, 5
      %v4531 = vor.u32 %v4527, %v4530
      %v4532 = vrot.slane %v4531, 4
      %v4534 = vshll.u32 %v3838, 16
      %v4536 = vrot.slane %v4534, 5
      %v4537 = vsel %vm305, %v4532, %v4536
      %v4538 = vshrl.u32 %v3838, 16
      %v4540 = vrot.slane %v4538, 4
      %v4541 = vor.u32 %v4540, %v4536
      %v4542 = vrot.slane %v4541, 4
      %v4544 = vshll.u32 %v3839, 16
      %v4546 = vrot.slane %v4544, 5
      %v4547 = vsel %vm305, %v4542, %v4546
      %v4549 = vshrl.u32 %v3840, 16
      %v4551 = vrot.slane %v4549, 4
      %v4552 = vshll.u32 %v3840, 16
      %v4554 = vrot.slane %v4552, 5
      %v4555 = vor.u32 %v4551, %v4554
      %v4556 = vrot.slane %v4555, 4
      %v4558 = vshll.u32 %v3841, 16
      %v4560 = vrot.slane %v4558, 5
      %v4561 = vsel %vm305, %v4556, %v4560
      %v4562 = vshrl.u32 %v3841, 16
      %v4564 = vrot.slane %v4562, 4
      %v4565 = vor.u32 %v4564, %v4560
      %v4566 = vrot.slane %v4565, 4
      %v4568 = vshll.u32 %v3842, 16
      %v4570 = vrot.slane %v4568, 5
      %v4571 = vsel %vm305, %v4566, %v4570
      %v4573 = vshrl.u32 %v3843, 16
      %v4575 = vrot.slane %v4573, 4
      %v4576 = vshll.u32 %v3843, 16
      %v4578 = vrot.slane %v4576, 5
      %v4579 = vor.u32 %v4575, %v4578
      %v4580 = vrot.slane %v4579, 4
      %v4582 = vshll.u32 %v3844, 16
      %v4584 = vrot.slane %v4582, 5
      %v4585 = vsel %vm305, %v4580, %v4584
      %v4586 = vshrl.u32 %v3844, 16
      %v4588 = vrot.slane %v4586, 4
      %v4589 = vor.u32 %v4588, %v4584
      %v4590 = vrot.slane %v4589, 4
      %v4592 = vshll.u32 %v3845, 16
      %v4594 = vrot.slane %v4592, 5
      %v4595 = vsel %vm305, %v4590, %v4594
      %v4597 = vshrl.u32 %v3846, 16
      %v4599 = vrot.slane %v4597, 4
      %v4600 = vshll.u32 %v3846, 16
      %v4602 = vrot.slane %v4600, 5
      %v4603 = vor.u32 %v4599, %v4602
      %v4604 = vrot.slane %v4603, 4
      %v4606 = vshll.u32 %v3847, 16
      %v4608 = vrot.slane %v4606, 5
      %v4609 = vsel %vm305, %v4604, %v4608
      %v4610 = vshrl.u32 %v3847, 16
      %v4612 = vrot.slane %v4610, 4
      %v4613 = vor.u32 %v4612, %v4608
      %v4614 = vrot.slane %v4613, 4
      %v4616 = vshll.u32 %v3848, 16
      %v4618 = vrot.slane %v4616, 5
      %v4619 = vsel %vm305, %v4614, %v4618
      %v4621 = vshrl.u32 %v3849, 16
      %v4623 = vrot.slane %v4621, 4
      %v4624 = vshll.u32 %v3849, 16
      %v4626 = vrot.slane %v4624, 5
      %v4627 = vor.u32 %v4623, %v4626
      %v4628 = vrot.slane %v4627, 4
      %v4630 = vshll.u32 %v3850, 16
      %v4632 = vrot.slane %v4630, 5
      %v4633 = vsel %vm305, %v4628, %v4632
      %v4634 = vshrl.u32 %v3850, 16
      %v4636 = vrot.slane %v4634, 4
      %v4637 = vor.u32 %v4636, %v4632
      %v4638 = vrot.slane %v4637, 4
      %v4640 = vshll.u32 %v3851, 16
      %v4642 = vrot.slane %v4640, 5
      %v4643 = vsel %vm305, %v4638, %v4642
      %v4645 = vshrl.u32 %v3852, 16
      %v4647 = vrot.slane %v4645, 4
      %v4648 = vshll.u32 %v3852, 16
      %v4650 = vrot.slane %v4648, 5
      %v4651 = vor.u32 %v4647, %v4650
      %v4652 = vrot.slane %v4651, 4
      %v4654 = vshll.u32 %v3853, 16
      %v4656 = vrot.slane %v4654, 5
      %v4657 = vsel %vm305, %v4652, %v4656
      %v4658 = vshrl.u32 %v3853, 16
      %v4660 = vrot.slane %v4658, 4
      %v4661 = vor.u32 %v4660, %v4656
      %v4662 = vrot.slane %v4661, 4
      %v4664 = vshll.u32 %v3854, 16
      %v4666 = vrot.slane %v4664, 5
      %v4667 = vsel %vm305, %v4662, %v4666
      %v4669 = vshrl.u32 %v3855, 16
      %v4671 = vrot.slane %v4669, 4
      %v4672 = vshll.u32 %v3855, 16
      %v4674 = vrot.slane %v4672, 5
      %v4675 = vor.u32 %v4671, %v4674
      %v4676 = vrot.slane %v4675, 4
      %v4678 = vshll.u32 %v3856, 16
      %v4680 = vrot.slane %v4678, 5
      %v4681 = vsel %vm305, %v4676, %v4680
      %v4682 = vshrl.u32 %v3856, 16
      %v4684 = vrot.slane %v4682, 4
      %v4685 = vor.u32 %v4684, %v4680
      %v4686 = vrot.slane %v4685, 4
      %v4688 = vshll.u32 %v3857, 16
      %v4690 = vrot.slane %v4688, 5
      %v4691 = vsel %vm305, %v4686, %v4690
      %s4692 = scalar_lea.vmem %s1, 896
      %v4693 = vld [vmem:[%s4692] sm:$0xff]
      %v4694 = vld [vmem:[%s4692 + $0x8] sm:$0xff]
      %v4695 = vld [vmem:[%s4692 + $0x10] sm:$0xff]
      %v4696 = vld [vmem:[%s4692 + $0x18] sm:$0xff]
      %v4697 = vld [vmem:[%s4692 + $0x20] sm:$0xff]
      %v4698 = vld [vmem:[%s4692 + $0x28] sm:$0xff]
      %v4699 = vld [vmem:[%s4692 + $0x30] sm:$0xff]
      %v4700 = vld [vmem:[%s4692 + $0x38] sm:$0xff]
      %v4701 = vld [vmem:[%s4692 + $0x40] sm:$0xff]
      %v4702 = vld [vmem:[%s4692 + $0x48] sm:$0xff]
      %v4703 = vld [vmem:[%s4692 + $0x50] sm:$0xff]
      %v4704 = vld [vmem:[%s4692 + $0x58] sm:$0xff]
      %v4705 = vld [vmem:[%s4692 + $0x60] sm:$0xff]
      %v4706 = vld [vmem:[%s4692 + $0x68] sm:$0xff]
      %v4707 = vld [vmem:[%s4692 + $0x70] sm:$0xff]
      %v4708 = vld [vmem:[%s4692 + $0x78] sm:$0xff]
      %v4709 = vunpack.c.l.b16 %v4321
      %v4710 = vunpack.c.l.b16 %v4331
      %v4711 = vunpack.c.l.b16 %v4345
      %v4712 = vunpack.c.l.b16 %v4355
      %v4713 = vunpack.c.l.b16 %v4369
      %v4714 = vunpack.c.l.b16 %v4379
      %v4715 = vunpack.c.l.b16 %v4393
      %v4716 = vunpack.c.l.b16 %v4403
      %v4717 = vunpack.c.l.b16 %v4417
      %v4718 = vunpack.c.l.b16 %v4427
      %v4719 = vunpack.c.l.b16 %v4441
      %v4720 = vunpack.c.l.b16 %v4451
      %v4721 = vunpack.c.l.b16 %v4465
      %v4722 = vunpack.c.l.b16 %v4475
      %v4723 = vunpack.c.l.b16 %v4489
      %v4724 = vunpack.c.l.b16 %v4499
      %v4725 = vunpack.c.l.b16 %v4513
      %v4726 = vunpack.c.l.b16 %v4523
      %v4727 = vunpack.c.l.b16 %v4537
      %v4728 = vunpack.c.l.b16 %v4547
      %v4729 = vunpack.c.l.b16 %v4561
      %v4730 = vunpack.c.l.b16 %v4571
      %v4731 = vunpack.c.l.b16 %v4585
      %v4732 = vunpack.c.l.b16 %v4595
      %v4733 = vunpack.c.l.b16 %v4609
      %v4734 = vunpack.c.l.b16 %v4619
      %v4735 = vunpack.c.l.b16 %v4633
      %v4736 = vunpack.c.l.b16 %v4643
      %v4737 = vunpack.c.l.b16 %v4657
      %v4738 = vunpack.c.l.b16 %v4667
      %v4739 = vunpack.c.l.b16 %v4681
      %v4740 = vunpack.c.l.b16 %v4691
      %v4741 = vpack.c.b16 %v4710, %v4709
      %v4742 = vpack.c.b16 %v4712, %v4711
      %v4743 = vpack.c.b16 %v4714, %v4713
      %v4744 = vpack.c.b16 %v4716, %v4715
      %v4745 = vpack.c.b16 %v4718, %v4717
      %v4746 = vpack.c.b16 %v4720, %v4719
      %v4747 = vpack.c.b16 %v4722, %v4721
      %v4748 = vpack.c.b16 %v4724, %v4723
      %v4749 = vpack.c.b16 %v4726, %v4725
      %v4750 = vpack.c.b16 %v4728, %v4727
      %v4751 = vpack.c.b16 %v4730, %v4729
      %v4752 = vpack.c.b16 %v4732, %v4731
      %v4753 = vpack.c.b16 %v4734, %v4733
      %v4754 = vpack.c.b16 %v4736, %v4735
      %v4755 = vpack.c.b16 %v4738, %v4737
      %v4756 = vpack.c.b16 %v4740, %v4739
      %v4789 = vunpack.c.l.b16 %v4693
      %v4790 = vunpack.c.h.b16 %v4693
      %v4791 = vunpack.c.l.b16 %v4694
      %v4792 = vunpack.c.h.b16 %v4694
      %v4793 = vunpack.c.l.b16 %v4695
      %v4794 = vunpack.c.h.b16 %v4695
      %v4795 = vunpack.c.l.b16 %v4696
      %v4796 = vunpack.c.h.b16 %v4696
      %v4797 = vunpack.c.l.b16 %v4697
      %v4798 = vunpack.c.h.b16 %v4697
      %v4799 = vunpack.c.l.b16 %v4698
      %v4800 = vunpack.c.h.b16 %v4698
      %v4801 = vunpack.c.l.b16 %v4699
      %v4802 = vunpack.c.h.b16 %v4699
      %v4803 = vunpack.c.l.b16 %v4700
      %v4804 = vunpack.c.h.b16 %v4700
      %v4805 = vunpack.c.l.b16 %v4701
      %v4806 = vunpack.c.h.b16 %v4701
      %v4807 = vunpack.c.l.b16 %v4702
      %v4808 = vunpack.c.h.b16 %v4702
      %v4809 = vunpack.c.l.b16 %v4703
      %v4810 = vunpack.c.h.b16 %v4703
      %v4811 = vunpack.c.l.b16 %v4704
      %v4812 = vunpack.c.h.b16 %v4704
      %v4813 = vunpack.c.l.b16 %v4705
      %v4814 = vunpack.c.h.b16 %v4705
      %v4815 = vunpack.c.l.b16 %v4706
      %v4816 = vunpack.c.h.b16 %v4706
      %v4817 = vunpack.c.l.b16 %v4707
      %v4818 = vunpack.c.h.b16 %v4707
      %v4819 = vunpack.c.l.b16 %v4708
      %v4820 = vunpack.c.h.b16 %v4708
      %v4821 = vpack.c.b16 %v4791, %v4789
      %v4822 = vpack.c.b16 %v4792, %v4790
      %v4823 = vpack.c.b16 %v4795, %v4793
      %v4824 = vpack.c.b16 %v4796, %v4794
      %v4825 = vpack.c.b16 %v4799, %v4797
      %v4826 = vpack.c.b16 %v4800, %v4798
      %v4827 = vpack.c.b16 %v4803, %v4801
      %v4828 = vpack.c.b16 %v4804, %v4802
      %v4829 = vpack.c.b16 %v4807, %v4805
      %v4830 = vpack.c.b16 %v4808, %v4806
      %v4831 = vpack.c.b16 %v4811, %v4809
      %v4832 = vpack.c.b16 %v4812, %v4810
      %v4833 = vpack.c.b16 %v4815, %v4813
      %v4834 = vpack.c.b16 %v4816, %v4814
      %v4835 = vpack.c.b16 %v4819, %v4817
      %v4836 = vpack.c.b16 %v4820, %v4818
      %4853 = vmatprep.subr.bf16.mxu0 %v4822
      %4854 = vmatpush1.bf16.msra.mxu0 %v4821
      %4855 = vmatprep.subr.bf16.mxu0 %v4824
      %4856 = vmatpush1.bf16.msra.mxu0 %v4823
      %4857 = vmatprep.subr.bf16.mxu0 %v4826
      %4858 = vmatpush1.bf16.msra.mxu0 %v4825
      %4859 = vmatprep.subr.bf16.mxu0 %v4828
      %4860 = vmatpush1.bf16.msra.mxu0 %v4827
      %4861 = vmatprep.subr.bf16.mxu0 %v4830
      %4862 = vmatpush1.bf16.msra.mxu0 %v4829
      %4863 = vmatprep.subr.bf16.mxu0 %v4832
      %4864 = vmatpush1.bf16.msra.mxu0 %v4831
      %4865 = vmatprep.subr.bf16.mxu0 %v4834
      %4866 = vmatpush1.bf16.msra.mxu0 %v4833
      %4867 = vmatprep.subr.bf16.mxu0 %v4836
      %4868 = vmatpush1.bf16.msra.mxu0 %v4835
      %4869 = vmatprep.subr.bf16.mxu0 0
      %4870 = vmatpush1.bf16.msra.mxu0 0
      %4871 = vmatprep.subr.bf16.mxu0 0
      %4872 = vmatpush1.bf16.msra.mxu0 0
      %4873 = vmatprep.subr.bf16.mxu0 0
      %4874 = vmatpush1.bf16.msra.mxu0 0
      %4875 = vmatprep.subr.bf16.mxu0 0
      %4876 = vmatpush1.bf16.msra.mxu0 0
      %4877 = vmatprep.subr.bf16.mxu0 0
      %4878 = vmatpush1.bf16.msra.mxu0 0
      %4879 = vmatprep.subr.bf16.mxu0 0
      %4880 = vmatpush1.bf16.msra.mxu0 0
      %4881 = vmatprep.subr.bf16.mxu0 0
      %4882 = vmatpush1.bf16.msra.mxu0 0
      %4883 = vmatprep.subr.bf16.mxu0 0
      %4884 = vmatpush1.bf16.msra.mxu0 0
      %4885 = vmatprep.mubr.bf16.mxu0 0
      %4886 = vmatmul.mubr.bf16.gmra.mrb[0].mxu0 %v4741
      %v4887 = vpop.f32.mrb[0].mxu0
      %v4888 = vadd.f32 0.0, %v4887
      %v4889 = vpop.f32.mrb[0].mxu0
      %v4890 = vadd.f32 0.0, %v4889
      %v4891 = vpop.f32.mrb[0].mxu0
      %v4892 = vadd.f32 0.0, %v4891
      %v4893 = vpop.f32.mrb[0].mxu0
      %v4894 = vadd.f32 0.0, %v4893
      %4895 = vmatprep.mubr.bf16.mxu0 0
      %4896 = vmatmul.mubr.bf16.gmra.mrb[0].mxu0 %v4742
      %v4897 = vpop.f32.mrb[0].mxu0
      %v4898 = vadd.f32 0.0, %v4897
      %v4899 = vpop.f32.mrb[0].mxu0
      %v4900 = vadd.f32 0.0, %v4899
      %v4901 = vpop.f32.mrb[0].mxu0
      %v4902 = vadd.f32 0.0, %v4901
      %v4903 = vpop.f32.mrb[0].mxu0
      %v4904 = vadd.f32 0.0, %v4903
      %4905 = vmatprep.mubr.bf16.mxu0 0
      %4906 = vmatmul.mubr.bf16.gmra.mrb[0].mxu0 %v4743
      %v4907 = vpop.f32.mrb[0].mxu0
      %v4908 = vadd.f32 0.0, %v4907
      %v4909 = vpop.f32.mrb[0].mxu0
      %v4910 = vadd.f32 0.0, %v4909
      %v4911 = vpop.f32.mrb[0].mxu0
      %v4912 = vadd.f32 0.0, %v4911
      %v4913 = vpop.f32.mrb[0].mxu0
      %v4914 = vadd.f32 0.0, %v4913
      %4915 = vmatprep.mubr.bf16.mxu0 0
      %4916 = vmatmul.mubr.bf16.gmra.mrb[0].mxu0 %v4744
      %v4917 = vpop.f32.mrb[0].mxu0
      %v4918 = vadd.f32 0.0, %v4917
      %v4919 = vpop.f32.mrb[0].mxu0
      %v4920 = vadd.f32 0.0, %v4919
      %v4921 = vpop.f32.mrb[0].mxu0
      %v4922 = vadd.f32 0.0, %v4921
      %v4923 = vpop.f32.mrb[0].mxu0
      %v4924 = vadd.f32 0.0, %v4923
      %4925 = vmatprep.mubr.bf16.mxu0 0
      %4926 = vmatmul.mubr.bf16.gmra.mrb[0].mxu0 %v4745
      %v4927 = vpop.f32.mrb[0].mxu0
      %v4928 = vadd.f32 0.0, %v4927
      %v4929 = vpop.f32.mrb[0].mxu0
      %v4930 = vadd.f32 0.0, %v4929
      %v4931 = vpop.f32.mrb[0].mxu0
      %v4932 = vadd.f32 0.0, %v4931
      %v4933 = vpop.f32.mrb[0].mxu0
      %v4934 = vadd.f32 0.0, %v4933
      %4935 = vmatprep.mubr.bf16.mxu0 0
      %4936 = vmatmul.mubr.bf16.gmra.mrb[0].mxu0 %v4746
      %v4937 = vpop.f32.mrb[0].mxu0
      %v4938 = vadd.f32 0.0, %v4937
      %v4939 = vpop.f32.mrb[0].mxu0
      %v4940 = vadd.f32 0.0, %v4939
      %v4941 = vpop.f32.mrb[0].mxu0
      %v4942 = vadd.f32 0.0, %v4941
      %v4943 = vpop.f32.mrb[0].mxu0
      %v4944 = vadd.f32 0.0, %v4943
      %4945 = vmatprep.mubr.bf16.mxu0 0
      %4946 = vmatmul.mubr.bf16.gmra.mrb[0].mxu0 %v4747
      %v4947 = vpop.f32.mrb[0].mxu0
      %v4948 = vadd.f32 0.0, %v4947
      %v4949 = vpop.f32.mrb[0].mxu0
      %v4950 = vadd.f32 0.0, %v4949
      %v4951 = vpop.f32.mrb[0].mxu0
      %v4952 = vadd.f32 0.0, %v4951
      %v4953 = vpop.f32.mrb[0].mxu0
      %v4954 = vadd.f32 0.0, %v4953
      %4955 = vmatprep.mubr.bf16.mxu0 0
      %4956 = vmatmul.mubr.bf16.gmra.mrb[0].mxu0 %v4748
      %v4957 = vpop.f32.mrb[0].mxu0
      %v4958 = vadd.f32 0.0, %v4957
      %v4959 = vpop.f32.mrb[0].mxu0
      %v4960 = vadd.f32 0.0, %v4959
      %v4961 = vpop.f32.mrb[0].mxu0
      %v4962 = vadd.f32 0.0, %v4961
      %v4963 = vpop.f32.mrb[0].mxu0
      %v4964 = vadd.f32 0.0, %v4963
      %4965 = vmatprep.mubr.bf16.mxu0 0
      %4966 = vmatmul.mubr.bf16.gmra.mrb[0].mxu0 %v4749
      %v4967 = vpop.f32.mrb[0].mxu0
      %v4968 = vadd.f32 0.0, %v4967
      %v4969 = vpop.f32.mrb[0].mxu0
      %v4970 = vadd.f32 0.0, %v4969
      %v4971 = vpop.f32.mrb[0].mxu0
      %v4972 = vadd.f32 0.0, %v4971
      %v4973 = vpop.f32.mrb[0].mxu0
      %v4974 = vadd.f32 0.0, %v4973
      %4975 = vmatprep.mubr.bf16.mxu0 0
      %4976 = vmatmul.mubr.bf16.gmra.mrb[0].mxu0 %v4750
      %v4977 = vpop.f32.mrb[0].mxu0
      %v4978 = vadd.f32 0.0, %v4977
      %v4979 = vpop.f32.mrb[0].mxu0
      %v4980 = vadd.f32 0.0, %v4979
      %v4981 = vpop.f32.mrb[0].mxu0
      %v4982 = vadd.f32 0.0, %v4981
      %v4983 = vpop.f32.mrb[0].mxu0
      %v4984 = vadd.f32 0.0, %v4983
      %4985 = vmatprep.mubr.bf16.mxu0 0
      %4986 = vmatmul.mubr.bf16.gmra.mrb[0].mxu0 %v4751
      %v4987 = vpop.f32.mrb[0].mxu0
      %v4988 = vadd.f32 0.0, %v4987
      %v4989 = vpop.f32.mrb[0].mxu0
      %v4990 = vadd.f32 0.0, %v4989
      %v4991 = vpop.f32.mrb[0].mxu0
      %v4992 = vadd.f32 0.0, %v4991
      %v4993 = vpop.f32.mrb[0].mxu0
      %v4994 = vadd.f32 0.0, %v4993
      %4995 = vmatprep.mubr.bf16.mxu0 0
      %4996 = vmatmul.mubr.bf16.gmra.mrb[0].mxu0 %v4752
      %v4997 = vpop.f32.mrb[0].mxu0
      %v4998 = vadd.f32 0.0, %v4997
      %v4999 = vpop.f32.mrb[0].mxu0
      %v5000 = vadd.f32 0.0, %v4999
      %v5001 = vpop.f32.mrb[0].mxu0
      %v5002 = vadd.f32 0.0, %v5001
      %v5003 = vpop.f32.mrb[0].mxu0
      %v5004 = vadd.f32 0.0, %v5003
      %5005 = vmatprep.mubr.bf16.mxu0 0
      %5006 = vmatmul.mubr.bf16.gmra.mrb[0].mxu0 %v4753
      %v5007 = vpop.f32.mrb[0].mxu0
      %v5008 = vadd.f32 0.0, %v5007
      %v5009 = vpop.f32.mrb[0].mxu0
      %v5010 = vadd.f32 0.0, %v5009
      %v5011 = vpop.f32.mrb[0].mxu0
      %v5012 = vadd.f32 0.0, %v5011
      %v5013 = vpop.f32.mrb[0].mxu0
      %v5014 = vadd.f32 0.0, %v5013
      %5015 = vmatprep.mubr.bf16.mxu0 0
      %5016 = vmatmul.mubr.bf16.gmra.mrb[0].mxu0 %v4754
      %v5017 = vpop.f32.mrb[0].mxu0
      %v5018 = vadd.f32 0.0, %v5017
      %v5019 = vpop.f32.mrb[0].mxu0
      %v5020 = vadd.f32 0.0, %v5019
      %v5021 = vpop.f32.mrb[0].mxu0
      %v5022 = vadd.f32 0.0, %v5021
      %v5023 = vpop.f32.mrb[0].mxu0
      %v5024 = vadd.f32 0.0, %v5023
      %5025 = vmatprep.mubr.bf16.mxu0 0
      %5026 = vmatmul.mubr.bf16.gmra.mrb[0].mxu0 %v4755
      %v5027 = vpop.f32.mrb[0].mxu0
      %v5028 = vadd.f32 0.0, %v5027
      %v5029 = vpop.f32.mrb[0].mxu0
      %v5030 = vadd.f32 0.0, %v5029
      %v5031 = vpop.f32.mrb[0].mxu0
      %v5032 = vadd.f32 0.0, %v5031
      %v5033 = vpop.f32.mrb[0].mxu0
      %v5034 = vadd.f32 0.0, %v5033
      %5035 = vmatprep.mubr.bf16.mxu0 0
      %5036 = vmatmul.mubr.bf16.gmra.mrb[0].mxu0 %v4756
      %v5037 = vpop.f32.mrb[0].mxu0
      %v5038 = vadd.f32 0.0, %v5037
      %v5039 = vpop.f32.mrb[0].mxu0
      %v5040 = vadd.f32 0.0, %v5039
      %v5041 = vpop.f32.mrb[0].mxu0
      %v5042 = vadd.f32 0.0, %v5041
      %v5043 = vpop.f32.mrb[0].mxu0
      %v5044 = vadd.f32 0.0, %v5043
      %5045 = vdwg.mxu0
      %v5046 = vadd.f32 %v4244, %v4888
      %v5047 = vadd.f32 %v4245, %v4890
      %v5048 = vadd.f32 %v4246, %v4892
      %v5049 = vadd.f32 %v4247, %v4894
      %v5050 = vadd.f32 %v4248, %v4898
      %v5051 = vadd.f32 %v4249, %v4900
      %v5052 = vadd.f32 %v4250, %v4902
      %v5053 = vadd.f32 %v4251, %v4904
      %v5054 = vadd.f32 %v4252, %v4908
      %v5055 = vadd.f32 %v4253, %v4910
      %v5056 = vadd.f32 %v4254, %v4912
      %v5057 = vadd.f32 %v4255, %v4914
      %v5058 = vadd.f32 %v4256, %v4918
      %v5059 = vadd.f32 %v4257, %v4920
      %v5060 = vadd.f32 %v4258, %v4922
      %v5061 = vadd.f32 %v4259, %v4924
      %v5062 = vadd.f32 %v4260, %v4928
      %v5063 = vadd.f32 %v4261, %v4930
      %v5064 = vadd.f32 %v4262, %v4932
      %v5065 = vadd.f32 %v4263, %v4934
      %v5066 = vadd.f32 %v4264, %v4938
      %v5067 = vadd.f32 %v4265, %v4940
      %v5068 = vadd.f32 %v4266, %v4942
      %v5069 = vadd.f32 %v4267, %v4944
      %v5070 = vadd.f32 %v4268, %v4948
      %v5071 = vadd.f32 %v4269, %v4950
      %v5072 = vadd.f32 %v4270, %v4952
      %v5073 = vadd.f32 %v4271, %v4954
      %v5074 = vadd.f32 %v4272, %v4958
      %v5075 = vadd.f32 %v4273, %v4960
      %v5076 = vadd.f32 %v4274, %v4962
      %v5077 = vadd.f32 %v4275, %v4964
      %v5078 = vadd.f32 %v4276, %v4968
      %v5079 = vadd.f32 %v4277, %v4970
      %v5080 = vadd.f32 %v4278, %v4972
      %v5081 = vadd.f32 %v4279, %v4974
      %v5082 = vadd.f32 %v4280, %v4978
      %v5083 = vadd.f32 %v4281, %v4980
      %v5084 = vadd.f32 %v4282, %v4982
      %v5085 = vadd.f32 %v4283, %v4984
      %v5086 = vadd.f32 %v4284, %v4988
      %v5087 = vadd.f32 %v4285, %v4990
      %v5088 = vadd.f32 %v4286, %v4992
      %v5089 = vadd.f32 %v4287, %v4994
      %v5090 = vadd.f32 %v4288, %v4998
      %v5091 = vadd.f32 %v4289, %v5000
      %v5092 = vadd.f32 %v4290, %v5002
      %v5093 = vadd.f32 %v4291, %v5004
      %v5094 = vadd.f32 %v4292, %v5008
      %v5095 = vadd.f32 %v4293, %v5010
      %v5096 = vadd.f32 %v4294, %v5012
      %v5097 = vadd.f32 %v4295, %v5014
      %v5098 = vadd.f32 %v4296, %v5018
      %v5099 = vadd.f32 %v4297, %v5020
      %v5100 = vadd.f32 %v4298, %v5022
      %v5101 = vadd.f32 %v4299, %v5024
      %v5102 = vadd.f32 %v4300, %v5028
      %v5103 = vadd.f32 %v4301, %v5030
      %v5104 = vadd.f32 %v4302, %v5032
      %v5105 = vadd.f32 %v4303, %v5034
      %v5106 = vadd.f32 %v4304, %v5038
      %v5107 = vadd.f32 %v4305, %v5040
      %v5108 = vadd.f32 %v4306, %v5042
      %v5109 = vadd.f32 %v4307, %v5044
      %v5126 = vrot.slane %v3810, 5
      %v5127 = vrot.slane %v5126, 4
      %v5128 = vrot.slane %v3811, 5
      %v5129 = vsel %vm1431, %v5127, %v5128
      %v5130 = vrot.slane %v5128, 4
      %v5131 = vrot.slane %v3812, 5
      %v5132 = vsel %vm1431, %v5130, %v5131
      %v5133 = vrot.slane %v3813, 5
      %v5134 = vrot.slane %v5133, 4
      %v5135 = vrot.slane %v3814, 5
      %v5136 = vsel %vm1431, %v5134, %v5135
      %v5137 = vrot.slane %v5135, 4
      %v5138 = vrot.slane %v3815, 5
      %v5139 = vsel %vm1431, %v5137, %v5138
      %v5140 = vrot.slane %v3816, 5
      %v5141 = vrot.slane %v5140, 4
      %v5142 = vrot.slane %v3817, 5
      %v5143 = vsel %vm1431, %v5141, %v5142
      %v5144 = vrot.slane %v5142, 4
      %v5145 = vrot.slane %v3818, 5
      %v5146 = vsel %vm1431, %v5144, %v5145
      %v5147 = vrot.slane %v3819, 5
      %v5148 = vrot.slane %v5147, 4
      %v5149 = vrot.slane %v3820, 5
      %v5150 = vsel %vm1431, %v5148, %v5149
      %v5151 = vrot.slane %v5149, 4
      %v5152 = vrot.slane %v3821, 5
      %v5153 = vsel %vm1431, %v5151, %v5152
      %v5154 = vrot.slane %v3822, 5
      %v5155 = vrot.slane %v5154, 4
      %v5156 = vrot.slane %v3823, 5
      %v5157 = vsel %vm1431, %v5155, %v5156
      %v5158 = vrot.slane %v5156, 4
      %v5159 = vrot.slane %v3824, 5
      %v5160 = vsel %vm1431, %v5158, %v5159
      %v5161 = vrot.slane %v3825, 5
      %v5162 = vrot.slane %v5161, 4
      %v5163 = vrot.slane %v3826, 5
      %v5164 = vsel %vm1431, %v5162, %v5163
      %v5165 = vrot.slane %v5163, 4
      %v5166 = vrot.slane %v3827, 5
      %v5167 = vsel %vm1431, %v5165, %v5166
      %v5168 = vrot.slane %v3828, 5
      %v5169 = vrot.slane %v5168, 4
      %v5170 = vrot.slane %v3829, 5
      %v5171 = vsel %vm1431, %v5169, %v5170
      %v5172 = vrot.slane %v5170, 4
      %v5173 = vrot.slane %v3830, 5
      %v5174 = vsel %vm1431, %v5172, %v5173
      %v5175 = vrot.slane %v3831, 5
      %v5176 = vrot.slane %v5175, 4
      %v5177 = vrot.slane %v3832, 5
      %v5178 = vsel %vm1431, %v5176, %v5177
      %v5179 = vrot.slane %v5177, 4
      %v5180 = vrot.slane %v3833, 5
      %v5181 = vsel %vm1431, %v5179, %v5180
      %v5182 = vrot.slane %v3834, 5
      %v5183 = vrot.slane %v5182, 4
      %v5184 = vrot.slane %v3835, 5
      %v5185 = vsel %vm1431, %v5183, %v5184
      %v5186 = vrot.slane %v5184, 4
      %v5187 = vrot.slane %v3836, 5
      %v5188 = vsel %vm1431, %v5186, %v5187
      %v5189 = vrot.slane %v3837, 5
      %v5190 = vrot.slane %v5189, 4
      %v5191 = vrot.slane %v3838, 5
      %v5192 = vsel %vm1431, %v5190, %v5191
      %v5193 = vrot.slane %v5191, 4
      %v5194 = vrot.slane %v3839, 5
      %v5195 = vsel %vm1431, %v5193, %v5194
      %v5196 = vrot.slane %v3840, 5
      %v5197 = vrot.slane %v5196, 4
      %v5198 = vrot.slane %v3841, 5
      %v5199 = vsel %vm1431, %v5197, %v5198
      %v5200 = vrot.slane %v5198, 4
      %v5201 = vrot.slane %v3842, 5
      %v5202 = vsel %vm1431, %v5200, %v5201
      %v5203 = vrot.slane %v3843, 5
      %v5204 = vrot.slane %v5203, 4
      %v5205 = vrot.slane %v3844, 5
      %v5206 = vsel %vm1431, %v5204, %v5205
      %v5207 = vrot.slane %v5205, 4
      %v5208 = vrot.slane %v3845, 5
      %v5209 = vsel %vm1431, %v5207, %v5208
      %v5210 = vrot.slane %v3846, 5
      %v5211 = vrot.slane %v5210, 4
      %v5212 = vrot.slane %v3847, 5
      %v5213 = vsel %vm1431, %v5211, %v5212
      %v5214 = vrot.slane %v5212, 4
      %v5215 = vrot.slane %v3848, 5
      %v5216 = vsel %vm1431, %v5214, %v5215
      %v5217 = vrot.slane %v3849, 5
      %v5218 = vrot.slane %v5217, 4
      %v5219 = vrot.slane %v3850, 5
      %v5220 = vsel %vm1431, %v5218, %v5219
      %v5221 = vrot.slane %v5219, 4
      %v5222 = vrot.slane %v3851, 5
      %v5223 = vsel %vm1431, %v5221, %v5222
      %v5224 = vrot.slane %v3852, 5
      %v5225 = vrot.slane %v5224, 4
      %v5226 = vrot.slane %v3853, 5
      %v5227 = vsel %vm1431, %v5225, %v5226
      %v5228 = vrot.slane %v5226, 4
      %v5229 = vrot.slane %v3854, 5
      %v5230 = vsel %vm1431, %v5228, %v5229
      %v5231 = vrot.slane %v3855, 5
      %v5232 = vrot.slane %v5231, 4
      %v5233 = vrot.slane %v3856, 5
      %v5234 = vsel %vm1431, %v5232, %v5233
      %v5235 = vrot.slane %v5233, 4
      %v5236 = vrot.slane %v3857, 5
      %v5237 = vsel %vm1431, %v5235, %v5236
      %s5238 = scalar_lea.vmem %s1, 1024
      %v5239 = vld [vmem:[%s5238] sm:$0xff]
      %v5240 = vld [vmem:[%s5238 + $0x8] sm:$0xff]
      %v5241 = vld [vmem:[%s5238 + $0x10] sm:$0xff]
      %v5242 = vld [vmem:[%s5238 + $0x18] sm:$0xff]
      %v5243 = vld [vmem:[%s5238 + $0x20] sm:$0xff]
      %v5244 = vld [vmem:[%s5238 + $0x28] sm:$0xff]
      %v5245 = vld [vmem:[%s5238 + $0x30] sm:$0xff]
      %v5246 = vld [vmem:[%s5238 + $0x38] sm:$0xff]
      %v5247 = vld [vmem:[%s5238 + $0x40] sm:$0xff]
      %v5248 = vld [vmem:[%s5238 + $0x48] sm:$0xff]
      %v5249 = vld [vmem:[%s5238 + $0x50] sm:$0xff]
      %v5250 = vld [vmem:[%s5238 + $0x58] sm:$0xff]
      %v5251 = vld [vmem:[%s5238 + $0x60] sm:$0xff]
      %v5252 = vld [vmem:[%s5238 + $0x68] sm:$0xff]
      %v5253 = vld [vmem:[%s5238 + $0x70] sm:$0xff]
      %v5254 = vld [vmem:[%s5238 + $0x78] sm:$0xff]
      %v5255 = vunpack.c.l.b16 %v5129
      %v5256 = vunpack.c.l.b16 %v5132
      %v5257 = vunpack.c.l.b16 %v5136
      %v5258 = vunpack.c.l.b16 %v5139
      %v5259 = vunpack.c.l.b16 %v5143
      %v5260 = vunpack.c.l.b16 %v5146
      %v5261 = vunpack.c.l.b16 %v5150
      %v5262 = vunpack.c.l.b16 %v5153
      %v5263 = vunpack.c.l.b16 %v5157
      %v5264 = vunpack.c.l.b16 %v5160
      %v5265 = vunpack.c.l.b16 %v5164
      %v5266 = vunpack.c.l.b16 %v5167
      %v5267 = vunpack.c.l.b16 %v5171
      %v5268 = vunpack.c.l.b16 %v5174
      %v5269 = vunpack.c.l.b16 %v5178
      %v5270 = vunpack.c.l.b16 %v5181
      %v5271 = vunpack.c.l.b16 %v5185
      %v5272 = vunpack.c.l.b16 %v5188
      %v5273 = vunpack.c.l.b16 %v5192
      %v5274 = vunpack.c.l.b16 %v5195
      %v5275 = vunpack.c.l.b16 %v5199
      %v5276 = vunpack.c.l.b16 %v5202
      %v5277 = vunpack.c.l.b16 %v5206
      %v5278 = vunpack.c.l.b16 %v5209
      %v5279 = vunpack.c.l.b16 %v5213
      %v5280 = vunpack.c.l.b16 %v5216
      %v5281 = vunpack.c.l.b16 %v5220
      %v5282 = vunpack.c.l.b16 %v5223
      %v5283 = vunpack.c.l.b16 %v5227
      %v5284 = vunpack.c.l.b16 %v5230
      %v5285 = vunpack.c.l.b16 %v5234
      %v5286 = vunpack.c.l.b16 %v5237
      %v5287 = vpack.c.b16 %v5256, %v5255
      %v5288 = vpack.c.b16 %v5258, %v5257
      %v5289 = vpack.c.b16 %v5260, %v5259
      %v5290 = vpack.c.b16 %v5262, %v5261
      %v5291 = vpack.c.b16 %v5264, %v5263
      %v5292 = vpack.c.b16 %v5266, %v5265
      %v5293 = vpack.c.b16 %v5268, %v5267
      %v5294 = vpack.c.b16 %v5270, %v5269
      %v5295 = vpack.c.b16 %v5272, %v5271
      %v5296 = vpack.c.b16 %v5274, %v5273
      %v5297 = vpack.c.b16 %v5276, %v5275
      %v5298 = vpack.c.b16 %v5278, %v5277
      %v5299 = vpack.c.b16 %v5280, %v5279
      %v5300 = vpack.c.b16 %v5282, %v5281
      %v5301 = vpack.c.b16 %v5284, %v5283
      %v5302 = vpack.c.b16 %v5286, %v5285
      %v5335 = vunpack.c.l.b16 %v5239
      %v5336 = vunpack.c.h.b16 %v5239
      %v5337 = vunpack.c.l.b16 %v5240
      %v5338 = vunpack.c.h.b16 %v5240
      %v5339 = vunpack.c.l.b16 %v5241
      %v5340 = vunpack.c.h.b16 %v5241
      %v5341 = vunpack.c.l.b16 %v5242
      %v5342 = vunpack.c.h.b16 %v5242
      %v5343 = vunpack.c.l.b16 %v5243
      %v5344 = vunpack.c.h.b16 %v5243
      %v5345 = vunpack.c.l.b16 %v5244
      %v5346 = vunpack.c.h.b16 %v5244
      %v5347 = vunpack.c.l.b16 %v5245
      %v5348 = vunpack.c.h.b16 %v5245
      %v5349 = vunpack.c.l.b16 %v5246
      %v5350 = vunpack.c.h.b16 %v5246
      %v5351 = vunpack.c.l.b16 %v5247
      %v5352 = vunpack.c.h.b16 %v5247
      %v5353 = vunpack.c.l.b16 %v5248
      %v5354 = vunpack.c.h.b16 %v5248
      %v5355 = vunpack.c.l.b16 %v5249
      %v5356 = vunpack.c.h.b16 %v5249
      %v5357 = vunpack.c.l.b16 %v5250
      %v5358 = vunpack.c.h.b16 %v5250
      %v5359 = vunpack.c.l.b16 %v5251
      %v5360 = vunpack.c.h.b16 %v5251
      %v5361 = vunpack.c.l.b16 %v5252
      %v5362 = vunpack.c.h.b16 %v5252
      %v5363 = vunpack.c.l.b16 %v5253
      %v5364 = vunpack.c.h.b16 %v5253
      %v5365 = vunpack.c.l.b16 %v5254
      %v5366 = vunpack.c.h.b16 %v5254
      %v5367 = vpack.c.b16 %v5337, %v5335
      %v5368 = vpack.c.b16 %v5338, %v5336
      %v5369 = vpack.c.b16 %v5341, %v5339
      %v5370 = vpack.c.b16 %v5342, %v5340
      %v5371 = vpack.c.b16 %v5345, %v5343
      %v5372 = vpack.c.b16 %v5346, %v5344
      %v5373 = vpack.c.b16 %v5349, %v5347
      %v5374 = vpack.c.b16 %v5350, %v5348
      %v5375 = vpack.c.b16 %v5353, %v5351
      %v5376 = vpack.c.b16 %v5354, %v5352
      %v5377 = vpack.c.b16 %v5357, %v5355
      %v5378 = vpack.c.b16 %v5358, %v5356
      %v5379 = vpack.c.b16 %v5361, %v5359
      %v5380 = vpack.c.b16 %v5362, %v5360
      %v5381 = vpack.c.b16 %v5365, %v5363
      %v5382 = vpack.c.b16 %v5366, %v5364
      %5399 = vmatprep.subr.bf16.mxu0 %v5368
      %5400 = vmatpush1.bf16.msra.mxu0 %v5367
      %5401 = vmatprep.subr.bf16.mxu0 %v5370
      %5402 = vmatpush1.bf16.msra.mxu0 %v5369
      %5403 = vmatprep.subr.bf16.mxu0 %v5372
      %5404 = vmatpush1.bf16.msra.mxu0 %v5371
      %5405 = vmatprep.subr.bf16.mxu0 %v5374
      %5406 = vmatpush1.bf16.msra.mxu0 %v5373
      %5407 = vmatprep.subr.bf16.mxu0 %v5376
      %5408 = vmatpush1.bf16.msra.mxu0 %v5375
      %5409 = vmatprep.subr.bf16.mxu0 %v5378
      %5410 = vmatpush1.bf16.msra.mxu0 %v5377
      %5411 = vmatprep.subr.bf16.mxu0 %v5380
      %5412 = vmatpush1.bf16.msra.mxu0 %v5379
      %5413 = vmatprep.subr.bf16.mxu0 %v5382
      %5414 = vmatpush1.bf16.msra.mxu0 %v5381
      %5415 = vmatprep.subr.bf16.mxu0 0
      %5416 = vmatpush1.bf16.msra.mxu0 0
      %5417 = vmatprep.subr.bf16.mxu0 0
      %5418 = vmatpush1.bf16.msra.mxu0 0
      %5419 = vmatprep.subr.bf16.mxu0 0
      %5420 = vmatpush1.bf16.msra.mxu0 0
      %5421 = vmatprep.subr.bf16.mxu0 0
      %5422 = vmatpush1.bf16.msra.mxu0 0
      %5423 = vmatprep.subr.bf16.mxu0 0
      %5424 = vmatpush1.bf16.msra.mxu0 0
      %5425 = vmatprep.subr.bf16.mxu0 0
      %5426 = vmatpush1.bf16.msra.mxu0 0
      %5427 = vmatprep.subr.bf16.mxu0 0
      %5428 = vmatpush1.bf16.msra.mxu0 0
      %5429 = vmatprep.subr.bf16.mxu0 0
      %5430 = vmatpush1.bf16.msra.mxu0 0
      %5431 = vmatprep.mubr.bf16.mxu0 0
      %5432 = vmatmul.mubr.bf16.gmra.mrb[0].mxu0 %v5287
      %v5433 = vpop.f32.mrb[0].mxu0
      %v5434 = vadd.f32 0.0, %v5433
      %v5435 = vpop.f32.mrb[0].mxu0
      %v5436 = vadd.f32 0.0, %v5435
      %v5437 = vpop.f32.mrb[0].mxu0
      %v5438 = vadd.f32 0.0, %v5437
      %v5439 = vpop.f32.mrb[0].mxu0
      %v5440 = vadd.f32 0.0, %v5439
      %5441 = vmatprep.mubr.bf16.mxu0 0
      %5442 = vmatmul.mubr.bf16.gmra.mrb[0].mxu0 %v5288
      %v5443 = vpop.f32.mrb[0].mxu0
      %v5444 = vadd.f32 0.0, %v5443
      %v5445 = vpop.f32.mrb[0].mxu0
      %v5446 = vadd.f32 0.0, %v5445
      %v5447 = vpop.f32.mrb[0].mxu0
      %v5448 = vadd.f32 0.0, %v5447
      %v5449 = vpop.f32.mrb[0].mxu0
      %v5450 = vadd.f32 0.0, %v5449
      %5451 = vmatprep.mubr.bf16.mxu0 0
      %5452 = vmatmul.mubr.bf16.gmra.mrb[0].mxu0 %v5289
      %v5453 = vpop.f32.mrb[0].mxu0
      %v5454 = vadd.f32 0.0, %v5453
      %v5455 = vpop.f32.mrb[0].mxu0
      %v5456 = vadd.f32 0.0, %v5455
      %v5457 = vpop.f32.mrb[0].mxu0
      %v5458 = vadd.f32 0.0, %v5457
      %v5459 = vpop.f32.mrb[0].mxu0
      %v5460 = vadd.f32 0.0, %v5459
      %5461 = vmatprep.mubr.bf16.mxu0 0
      %5462 = vmatmul.mubr.bf16.gmra.mrb[0].mxu0 %v5290
      %v5463 = vpop.f32.mrb[0].mxu0
      %v5464 = vadd.f32 0.0, %v5463
      %v5465 = vpop.f32.mrb[0].mxu0
      %v5466 = vadd.f32 0.0, %v5465
      %v5467 = vpop.f32.mrb[0].mxu0
      %v5468 = vadd.f32 0.0, %v5467
      %v5469 = vpop.f32.mrb[0].mxu0
      %v5470 = vadd.f32 0.0, %v5469
      %5471 = vmatprep.mubr.bf16.mxu0 0
      %5472 = vmatmul.mubr.bf16.gmra.mrb[0].mxu0 %v5291
      %v5473 = vpop.f32.mrb[0].mxu0
      %v5474 = vadd.f32 0.0, %v5473
      %v5475 = vpop.f32.mrb[0].mxu0
      %v5476 = vadd.f32 0.0, %v5475
      %v5477 = vpop.f32.mrb[0].mxu0
      %v5478 = vadd.f32 0.0, %v5477
      %v5479 = vpop.f32.mrb[0].mxu0
      %v5480 = vadd.f32 0.0, %v5479
      %5481 = vmatprep.mubr.bf16.mxu0 0
      %5482 = vmatmul.mubr.bf16.gmra.mrb[0].mxu0 %v5292
      %v5483 = vpop.f32.mrb[0].mxu0
      %v5484 = vadd.f32 0.0, %v5483
      %v5485 = vpop.f32.mrb[0].mxu0
      %v5486 = vadd.f32 0.0, %v5485
      %v5487 = vpop.f32.mrb[0].mxu0
      %v5488 = vadd.f32 0.0, %v5487
      %v5489 = vpop.f32.mrb[0].mxu0
      %v5490 = vadd.f32 0.0, %v5489
      %5491 = vmatprep.mubr.bf16.mxu0 0
      %5492 = vmatmul.mubr.bf16.gmra.mrb[0].mxu0 %v5293
      %v5493 = vpop.f32.mrb[0].mxu0
      %v5494 = vadd.f32 0.0, %v5493
      %v5495 = vpop.f32.mrb[0].mxu0
      %v5496 = vadd.f32 0.0, %v5495
      %v5497 = vpop.f32.mrb[0].mxu0
      %v5498 = vadd.f32 0.0, %v5497
      %v5499 = vpop.f32.mrb[0].mxu0
      %v5500 = vadd.f32 0.0, %v5499
      %5501 = vmatprep.mubr.bf16.mxu0 0
      %5502 = vmatmul.mubr.bf16.gmra.mrb[0].mxu0 %v5294
      %v5503 = vpop.f32.mrb[0].mxu0
      %v5504 = vadd.f32 0.0, %v5503
      %v5505 = vpop.f32.mrb[0].mxu0
      %v5506 = vadd.f32 0.0, %v5505
      %v5507 = vpop.f32.mrb[0].mxu0
      %v5508 = vadd.f32 0.0, %v5507
      %v5509 = vpop.f32.mrb[0].mxu0
      %v5510 = vadd.f32 0.0, %v5509
      %5511 = vmatprep.mubr.bf16.mxu0 0
      %5512 = vmatmul.mubr.bf16.gmra.mrb[0].mxu0 %v5295
      %v5513 = vpop.f32.mrb[0].mxu0
      %v5514 = vadd.f32 0.0, %v5513
      %v5515 = vpop.f32.mrb[0].mxu0
      %v5516 = vadd.f32 0.0, %v5515
      %v5517 = vpop.f32.mrb[0].mxu0
      %v5518 = vadd.f32 0.0, %v5517
      %v5519 = vpop.f32.mrb[0].mxu0
      %v5520 = vadd.f32 0.0, %v5519
      %5521 = vmatprep.mubr.bf16.mxu0 0
      %5522 = vmatmul.mubr.bf16.gmra.mrb[0].mxu0 %v5296
      %v5523 = vpop.f32.mrb[0].mxu0
      %v5524 = vadd.f32 0.0, %v5523
      %v5525 = vpop.f32.mrb[0].mxu0
      %v5526 = vadd.f32 0.0, %v5525
      %v5527 = vpop.f32.mrb[0].mxu0
      %v5528 = vadd.f32 0.0, %v5527
      %v5529 = vpop.f32.mrb[0].mxu0
      %v5530 = vadd.f32 0.0, %v5529
      %5531 = vmatprep.mubr.bf16.mxu0 0
      %5532 = vmatmul.mubr.bf16.gmra.mrb[0].mxu0 %v5297
      %v5533 = vpop.f32.mrb[0].mxu0
      %v5534 = vadd.f32 0.0, %v5533
      %v5535 = vpop.f32.mrb[0].mxu0
      %v5536 = vadd.f32 0.0, %v5535
      %v5537 = vpop.f32.mrb[0].mxu0
      %v5538 = vadd.f32 0.0, %v5537
      %v5539 = vpop.f32.mrb[0].mxu0
      %v5540 = vadd.f32 0.0, %v5539
      %5541 = vmatprep.mubr.bf16.mxu0 0
      %5542 = vmatmul.mubr.bf16.gmra.mrb[0].mxu0 %v5298
      %v5543 = vpop.f32.mrb[0].mxu0
      %v5544 = vadd.f32 0.0, %v5543
      %v5545 = vpop.f32.mrb[0].mxu0
      %v5546 = vadd.f32 0.0, %v5545
      %v5547 = vpop.f32.mrb[0].mxu0
      %v5548 = vadd.f32 0.0, %v5547
      %v5549 = vpop.f32.mrb[0].mxu0
      %v5550 = vadd.f32 0.0, %v5549
      %5551 = vmatprep.mubr.bf16.mxu0 0
      %5552 = vmatmul.mubr.bf16.gmra.mrb[0].mxu0 %v5299
      %v5553 = vpop.f32.mrb[0].mxu0
      %v5554 = vadd.f32 0.0, %v5553
      %v5555 = vpop.f32.mrb[0].mxu0
      %v5556 = vadd.f32 0.0, %v5555
      %v5557 = vpop.f32.mrb[0].mxu0
      %v5558 = vadd.f32 0.0, %v5557
      %v5559 = vpop.f32.mrb[0].mxu0
      %v5560 = vadd.f32 0.0, %v5559
      %5561 = vmatprep.mubr.bf16.mxu0 0
      %5562 = vmatmul.mubr.bf16.gmra.mrb[0].mxu0 %v5300
      %v5563 = vpop.f32.mrb[0].mxu0
      %v5564 = vadd.f32 0.0, %v5563
      %v5565 = vpop.f32.mrb[0].mxu0
      %v5566 = vadd.f32 0.0, %v5565
      %v5567 = vpop.f32.mrb[0].mxu0
      %v5568 = vadd.f32 0.0, %v5567
      %v5569 = vpop.f32.mrb[0].mxu0
      %v5570 = vadd.f32 0.0, %v5569
      %5571 = vmatprep.mubr.bf16.mxu0 0
      %5572 = vmatmul.mubr.bf16.gmra.mrb[0].mxu0 %v5301
      %v5573 = vpop.f32.mrb[0].mxu0
      %v5574 = vadd.f32 0.0, %v5573
      %v5575 = vpop.f32.mrb[0].mxu0
      %v5576 = vadd.f32 0.0, %v5575
      %v5577 = vpop.f32.mrb[0].mxu0
      %v5578 = vadd.f32 0.0, %v5577
      %v5579 = vpop.f32.mrb[0].mxu0
      %v5580 = vadd.f32 0.0, %v5579
      %5581 = vmatprep.mubr.bf16.mxu0 0
      %5582 = vmatmul.mubr.bf16.gmra.mrb[0].mxu0 %v5302
      %v5583 = vpop.f32.mrb[0].mxu0
      %v5584 = vadd.f32 0.0, %v5583
      %v5585 = vpop.f32.mrb[0].mxu0
      %v5586 = vadd.f32 0.0, %v5585
      %v5587 = vpop.f32.mrb[0].mxu0
      %v5588 = vadd.f32 0.0, %v5587
      %v5589 = vpop.f32.mrb[0].mxu0
      %v5590 = vadd.f32 0.0, %v5589
      %5591 = vdwg.mxu0
      %v5592 = vadd.f32 %v5046, %v5434
      %v5593 = vadd.f32 %v5047, %v5436
      %v5594 = vadd.f32 %v5048, %v5438
      %v5595 = vadd.f32 %v5049, %v5440
      %v5596 = vadd.f32 %v5050, %v5444
      %v5597 = vadd.f32 %v5051, %v5446
      %v5598 = vadd.f32 %v5052, %v5448
      %v5599 = vadd.f32 %v5053, %v5450
      %v5600 = vadd.f32 %v5054, %v5454
      %v5601 = vadd.f32 %v5055, %v5456
      %v5602 = vadd.f32 %v5056, %v5458
      %v5603 = vadd.f32 %v5057, %v5460
      %v5604 = vadd.f32 %v5058, %v5464
      %v5605 = vadd.f32 %v5059, %v5466
      %v5606 = vadd.f32 %v5060, %v5468
      %v5607 = vadd.f32 %v5061, %v5470
      %v5608 = vadd.f32 %v5062, %v5474
      %v5609 = vadd.f32 %v5063, %v5476
      %v5610 = vadd.f32 %v5064, %v5478
      %v5611 = vadd.f32 %v5065, %v5480
      %v5612 = vadd.f32 %v5066, %v5484
      %v5613 = vadd.f32 %v5067, %v5486
      %v5614 = vadd.f32 %v5068, %v5488
      %v5615 = vadd.f32 %v5069, %v5490
      %v5616 = vadd.f32 %v5070, %v5494
      %v5617 = vadd.f32 %v5071, %v5496
      %v5618 = vadd.f32 %v5072, %v5498
      %v5619 = vadd.f32 %v5073, %v5500
      %v5620 = vadd.f32 %v5074, %v5504
      %v5621 = vadd.f32 %v5075, %v5506
      %v5622 = vadd.f32 %v5076, %v5508
      %v5623 = vadd.f32 %v5077, %v5510
      %v5624 = vadd.f32 %v5078, %v5514
      %v5625 = vadd.f32 %v5079, %v5516
      %v5626 = vadd.f32 %v5080, %v5518
      %v5627 = vadd.f32 %v5081, %v5520
      %v5628 = vadd.f32 %v5082, %v5524
      %v5629 = vadd.f32 %v5083, %v5526
      %v5630 = vadd.f32 %v5084, %v5528
      %v5631 = vadd.f32 %v5085, %v5530
      %v5632 = vadd.f32 %v5086, %v5534
      %v5633 = vadd.f32 %v5087, %v5536
      %v5634 = vadd.f32 %v5088, %v5538
      %v5635 = vadd.f32 %v5089, %v5540
      %v5636 = vadd.f32 %v5090, %v5544
      %v5637 = vadd.f32 %v5091, %v5546
      %v5638 = vadd.f32 %v5092, %v5548
      %v5639 = vadd.f32 %v5093, %v5550
      %v5640 = vadd.f32 %v5094, %v5554
      %v5641 = vadd.f32 %v5095, %v5556
      %v5642 = vadd.f32 %v5096, %v5558
      %v5643 = vadd.f32 %v5097, %v5560
      %v5644 = vadd.f32 %v5098, %v5564
      %v5645 = vadd.f32 %v5099, %v5566
      %v5646 = vadd.f32 %v5100, %v5568
      %v5647 = vadd.f32 %v5101, %v5570
      %v5648 = vadd.f32 %v5102, %v5574
      %v5649 = vadd.f32 %v5103, %v5576
      %v5650 = vadd.f32 %v5104, %v5578
      %v5651 = vadd.f32 %v5105, %v5580
      %v5652 = vadd.f32 %v5106, %v5584
      %v5653 = vadd.f32 %v5107, %v5586
      %v5654 = vadd.f32 %v5108, %v5588
      %v5655 = vadd.f32 %v5109, %v5590
      %5656 = vst [vmem:[%s227] sm:$0xff] %v5592
      %5657 = vst [vmem:[%s227 + $0x8] sm:$0xff] %v5593
      %5658 = vst [vmem:[%s227 + $0x10] sm:$0xff] %v5594
      %5659 = vst [vmem:[%s227 + $0x18] sm:$0xff] %v5595
      %5660 = vst [vmem:[%s227 + $0x20] sm:$0xff] %v5596
      %5661 = vst [vmem:[%s227 + $0x28] sm:$0xff] %v5597
      %5662 = vst [vmem:[%s227 + $0x30] sm:$0xff] %v5598
      %5663 = vst [vmem:[%s227 + $0x38] sm:$0xff] %v5599
      %5664 = vst [vmem:[%s227 + $0x40] sm:$0xff] %v5600
      %5665 = vst [vmem:[%s227 + $0x48] sm:$0xff] %v5601
      %5666 = vst [vmem:[%s227 + $0x50] sm:$0xff] %v5602
      %5667 = vst [vmem:[%s227 + $0x58] sm:$0xff] %v5603
      %5668 = vst [vmem:[%s227 + $0x60] sm:$0xff] %v5604
      %5669 = vst [vmem:[%s227 + $0x68] sm:$0xff] %v5605
      %5670 = vst [vmem:[%s227 + $0x70] sm:$0xff] %v5606
      %5671 = vst [vmem:[%s227 + $0x78] sm:$0xff] %v5607
      %5672 = vst [vmem:[%s227 + $0x80] sm:$0xff] %v5608
      %5673 = vst [vmem:[%s227 + $0x88] sm:$0xff] %v5609
      %5674 = vst [vmem:[%s227 + $0x90] sm:$0xff] %v5610
      %5675 = vst [vmem:[%s227 + $0x98] sm:$0xff] %v5611
      %5676 = vst [vmem:[%s227 + $0xa0] sm:$0xff] %v5612
      %5677 = vst [vmem:[%s227 + $0xa8] sm:$0xff] %v5613
      %5678 = vst [vmem:[%s227 + $0xb0] sm:$0xff] %v5614
      %5679 = vst [vmem:[%s227 + $0xb8] sm:$0xff] %v5615
      %5680 = vst [vmem:[%s227 + $0xc0] sm:$0xff] %v5616
      %5681 = vst [vmem:[%s227 + $0xc8] sm:$0xff] %v5617
      %5682 = vst [vmem:[%s227 + $0xd0] sm:$0xff] %v5618
      %5683 = vst [vmem:[%s227 + $0xd8] sm:$0xff] %v5619
      %5684 = vst [vmem:[%s227 + $0xe0] sm:$0xff] %v5620
      %5685 = vst [vmem:[%s227 + $0xe8] sm:$0xff] %v5621
      %5686 = vst [vmem:[%s227 + $0xf0] sm:$0xff] %v5622
      %5687 = vst [vmem:[%s227 + $0xf8] sm:$0xff] %v5623
      %5688 = vst [vmem:[%s227 + $0x100] sm:$0xff] %v5624
      %5689 = vst [vmem:[%s227 + $0x108] sm:$0xff] %v5625
      %5690 = vst [vmem:[%s227 + $0x110] sm:$0xff] %v5626
      %5691 = vst [vmem:[%s227 + $0x118] sm:$0xff] %v5627
      %5692 = vst [vmem:[%s227 + $0x120] sm:$0xff] %v5628
      %5693 = vst [vmem:[%s227 + $0x128] sm:$0xff] %v5629
      %5694 = vst [vmem:[%s227 + $0x130] sm:$0xff] %v5630
      %5695 = vst [vmem:[%s227 + $0x138] sm:$0xff] %v5631
      %5696 = vst [vmem:[%s227 + $0x140] sm:$0xff] %v5632
      %5697 = vst [vmem:[%s227 + $0x148] sm:$0xff] %v5633
      %5698 = vst [vmem:[%s227 + $0x150] sm:$0xff] %v5634
      %5699 = vst [vmem:[%s227 + $0x158] sm:$0xff] %v5635
      %5700 = vst [vmem:[%s227 + $0x160] sm:$0xff] %v5636
      %5701 = vst [vmem:[%s227 + $0x168] sm:$0xff] %v5637
      %5702 = vst [vmem:[%s227 + $0x170] sm:$0xff] %v5638
      %5703 = vst [vmem:[%s227 + $0x178] sm:$0xff] %v5639
      %5704 = vst [vmem:[%s227 + $0x180] sm:$0xff] %v5640
      %5705 = vst [vmem:[%s227 + $0x188] sm:$0xff] %v5641
      %5706 = vst [vmem:[%s227 + $0x190] sm:$0xff] %v5642
      %5707 = vst [vmem:[%s227 + $0x198] sm:$0xff] %v5643
      %5708 = vst [vmem:[%s227 + $0x1a0] sm:$0xff] %v5644
      %5709 = vst [vmem:[%s227 + $0x1a8] sm:$0xff] %v5645
      %5710 = vst [vmem:[%s227 + $0x1b0] sm:$0xff] %v5646
      %5711 = vst [vmem:[%s227 + $0x1b8] sm:$0xff] %v5647
      %5712 = vst [vmem:[%s227 + $0x1c0] sm:$0xff] %v5648
      %5713 = vst [vmem:[%s227 + $0x1c8] sm:$0xff] %v5649
      %5714 = vst [vmem:[%s227 + $0x1d0] sm:$0xff] %v5650
      %5715 = vst [vmem:[%s227 + $0x1d8] sm:$0xff] %v5651
      %5716 = vst [vmem:[%s227 + $0x1e0] sm:$0xff] %v5652
      %5717 = vst [vmem:[%s227 + $0x1e8] sm:$0xff] %v5653
      %5718 = vst [vmem:[%s227 + $0x1f0] sm:$0xff] %v5654
      %5719 = vst [vmem:[%s227 + $0x1f8] sm:$0xff] %v5655
      %v5720 = vadd.f32 %v5592, %v5594
      %v5721 = vadd.f32 %v5720, %v5596
      %v5722 = vadd.f32 %v5721, %v5598
      %v5723 = vadd.f32 %v5722, %v5600
      %v5724 = vadd.f32 %v5723, %v5602
      %v5725 = vadd.f32 %v5724, %v5604
      %v5726 = vadd.f32 %v5725, %v5606
      %v5727 = vadd.f32 %v5726, %v5608
      %v5728 = vadd.f32 %v5727, %v5610
      %v5729 = vadd.f32 %v5728, %v5612
      %v5730 = vadd.f32 %v5729, %v5614
      %v5731 = vadd.f32 %v5730, %v5616
      %v5732 = vadd.f32 %v5731, %v5618
      %v5733 = vadd.f32 %v5732, %v5620
      %v5734 = vadd.f32 %v5733, %v5622
      %v5735 = vadd.f32 %v5734, %v5624
      %v5736 = vadd.f32 %v5735, %v5626
      %v5737 = vadd.f32 %v5736, %v5628
      %v5738 = vadd.f32 %v5737, %v5630
      %v5739 = vadd.f32 %v5738, %v5632
      %v5740 = vadd.f32 %v5739, %v5634
      %v5741 = vadd.f32 %v5740, %v5636
      %v5742 = vadd.f32 %v5741, %v5638
      %v5743 = vadd.f32 %v5742, %v5640
      %v5744 = vadd.f32 %v5743, %v5642
      %v5745 = vadd.f32 %v5744, %v5644
      %v5746 = vadd.f32 %v5745, %v5646
      %v5747 = vadd.f32 %v5746, %v5648
      %v5748 = vadd.f32 %v5747, %v5650
      %v5749 = vadd.f32 %v5748, %v5652
      %v5750 = vadd.f32 %v5749, %v5654
      %v5751 = vrot.slane %v5750, 4
      %v5752 = vadd.f32 %v5750, %v5751
      %v5753 = vrot.slane %v5752, 2
      %v5754 = vadd.f32 %v5752, %v5753
      %v5755 = vrot.slane %v5754, 1
      %v5756 = vadd.f32 %v5754, %v5755
      %v5757 = vadd.f32 %v5593, %v5595
      %v5758 = vadd.f32 %v5757, %v5597
      %v5759 = vadd.f32 %v5758, %v5599
      %v5760 = vadd.f32 %v5759, %v5601
      %v5761 = vadd.f32 %v5760, %v5603
      %v5762 = vadd.f32 %v5761, %v5605
      %v5763 = vadd.f32 %v5762, %v5607
      %v5764 = vadd.f32 %v5763, %v5609
      %v5765 = vadd.f32 %v5764, %v5611
      %v5766 = vadd.f32 %v5765, %v5613
      %v5767 = vadd.f32 %v5766, %v5615
      %v5768 = vadd.f32 %v5767, %v5617
      %v5769 = vadd.f32 %v5768, %v5619
      %v5770 = vadd.f32 %v5769, %v5621
      %v5771 = vadd.f32 %v5770, %v5623
      %v5772 = vadd.f32 %v5771, %v5625
      %v5773 = vadd.f32 %v5772, %v5627
      %v5774 = vadd.f32 %v5773, %v5629
      %v5775 = vadd.f32 %v5774, %v5631
      %v5776 = vadd.f32 %v5775, %v5633
      %v5777 = vadd.f32 %v5776, %v5635
      %v5778 = vadd.f32 %v5777, %v5637
      %v5779 = vadd.f32 %v5778, %v5639
      %v5780 = vadd.f32 %v5779, %v5641
      %v5781 = vadd.f32 %v5780, %v5643
      %v5782 = vadd.f32 %v5781, %v5645
      %v5783 = vadd.f32 %v5782, %v5647
      %v5784 = vadd.f32 %v5783, %v5649
      %v5785 = vadd.f32 %v5784, %v5651
      %v5786 = vadd.f32 %v5785, %v5653
      %v5787 = vadd.f32 %v5786, %v5655
      %v5788 = vrot.slane %v5787, 4
      %v5789 = vadd.f32 %v5787, %v5788
      %v5790 = vrot.slane %v5789, 2
      %v5791 = vadd.f32 %v5789, %v5790
      %v5792 = vrot.slane %v5791, 1
      %v5793 = vadd.f32 %v5791, %v5792
      %v5794 = vmul.f32 %v5592, %v5592
      %v5795 = vmul.f32 %v5593, %v5593
      %v5796 = vmul.f32 %v5594, %v5594
      %v5797 = vmul.f32 %v5595, %v5595
      %v5798 = vmul.f32 %v5596, %v5596
      %v5799 = vmul.f32 %v5597, %v5597
      %v5800 = vmul.f32 %v5598, %v5598
      %v5801 = vmul.f32 %v5599, %v5599
      %v5802 = vmul.f32 %v5600, %v5600
      %v5803 = vmul.f32 %v5601, %v5601
      %v5804 = vmul.f32 %v5602, %v5602
      %v5805 = vmul.f32 %v5603, %v5603
      %v5806 = vmul.f32 %v5604, %v5604
      %v5807 = vmul.f32 %v5605, %v5605
      %v5808 = vmul.f32 %v5606, %v5606
      %v5809 = vmul.f32 %v5607, %v5607
      %v5810 = vmul.f32 %v5608, %v5608
      %v5811 = vmul.f32 %v5609, %v5609
      %v5812 = vmul.f32 %v5610, %v5610
      %v5813 = vmul.f32 %v5611, %v5611
      %v5814 = vmul.f32 %v5612, %v5612
      %v5815 = vmul.f32 %v5613, %v5613
      %v5816 = vmul.f32 %v5614, %v5614
      %v5817 = vmul.f32 %v5615, %v5615
      %v5818 = vmul.f32 %v5616, %v5616
      %v5819 = vmul.f32 %v5617, %v5617
      %v5820 = vmul.f32 %v5618, %v5618
      %v5821 = vmul.f32 %v5619, %v5619
      %v5822 = vmul.f32 %v5620, %v5620
      %v5823 = vmul.f32 %v5621, %v5621
      %v5824 = vmul.f32 %v5622, %v5622
      %v5825 = vmul.f32 %v5623, %v5623
      %v5826 = vmul.f32 %v5624, %v5624
      %v5827 = vmul.f32 %v5625, %v5625
      %v5828 = vmul.f32 %v5626, %v5626
      %v5829 = vmul.f32 %v5627, %v5627
      %v5830 = vmul.f32 %v5628, %v5628
      %v5831 = vmul.f32 %v5629, %v5629
      %v5832 = vmul.f32 %v5630, %v5630
      %v5833 = vmul.f32 %v5631, %v5631
      %v5834 = vmul.f32 %v5632, %v5632
      %v5835 = vmul.f32 %v5633, %v5633
      %v5836 = vmul.f32 %v5634, %v5634
      %v5837 = vmul.f32 %v5635, %v5635
      %v5838 = vmul.f32 %v5636, %v5636
      %v5839 = vmul.f32 %v5637, %v5637
      %v5840 = vmul.f32 %v5638, %v5638
      %v5841 = vmul.f32 %v5639, %v5639
      %v5842 = vmul.f32 %v5640, %v5640
      %v5843 = vmul.f32 %v5641, %v5641
      %v5844 = vmul.f32 %v5642, %v5642
      %v5845 = vmul.f32 %v5643, %v5643
      %v5846 = vmul.f32 %v5644, %v5644
      %v5847 = vmul.f32 %v5645, %v5645
      %v5848 = vmul.f32 %v5646, %v5646
      %v5849 = vmul.f32 %v5647, %v5647
      %v5850 = vmul.f32 %v5648, %v5648
      %v5851 = vmul.f32 %v5649, %v5649
      %v5852 = vmul.f32 %v5650, %v5650
      %v5853 = vmul.f32 %v5651, %v5651
      %v5854 = vmul.f32 %v5652, %v5652
      %v5855 = vmul.f32 %v5653, %v5653
      %v5856 = vmul.f32 %v5654, %v5654
      %v5857 = vmul.f32 %v5655, %v5655
      %v5858 = vadd.f32 %v5794, %v5796
      %v5859 = vadd.f32 %v5858, %v5798
      %v5860 = vadd.f32 %v5859, %v5800
      %v5861 = vadd.f32 %v5860, %v5802
      %v5862 = vadd.f32 %v5861, %v5804
      %v5863 = vadd.f32 %v5862, %v5806
      %v5864 = vadd.f32 %v5863, %v5808
      %v5865 = vadd.f32 %v5864, %v5810
      %v5866 = vadd.f32 %v5865, %v5812
      %v5867 = vadd.f32 %v5866, %v5814
      %v5868 = vadd.f32 %v5867, %v5816
      %v5869 = vadd.f32 %v5868, %v5818
      %v5870 = vadd.f32 %v5869, %v5820
      %v5871 = vadd.f32 %v5870, %v5822
      %v5872 = vadd.f32 %v5871, %v5824
      %v5873 = vadd.f32 %v5872, %v5826
      %v5874 = vadd.f32 %v5873, %v5828
      %v5875 = vadd.f32 %v5874, %v5830
      %v5876 = vadd.f32 %v5875, %v5832
      %v5877 = vadd.f32 %v5876, %v5834
      %v5878 = vadd.f32 %v5877, %v5836
      %v5879 = vadd.f32 %v5878, %v5838
      %v5880 = vadd.f32 %v5879, %v5840
      %v5881 = vadd.f32 %v5880, %v5842
      %v5882 = vadd.f32 %v5881, %v5844
      %v5883 = vadd.f32 %v5882, %v5846
      %v5884 = vadd.f32 %v5883, %v5848
      %v5885 = vadd.f32 %v5884, %v5850
      %v5886 = vadd.f32 %v5885, %v5852
      %v5887 = vadd.f32 %v5886, %v5854
      %v5888 = vadd.f32 %v5887, %v5856
      %v5889 = vrot.slane %v5888, 4
      %v5890 = vadd.f32 %v5888, %v5889
      %v5891 = vrot.slane %v5890, 2
      %v5892 = vadd.f32 %v5890, %v5891
      %v5893 = vrot.slane %v5892, 1
      %v5894 = vadd.f32 %v5892, %v5893
      %v5895 = vadd.f32 %v5795, %v5797
      %v5896 = vadd.f32 %v5895, %v5799
      %v5897 = vadd.f32 %v5896, %v5801
      %v5898 = vadd.f32 %v5897, %v5803
      %v5899 = vadd.f32 %v5898, %v5805
      %v5900 = vadd.f32 %v5899, %v5807
      %v5901 = vadd.f32 %v5900, %v5809
      %v5902 = vadd.f32 %v5901, %v5811
      %v5903 = vadd.f32 %v5902, %v5813
      %v5904 = vadd.f32 %v5903, %v5815
      %v5905 = vadd.f32 %v5904, %v5817
      %v5906 = vadd.f32 %v5905, %v5819
      %v5907 = vadd.f32 %v5906, %v5821
      %v5908 = vadd.f32 %v5907, %v5823
      %v5909 = vadd.f32 %v5908, %v5825
      %v5910 = vadd.f32 %v5909, %v5827
      %v5911 = vadd.f32 %v5910, %v5829
      %v5912 = vadd.f32 %v5911, %v5831
      %v5913 = vadd.f32 %v5912, %v5833
      %v5914 = vadd.f32 %v5913, %v5835
      %v5915 = vadd.f32 %v5914, %v5837
      %v5916 = vadd.f32 %v5915, %v5839
      %v5917 = vadd.f32 %v5916, %v5841
      %v5918 = vadd.f32 %v5917, %v5843
      %v5919 = vadd.f32 %v5918, %v5845
      %v5920 = vadd.f32 %v5919, %v5847
      %v5921 = vadd.f32 %v5920, %v5849
      %v5922 = vadd.f32 %v5921, %v5851
      %v5923 = vadd.f32 %v5922, %v5853
      %v5924 = vadd.f32 %v5923, %v5855
      %v5925 = vadd.f32 %v5924, %v5857
      %v5926 = vrot.slane %v5925, 4
      %v5927 = vadd.f32 %v5925, %v5926
      %v5928 = vrot.slane %v5927, 2
      %v5929 = vadd.f32 %v5927, %v5928
      %v5930 = vrot.slane %v5929, 1
      %v5931 = vadd.f32 %v5929, %v5930
      %vm5932 = vcmask 1040384
      %v5933 = vsel %vm5932, %v5756, %v5894
      %v5934 = vsel %vm5932, %v5793, %v5931
      %v5937 = vcombine.low %v5933, %v5934
      %v5939 = vunpack.c.l.s4 1983009808
      %v5940 = vunpack.c.0.s8 %v5939
      %v5941 = vlaneseq
      %v5942 = vshrl.u32 %v5941, 7
      %v5943 = vsub.s32 %v5940, %v5942
      %v5944 = vrot.slane %v5937, %v5943
      %5946 = vst [vmem:[%s237] sm:$0xf] %v5944
      %s5947 = smul.u32 16, %s20
      %p5948 = scmp.lt.s32.totalorder %s19, 1
      %s5949 = scalar_select %p5948, %s19, 1
      %p5950 = scmp.lt.s32.totalorder %s5947, 15
      %s5951 = scalar_select %p5950, %s5947, 15
      %s5952 = smul.addr %s5951, 4
      %s5953 = smul.addr %s5949, 64
      %s5954 = sadd.s32 %s5952, %s5953
      %s5955 = smul.addr %s5954, 8
      %s5956 = scalar_lea.vmem %s2, %s5955
      %p5957 = scmp.lt.s32.totalorder %s19, 1
      %s5958 = scalar_select %p5957, %s19, 1
      %p5959 = scmp.lt.s32.totalorder %s20, 0
      %s5960 = scalar_select %p5959, %s20, 0
      %s5961 = smul.addr %s5960, 2
      %s5962 = smul.addr %s5958, 2
      %s5963 = sadd.s32 %s5961, %s5962
      %s5964 = smul.addr %s5963, 2
      %s5965 = scalar_lea.vmem %s3, %s5964
      // Predicated region
      $region29: #{up_transition_forward.8} parent=27 // pred_check
        %p5966 = pneg %p96
      $region30: #{up_transition_forward.8} parent=27 // pred_check_branch
        %5968 = sbr.rel (%p5966) target = $region32
      $region31: #{up_transition_forward.8} parent=27 // pred_region
        %s5969 = smul.u32 16, %s20
      $region32: #{up_transition_forward.8} parent=27 // pred_fallthru
        _
      // Predicated region
      $region33: #{up_transition_forward.8} parent=27 // pred_check
        %p5970 = pneg %p124
      $region34: #{up_transition_forward.8} parent=27 // pred_check_branch
        %5972 = sbr.rel (%p5970) target = $region36
      $region35: #{up_transition_forward.8} parent=27 // pred_region
        _
      $region36: #{up_transition_forward.8} parent=27 // pred_fallthru
        _
    $region28: #{up_transition_forward.8} parent=5 // pred_fallthru
      _
    %p5973 = scmp.le.s32.totalorder 2, %s10
    // Predicated region
    $region37: #{up_transition_forward.8} parent=5 // pred_check
      %p5974 = pneg %p5973
    $region38: #{up_transition_forward.8} parent=5 // pred_check_branch
      %5976 = sbr.rel (%p5974) target = $region40
    $region39: #{up_transition_forward.8} parent=5 // pred_region
      %s5977 = ssub.s32 %s10, 2
      // Predicated region
      $region41: #{up_transition_forward.8} parent=39 // pred_check
        %p5978 = pneg %p102
      $region42: #{up_transition_forward.8} parent=39 // pred_check_branch
        %5980 = sbr.rel (%p5978) target = $region44
      $region43: #{up_transition_forward.8} parent=39 // pred_region
        %s5981 = smul.u32 16, %s22
        %p5982 = scmp.lt.s32.totalorder %s21, 1
        %s5983 = scalar_select %p5982, %s21, 1
        %p5984 = scmp.lt.s32.totalorder %s5981, 15
        %s5985 = scalar_select %p5984, %s5981, 15
        %s5986 = smul.addr %s5985, 4
        %s5987 = smul.addr %s5983, 64
        %s5988 = sadd.s32 %s5986, %s5987
        %s5989 = smul.addr %s5988, 8
        %s5990 = scalar_lea.vmem %s2, %s5989
      $region44: #{up_transition_forward.8} parent=39 // pred_fallthru
        _
      // Predicated region
      $region45: #{up_transition_forward.8} parent=39 // pred_check
        %p5991 = pneg %p130
      $region46: #{up_transition_forward.8} parent=39 // pred_check_branch
        %5993 = sbr.rel (%p5991) target = $region48
      $region47: #{up_transition_forward.8} parent=39 // pred_region
        %p5994 = scmp.lt.s32.totalorder %s21, 1
        %s5995 = scalar_select %p5994, %s21, 1
        %p5996 = scmp.lt.s32.totalorder %s22, 0
        %s5997 = scalar_select %p5996, %s22, 0
        %s5998 = smul.addr %s5997, 2
        %s5999 = smul.addr %s5995, 2
        %s6000 = sadd.s32 %s5998, %s5999
        %s6001 = smul.addr %s6000, 2
        %s6002 = scalar_lea.vmem %s3, %s6001
      $region48: #{up_transition_forward.8} parent=39 // pred_fallthru
        _
    $region40: #{up_transition_forward.8} parent=5 // pred_fallthru
      _
  $region6: #{up_transition_forward.8} parent=0 // loop_footer
    %s14 = sadd.s32 1, %s10
  $region7: #{up_transition_forward.8} parent=0 // loop_footer_branch
    %9 = sbr.rel target = $region3
  $region8: #{up_transition_forward.8} parent=0 // loop_exit
    _

</llo_original>
